<compile_context>
chip_gen: v7x
topology: tpu7x:2x2x1
jax: 0.10.0
libtpu: 0.0.40
codegen_flags: <defaults>
</compile_context>

<pallas_src>
import functools
import math

import jax
import jax.numpy as jnp
from jax.experimental import pallas as pl
from jax.experimental.pallas import tpu as pltpu


# ----------------------------------------------------------------------------
# Helpers used inside the kernel (f32 math)
# ----------------------------------------------------------------------------
def _layernorm(x, w, b, eps=1e-5):
    mu = jnp.mean(x, axis=-1, keepdims=True)
    var = jnp.mean((x - mu) ** 2, axis=-1, keepdims=True)
    return (x - mu) * jax.lax.rsqrt(var + eps) * w + b


def _quick_gelu(x):
    # CLIP uses QuickGELU: x * sigmoid(1.702 * x); written with exp + divide
    # to keep the lowering dead simple.
    return x * (1.0 / (1.0 + jnp.exp(-1.702 * x)))


# ----------------------------------------------------------------------------
# Single fused kernel:
#   l == 0      : Normalize+conv1 patch embed + cls token + pos emb + ln_pre
#   every l     : one residual attention block (pre-LN MHA + pre-LN MLP)
#   l == L - 1  : ln_post(class token) @ visual projection -> features
# Token tensor stays resident in a VMEM scratch across all layers.
# ----------------------------------------------------------------------------
def clip_visual_kernel(patch_ref, key_bias_ref,
                       conv_w, conv_b, cls_ref, pos_ref,
                       lnpre_w, lnpre_b,
                       ln1w, ln1b, wqkv, bqkv, wo, bo,
                       ln2w, ln2b, w1, b1, w2, b2,
                       lnpo_w, lnpo_b, proj_ref,
                       feat_ref,
                       tok_acc,
                       *, num_heads, n_patches):
    l = pl.program_id(1)
    n_layers = pl.num_programs(1)

    Bb, T, W = tok_acc.shape
    M = Bb * T
    H = num_heads
    dh = W // H
    scale = 1.0 / math.sqrt(dh)

    # ---- layer 0: fused patch embedding + ln_pre into the resident scratch ----
    @pl.when(l == 0)
    def _():
        p = patch_ref[...]                                   # (Bb, T, CPP) f32
        cpp = p.shape[-1]
        # Normalize() is already folded into conv_w / conv_b at init.
        pe = jnp.dot(p.reshape(M, cpp).astype(jnp.bfloat16), conv_w[...],
                     preferred_element_type=jnp.float32).reshape(Bb, T, W)
        ridx = jax.lax.broadcasted_iota(jnp.int32, (1, T, 1), 1)
        patch_mask = jnp.logical_and(ridx >= 1, ridx <= n_patches).astype(jnp.float32)
        cls_mask = (ridx == 0).astype(jnp.float32)
        emb = (pe
               + patch_mask * conv_b[...]        # folded Normalize bias, patches only
               + cls_mask * cls_ref[...]         # class embedding, row 0 only
               + pos_ref[...][None])             # pos emb (zero-padded past seq)
        tok_acc[...] = _layernorm(emb, lnpre_w[...], lnpre_b[...])

    x = tok_acc[...]                                          # (Bb, T, W) f32

    # ---------------- multi-head self-attention (pre-LN) ----------------
    h = _layernorm(x, ln1w[...], ln1b[...])
    qkv = (jnp.dot(h.reshape(M, W).astype(jnp.bfloat16), wqkv[...],
                   preferred_element_type=jnp.float32)
           + bqkv[...]).reshape(Bb, T, 3 * W)

    kb = key_bias_ref[...]                                    # (1, T): 0 / -1e30
    wo_full = wo[...]                                         # (W, W) bf16
    attn_flat = jnp.zeros((M, W), jnp.float32)
    # Short static unroll over heads; per-head slices are 128-lane aligned here
    # (dh == 128).  Batch dim handled by a single-batch-dim dot_general.
    # TODO(synk): at real CLIP dh=64 the head slices are not lane-aligned; lay
    # the qkv weight out head-major and accept one relayout, or widen dh.
    for hd in range(H):
        qh = qkv[:, :, hd * dh:(hd + 1) * dh].astype(jnp.bfloat16)
        kh = qkv[:, :, W + hd * dh:W + (hd + 1) * dh].astype(jnp.bfloat16)
        vh = qkv[:, :, 2 * W + hd * dh:2 * W + (hd + 1) * dh].astype(jnp.bfloat16)
        # s: (Bb, T, T) == einsum('bqd,bkd->bqk'); f32 accumulate
        s = jax.lax.dot_general(qh, kh, (((2,), (2,)), ((0,), (0,))),
                                preferred_element_type=jnp.float32) * scale
        s = s + kb                                            # mask padded keys
        s = s - jnp.max(s, axis=-1, keepdims=True)
        p_ = jnp.exp(s)
        p_ = p_ * pl.reciprocal(jnp.sum(p_, axis=-1, keepdims=True), approx=True)
        # oh: (Bb, T, dh) == einsum('bqk,bkd->bqd')
        oh = jax.lax.dot_general(p_.astype(jnp.bfloat16), vh,
                                 (((2,), (1,)), ((0,), (0,))),
                                 preferred_element_type=jnp.float32)
        # concat_h(o_h) @ Wo == sum_h o_h @ Wo[h*dh:(h+1)*dh, :]
        attn_flat = attn_flat + jnp.dot(
            oh.reshape(M, dh).astype(jnp.bfloat16),
            wo_full[hd * dh:(hd + 1) * dh, :],
            preferred_element_type=jnp.float32)
    x = x + (attn_flat + bo[...]).reshape(Bb, T, W)

    # ---------------- MLP (pre-LN, QuickGELU) ----------------
    h2 = _layernorm(x, ln2w[...], ln2b[...]).reshape(M, W)
    u = jnp.dot(h2.astype(jnp.bfloat16), w1[...],
                preferred_element_type=jnp.float32) + b1[...]
    u = _quick_gelu(u)
    m = jnp.dot(u.astype(jnp.bfloat16), w2[...],
                preferred_element_type=jnp.float32) + b2[...]
    x = x + m.reshape(Bb, T, W)

    tok_acc[...] = x

    # ---- head: ln_post on the class token, then visual projection ----
    @pl.when(l == n_layers - 1)
    def _():
        cls = x[:, 0, :]                                      # (Bb, W)
        hc = _layernorm(cls, lnpo_w[...], lnpo_b[...])
        feat = jnp.dot(hc.astype(jnp.bfloat16), proj_ref[...],
                       preferred_element_type=jnp.float32)
        feat_ref[...] = feat.reshape(Bb, 1, -1)


# ----------------------------------------------------------------------------
# ClipModel (ViT visual encoder) in JAX/Pallas
# ----------------------------------------------------------------------------
class ClipModelPallas:
    MEAN = (0.48145466, 0.4578275, 0.40821073)
    STD = (0.26862954, 0.26130258, 0.27577711)

    def __init__(self, key, *, image_size=16, patch=8, width=256, heads=2,
                 layers=2, output_dim=128, channels=3, batch_block=8):
        assert width % heads == 0 and width % 128 == 0 and output_dim % 128 == 0
        assert (width // heads) % 128 == 0, "demo keeps per-head slices lane-aligned"
        self.image_size = image_size
        self.patch = patch
        self.grid = image_size // patch
        self.num_patches = self.grid * self.grid
        self.seq = self.num_patches + 1            # cls + patches
        self.seq_pad = ((self.seq + 7) // 8) * 8   # pad tokens to sublane multiple
        self.width = width
        self.heads = heads
        self.layers = layers
        self.output_dim = output_dim
        self.channels = channels
        self.batch_block = batch_block

        cpp = channels * patch * patch
        W, L = width, layers
        k = iter(jax.random.split(key, 16))

        def nrm(shape, scale=0.02):
            return (scale * jax.random.normal(next(k), shape)).astype(jnp.float32)

        # conv1 weight flattened to (C*P*P, width) in (c, py, px) order, with
        # the Normalize() transform folded in (pixels hit the kernel raw).
        conv1_w = nrm((cpp, W))
        mean = jnp.asarray(self.MEAN, jnp.float32)[:channels]
        std = jnp.asarray(self.STD, jnp.float32)[:channels]
        mean_flat = jnp.repeat(mean, patch * patch)            # (cpp,)
        invstd_flat = jnp.repeat(1.0 / std, patch * patch)     # (cpp,)
        self.conv1_w = (conv1_w * invstd_flat[:, None]).astype(jnp.bfloat16)
        self.conv1_b = (-(mean_flat * invstd_flat) @ conv1_w).reshape(1, W)

        self.class_emb = nrm((1, W))
        pos = nrm((self.seq, W))
        self.pos_emb_pad = jnp.pad(pos, ((0, self.seq_pad - self.seq), (0, 0)))
        self.ln_pre_w = jnp.ones((1, W), jnp.float32)
        self.ln_pre_b = jnp.zeros((1, W), jnp.float32)

        # Per-layer weights stacked on a leading (layers,) axis so the fused
        # pallas_call streams them via an index_map over the layer grid axis.
        # Matmul weights are stored bf16 (f32 accumulate in-kernel).
        self.ln1_w = jnp.ones((L, 1, W), jnp.float32)
        self.ln1_b = jnp.zeros((L, 1, W), jnp.float32)
        self.wqkv = nrm((L, W, 3 * W)).astype(jnp.bfloat16)    # (in, out) layout
        self.bqkv = nrm((L, 1, 3 * W))
        self.wo = nrm((L, W, W)).astype(jnp.bfloat16)
        self.bo = nrm((L, 1, W))
        self.ln2_w = jnp.ones((L, 1, W), jnp.float32)
        self.ln2_b = jnp.zeros((L, 1, W), jnp.float32)
        self.w1 = nrm((L, W, 4 * W)).astype(jnp.bfloat16)
        self.b1 = nrm((L, 1, 4 * W))
        self.w2 = nrm((L, 4 * W, W)).astype(jnp.bfloat16)
        self.b2 = nrm((L, 1, W))

        self.ln_post_w = jnp.ones((1, W), jnp.float32)
        self.ln_post_b = jnp.zeros((1, W), jnp.float32)
        self.proj = nrm((W, output_dim)).astype(jnp.bfloat16)

        # Key-padding bias, hoisted out of the kernel (0 on real keys, -1e30 on pad).
        self.key_bias = jnp.where(jnp.arange(self.seq_pad) < self.seq,
                                  0.0, -1e30).astype(jnp.float32).reshape(1, self.seq_pad)

        # self._classifier is None  ->  forward returns the CLIP image features.
        # TODO(synk): new_last_layer / add_probe (nn.Linear classifier head) not
        # instantiated here, matching the default forward path.
        # TODO(synk): at real CLIP widths (768/1024) add a K-tile grid axis over
        # the 4W x W MLP slabs so Buffered(2) pipelining fits v7x's 64 MiB VMEM.

    def forward(self, x):
        # x: (B, C, H, W) float32, NCHW as in PyTorch.
        B, C, Himg, Wimg = x.shape
        P, G, N = self.patch, self.grid, self.num_patches
        Wd, Tpad, OD, L = self.width, self.seq_pad, self.output_dim, self.layers
        CPP = C * P * P

        # Batch block: fill the MXU M axis (Bblk*Tpad rows) while keeping >= 2
        # blocks along the "parallel" batch axis when B allows (v7x: 2 TCs).
        bblk = math.gcd(B, self.batch_block)

        # ---- glue: NCHW -> padded patch rows (B, Tpad, C*P*P); row 0 (class
        # slot) and rows N+1.. (sequence pad) are zero and masked in-kernel ----
        patches = (x.reshape(B, C, G, P, G, P)
                     .transpose(0, 2, 4, 1, 3, 5)
                     .reshape(B, N, CPP))
        aug = jnp.pad(patches, ((0, 0), (1, Tpad - 1 - N), (0, 0)))

        per_layer = lambda *tail: pl.BlockSpec(
            (None,) + tail, lambda b, l: (l,) + (0,) * len(tail))
        shared = lambda *shape: pl.BlockSpec(
            shape, lambda b, l: (0,) * len(shape))

        feats = pl.pallas_call(
            functools.partial(clip_visual_kernel,
                              num_heads=self.heads, n_patches=N),
            out_shape=jax.ShapeDtypeStruct((B, 1, OD), jnp.float32),
            grid_spec=pltpu.PrefetchScalarGridSpec(
                num_scalar_prefetch=0,
                grid=(B // bblk, L),
                in_specs=[
                    pl.BlockSpec((bblk, Tpad, CPP), lambda b, l: (b, 0, 0)),  # patches
                    shared(1, Tpad),                                          # key bias
                    shared(CPP, Wd), shared(1, Wd),                           # conv1 (folded)
                    shared(1, Wd), shared(Tpad, Wd),                          # cls, pos
                    shared(1, Wd), shared(1, Wd),                             # ln_pre
                    per_layer(1, Wd), per_layer(1, Wd),                       # ln1
                    per_layer(Wd, 3 * Wd), per_layer(1, 3 * Wd),              # qkv
                    per_layer(Wd, Wd), per_layer(1, Wd),                      # out proj
                    per_layer(1, Wd), per_layer(1, Wd),                       # ln2
                    per_layer(Wd, 4 * Wd), per_layer(1, 4 * Wd),              # mlp fc1
                    per_layer(4 * Wd, Wd), per_layer(1, Wd),                  # mlp fc2
                    shared(1, Wd), shared(1, Wd),                             # ln_post
                    shared(Wd, OD),                                           # proj
                ],
                out_specs=pl.BlockSpec((bblk, 1, OD), lambda b, l: (b, 0, 0)),
                scratch_shapes=[pltpu.VMEM((bblk, Tpad, Wd), jnp.float32)],
            ),
            compiler_params=pltpu.CompilerParams(
                dimension_semantics=("parallel", "arbitrary"),
                vmem_limit_bytes=48 * 1024 * 1024),
        )(aug, self.key_bias,
          self.conv1_w, self.conv1_b, self.class_emb, self.pos_emb_pad,
          self.ln_pre_w, self.ln_pre_b,
          self.ln1_w, self.ln1_b, self.wqkv, self.bqkv, self.wo, self.bo,
          self.ln2_w, self.ln2_b, self.w1, self.b1, self.w2, self.b2,
          self.ln_post_w, self.ln_post_b, self.proj)

        return feats.reshape(B, OD)


if __name__ == "__main__":
    key = jax.random.PRNGKey(0)
    k_param, k_input = jax.random.split(key)

    model = ClipModelPallas(k_param, image_size=16, patch=8, width=256,
                            heads=2, layers=2, output_dim=128, channels=3,
                            batch_block=8)

    # Deterministic input image batch in [0, 1), NCHW.
    x = jax.random.uniform(k_input, (16, 3, 16, 16), dtype=jnp.float32)

    feats = model.forward(x)
    feats = jax.block_until_ready(feats)
    assert feats.shape == (16, 128) and feats.dtype == jnp.float32
    assert bool(jnp.all(jnp.isfinite(feats)))
    print("KERNEL_OK")
</pallas_src>

<mosaic_0001>
module attributes {stable_mosaic.version = 11 : i64} {
  func.func @clip_visual_kernel(%arg0: i32, %arg1: i32, %arg2: memref<8x8x192xf32, #tpu.memory_space<vmem>>, %arg3: memref<1x8xf32, #tpu.memory_space<vmem>>, %arg4: memref<192x256xbf16, #tpu.memory_space<vmem>>, %arg5: memref<1x256xf32, #tpu.memory_space<vmem>>, %arg6: memref<1x256xf32, #tpu.memory_space<vmem>>, %arg7: memref<8x256xf32, #tpu.memory_space<vmem>>, %arg8: memref<1x256xf32, #tpu.memory_space<vmem>>, %arg9: memref<1x256xf32, #tpu.memory_space<vmem>>, %arg10: memref<1x1x256xf32, #tpu.memory_space<vmem>>, %arg11: memref<1x1x256xf32, #tpu.memory_space<vmem>>, %arg12: memref<1x256x768xbf16, #tpu.memory_space<vmem>>, %arg13: memref<1x1x768xf32, #tpu.memory_space<vmem>>, %arg14: memref<1x256x256xbf16, #tpu.memory_space<vmem>>, %arg15: memref<1x1x256xf32, #tpu.memory_space<vmem>>, %arg16: memref<1x1x256xf32, #tpu.memory_space<vmem>>, %arg17: memref<1x1x256xf32, #tpu.memory_space<vmem>>, %arg18: memref<1x256x1024xbf16, #tpu.memory_space<vmem>>, %arg19: memref<1x1x1024xf32, #tpu.memory_space<vmem>>, %arg20: memref<1x1024x256xbf16, #tpu.memory_space<vmem>>, %arg21: memref<1x1x256xf32, #tpu.memory_space<vmem>>, %arg22: memref<1x256xf32, #tpu.memory_space<vmem>>, %arg23: memref<1x256xf32, #tpu.memory_space<vmem>>, %arg24: memref<256x128xbf16, #tpu.memory_space<vmem>>, %arg25: memref<8x1x128xf32, #tpu.memory_space<vmem>>, %arg26: memref<8x8x256xf32, #tpu.memory_space<vmem>>) attributes {dimension_semantics = [#tpu.dimension_semantics<parallel>, #tpu.dimension_semantics<arbitrary>], iteration_bounds = array<i64: 2, 2>, scalar_prefetch = 0 : i64, scratch_operands = 1 : i64, tpu.core_type = #tpu.core_type<tc>, window_params = [{transform_indices = @transform_0, window_bounds = array<i64: 8, 8, 192>}, {pipeline_mode = #tpu.pipeline_mode<synchronous>, transform_indices = @transform_1, window_bounds = array<i64: 1, 8>}, {pipeline_mode = #tpu.pipeline_mode<synchronous>, transform_indices = @transform_2, window_bounds = array<i64: 192, 256>}, {pipeline_mode = #tpu.pipeline_mode<synchronous>, transform_indices = @transform_3, window_bounds = array<i64: 1, 256>}, {pipeline_mode = #tpu.pipeline_mode<synchronous>, transform_indices = @transform_4, window_bounds = array<i64: 1, 256>}, {pipeline_mode = #tpu.pipeline_mode<synchronous>, transform_indices = @transform_5, window_bounds = array<i64: 8, 256>}, {pipeline_mode = #tpu.pipeline_mode<synchronous>, transform_indices = @transform_6, window_bounds = array<i64: 1, 256>}, {pipeline_mode = #tpu.pipeline_mode<synchronous>, transform_indices = @transform_7, window_bounds = array<i64: 1, 256>}, {transform_indices = @transform_8, window_bounds = array<i64: 1, 1, 256>}, {transform_indices = @transform_9, window_bounds = array<i64: 1, 1, 256>}, {transform_indices = @transform_10, window_bounds = array<i64: 1, 256, 768>}, {transform_indices = @transform_11, window_bounds = array<i64: 1, 1, 768>}, {transform_indices = @transform_12, window_bounds = array<i64: 1, 256, 256>}, {transform_indices = @transform_13, window_bounds = array<i64: 1, 1, 256>}, {transform_indices = @transform_14, window_bounds = array<i64: 1, 1, 256>}, {transform_indices = @transform_15, window_bounds = array<i64: 1, 1, 256>}, {transform_indices = @transform_16, window_bounds = array<i64: 1, 256, 1024>}, {transform_indices = @transform_17, window_bounds = array<i64: 1, 1, 1024>}, {transform_indices = @transform_18, window_bounds = array<i64: 1, 1024, 256>}, {transform_indices = @transform_19, window_bounds = array<i64: 1, 1, 256>}, {pipeline_mode = #tpu.pipeline_mode<synchronous>, transform_indices = @transform_20, window_bounds = array<i64: 1, 256>}, {pipeline_mode = #tpu.pipeline_mode<synchronous>, transform_indices = @transform_21, window_bounds = array<i64: 1, 256>}, {pipeline_mode = #tpu.pipeline_mode<synchronous>, transform_indices = @transform_22, window_bounds = array<i64: 256, 128>}, {transform_indices = @transform_23, window_bounds = array<i64: 8, 1, 128>}]} {
    %c0_i32 = arith.constant 0 : i32
    %0 = arith.cmpi eq, %arg1, %c0_i32 : i32
    %1 = arith.extui %0 : i1 to i32
    %c0_i32_0 = arith.constant 0 : i32
    %2 = arith.cmpi ne, %1, %c0_i32_0 : i32
    scf.if %2 {
      %c0_73 = arith.constant 0 : index
      %c0_74 = arith.constant 0 : index
      %c0_75 = arith.constant 0 : index
      %169 = vector.load %arg2[%c0_73, %c0_74, %c0_75] : memref<8x8x192xf32, #tpu.memory_space<vmem>>, vector<8x8x192xf32>
      %170 = vector.shape_cast %169 : vector<8x8x192xf32> to vector<64x192xf32>
      %171 = arith.truncf %170 : vector<64x192xf32> to vector<64x192xbf16>
      %c0_76 = arith.constant 0 : index
      %c0_77 = arith.constant 0 : index
      %172 = vector.load %arg4[%c0_76, %c0_77] : memref<192x256xbf16, #tpu.memory_space<vmem>>, vector<192x256xbf16>
      %cst_78 = arith.constant dense<0.000000e+00> : vector<64x256xf32>
      %173 = tpu.matmul %171, %172, %cst_78 {dimension_numbers = #tpu.dot_dimension_numbers<[1], [0], [0], [1], [0, 0, 1, 1], [], []>} : vector<64x192xbf16>, vector<192x256xbf16>, vector<64x256xf32> -> vector<64x256xf32>
      %174 = vector.shape_cast %173 : vector<64x256xf32> to vector<8x8x256xf32>
      %175 = tpu.iota {dimensions = array<i32: 1>} : vector<1x8x1xi32>
      %c1_i32_79 = arith.constant 1 : i32
      %176 = vector.broadcast %c1_i32_79 : i32 to vector<1x8x1xi32>
      %177 = arith.cmpi sge, %175, %176 : vector<1x8x1xi32>
      %c4_i32 = arith.constant 4 : i32
      %178 = vector.broadcast %c4_i32 : i32 to vector<1x8x1xi32>
      %179 = arith.cmpi sle, %175, %178 : vector<1x8x1xi32>
      %180 = arith.andi %177, %179 : vector<1x8x1xi1>
      %181 = arith.extui %180 : vector<1x8x1xi1> to vector<1x8x1xi32>
      %182 = arith.sitofp %181 : vector<1x8x1xi32> to vector<1x8x1xf32>
      %c0_i32_80 = arith.constant 0 : i32
      %183 = vector.broadcast %c0_i32_80 : i32 to vector<1x8x1xi32>
      %184 = arith.cmpi eq, %175, %183 : vector<1x8x1xi32>
      %185 = arith.extui %184 : vector<1x8x1xi1> to vector<1x8x1xi32>
      %186 = arith.sitofp %185 : vector<1x8x1xi32> to vector<1x8x1xf32>
      %c0_81 = arith.constant 0 : index
      %c0_82 = arith.constant 0 : index
      %187 = vector.load %arg5[%c0_81, %c0_82] : memref<1x256xf32, #tpu.memory_space<vmem>>, vector<1x256xf32>
      %188 = vector.shape_cast %187 : vector<1x256xf32> to vector<1x1x256xf32>
      %189 = vector.broadcast %182 : vector<1x8x1xf32> to vector<1x8x256xf32>
      %190 = vector.broadcast %188 : vector<1x1x256xf32> to vector<1x8x256xf32>
      %191 = arith.mulf %189, %190 : vector<1x8x256xf32>
      %192 = vector.broadcast %191 : vector<1x8x256xf32> to vector<8x8x256xf32>
      %193 = arith.addf %174, %192 : vector<8x8x256xf32>
      %c0_83 = arith.constant 0 : index
      %c0_84 = arith.constant 0 : index
      %194 = vector.load %arg6[%c0_83, %c0_84] : memref<1x256xf32, #tpu.memory_space<vmem>>, vector<1x256xf32>
      %195 = vector.shape_cast %194 : vector<1x256xf32> to vector<1x1x256xf32>
      %196 = vector.broadcast %186 : vector<1x8x1xf32> to vector<1x8x256xf32>
      %197 = vector.broadcast %195 : vector<1x1x256xf32> to vector<1x8x256xf32>
      %198 = arith.mulf %196, %197 : vector<1x8x256xf32>
      %199 = vector.broadcast %198 : vector<1x8x256xf32> to vector<8x8x256xf32>
      %200 = arith.addf %193, %199 : vector<8x8x256xf32>
      %c0_85 = arith.constant 0 : index
      %c0_86 = arith.constant 0 : index
      %201 = vector.load %arg7[%c0_85, %c0_86] : memref<8x256xf32, #tpu.memory_space<vmem>>, vector<8x256xf32>
      %202 = vector.shape_cast %201 : vector<8x256xf32> to vector<1x8x256xf32>
      %203 = vector.broadcast %202 : vector<1x8x256xf32> to vector<8x8x256xf32>
      %204 = arith.addf %200, %203 : vector<8x8x256xf32>
      %c0_87 = arith.constant 0 : index
      %c0_88 = arith.constant 0 : index
      %205 = vector.load %arg8[%c0_87, %c0_88] : memref<1x256xf32, #tpu.memory_space<vmem>>, vector<1x256xf32>
      %c0_89 = arith.constant 0 : index
      %c0_90 = arith.constant 0 : index
      %206 = vector.load %arg9[%c0_89, %c0_90] : memref<1x256xf32, #tpu.memory_space<vmem>>, vector<1x256xf32>
      %cst_91 = arith.constant dense<0.000000e+00> : vector<8x8xf32>
      %207 = vector.multi_reduction <add>, %204, %cst_91 [2] : vector<8x8x256xf32> to vector<8x8xf32>
      %208 = vector.shape_cast %207 : vector<8x8xf32> to vector<8x8x1xf32>
      %cst_92 = arith.constant 2.560000e+02 : f32
      %209 = vector.broadcast %cst_92 : f32 to vector<8x8x1xf32>
      %210 = arith.divf %208, %209 : vector<8x8x1xf32>
      %211 = vector.broadcast %210 : vector<8x8x1xf32> to vector<8x8x256xf32>
      %212 = arith.subf %204, %211 : vector<8x8x256xf32>
      %213 = arith.mulf %212, %212 : vector<8x8x256xf32>
      %cst_93 = arith.constant dense<0.000000e+00> : vector<8x8xf32>
      %214 = vector.multi_reduction <add>, %213, %cst_93 [2] : vector<8x8x256xf32> to vector<8x8xf32>
      %215 = vector.shape_cast %214 : vector<8x8xf32> to vector<8x8x1xf32>
      %cst_94 = arith.constant 2.560000e+02 : f32
      %216 = vector.broadcast %cst_94 : f32 to vector<8x8x1xf32>
      %217 = arith.divf %215, %216 : vector<8x8x1xf32>
      %218 = vector.broadcast %210 : vector<8x8x1xf32> to vector<8x8x256xf32>
      %219 = arith.subf %204, %218 : vector<8x8x256xf32>
      %cst_95 = arith.constant 9.99999974E-6 : f32
      %220 = vector.broadcast %cst_95 : f32 to vector<8x8x1xf32>
      %221 = arith.addf %217, %220 : vector<8x8x1xf32>
      %222 = math.rsqrt %221 : vector<8x8x1xf32>
      %223 = vector.broadcast %222 : vector<8x8x1xf32> to vector<8x8x256xf32>
      %224 = arith.mulf %219, %223 : vector<8x8x256xf32>
      %225 = vector.shape_cast %205 : vector<1x256xf32> to vector<1x1x256xf32>
      %226 = vector.broadcast %225 : vector<1x1x256xf32> to vector<8x8x256xf32>
      %227 = arith.mulf %224, %226 : vector<8x8x256xf32>
      %228 = vector.shape_cast %206 : vector<1x256xf32> to vector<1x1x256xf32>
      %229 = vector.broadcast %228 : vector<1x1x256xf32> to vector<8x8x256xf32>
      %230 = arith.addf %227, %229 : vector<8x8x256xf32>
      %c0_96 = arith.constant 0 : index
      %c0_97 = arith.constant 0 : index
      %c0_98 = arith.constant 0 : index
      %231 = vector.load %arg26[%c0_96, %c0_97, %c0_98] : memref<8x8x256xf32, #tpu.memory_space<vmem>>, vector<8x8x256xf32>
      tpu.vector_store %arg26[%c0_96, %c0_97, %c0_98], %230 {strides = array<i32>} : memref<8x8x256xf32, #tpu.memory_space<vmem>>, vector<8x8x256xf32>,
    } else {
    }
    %c0 = arith.constant 0 : index
    %c0_1 = arith.constant 0 : index
    %c0_2 = arith.constant 0 : index
    %3 = vector.load %arg26[%c0, %c0_1, %c0_2] : memref<8x8x256xf32, #tpu.memory_space<vmem>>, vector<8x8x256xf32>
    %c0_3 = arith.constant 0 : index
    %c0_4 = arith.constant 0 : index
    %c0_5 = arith.constant 0 : index
    %4 = vector.load %arg10[%c0_3, %c0_4, %c0_5] : memref<1x1x256xf32, #tpu.memory_space<vmem>>, vector<1x1x256xf32>
    %5 = vector.shape_cast %4 : vector<1x1x256xf32> to vector<1x256xf32>
    %c0_6 = arith.constant 0 : index
    %c0_7 = arith.constant 0 : index
    %c0_8 = arith.constant 0 : index
    %6 = vector.load %arg11[%c0_6, %c0_7, %c0_8] : memref<1x1x256xf32, #tpu.memory_space<vmem>>, vector<1x1x256xf32>
    %7 = vector.shape_cast %6 : vector<1x1x256xf32> to vector<1x256xf32>
    %cst = arith.constant dense<0.000000e+00> : vector<8x8xf32>
    %8 = vector.multi_reduction <add>, %3, %cst [2] : vector<8x8x256xf32> to vector<8x8xf32>
    %9 = vector.shape_cast %8 : vector<8x8xf32> to vector<8x8x1xf32>
    %cst_9 = arith.constant 2.560000e+02 : f32
    %10 = vector.broadcast %cst_9 : f32 to vector<8x8x1xf32>
    %11 = arith.divf %9, %10 : vector<8x8x1xf32>
    %12 = vector.broadcast %11 : vector<8x8x1xf32> to vector<8x8x256xf32>
    %13 = arith.subf %3, %12 : vector<8x8x256xf32>
    %14 = arith.mulf %13, %13 : vector<8x8x256xf32>
    %cst_10 = arith.constant dense<0.000000e+00> : vector<8x8xf32>
    %15 = vector.multi_reduction <add>, %14, %cst_10 [2] : vector<8x8x256xf32> to vector<8x8xf32>
    %16 = vector.shape_cast %15 : vector<8x8xf32> to vector<8x8x1xf32>
    %cst_11 = arith.constant 2.560000e+02 : f32
    %17 = vector.broadcast %cst_11 : f32 to vector<8x8x1xf32>
    %18 = arith.divf %16, %17 : vector<8x8x1xf32>
    %19 = vector.broadcast %11 : vector<8x8x1xf32> to vector<8x8x256xf32>
    %20 = arith.subf %3, %19 : vector<8x8x256xf32>
    %cst_12 = arith.constant 9.99999974E-6 : f32
    %21 = vector.broadcast %cst_12 : f32 to vector<8x8x1xf32>
    %22 = arith.addf %18, %21 : vector<8x8x1xf32>
    %23 = math.rsqrt %22 : vector<8x8x1xf32>
    %24 = vector.broadcast %23 : vector<8x8x1xf32> to vector<8x8x256xf32>
    %25 = arith.mulf %20, %24 : vector<8x8x256xf32>
    %26 = vector.shape_cast %5 : vector<1x256xf32> to vector<1x1x256xf32>
    %27 = vector.broadcast %26 : vector<1x1x256xf32> to vector<8x8x256xf32>
    %28 = arith.mulf %25, %27 : vector<8x8x256xf32>
    %29 = vector.shape_cast %7 : vector<1x256xf32> to vector<1x1x256xf32>
    %30 = vector.broadcast %29 : vector<1x1x256xf32> to vector<8x8x256xf32>
    %31 = arith.addf %28, %30 : vector<8x8x256xf32>
    %32 = vector.shape_cast %31 : vector<8x8x256xf32> to vector<64x256xf32>
    %33 = arith.truncf %32 : vector<64x256xf32> to vector<64x256xbf16>
    %c0_13 = arith.constant 0 : index
    %c0_14 = arith.constant 0 : index
    %c0_15 = arith.constant 0 : index
    %34 = vector.load %arg12[%c0_13, %c0_14, %c0_15] : memref<1x256x768xbf16, #tpu.memory_space<vmem>>, vector<1x256x768xbf16>
    %35 = vector.shape_cast %34 : vector<1x256x768xbf16> to vector<256x768xbf16>
    %cst_16 = arith.constant dense<0.000000e+00> : vector<64x768xf32>
    %36 = tpu.matmul %33, %35, %cst_16 {dimension_numbers = #tpu.dot_dimension_numbers<[1], [0], [0], [1], [0, 0, 1, 1], [], []>} : vector<64x256xbf16>, vector<256x768xbf16>, vector<64x768xf32> -> vector<64x768xf32>
    %c0_17 = arith.constant 0 : index
    %c0_18 = arith.constant 0 : index
    %c0_19 = arith.constant 0 : index
    %37 = vector.load %arg13[%c0_17, %c0_18, %c0_19] : memref<1x1x768xf32, #tpu.memory_space<vmem>>, vector<1x1x768xf32>
    %38 = vector.shape_cast %37 : vector<1x1x768xf32> to vector<1x768xf32>
    %39 = vector.broadcast %38 : vector<1x768xf32> to vector<64x768xf32>
    %40 = arith.addf %36, %39 : vector<64x768xf32>
    %41 = vector.shape_cast %40 : vector<64x768xf32> to vector<8x8x768xf32>
    %c0_20 = arith.constant 0 : index
    %c0_21 = arith.constant 0 : index
    %42 = vector.load %arg3[%c0_20, %c0_21] : memref<1x8xf32, #tpu.memory_space<vmem>>, vector<1x8xf32>
    %c0_22 = arith.constant 0 : index
    %c0_23 = arith.constant 0 : index
    %c0_24 = arith.constant 0 : index
    %43 = vector.load %arg14[%c0_22, %c0_23, %c0_24] : memref<1x256x256xbf16, #tpu.memory_space<vmem>>, vector<1x256x256xbf16>
    %44 = vector.shape_cast %43 : vector<1x256x256xbf16> to vector<256x256xbf16>
    %cst_25 = arith.constant 0.000000e+00 : f32
    %45 = vector.broadcast %cst_25 : f32 to vector<64x256xf32>
    %46 = vector.extract_strided_slice %41 {offsets = [0, 0, 0], sizes = [8, 8, 128], strides = [1, 1, 1]} : vector<8x8x768xf32> to vector<8x8x128xf32>
    %47 = arith.truncf %46 : vector<8x8x128xf32> to vector<8x8x128xbf16>
    %48 = vector.extract_strided_slice %41 {offsets = [0, 0, 256], sizes = [8, 8, 128], strides = [1, 1, 1]} : vector<8x8x768xf32> to vector<8x8x128xf32>
    %49 = arith.truncf %48 : vector<8x8x128xf32> to vector<8x8x128xbf16>
    %50 = vector.extract_strided_slice %41 {offsets = [0, 0, 512], sizes = [8, 8, 128], strides = [1, 1, 1]} : vector<8x8x768xf32> to vector<8x8x128xf32>
    %51 = arith.truncf %50 : vector<8x8x128xf32> to vector<8x8x128xbf16>
    %cst_26 = arith.constant dense<0.000000e+00> : vector<8x8x8xf32>
    %52 = tpu.matmul %47, %49, %cst_26 {dimension_numbers = #tpu.dot_dimension_numbers<[2], [2], [1], [1], [0, 0, 0, 1, 1, 1], [0], [0]>} : vector<8x8x128xbf16>, vector<8x8x128xbf16>, vector<8x8x8xf32> -> vector<8x8x8xf32>
    %cst_27 = arith.constant 0.0883883461 : f32
    %53 = vector.broadcast %cst_27 : f32 to vector<8x8x8xf32>
    %54 = arith.mulf %52, %53 : vector<8x8x8xf32>
    %55 = vector.shape_cast %42 : vector<1x8xf32> to vector<1x1x8xf32>
    %56 = vector.broadcast %55 : vector<1x1x8xf32> to vector<8x8x8xf32>
    %57 = arith.addf %54, %56 : vector<8x8x8xf32>
    %cst_28 = arith.constant dense<0xFF800000> : vector<8x8xf32>
    %58 = vector.multi_reduction <maximumf>, %57, %cst_28 [2] : vector<8x8x8xf32> to vector<8x8xf32>
    %59 = vector.shape_cast %58 : vector<8x8xf32> to vector<8x8x1xf32>
    %60 = vector.broadcast %59 : vector<8x8x1xf32> to vector<8x8x8xf32>
    %61 = arith.subf %57, %60 : vector<8x8x8xf32>
    %62 = math.exp %61 : vector<8x8x8xf32>
    %cst_29 = arith.constant dense<0.000000e+00> : vector<8x8xf32>
    %63 = vector.multi_reduction <add>, %62, %cst_29 [2] : vector<8x8x8xf32> to vector<8x8xf32>
    %64 = vector.shape_cast %63 : vector<8x8xf32> to vector<8x8x1xf32>
    %65 = tpu.reciprocal %64 {approx = true} : vector<8x8x1xf32> -> vector<8x8x1xf32>
    %66 = vector.broadcast %65 : vector<8x8x1xf32> to vector<8x8x8xf32>
    %67 = arith.mulf %62, %66 : vector<8x8x8xf32>
    %68 = arith.truncf %67 : vector<8x8x8xf32> to vector<8x8x8xbf16>
    %cst_30 = arith.constant dense<0.000000e+00> : vector<8x8x128xf32>
    %69 = tpu.matmul %68, %51, %cst_30 {dimension_numbers = #tpu.dot_dimension_numbers<[2], [1], [1], [2], [0, 0, 0, 1, 1, 2], [0], [0]>} : vector<8x8x8xbf16>, vector<8x8x128xbf16>, vector<8x8x128xf32> -> vector<8x8x128xf32>
    %70 = vector.shape_cast %69 : vector<8x8x128xf32> to vector<64x128xf32>
    %71 = arith.truncf %70 : vector<64x128xf32> to vector<64x128xbf16>
    %72 = vector.extract_strided_slice %44 {offsets = [0, 0], sizes = [128, 256], strides = [1, 1]} : vector<256x256xbf16> to vector<128x256xbf16>
    %cst_31 = arith.constant dense<0.000000e+00> : vector<64x256xf32>
    %73 = tpu.matmul %71, %72, %cst_31 {dimension_numbers = #tpu.dot_dimension_numbers<[1], [0], [0], [1], [0, 0, 1, 1], [], []>} : vector<64x128xbf16>, vector<128x256xbf16>, vector<64x256xf32> -> vector<64x256xf32>
    %74 = arith.addf %45, %73 : vector<64x256xf32>
    %75 = vector.extract_strided_slice %41 {offsets = [0, 0, 128], sizes = [8, 8, 128], strides = [1, 1, 1]} : vector<8x8x768xf32> to vector<8x8x128xf32>
    %76 = arith.truncf %75 : vector<8x8x128xf32> to vector<8x8x128xbf16>
    %77 = vector.extract_strided_slice %41 {offsets = [0, 0, 384], sizes = [8, 8, 128], strides = [1, 1, 1]} : vector<8x8x768xf32> to vector<8x8x128xf32>
    %78 = arith.truncf %77 : vector<8x8x128xf32> to vector<8x8x128xbf16>
    %79 = vector.extract_strided_slice %41 {offsets = [0, 0, 640], sizes = [8, 8, 128], strides = [1, 1, 1]} : vector<8x8x768xf32> to vector<8x8x128xf32>
    %80 = arith.truncf %79 : vector<8x8x128xf32> to vector<8x8x128xbf16>
    %cst_32 = arith.constant dense<0.000000e+00> : vector<8x8x8xf32>
    %81 = tpu.matmul %76, %78, %cst_32 {dimension_numbers = #tpu.dot_dimension_numbers<[2], [2], [1], [1], [0, 0, 0, 1, 1, 1], [0], [0]>} : vector<8x8x128xbf16>, vector<8x8x128xbf16>, vector<8x8x8xf32> -> vector<8x8x8xf32>
    %cst_33 = arith.constant 0.0883883461 : f32
    %82 = vector.broadcast %cst_33 : f32 to vector<8x8x8xf32>
    %83 = arith.mulf %81, %82 : vector<8x8x8xf32>
    %84 = vector.shape_cast %42 : vector<1x8xf32> to vector<1x1x8xf32>
    %85 = vector.broadcast %84 : vector<1x1x8xf32> to vector<8x8x8xf32>
    %86 = arith.addf %83, %85 : vector<8x8x8xf32>
    %cst_34 = arith.constant dense<0xFF800000> : vector<8x8xf32>
    %87 = vector.multi_reduction <maximumf>, %86, %cst_34 [2] : vector<8x8x8xf32> to vector<8x8xf32>
    %88 = vector.shape_cast %87 : vector<8x8xf32> to vector<8x8x1xf32>
    %89 = vector.broadcast %88 : vector<8x8x1xf32> to vector<8x8x8xf32>
    %90 = arith.subf %86, %89 : vector<8x8x8xf32>
    %91 = math.exp %90 : vector<8x8x8xf32>
    %cst_35 = arith.constant dense<0.000000e+00> : vector<8x8xf32>
    %92 = vector.multi_reduction <add>, %91, %cst_35 [2] : vector<8x8x8xf32> to vector<8x8xf32>
    %93 = vector.shape_cast %92 : vector<8x8xf32> to vector<8x8x1xf32>
    %94 = tpu.reciprocal %93 {approx = true} : vector<8x8x1xf32> -> vector<8x8x1xf32>
    %95 = vector.broadcast %94 : vector<8x8x1xf32> to vector<8x8x8xf32>
    %96 = arith.mulf %91, %95 : vector<8x8x8xf32>
    %97 = arith.truncf %96 : vector<8x8x8xf32> to vector<8x8x8xbf16>
    %cst_36 = arith.constant dense<0.000000e+00> : vector<8x8x128xf32>
    %98 = tpu.matmul %97, %80, %cst_36 {dimension_numbers = #tpu.dot_dimension_numbers<[2], [1], [1], [2], [0, 0, 0, 1, 1, 2], [0], [0]>} : vector<8x8x8xbf16>, vector<8x8x128xbf16>, vector<8x8x128xf32> -> vector<8x8x128xf32>
    %99 = vector.shape_cast %98 : vector<8x8x128xf32> to vector<64x128xf32>
    %100 = arith.truncf %99 : vector<64x128xf32> to vector<64x128xbf16>
    %101 = vector.extract_strided_slice %44 {offsets = [128, 0], sizes = [128, 256], strides = [1, 1]} : vector<256x256xbf16> to vector<128x256xbf16>
    %cst_37 = arith.constant dense<0.000000e+00> : vector<64x256xf32>
    %102 = tpu.matmul %100, %101, %cst_37 {dimension_numbers = #tpu.dot_dimension_numbers<[1], [0], [0], [1], [0, 0, 1, 1], [], []>} : vector<64x128xbf16>, vector<128x256xbf16>, vector<64x256xf32> -> vector<64x256xf32>
    %103 = arith.addf %74, %102 : vector<64x256xf32>
    %c0_38 = arith.constant 0 : index
    %c0_39 = arith.constant 0 : index
    %c0_40 = arith.constant 0 : index
    %104 = vector.load %arg15[%c0_38, %c0_39, %c0_40] : memref<1x1x256xf32, #tpu.memory_space<vmem>>, vector<1x1x256xf32>
    %105 = vector.shape_cast %104 : vector<1x1x256xf32> to vector<1x256xf32>
    %106 = vector.broadcast %105 : vector<1x256xf32> to vector<64x256xf32>
    %107 = arith.addf %103, %106 : vector<64x256xf32>
    %108 = vector.shape_cast %107 : vector<64x256xf32> to vector<8x8x256xf32>
    %109 = arith.addf %3, %108 : vector<8x8x256xf32>
    %c0_41 = arith.constant 0 : index
    %c0_42 = arith.constant 0 : index
    %c0_43 = arith.constant 0 : index
    %110 = vector.load %arg16[%c0_41, %c0_42, %c0_43] : memref<1x1x256xf32, #tpu.memory_space<vmem>>, vector<1x1x256xf32>
    %111 = vector.shape_cast %110 : vector<1x1x256xf32> to vector<1x256xf32>
    %c0_44 = arith.constant 0 : index
    %c0_45 = arith.constant 0 : index
    %c0_46 = arith.constant 0 : index
    %112 = vector.load %arg17[%c0_44, %c0_45, %c0_46] : memref<1x1x256xf32, #tpu.memory_space<vmem>>, vector<1x1x256xf32>
    %113 = vector.shape_cast %112 : vector<1x1x256xf32> to vector<1x256xf32>
    %cst_47 = arith.constant dense<0.000000e+00> : vector<8x8xf32>
    %114 = vector.multi_reduction <add>, %109, %cst_47 [2] : vector<8x8x256xf32> to vector<8x8xf32>
    %115 = vector.shape_cast %114 : vector<8x8xf32> to vector<8x8x1xf32>
    %cst_48 = arith.constant 2.560000e+02 : f32
    %116 = vector.broadcast %cst_48 : f32 to vector<8x8x1xf32>
    %117 = arith.divf %115, %116 : vector<8x8x1xf32>
    %118 = vector.broadcast %117 : vector<8x8x1xf32> to vector<8x8x256xf32>
    %119 = arith.subf %109, %118 : vector<8x8x256xf32>
    %120 = arith.mulf %119, %119 : vector<8x8x256xf32>
    %cst_49 = arith.constant dense<0.000000e+00> : vector<8x8xf32>
    %121 = vector.multi_reduction <add>, %120, %cst_49 [2] : vector<8x8x256xf32> to vector<8x8xf32>
    %122 = vector.shape_cast %121 : vector<8x8xf32> to vector<8x8x1xf32>
    %cst_50 = arith.constant 2.560000e+02 : f32
    %123 = vector.broadcast %cst_50 : f32 to vector<8x8x1xf32>
    %124 = arith.divf %122, %123 : vector<8x8x1xf32>
    %125 = vector.broadcast %117 : vector<8x8x1xf32> to vector<8x8x256xf32>
    %126 = arith.subf %109, %125 : vector<8x8x256xf32>
    %cst_51 = arith.constant 9.99999974E-6 : f32
    %127 = vector.broadcast %cst_51 : f32 to vector<8x8x1xf32>
    %128 = arith.addf %124, %127 : vector<8x8x1xf32>
    %129 = math.rsqrt %128 : vector<8x8x1xf32>
    %130 = vector.broadcast %129 : vector<8x8x1xf32> to vector<8x8x256xf32>
    %131 = arith.mulf %126, %130 : vector<8x8x256xf32>
    %132 = vector.shape_cast %111 : vector<1x256xf32> to vector<1x1x256xf32>
    %133 = vector.broadcast %132 : vector<1x1x256xf32> to vector<8x8x256xf32>
    %134 = arith.mulf %131, %133 : vector<8x8x256xf32>
    %135 = vector.shape_cast %113 : vector<1x256xf32> to vector<1x1x256xf32>
    %136 = vector.broadcast %135 : vector<1x1x256xf32> to vector<8x8x256xf32>
    %137 = arith.addf %134, %136 : vector<8x8x256xf32>
    %138 = vector.shape_cast %137 : vector<8x8x256xf32> to vector<64x256xf32>
    %139 = arith.truncf %138 : vector<64x256xf32> to vector<64x256xbf16>
    %c0_52 = arith.constant 0 : index
    %c0_53 = arith.constant 0 : index
    %c0_54 = arith.constant 0 : index
    %140 = vector.load %arg18[%c0_52, %c0_53, %c0_54] : memref<1x256x1024xbf16, #tpu.memory_space<vmem>>, vector<1x256x1024xbf16>
    %141 = vector.shape_cast %140 : vector<1x256x1024xbf16> to vector<256x1024xbf16>
    %cst_55 = arith.constant dense<0.000000e+00> : vector<64x1024xf32>
    %142 = tpu.matmul %139, %141, %cst_55 {dimension_numbers = #tpu.dot_dimension_numbers<[1], [0], [0], [1], [0, 0, 1, 1], [], []>} : vector<64x256xbf16>, vector<256x1024xbf16>, vector<64x1024xf32> -> vector<64x1024xf32>
    %c0_56 = arith.constant 0 : index
    %c0_57 = arith.constant 0 : index
    %c0_58 = arith.constant 0 : index
    %143 = vector.load %arg19[%c0_56, %c0_57, %c0_58] : memref<1x1x1024xf32, #tpu.memory_space<vmem>>, vector<1x1x1024xf32>
    %144 = vector.shape_cast %143 : vector<1x1x1024xf32> to vector<1x1024xf32>
    %145 = vector.broadcast %144 : vector<1x1024xf32> to vector<64x1024xf32>
    %146 = arith.addf %142, %145 : vector<64x1024xf32>
    %cst_59 = arith.constant -1.702000e+00 : f32
    %147 = vector.broadcast %cst_59 : f32 to vector<64x1024xf32>
    %148 = arith.mulf %147, %146 : vector<64x1024xf32>
    %149 = math.exp %148 : vector<64x1024xf32>
    %cst_60 = arith.constant 1.000000e+00 : f32
    %150 = vector.broadcast %cst_60 : f32 to vector<64x1024xf32>
    %151 = arith.addf %150, %149 : vector<64x1024xf32>
    %cst_61 = arith.constant 1.000000e+00 : f32
    %152 = vector.broadcast %cst_61 : f32 to vector<64x1024xf32>
    %153 = arith.divf %152, %151 : vector<64x1024xf32>
    %154 = arith.mulf %146, %153 : vector<64x1024xf32>
    %155 = arith.truncf %154 : vector<64x1024xf32> to vector<64x1024xbf16>
    %c0_62 = arith.constant 0 : index
    %c0_63 = arith.constant 0 : index
    %c0_64 = arith.constant 0 : index
    %156 = vector.load %arg20[%c0_62, %c0_63, %c0_64] : memref<1x1024x256xbf16, #tpu.memory_space<vmem>>, vector<1x1024x256xbf16>
    %157 = vector.shape_cast %156 : vector<1x1024x256xbf16> to vector<1024x256xbf16>
    %cst_65 = arith.constant dense<0.000000e+00> : vector<64x256xf32>
    %158 = tpu.matmul %155, %157, %cst_65 {dimension_numbers = #tpu.dot_dimension_numbers<[1], [0], [0], [1], [0, 0, 1, 1], [], []>} : vector<64x1024xbf16>, vector<1024x256xbf16>, vector<64x256xf32> -> vector<64x256xf32>
    %c0_66 = arith.constant 0 : index
    %c0_67 = arith.constant 0 : index
    %c0_68 = arith.constant 0 : index
    %159 = vector.load %arg21[%c0_66, %c0_67, %c0_68] : memref<1x1x256xf32, #tpu.memory_space<vmem>>, vector<1x1x256xf32>
    %160 = vector.shape_cast %159 : vector<1x1x256xf32> to vector<1x256xf32>
    %161 = vector.broadcast %160 : vector<1x256xf32> to vector<64x256xf32>
    %162 = arith.addf %158, %161 : vector<64x256xf32>
    %163 = vector.shape_cast %162 : vector<64x256xf32> to vector<8x8x256xf32>
    %164 = arith.addf %109, %163 : vector<8x8x256xf32>
    %c0_69 = arith.constant 0 : index
    %c0_70 = arith.constant 0 : index
    %c0_71 = arith.constant 0 : index
    %165 = vector.load %arg26[%c0_69, %c0_70, %c0_71] : memref<8x8x256xf32, #tpu.memory_space<vmem>>, vector<8x8x256xf32>
    tpu.vector_store %arg26[%c0_69, %c0_70, %c0_71], %164 {strides = array<i32>} : memref<8x8x256xf32, #tpu.memory_space<vmem>>, vector<8x8x256xf32>,
    %c1_i32 = arith.constant 1 : i32
    %166 = arith.cmpi eq, %arg1, %c1_i32 : i32
    %167 = arith.extui %166 : i1 to i32
    %c0_i32_72 = arith.constant 0 : i32
    %168 = arith.cmpi ne, %167, %c0_i32_72 : i32
    scf.if %168 {
      %169 = vector.extract_strided_slice %164 {offsets = [0, 0, 0], sizes = [8, 1, 256], strides = [1, 1, 1]} : vector<8x8x256xf32> to vector<8x1x256xf32>
      %170 = vector.shape_cast %169 : vector<8x1x256xf32> to vector<8x256xf32>
      %c0_73 = arith.constant 0 : index
      %c0_74 = arith.constant 0 : index
      %171 = vector.load %arg22[%c0_73, %c0_74] : memref<1x256xf32, #tpu.memory_space<vmem>>, vector<1x256xf32>
      %c0_75 = arith.constant 0 : index
      %c0_76 = arith.constant 0 : index
      %172 = vector.load %arg23[%c0_75, %c0_76] : memref<1x256xf32, #tpu.memory_space<vmem>>, vector<1x256xf32>
      %cst_77 = arith.constant dense<0.000000e+00> : vector<8xf32>
      %173 = vector.multi_reduction <add>, %170, %cst_77 [1] : vector<8x256xf32> to vector<8xf32>
      %174 = vector.shape_cast %173 : vector<8xf32> to vector<8x1xf32>
      %cst_78 = arith.constant 2.560000e+02 : f32
      %175 = vector.broadcast %cst_78 : f32 to vector<8x1xf32>
      %176 = arith.divf %174, %175 : vector<8x1xf32>
      %177 = vector.broadcast %176 : vector<8x1xf32> to vector<8x256xf32>
      %178 = arith.subf %170, %177 : vector<8x256xf32>
      %179 = arith.mulf %178, %178 : vector<8x256xf32>
      %cst_79 = arith.constant dense<0.000000e+00> : vector<8xf32>
      %180 = vector.multi_reduction <add>, %179, %cst_79 [1] : vector<8x256xf32> to vector<8xf32>
      %181 = vector.shape_cast %180 : vector<8xf32> to vector<8x1xf32>
      %cst_80 = arith.constant 2.560000e+02 : f32
      %182 = vector.broadcast %cst_80 : f32 to vector<8x1xf32>
      %183 = arith.divf %181, %182 : vector<8x1xf32>
      %184 = vector.broadcast %176 : vector<8x1xf32> to vector<8x256xf32>
      %185 = arith.subf %170, %184 : vector<8x256xf32>
      %cst_81 = arith.constant 9.99999974E-6 : f32
      %186 = vector.broadcast %cst_81 : f32 to vector<8x1xf32>
      %187 = arith.addf %183, %186 : vector<8x1xf32>
      %188 = math.rsqrt %187 : vector<8x1xf32>
      %189 = vector.broadcast %188 : vector<8x1xf32> to vector<8x256xf32>
      %190 = arith.mulf %185, %189 : vector<8x256xf32>
      %191 = vector.broadcast %171 : vector<1x256xf32> to vector<8x256xf32>
      %192 = arith.mulf %190, %191 : vector<8x256xf32>
      %193 = vector.broadcast %172 : vector<1x256xf32> to vector<8x256xf32>
      %194 = arith.addf %192, %193 : vector<8x256xf32>
      %195 = arith.truncf %194 : vector<8x256xf32> to vector<8x256xbf16>
      %c0_82 = arith.constant 0 : index
      %c0_83 = arith.constant 0 : index
      %196 = vector.load %arg24[%c0_82, %c0_83] : memref<256x128xbf16, #tpu.memory_space<vmem>>, vector<256x128xbf16>
      %cst_84 = arith.constant dense<0.000000e+00> : vector<8x128xf32>
      %197 = tpu.matmul %195, %196, %cst_84 {dimension_numbers = #tpu.dot_dimension_numbers<[1], [0], [0], [1], [0, 0, 1, 1], [], []>} : vector<8x256xbf16>, vector<256x128xbf16>, vector<8x128xf32> -> vector<8x128xf32>
      %198 = vector.shape_cast %197 : vector<8x128xf32> to vector<8x1x128xf32>
      %c0_85 = arith.constant 0 : index
      %c0_86 = arith.constant 0 : index
      %c0_87 = arith.constant 0 : index
      %199 = vector.load %arg25[%c0_85, %c0_86, %c0_87] : memref<8x1x128xf32, #tpu.memory_space<vmem>>, vector<8x1x128xf32>
      tpu.vector_store %arg25[%c0_85, %c0_86, %c0_87], %198 {strides = array<i32>} : memref<8x1x128xf32, #tpu.memory_space<vmem>>, vector<8x1x128xf32>,
    } else {
    }
    return
  }
  func.func @transform_0(%arg0: i32, %arg1: i32) -> (i32, i32, i32) {
    %c0_i32 = arith.constant 0 : i32
    %c0_i32_0 = arith.constant 0 : i32
    %c0_i32_1 = arith.constant 0 : i32
    return %arg0, %c0_i32, %c0_i32_0 : i32, i32, i32
  }
  func.func @transform_1(%arg0: i32, %arg1: i32) -> (i32, i32) {
    %c0_i32 = arith.constant 0 : i32
    %c0_i32_0 = arith.constant 0 : i32
    %c0_i32_1 = arith.constant 0 : i32
    return %c0_i32, %c0_i32_0 : i32, i32
  }
  func.func @transform_2(%arg0: i32, %arg1: i32) -> (i32, i32) {
    %c0_i32 = arith.constant 0 : i32
    %c0_i32_0 = arith.constant 0 : i32
    %c0_i32_1 = arith.constant 0 : i32
    return %c0_i32, %c0_i32_0 : i32, i32
  }
  func.func @transform_3(%arg0: i32, %arg1: i32) -> (i32, i32) {
    %c0_i32 = arith.constant 0 : i32
    %c0_i32_0 = arith.constant 0 : i32
    %c0_i32_1 = arith.constant 0 : i32
    return %c0_i32, %c0_i32_0 : i32, i32
  }
  func.func @transform_4(%arg0: i32, %arg1: i32) -> (i32, i32) {
    %c0_i32 = arith.constant 0 : i32
    %c0_i32_0 = arith.constant 0 : i32
    %c0_i32_1 = arith.constant 0 : i32
    return %c0_i32, %c0_i32_0 : i32, i32
  }
  func.func @transform_5(%arg0: i32, %arg1: i32) -> (i32, i32) {
    %c0_i32 = arith.constant 0 : i32
    %c0_i32_0 = arith.constant 0 : i32
    %c0_i32_1 = arith.constant 0 : i32
    return %c0_i32, %c0_i32_0 : i32, i32
  }
  func.func @transform_6(%arg0: i32, %arg1: i32) -> (i32, i32) {
    %c0_i32 = arith.constant 0 : i32
    %c0_i32_0 = arith.constant 0 : i32
    %c0_i32_1 = arith.constant 0 : i32
    return %c0_i32, %c0_i32_0 : i32, i32
  }
  func.func @transform_7(%arg0: i32, %arg1: i32) -> (i32, i32) {
    %c0_i32 = arith.constant 0 : i32
    %c0_i32_0 = arith.constant 0 : i32
    %c0_i32_1 = arith.constant 0 : i32
    return %c0_i32, %c0_i32_0 : i32, i32
  }
  func.func @transform_8(%arg0: i32, %arg1: i32) -> (i32, i32, i32) {
    %c0_i32 = arith.constant 0 : i32
    %c0_i32_0 = arith.constant 0 : i32
    %c0_i32_1 = arith.constant 0 : i32
    return %arg1, %c0_i32, %c0_i32_0 : i32, i32, i32
  }
  func.func @transform_9(%arg0: i32, %arg1: i32) -> (i32, i32, i32) {
    %c0_i32 = arith.constant 0 : i32
    %c0_i32_0 = arith.constant 0 : i32
    %c0_i32_1 = arith.constant 0 : i32
    return %arg1, %c0_i32, %c0_i32_0 : i32, i32, i32
  }
  func.func @transform_10(%arg0: i32, %arg1: i32) -> (i32, i32, i32) {
    %c0_i32 = arith.constant 0 : i32
    %c0_i32_0 = arith.constant 0 : i32
    %c0_i32_1 = arith.constant 0 : i32
    return %arg1, %c0_i32, %c0_i32_0 : i32, i32, i32
  }
  func.func @transform_11(%arg0: i32, %arg1: i32) -> (i32, i32, i32) {
    %c0_i32 = arith.constant 0 : i32
    %c0_i32_0 = arith.constant 0 : i32
    %c0_i32_1 = arith.constant 0 : i32
    return %arg1, %c0_i32, %c0_i32_0 : i32, i32, i32
  }
  func.func @transform_12(%arg0: i32, %arg1: i32) -> (i32, i32, i32) {
    %c0_i32 = arith.constant 0 : i32
    %c0_i32_0 = arith.constant 0 : i32
    %c0_i32_1 = arith.constant 0 : i32
    return %arg1, %c0_i32, %c0_i32_0 : i32, i32, i32
  }
  func.func @transform_13(%arg0: i32, %arg1: i32) -> (i32, i32, i32) {
    %c0_i32 = arith.constant 0 : i32
    %c0_i32_0 = arith.constant 0 : i32
    %c0_i32_1 = arith.constant 0 : i32
    return %arg1, %c0_i32, %c0_i32_0 : i32, i32, i32
  }
  func.func @transform_14(%arg0: i32, %arg1: i32) -> (i32, i32, i32) {
    %c0_i32 = arith.constant 0 : i32
    %c0_i32_0 = arith.constant 0 : i32
    %c0_i32_1 = arith.constant 0 : i32
    return %arg1, %c0_i32, %c0_i32_0 : i32, i32, i32
  }
  func.func @transform_15(%arg0: i32, %arg1: i32) -> (i32, i32, i32) {
    %c0_i32 = arith.constant 0 : i32
    %c0_i32_0 = arith.constant 0 : i32
    %c0_i32_1 = arith.constant 0 : i32
    return %arg1, %c0_i32, %c0_i32_0 : i32, i32, i32
  }
  func.func @transform_16(%arg0: i32, %arg1: i32) -> (i32, i32, i32) {
    %c0_i32 = arith.constant 0 : i32
    %c0_i32_0 = arith.constant 0 : i32
    %c0_i32_1 = arith.constant 0 : i32
    return %arg1, %c0_i32, %c0_i32_0 : i32, i32, i32
  }
  func.func @transform_17(%arg0: i32, %arg1: i32) -> (i32, i32, i32) {
    %c0_i32 = arith.constant 0 : i32
    %c0_i32_0 = arith.constant 0 : i32
    %c0_i32_1 = arith.constant 0 : i32
    return %arg1, %c0_i32, %c0_i32_0 : i32, i32, i32
  }
  func.func @transform_18(%arg0: i32, %arg1: i32) -> (i32, i32, i32) {
    %c0_i32 = arith.constant 0 : i32
    %c0_i32_0 = arith.constant 0 : i32
    %c0_i32_1 = arith.constant 0 : i32
    return %arg1, %c0_i32, %c0_i32_0 : i32, i32, i32
  }
  func.func @transform_19(%arg0: i32, %arg1: i32) -> (i32, i32, i32) {
    %c0_i32 = arith.constant 0 : i32
    %c0_i32_0 = arith.constant 0 : i32
    %c0_i32_1 = arith.constant 0 : i32
    return %arg1, %c0_i32, %c0_i32_0 : i32, i32, i32
  }
  func.func @transform_20(%arg0: i32, %arg1: i32) -> (i32, i32) {
    %c0_i32 = arith.constant 0 : i32
    %c0_i32_0 = arith.constant 0 : i32
    %c0_i32_1 = arith.constant 0 : i32
    return %c0_i32, %c0_i32_0 : i32, i32
  }
  func.func @transform_21(%arg0: i32, %arg1: i32) -> (i32, i32) {
    %c0_i32 = arith.constant 0 : i32
    %c0_i32_0 = arith.constant 0 : i32
    %c0_i32_1 = arith.constant 0 : i32
    return %c0_i32, %c0_i32_0 : i32, i32
  }
  func.func @transform_22(%arg0: i32, %arg1: i32) -> (i32, i32) {
    %c0_i32 = arith.constant 0 : i32
    %c0_i32_0 = arith.constant 0 : i32
    %c0_i32_1 = arith.constant 0 : i32
    return %c0_i32, %c0_i32_0 : i32, i32
  }
  func.func @transform_23(%arg0: i32, %arg1: i32) -> (i32, i32, i32) {
    %c0_i32 = arith.constant 0 : i32
    %c0_i32_0 = arith.constant 0 : i32
    %c0_i32_1 = arith.constant 0 : i32
    return %arg0, %c0_i32, %c0_i32_0 : i32, i32, i32
  }
}

</mosaic_0001>

<llo_original>
// kernel: tpu_custom_call.1
$region0: #{tpu_custom_call.1}
  #allocation0 [shape = 'u32[]', space=smem, size = 0x4, offset = 0x4, fixed_abs, tag = 'smem constant byte address 0x4 - core index']
  #allocation1 [shape = 'u32[144,128]{1,0:T(1,128)}', space=vmem, size = 0x12000, scoped, tag = 'internal scratch']
  #allocation2 [shape = 'f32[8,8,256]{2,1,0:T(8,128)}', space=vmem, size = 0x10000, scoped, tag = 'scratch operand']
  %s0 = inlined_call_operand.hbm [shape: f32[16,8,192], index: 0, kind: input, shape index: {}]
  %s1 = inlined_call_operand.vmem [shape: f32[1,8], index: 1, kind: input, shape index: {}]
  %s2 = inlined_call_operand.hbm [shape: bf16[192,256], index: 2, kind: input, shape index: {}]
  %s3 = inlined_call_operand.hbm [shape: f32[1,256], index: 3, kind: input, shape index: {}]
  %s4 = inlined_call_operand.hbm [shape: f32[1,256], index: 4, kind: input, shape index: {}]
  %s5 = inlined_call_operand.vmem [shape: f32[8,256], index: 5, kind: input, shape index: {}]
  %s6 = inlined_call_operand.hbm [shape: f32[1,256], index: 6, kind: input, shape index: {}]
  %s7 = inlined_call_operand.hbm [shape: f32[1,256], index: 7, kind: input, shape index: {}]
  %s8 = inlined_call_operand.hbm [shape: f32[2,1,256], index: 8, kind: input, shape index: {}]
  %s9 = inlined_call_operand.hbm [shape: f32[2,1,256], index: 9, kind: input, shape index: {}]
  %s10 = inlined_call_operand.hbm [shape: bf16[2,256,768], index: 10, kind: input, shape index: {}]
  %s11 = inlined_call_operand.hbm [shape: f32[2,1,768], index: 11, kind: input, shape index: {}]
  %s12 = inlined_call_operand.hbm [shape: bf16[2,256,256], index: 12, kind: input, shape index: {}]
  %s13 = inlined_call_operand.vmem [shape: f32[2,1,256], index: 13, kind: input, shape index: {}]
  %s14 = inlined_call_operand.vmem [shape: f32[2,1,256], index: 14, kind: input, shape index: {}]
  %s15 = inlined_call_operand.vmem [shape: f32[2,1,256], index: 15, kind: input, shape index: {}]
  %s16 = inlined_call_operand.hbm [shape: bf16[2,256,1024], index: 16, kind: input, shape index: {}]
  %s17 = inlined_call_operand.vmem [shape: f32[2,1,1024], index: 17, kind: input, shape index: {}]
  %s18 = inlined_call_operand.hbm [shape: bf16[2,1024,256], index: 18, kind: input, shape index: {}]
  %s19 = inlined_call_operand.vmem [shape: f32[2,1,256], index: 19, kind: input, shape index: {}]
  %s20 = inlined_call_operand.vmem [shape: f32[1,256], index: 20, kind: input, shape index: {}]
  %s21 = inlined_call_operand.vmem [shape: f32[1,256], index: 21, kind: input, shape index: {}]
  %s22 = inlined_call_operand.hbm [shape: bf16[256,128], index: 22, kind: input, shape index: {}]
  %s23 = inlined_call_operand.hbm [shape: f32[16,1,128], index: 23, kind: output, shape index: {}]
  %s24 = sld [smem:[#allocation0]]
  $region189: #{tpu_custom_call.1} parent=0
    _
  %s26 = ssub.s32 1, %s24
  %s27 = scalar_select 0, %s26, %s24
  $region1: #{tpu_custom_call.1} parent=0
    #allocation3 [shape = 'u8[131072]{0}', space=vmem, size = 0x20000, scoped, tag = 'input window, operand 0']
    #allocation4 [shape = 's32[2]{0}', space=sflag, size = 0x8, scoped, tag = 'scoped memory for tpu_custom_call.1']
    #allocation5 [shape = 's32[2]{0}', space=sflag, size = 0x8, scoped, tag = 'scoped memory for tpu_custom_call.1']
    #allocation6 [shape = 'u8[98304]{0}', space=vmem, size = 0x18000, scoped, tag = 'input window, operand 2, single buffered']
    #allocation7 [shape = 's32[1]{0}', space=sflag, size = 0x4, scoped, tag = 'scoped memory for tpu_custom_call.1']
    #allocation8 [shape = 'u8[1024]{0}', space=vmem, size = 0x400, scoped, tag = 'input window, operand 3, single buffered']
    #allocation9 [shape = 'u8[1024]{0}', space=vmem, size = 0x400, scoped, tag = 'input window, operand 4, single buffered']
    #allocation10 [shape = 's32[1]{0}', space=sflag, size = 0x4, scoped, tag = 'scoped memory for tpu_custom_call.1']
    #allocation11 [shape = 'u8[1024]{0}', space=vmem, size = 0x400, scoped, tag = 'input window, operand 6, single buffered']
    #allocation12 [shape = 'u8[1024]{0}', space=vmem, size = 0x400, scoped, tag = 'input window, operand 7, single buffered']
    #allocation13 [shape = 's32[1]{0}', space=sflag, size = 0x4, scoped, tag = 'scoped memory for tpu_custom_call.1']
    #allocation14 [shape = 'u8[2048]{0}', space=vmem, size = 0x800, scoped, tag = 'input window, operand 8']
    #allocation15 [shape = 'u8[2048]{0}', space=vmem, size = 0x800, scoped, tag = 'input window, operand 9']
    #allocation16 [shape = 'u8[786432]{0}', space=vmem, size = 0xc0000, scoped, tag = 'input window, operand 10']
    #allocation17 [shape = 'u8[6144]{0}', space=vmem, size = 0x1800, scoped, tag = 'input window, operand 11']
    #allocation18 [shape = 'u8[262144]{0}', space=vmem, size = 0x40000, scoped, tag = 'input window, operand 12']
    #allocation19 [shape = 'u8[1048576]{0}', space=vmem, size = 0x100000, scoped, tag = 'input window, operand 16']
    #allocation20 [shape = 'u8[1048576]{0}', space=vmem, size = 0x100000, scoped, tag = 'input window, operand 18']
    #allocation21 [shape = 'u8[65536]{0}', space=vmem, size = 0x10000, scoped, tag = 'input window, operand 22, single buffered']
    #allocation22 [shape = 'u8[8192]{0}', space=vmem, size = 0x2000, scoped, tag = 'output window, operand 0']
    %28 = vsyncpa [#allocation4], 0
    %s29 = scalar_lea.sflag [#allocation4], 1
    %30 = vsyncpa %s29, 0
    %31 = vsyncpa [#allocation7], 0
    %32 = vsyncpa [#allocation10], 0
    %33 = vsyncpa [#allocation13], 0
    %34 = vsyncpa [#allocation5], 0
    %s35 = scalar_lea.sflag [#allocation5], 1
    %36 = vsyncpa %s35, 0
    loop: start=0, step=1, limit=6
    $region2: #{tpu_custom_call.1} parent=1 // loop_pre_header
      _
    $region3: #{tpu_custom_call.1} parent=1 // loop_header
      %s38 = sphi 0, %s42
      %p39 = scmp.ge.s32.totalorder %s38, 6
      %s45 = sphi 0, %s57
      %s46 = sphi 0, %s53
      %s47 = sphi 0, %s45
      %s48 = sphi 0, %s46
      %s49 = sphi 0, %s47
      %s50 = sphi 0, %s48
      %s60 = sphi 0, %s62
      %s63 = sphi 0, %s60
      %s64 = sphi 0, %s63
      %s80 = sphi 0, %s64
      %s84 = sphi 0, %s84
      %s86 = sphi 0, %s84
      %s87 = sphi 0, %s86
      %s101 = sphi 0, %s87
      %s105 = sphi 0, %s105
      %s107 = sphi 0, %s105
      %s108 = sphi 0, %s107
      %s122 = sphi 0, %s108
      %s126 = sphi 0, %s126
      %s128 = sphi 0, %s126
      %s129 = sphi 0, %s128
      %s143 = sphi 0, %s129
      %s147 = sphi 0, %s147
      %s149 = sphi 0, %s147
      %s150 = sphi 0, %s149
      %s164 = sphi 0, %s150
      %s168 = sphi 0, %s168
      %s170 = sphi 0, %s168
      %s171 = sphi 0, %s170
      %s185 = sphi 0, %s171
      %s189 = sphi 0, %s189
      %s191 = sphi 0, %s189
      %s192 = sphi 0, %s191
      %s206 = sphi 0, %s192
      %s210 = sphi 0, %s210
      %s212 = sphi 0, %s210
      %s213 = sphi 0, %s212
      %s227 = sphi 0, %s213
      %s233 = sphi 0, %s235
      %s236 = sphi 0, %s233
      %s237 = sphi 0, %s236
      %s253 = sphi 0, %s237
      %s259 = sphi 0, %s261
      %s262 = sphi 0, %s259
      %s263 = sphi 0, %s262
      %s279 = sphi 0, %s263
      %s285 = sphi 0, %s287
      %s288 = sphi 0, %s285
      %s289 = sphi 0, %s288
      %s305 = sphi 0, %s289
      %s311 = sphi 0, %s313
      %s314 = sphi 0, %s311
      %s315 = sphi 0, %s314
      %s331 = sphi 0, %s315
      %s337 = sphi 0, %s339
      %s340 = sphi 0, %s337
      %s341 = sphi 0, %s340
      %s357 = sphi 0, %s341
      %s363 = sphi 0, %s365
      %s366 = sphi 0, %s363
      %s367 = sphi 0, %s366
      %s383 = sphi 0, %s367
      %s389 = sphi 0, %s391
      %s392 = sphi 0, %s389
      %s393 = sphi 0, %s392
      %s409 = sphi 0, %s393
      %s415 = sphi 0, %s417
      %s418 = sphi 0, %s415
      %s419 = sphi 0, %s418
      %s435 = sphi 0, %s419
      %s441 = sphi 0, %s443
      %s444 = sphi 0, %s441
      %s445 = sphi 0, %s444
      %s461 = sphi 0, %s445
      %s467 = sphi 0, %s469
      %s470 = sphi 0, %s467
      %s471 = sphi 0, %s470
      %s487 = sphi 0, %s471
      %s493 = sphi 0, %s495
      %s496 = sphi 0, %s493
      %s497 = sphi 0, %s496
      %s513 = sphi 0, %s497
      %s519 = sphi 0, %s521
      %s522 = sphi 0, %s519
      %s523 = sphi 0, %s522
      %s539 = sphi 0, %s523
      %s543 = sphi 0, %s543
      %s545 = sphi 0, %s543
      %s546 = sphi 0, %s545
      %s560 = sphi 0, %s546
      %s564 = sphi 0, %s564
      %s566 = sphi 0, %s564
      %s567 = sphi 0, %s566
      %s581 = sphi 0, %s567
      %s585 = sphi 0, %s585
      %s587 = sphi 0, %s585
      %s588 = sphi 0, %s587
      %s602 = sphi 0, %s588
      %s608 = sphi 0, %s610
      %s611 = sphi 0, %s608
      %s612 = sphi 0, %s611
      %s628 = sphi 0, %s612
    $region4: #{tpu_custom_call.1} parent=1 // loop_header_branch
      %41 = sbr.rel (%p39) target = $region8
    $region5: #{tpu_custom_call.1} parent=1 // loop_body
      %s43 = ssub.s32 %s38, 1
      %s44 = ssub.s32 %s38, 2
      %s51 = sadd.s32 1, %s46
      %p52 = scmp.ge.s32.totalorder %s51, 2
      %s53 = scalar_select %p52, 0, %s51
      %s54 = sadd.s32 1, %s45
      %s55 = scalar_select %p52, %s54, %s45
      %p56 = scmp.ge.s32.totalorder %s55, 2
      %s57 = scalar_select %p56, 0, %s55
      %s58 = ssub.s32 %s45, %s57
      %p59 = scmp.eq.s32.totalorder %s58, 0
      %s61 = sadd.s32 %s60, 1
      %s62 = scalar_select %p59, %s60, %s61
      %p65 = pneg %p59
      %p66 = scmp.eq.s32.totalorder %s38, 3
      %p67 = por %p65, %p66
      %p68 = scmp.ne.s32.totalorder %s60, %s63
      %p69 = scmp.eq.s32.totalorder %s38, 0
      %p70 = por %p68, %p69
      %p71 = scmp.ne.s32.totalorder %s60, %s63
      %p72 = scmp.eq.s32.totalorder %s43, 3
      %p73 = por %p71, %p72
      %p74 = scmp.ne.s32.totalorder %s63, %s64
      %p75 = scmp.eq.s32.totalorder %s43, 0
      %p76 = por %p74, %p75
      %p77 = scmp.ne.s32.totalorder %s63, %s64
      %p78 = scmp.eq.s32.totalorder %s44, 3
      %p79 = por %p77, %p78
      %p81 = scmp.ne.s32.totalorder %s64, %s80
      %p82 = scmp.eq.s32.totalorder %s44, 0
      %p83 = por %p81, %p82
      %s85 = sadd.s32 %s84, 1
      %p88 = scmp.eq.s32.totalorder %s38, 3
      %p89 = scmp.ne.s32.totalorder %s84, %s86
      %p90 = scmp.eq.s32.totalorder %s38, 0
      %p91 = por %p89, %p90
      %p92 = scmp.ne.s32.totalorder %s84, %s86
      %p93 = scmp.eq.s32.totalorder %s43, 3
      %p94 = por %p92, %p93
      %p95 = scmp.ne.s32.totalorder %s86, %s87
      %p96 = scmp.eq.s32.totalorder %s43, 0
      %p97 = por %p95, %p96
      %p98 = scmp.ne.s32.totalorder %s86, %s87
      %p99 = scmp.eq.s32.totalorder %s44, 3
      %p100 = por %p98, %p99
      %p102 = scmp.ne.s32.totalorder %s87, %s101
      %p103 = scmp.eq.s32.totalorder %s44, 0
      %p104 = por %p102, %p103
      %s106 = sadd.s32 %s105, 1
      %p109 = scmp.eq.s32.totalorder %s38, 3
      %p110 = scmp.ne.s32.totalorder %s105, %s107
      %p111 = scmp.eq.s32.totalorder %s38, 0
      %p112 = por %p110, %p111
      %p113 = scmp.ne.s32.totalorder %s105, %s107
      %p114 = scmp.eq.s32.totalorder %s43, 3
      %p115 = por %p113, %p114
      %p116 = scmp.ne.s32.totalorder %s107, %s108
      %p117 = scmp.eq.s32.totalorder %s43, 0
      %p118 = por %p116, %p117
      %p119 = scmp.ne.s32.totalorder %s107, %s108
      %p120 = scmp.eq.s32.totalorder %s44, 3
      %p121 = por %p119, %p120
      %p123 = scmp.ne.s32.totalorder %s108, %s122
      %p124 = scmp.eq.s32.totalorder %s44, 0
      %p125 = por %p123, %p124
      %s127 = sadd.s32 %s126, 1
      %p130 = scmp.eq.s32.totalorder %s38, 3
      %p131 = scmp.ne.s32.totalorder %s126, %s128
      %p132 = scmp.eq.s32.totalorder %s38, 0
      %p133 = por %p131, %p132
      %p134 = scmp.ne.s32.totalorder %s126, %s128
      %p135 = scmp.eq.s32.totalorder %s43, 3
      %p136 = por %p134, %p135
      %p137 = scmp.ne.s32.totalorder %s128, %s129
      %p138 = scmp.eq.s32.totalorder %s43, 0
      %p139 = por %p137, %p138
      %p140 = scmp.ne.s32.totalorder %s128, %s129
      %p141 = scmp.eq.s32.totalorder %s44, 3
      %p142 = por %p140, %p141
      %p144 = scmp.ne.s32.totalorder %s129, %s143
      %p145 = scmp.eq.s32.totalorder %s44, 0
      %p146 = por %p144, %p145
      %s148 = sadd.s32 %s147, 1
      %p151 = scmp.eq.s32.totalorder %s38, 3
      %p152 = scmp.ne.s32.totalorder %s147, %s149
      %p153 = scmp.eq.s32.totalorder %s38, 0
      %p154 = por %p152, %p153
      %p155 = scmp.ne.s32.totalorder %s147, %s149
      %p156 = scmp.eq.s32.totalorder %s43, 3
      %p157 = por %p155, %p156
      %p158 = scmp.ne.s32.totalorder %s149, %s150
      %p159 = scmp.eq.s32.totalorder %s43, 0
      %p160 = por %p158, %p159
      %p161 = scmp.ne.s32.totalorder %s149, %s150
      %p162 = scmp.eq.s32.totalorder %s44, 3
      %p163 = por %p161, %p162
      %p165 = scmp.ne.s32.totalorder %s150, %s164
      %p166 = scmp.eq.s32.totalorder %s44, 0
      %p167 = por %p165, %p166
      %s169 = sadd.s32 %s168, 1
      %p172 = scmp.eq.s32.totalorder %s38, 3
      %p173 = scmp.ne.s32.totalorder %s168, %s170
      %p174 = scmp.eq.s32.totalorder %s38, 0
      %p175 = por %p173, %p174
      %p176 = scmp.ne.s32.totalorder %s168, %s170
      %p177 = scmp.eq.s32.totalorder %s43, 3
      %p178 = por %p176, %p177
      %p179 = scmp.ne.s32.totalorder %s170, %s171
      %p180 = scmp.eq.s32.totalorder %s43, 0
      %p181 = por %p179, %p180
      %p182 = scmp.ne.s32.totalorder %s170, %s171
      %p183 = scmp.eq.s32.totalorder %s44, 3
      %p184 = por %p182, %p183
      %p186 = scmp.ne.s32.totalorder %s171, %s185
      %p187 = scmp.eq.s32.totalorder %s44, 0
      %p188 = por %p186, %p187
      %s190 = sadd.s32 %s189, 1
      %p193 = scmp.eq.s32.totalorder %s38, 3
      %p194 = scmp.ne.s32.totalorder %s189, %s191
      %p195 = scmp.eq.s32.totalorder %s38, 0
      %p196 = por %p194, %p195
      %p197 = scmp.ne.s32.totalorder %s189, %s191
      %p198 = scmp.eq.s32.totalorder %s43, 3
      %p199 = por %p197, %p198
      %p200 = scmp.ne.s32.totalorder %s191, %s192
      %p201 = scmp.eq.s32.totalorder %s43, 0
      %p202 = por %p200, %p201
      %p203 = scmp.ne.s32.totalorder %s191, %s192
      %p204 = scmp.eq.s32.totalorder %s44, 3
      %p205 = por %p203, %p204
      %p207 = scmp.ne.s32.totalorder %s192, %s206
      %p208 = scmp.eq.s32.totalorder %s44, 0
      %p209 = por %p207, %p208
      %s211 = sadd.s32 %s210, 1
      %p214 = scmp.eq.s32.totalorder %s38, 3
      %p215 = scmp.ne.s32.totalorder %s210, %s212
      %p216 = scmp.eq.s32.totalorder %s38, 0
      %p217 = por %p215, %p216
      %p218 = scmp.ne.s32.totalorder %s210, %s212
      %p219 = scmp.eq.s32.totalorder %s43, 3
      %p220 = por %p218, %p219
      %p221 = scmp.ne.s32.totalorder %s212, %s213
      %p222 = scmp.eq.s32.totalorder %s43, 0
      %p223 = por %p221, %p222
      %p224 = scmp.ne.s32.totalorder %s212, %s213
      %p225 = scmp.eq.s32.totalorder %s44, 3
      %p226 = por %p224, %p225
      %p228 = scmp.ne.s32.totalorder %s213, %s227
      %p229 = scmp.eq.s32.totalorder %s44, 0
      %p230 = por %p228, %p229
      %s231 = ssub.s32 %s46, %s53
      %p232 = scmp.eq.s32.totalorder %s231, 0
      %s234 = sadd.s32 %s233, 1
      %s235 = scalar_select %p232, %s233, %s234
      %p238 = pneg %p232
      %p239 = scmp.eq.s32.totalorder %s38, 3
      %p240 = por %p238, %p239
      %p241 = scmp.ne.s32.totalorder %s233, %s236
      %p242 = scmp.eq.s32.totalorder %s38, 0
      %p243 = por %p241, %p242
      %p244 = scmp.ne.s32.totalorder %s233, %s236
      %p245 = scmp.eq.s32.totalorder %s43, 3
      %p246 = por %p244, %p245
      %p247 = scmp.ne.s32.totalorder %s236, %s237
      %p248 = scmp.eq.s32.totalorder %s43, 0
      %p249 = por %p247, %p248
      %p250 = scmp.ne.s32.totalorder %s236, %s237
      %p251 = scmp.eq.s32.totalorder %s44, 3
      %p252 = por %p250, %p251
      %p254 = scmp.ne.s32.totalorder %s237, %s253
      %p255 = scmp.eq.s32.totalorder %s44, 0
      %p256 = por %p254, %p255
      %s257 = ssub.s32 %s46, %s53
      %p258 = scmp.eq.s32.totalorder %s257, 0
      %s260 = sadd.s32 %s259, 1
      %s261 = scalar_select %p258, %s259, %s260
      %p264 = pneg %p258
      %p265 = scmp.eq.s32.totalorder %s38, 3
      %p266 = por %p264, %p265
      %p267 = scmp.ne.s32.totalorder %s259, %s262
      %p268 = scmp.eq.s32.totalorder %s38, 0
      %p269 = por %p267, %p268
      %p270 = scmp.ne.s32.totalorder %s259, %s262
      %p271 = scmp.eq.s32.totalorder %s43, 3
      %p272 = por %p270, %p271
      %p273 = scmp.ne.s32.totalorder %s262, %s263
      %p274 = scmp.eq.s32.totalorder %s43, 0
      %p275 = por %p273, %p274
      %p276 = scmp.ne.s32.totalorder %s262, %s263
      %p277 = scmp.eq.s32.totalorder %s44, 3
      %p278 = por %p276, %p277
      %p280 = scmp.ne.s32.totalorder %s263, %s279
      %p281 = scmp.eq.s32.totalorder %s44, 0
      %p282 = por %p280, %p281
      %s283 = ssub.s32 %s46, %s53
      %p284 = scmp.eq.s32.totalorder %s283, 0
      %s286 = sadd.s32 %s285, 1
      %s287 = scalar_select %p284, %s285, %s286
      %p290 = pneg %p284
      %p291 = scmp.eq.s32.totalorder %s38, 3
      %p292 = por %p290, %p291
      %p293 = scmp.ne.s32.totalorder %s285, %s288
      %p294 = scmp.eq.s32.totalorder %s38, 0
      %p295 = por %p293, %p294
      %p296 = scmp.ne.s32.totalorder %s285, %s288
      %p297 = scmp.eq.s32.totalorder %s43, 3
      %p298 = por %p296, %p297
      %p299 = scmp.ne.s32.totalorder %s288, %s289
      %p300 = scmp.eq.s32.totalorder %s43, 0
      %p301 = por %p299, %p300
      %p302 = scmp.ne.s32.totalorder %s288, %s289
      %p303 = scmp.eq.s32.totalorder %s44, 3
      %p304 = por %p302, %p303
      %p306 = scmp.ne.s32.totalorder %s289, %s305
      %p307 = scmp.eq.s32.totalorder %s44, 0
      %p308 = por %p306, %p307
      %s309 = ssub.s32 %s46, %s53
      %p310 = scmp.eq.s32.totalorder %s309, 0
      %s312 = sadd.s32 %s311, 1
      %s313 = scalar_select %p310, %s311, %s312
      %p316 = pneg %p310
      %p317 = scmp.eq.s32.totalorder %s38, 3
      %p318 = por %p316, %p317
      %p319 = scmp.ne.s32.totalorder %s311, %s314
      %p320 = scmp.eq.s32.totalorder %s38, 0
      %p321 = por %p319, %p320
      %p322 = scmp.ne.s32.totalorder %s311, %s314
      %p323 = scmp.eq.s32.totalorder %s43, 3
      %p324 = por %p322, %p323
      %p325 = scmp.ne.s32.totalorder %s314, %s315
      %p326 = scmp.eq.s32.totalorder %s43, 0
      %p327 = por %p325, %p326
      %p328 = scmp.ne.s32.totalorder %s314, %s315
      %p329 = scmp.eq.s32.totalorder %s44, 3
      %p330 = por %p328, %p329
      %p332 = scmp.ne.s32.totalorder %s315, %s331
      %p333 = scmp.eq.s32.totalorder %s44, 0
      %p334 = por %p332, %p333
      %s335 = ssub.s32 %s46, %s53
      %p336 = scmp.eq.s32.totalorder %s335, 0
      %s338 = sadd.s32 %s337, 1
      %s339 = scalar_select %p336, %s337, %s338
      %p342 = pneg %p336
      %p343 = scmp.eq.s32.totalorder %s38, 3
      %p344 = por %p342, %p343
      %p345 = scmp.ne.s32.totalorder %s337, %s340
      %p346 = scmp.eq.s32.totalorder %s38, 0
      %p347 = por %p345, %p346
      %p348 = scmp.ne.s32.totalorder %s337, %s340
      %p349 = scmp.eq.s32.totalorder %s43, 3
      %p350 = por %p348, %p349
      %p351 = scmp.ne.s32.totalorder %s340, %s341
      %p352 = scmp.eq.s32.totalorder %s43, 0
      %p353 = por %p351, %p352
      %p354 = scmp.ne.s32.totalorder %s340, %s341
      %p355 = scmp.eq.s32.totalorder %s44, 3
      %p356 = por %p354, %p355
      %p358 = scmp.ne.s32.totalorder %s341, %s357
      %p359 = scmp.eq.s32.totalorder %s44, 0
      %p360 = por %p358, %p359
      %s361 = ssub.s32 %s46, %s53
      %p362 = scmp.eq.s32.totalorder %s361, 0
      %s364 = sadd.s32 %s363, 1
      %s365 = scalar_select %p362, %s363, %s364
      %p368 = pneg %p362
      %p369 = scmp.eq.s32.totalorder %s38, 3
      %p370 = por %p368, %p369
      %p371 = scmp.ne.s32.totalorder %s363, %s366
      %p372 = scmp.eq.s32.totalorder %s38, 0
      %p373 = por %p371, %p372
      %p374 = scmp.ne.s32.totalorder %s363, %s366
      %p375 = scmp.eq.s32.totalorder %s43, 3
      %p376 = por %p374, %p375
      %p377 = scmp.ne.s32.totalorder %s366, %s367
      %p378 = scmp.eq.s32.totalorder %s43, 0
      %p379 = por %p377, %p378
      %p380 = scmp.ne.s32.totalorder %s366, %s367
      %p381 = scmp.eq.s32.totalorder %s44, 3
      %p382 = por %p380, %p381
      %p384 = scmp.ne.s32.totalorder %s367, %s383
      %p385 = scmp.eq.s32.totalorder %s44, 0
      %p386 = por %p384, %p385
      %s387 = ssub.s32 %s46, %s53
      %p388 = scmp.eq.s32.totalorder %s387, 0
      %s390 = sadd.s32 %s389, 1
      %s391 = scalar_select %p388, %s389, %s390
      %p394 = pneg %p388
      %p395 = scmp.eq.s32.totalorder %s38, 3
      %p396 = por %p394, %p395
      %p397 = scmp.ne.s32.totalorder %s389, %s392
      %p398 = scmp.eq.s32.totalorder %s38, 0
      %p399 = por %p397, %p398
      %p400 = scmp.ne.s32.totalorder %s389, %s392
      %p401 = scmp.eq.s32.totalorder %s43, 3
      %p402 = por %p400, %p401
      %p403 = scmp.ne.s32.totalorder %s392, %s393
      %p404 = scmp.eq.s32.totalorder %s43, 0
      %p405 = por %p403, %p404
      %p406 = scmp.ne.s32.totalorder %s392, %s393
      %p407 = scmp.eq.s32.totalorder %s44, 3
      %p408 = por %p406, %p407
      %p410 = scmp.ne.s32.totalorder %s393, %s409
      %p411 = scmp.eq.s32.totalorder %s44, 0
      %p412 = por %p410, %p411
      %s413 = ssub.s32 %s46, %s53
      %p414 = scmp.eq.s32.totalorder %s413, 0
      %s416 = sadd.s32 %s415, 1
      %s417 = scalar_select %p414, %s415, %s416
      %p420 = pneg %p414
      %p421 = scmp.eq.s32.totalorder %s38, 3
      %p422 = por %p420, %p421
      %p423 = scmp.ne.s32.totalorder %s415, %s418
      %p424 = scmp.eq.s32.totalorder %s38, 0
      %p425 = por %p423, %p424
      %p426 = scmp.ne.s32.totalorder %s415, %s418
      %p427 = scmp.eq.s32.totalorder %s43, 3
      %p428 = por %p426, %p427
      %p429 = scmp.ne.s32.totalorder %s418, %s419
      %p430 = scmp.eq.s32.totalorder %s43, 0
      %p431 = por %p429, %p430
      %p432 = scmp.ne.s32.totalorder %s418, %s419
      %p433 = scmp.eq.s32.totalorder %s44, 3
      %p434 = por %p432, %p433
      %p436 = scmp.ne.s32.totalorder %s419, %s435
      %p437 = scmp.eq.s32.totalorder %s44, 0
      %p438 = por %p436, %p437
      %s439 = ssub.s32 %s46, %s53
      %p440 = scmp.eq.s32.totalorder %s439, 0
      %s442 = sadd.s32 %s441, 1
      %s443 = scalar_select %p440, %s441, %s442
      %p446 = pneg %p440
      %p447 = scmp.eq.s32.totalorder %s38, 3
      %p448 = por %p446, %p447
      %p449 = scmp.ne.s32.totalorder %s441, %s444
      %p450 = scmp.eq.s32.totalorder %s38, 0
      %p451 = por %p449, %p450
      %p452 = scmp.ne.s32.totalorder %s441, %s444
      %p453 = scmp.eq.s32.totalorder %s43, 3
      %p454 = por %p452, %p453
      %p455 = scmp.ne.s32.totalorder %s444, %s445
      %p456 = scmp.eq.s32.totalorder %s43, 0
      %p457 = por %p455, %p456
      %p458 = scmp.ne.s32.totalorder %s444, %s445
      %p459 = scmp.eq.s32.totalorder %s44, 3
      %p460 = por %p458, %p459
      %p462 = scmp.ne.s32.totalorder %s445, %s461
      %p463 = scmp.eq.s32.totalorder %s44, 0
      %p464 = por %p462, %p463
      %s465 = ssub.s32 %s46, %s53
      %p466 = scmp.eq.s32.totalorder %s465, 0
      %s468 = sadd.s32 %s467, 1
      %s469 = scalar_select %p466, %s467, %s468
      %p472 = pneg %p466
      %p473 = scmp.eq.s32.totalorder %s38, 3
      %p474 = por %p472, %p473
      %p475 = scmp.ne.s32.totalorder %s467, %s470
      %p476 = scmp.eq.s32.totalorder %s38, 0
      %p477 = por %p475, %p476
      %p478 = scmp.ne.s32.totalorder %s467, %s470
      %p479 = scmp.eq.s32.totalorder %s43, 3
      %p480 = por %p478, %p479
      %p481 = scmp.ne.s32.totalorder %s470, %s471
      %p482 = scmp.eq.s32.totalorder %s43, 0
      %p483 = por %p481, %p482
      %p484 = scmp.ne.s32.totalorder %s470, %s471
      %p485 = scmp.eq.s32.totalorder %s44, 3
      %p486 = por %p484, %p485
      %p488 = scmp.ne.s32.totalorder %s471, %s487
      %p489 = scmp.eq.s32.totalorder %s44, 0
      %p490 = por %p488, %p489
      %s491 = ssub.s32 %s46, %s53
      %p492 = scmp.eq.s32.totalorder %s491, 0
      %s494 = sadd.s32 %s493, 1
      %s495 = scalar_select %p492, %s493, %s494
      %p498 = pneg %p492
      %p499 = scmp.eq.s32.totalorder %s38, 3
      %p500 = por %p498, %p499
      %p501 = scmp.ne.s32.totalorder %s493, %s496
      %p502 = scmp.eq.s32.totalorder %s38, 0
      %p503 = por %p501, %p502
      %p504 = scmp.ne.s32.totalorder %s493, %s496
      %p505 = scmp.eq.s32.totalorder %s43, 3
      %p506 = por %p504, %p505
      %p507 = scmp.ne.s32.totalorder %s496, %s497
      %p508 = scmp.eq.s32.totalorder %s43, 0
      %p509 = por %p507, %p508
      %p510 = scmp.ne.s32.totalorder %s496, %s497
      %p511 = scmp.eq.s32.totalorder %s44, 3
      %p512 = por %p510, %p511
      %p514 = scmp.ne.s32.totalorder %s497, %s513
      %p515 = scmp.eq.s32.totalorder %s44, 0
      %p516 = por %p514, %p515
      %s517 = ssub.s32 %s46, %s53
      %p518 = scmp.eq.s32.totalorder %s517, 0
      %s520 = sadd.s32 %s519, 1
      %s521 = scalar_select %p518, %s519, %s520
      %p524 = pneg %p518
      %p525 = scmp.eq.s32.totalorder %s38, 3
      %p526 = por %p524, %p525
      %p527 = scmp.ne.s32.totalorder %s519, %s522
      %p528 = scmp.eq.s32.totalorder %s38, 0
      %p529 = por %p527, %p528
      %p530 = scmp.ne.s32.totalorder %s519, %s522
      %p531 = scmp.eq.s32.totalorder %s43, 3
      %p532 = por %p530, %p531
      %p533 = scmp.ne.s32.totalorder %s522, %s523
      %p534 = scmp.eq.s32.totalorder %s43, 0
      %p535 = por %p533, %p534
      %p536 = scmp.ne.s32.totalorder %s522, %s523
      %p537 = scmp.eq.s32.totalorder %s44, 3
      %p538 = por %p536, %p537
      %p540 = scmp.ne.s32.totalorder %s523, %s539
      %p541 = scmp.eq.s32.totalorder %s44, 0
      %p542 = por %p540, %p541
      %s544 = sadd.s32 %s543, 1
      %p547 = scmp.eq.s32.totalorder %s38, 3
      %p548 = scmp.ne.s32.totalorder %s543, %s545
      %p549 = scmp.eq.s32.totalorder %s38, 0
      %p550 = por %p548, %p549
      %p551 = scmp.ne.s32.totalorder %s543, %s545
      %p552 = scmp.eq.s32.totalorder %s43, 3
      %p553 = por %p551, %p552
      %p554 = scmp.ne.s32.totalorder %s545, %s546
      %p555 = scmp.eq.s32.totalorder %s43, 0
      %p556 = por %p554, %p555
      %p557 = scmp.ne.s32.totalorder %s545, %s546
      %p558 = scmp.eq.s32.totalorder %s44, 3
      %p559 = por %p557, %p558
      %p561 = scmp.ne.s32.totalorder %s546, %s560
      %p562 = scmp.eq.s32.totalorder %s44, 0
      %p563 = por %p561, %p562
      %s565 = sadd.s32 %s564, 1
      %p568 = scmp.eq.s32.totalorder %s38, 3
      %p569 = scmp.ne.s32.totalorder %s564, %s566
      %p570 = scmp.eq.s32.totalorder %s38, 0
      %p571 = por %p569, %p570
      %p572 = scmp.ne.s32.totalorder %s564, %s566
      %p573 = scmp.eq.s32.totalorder %s43, 3
      %p574 = por %p572, %p573
      %p575 = scmp.ne.s32.totalorder %s566, %s567
      %p576 = scmp.eq.s32.totalorder %s43, 0
      %p577 = por %p575, %p576
      %p578 = scmp.ne.s32.totalorder %s566, %s567
      %p579 = scmp.eq.s32.totalorder %s44, 3
      %p580 = por %p578, %p579
      %p582 = scmp.ne.s32.totalorder %s567, %s581
      %p583 = scmp.eq.s32.totalorder %s44, 0
      %p584 = por %p582, %p583
      %s586 = sadd.s32 %s585, 1
      %p589 = scmp.eq.s32.totalorder %s38, 3
      %p590 = scmp.ne.s32.totalorder %s585, %s587
      %p591 = scmp.eq.s32.totalorder %s38, 0
      %p592 = por %p590, %p591
      %p593 = scmp.ne.s32.totalorder %s585, %s587
      %p594 = scmp.eq.s32.totalorder %s43, 3
      %p595 = por %p593, %p594
      %p596 = scmp.ne.s32.totalorder %s587, %s588
      %p597 = scmp.eq.s32.totalorder %s43, 0
      %p598 = por %p596, %p597
      %p599 = scmp.ne.s32.totalorder %s587, %s588
      %p600 = scmp.eq.s32.totalorder %s44, 3
      %p601 = por %p599, %p600
      %p603 = scmp.ne.s32.totalorder %s588, %s602
      %p604 = scmp.eq.s32.totalorder %s44, 0
      %p605 = por %p603, %p604
      %s606 = ssub.s32 %s45, %s57
      %p607 = scmp.eq.s32.totalorder %s606, 0
      %s609 = sadd.s32 %s608, 1
      %s610 = scalar_select %p607, %s608, %s609
      %p613 = pneg %p607
      %p614 = scmp.eq.s32.totalorder %s38, 3
      %p615 = por %p613, %p614
      %p616 = scmp.ne.s32.totalorder %s608, %s611
      %p617 = scmp.eq.s32.totalorder %s38, 0
      %p618 = por %p616, %p617
      %p619 = scmp.ne.s32.totalorder %s608, %s611
      %p620 = scmp.eq.s32.totalorder %s43, 3
      %p621 = por %p619, %p620
      %p622 = scmp.ne.s32.totalorder %s611, %s612
      %p623 = scmp.eq.s32.totalorder %s43, 0
      %p624 = por %p622, %p623
      %p625 = scmp.ne.s32.totalorder %s611, %s612
      %p626 = scmp.eq.s32.totalorder %s44, 3
      %p627 = por %p625, %p626
      %p629 = scmp.ne.s32.totalorder %s612, %s628
      %p630 = scmp.eq.s32.totalorder %s44, 0
      %p631 = por %p629, %p630
      %p632 = scmp.le.s32.totalorder 1, %s38
      %p633 = scmp.lt.s32.totalorder %s38, 5
      %p634 = pnand %p632, %p633
      %p635 = pneg %p634
      // Predicated region
      $region9: #{tpu_custom_call.1} parent=5 // pred_check
        _
      $region10: #{tpu_custom_call.1} parent=5 // pred_check_branch
        %637 = sbr.rel (%p634) target = $region12
      $region11: #{tpu_custom_call.1} parent=5 // pred_region
        %s638 = ssub.s32 %s38, 1
        // Predicated region
        $region13: #{tpu_custom_call.1} parent=11 // pred_check
          %p639 = pneg %p97
        $region14: #{tpu_custom_call.1} parent=11 // pred_check_branch
          %641 = sbr.rel (%p639) target = $region16
        $region15: #{tpu_custom_call.1} parent=11 // pred_region
          _
        $region16: #{tpu_custom_call.1} parent=11 // pred_fallthru
          _
        // Predicated region
        $region17: #{tpu_custom_call.1} parent=11 // pred_check
          %p642 = pneg %p118
        $region18: #{tpu_custom_call.1} parent=11 // pred_check_branch
          %644 = sbr.rel (%p642) target = $region20
        $region19: #{tpu_custom_call.1} parent=11 // pred_region
          %s646 = ssub.s32 3072, 3072
          %647 = vsyncadd [#allocation7], %s646
          %s648 = sshll.u32 [#allocation6], 4
          %s649 = int_to_ptr.vmem [resolvable:$true] %s648
          %654 = dma.hbm_to_vmem [thread:$0]  %s2, 3072, %s649, [#allocation7], 128, 128, 8
        $region20: #{tpu_custom_call.1} parent=11 // pred_fallthru
          _
        // Predicated region
        $region21: #{tpu_custom_call.1} parent=11 // pred_check
          %p655 = pneg %p139
        $region22: #{tpu_custom_call.1} parent=11 // pred_check_branch
          %657 = sbr.rel (%p655) target = $region24
        $region23: #{tpu_custom_call.1} parent=11 // pred_region
          %s659 = ssub.s32 32, 32
          %660 = vsyncadd [#allocation7], %s659
          %s662 = sshll.u32 [#allocation8], 4
          %s663 = int_to_ptr.vmem [resolvable:$true] %s662
          %665 = dma.hbm_to_vmem [thread:$0]  %s3, 32, %s663, [#allocation7]
        $region24: #{tpu_custom_call.1} parent=11 // pred_fallthru
          _
        // Predicated region
        $region25: #{tpu_custom_call.1} parent=11 // pred_check
          %p666 = pneg %p160
        $region26: #{tpu_custom_call.1} parent=11 // pred_check_branch
          %668 = sbr.rel (%p666) target = $region28
        $region27: #{tpu_custom_call.1} parent=11 // pred_region
          %s670 = ssub.s32 32, 32
          %671 = vsyncadd [#allocation10], %s670
          %s673 = sshll.u32 [#allocation9], 4
          %s674 = int_to_ptr.vmem [resolvable:$true] %s673
          %676 = dma.hbm_to_vmem [thread:$0]  %s4, 32, %s674, [#allocation10]
        $region28: #{tpu_custom_call.1} parent=11 // pred_fallthru
          _
        // Predicated region
        $region29: #{tpu_custom_call.1} parent=11 // pred_check
          %p677 = pneg %p181
        $region30: #{tpu_custom_call.1} parent=11 // pred_check_branch
          %679 = sbr.rel (%p677) target = $region32
        $region31: #{tpu_custom_call.1} parent=11 // pred_region
          _
        $region32: #{tpu_custom_call.1} parent=11 // pred_fallthru
          _
        // Predicated region
        $region33: #{tpu_custom_call.1} parent=11 // pred_check
          %p680 = pneg %p202
        $region34: #{tpu_custom_call.1} parent=11 // pred_check_branch
          %682 = sbr.rel (%p680) target = $region36
        $region35: #{tpu_custom_call.1} parent=11 // pred_region
          %s684 = ssub.s32 32, 32
          %685 = vsyncadd [#allocation10], %s684
          %s687 = sshll.u32 [#allocation11], 4
          %s688 = int_to_ptr.vmem [resolvable:$true] %s687
          %690 = dma.hbm_to_vmem [thread:$0]  %s6, 32, %s688, [#allocation10]
        $region36: #{tpu_custom_call.1} parent=11 // pred_fallthru
          _
        // Predicated region
        $region37: #{tpu_custom_call.1} parent=11 // pred_check
          %p691 = pneg %p223
        $region38: #{tpu_custom_call.1} parent=11 // pred_check_branch
          %693 = sbr.rel (%p691) target = $region40
        $region39: #{tpu_custom_call.1} parent=11 // pred_region
          %s695 = ssub.s32 32, 32
          %696 = vsyncadd [#allocation13], %s695
          %s698 = sshll.u32 [#allocation12], 4
          %s699 = int_to_ptr.vmem [resolvable:$true] %s698
          %701 = dma.hbm_to_vmem [thread:$0]  %s7, 32, %s699, [#allocation13]
        $region40: #{tpu_custom_call.1} parent=11 // pred_fallthru
          _
        // Predicated region
        $region41: #{tpu_custom_call.1} parent=11 // pred_check
          %p702 = pneg %p556
        $region42: #{tpu_custom_call.1} parent=11 // pred_check_branch
          %704 = sbr.rel (%p702) target = $region44
        $region43: #{tpu_custom_call.1} parent=11 // pred_region
          _
        $region44: #{tpu_custom_call.1} parent=11 // pred_fallthru
          _
        // Predicated region
        $region45: #{tpu_custom_call.1} parent=11 // pred_check
          %p705 = pneg %p577
        $region46: #{tpu_custom_call.1} parent=11 // pred_check_branch
          %707 = sbr.rel (%p705) target = $region48
        $region47: #{tpu_custom_call.1} parent=11 // pred_region
          _
        $region48: #{tpu_custom_call.1} parent=11 // pred_fallthru
          _
        // Predicated region
        $region49: #{tpu_custom_call.1} parent=11 // pred_check
          %p708 = pneg %p598
        $region50: #{tpu_custom_call.1} parent=11 // pred_check_branch
          %710 = sbr.rel (%p708) target = $region52
        $region51: #{tpu_custom_call.1} parent=11 // pred_region
          %s712 = ssub.s32 2048, 2048
          %713 = vsyncadd [#allocation7], %s712
          %s714 = sshll.u32 [#allocation21], 4
          %s715 = int_to_ptr.vmem [resolvable:$true] %s714
          %720 = dma.hbm_to_vmem [thread:$0]  %s22, 2048, %s715, [#allocation7], 64, 64, 4
        $region52: #{tpu_custom_call.1} parent=11 // pred_fallthru
          _
      $region12: #{tpu_custom_call.1} parent=5 // pred_fallthru
        _
      %p721 = scmp.lt.s32.totalorder %s38, 4
      // Predicated region
      $region53: #{tpu_custom_call.1} parent=5 // pred_check
        %p722 = pneg %p721
      $region54: #{tpu_custom_call.1} parent=5 // pred_check_branch
        %724 = sbr.rel (%p722) target = $region56
      $region55: #{tpu_custom_call.1} parent=5 // pred_region
        // Predicated region
        $region57: #{tpu_custom_call.1} parent=55 // pred_check
          %p725 = pneg %p70
        $region58: #{tpu_custom_call.1} parent=55 // pred_check_branch
          %727 = sbr.rel (%p725) target = $region60
        $region59: #{tpu_custom_call.1} parent=55 // pred_region
          %s728 = sand.u32 %s38, 1
          %s729 = scalar_lea.sflag [#allocation4], %s728
          %s730 = sand.u32 %s60, 1
          %s731 = smul.addr %s730, 128
          %s732 = scalar_lea.vmem [#allocation3], %s731
          %s733 = smul.u32 8, %s45
          %s735 = ssub.s32 2048, 2048
          %736 = vsyncadd %s729, %s735
          %s737 = smul.addr %s733, 2
          %s738 = smul.addr %s737, 128
          %s739 = scalar_lea.hbm %s0, %s738
          %s740 = sshll.u32 %s732, 4
          %s741 = int_to_ptr.vmem [resolvable:$true] %s740
          %746 = dma.hbm_to_vmem [thread:$0]  %s739, 2048, %s741, %s729, 256, 256, 16
        $region60: #{tpu_custom_call.1} parent=55 // pred_fallthru
          _
        // Predicated region
        $region61: #{tpu_custom_call.1} parent=55 // pred_check
          %p747 = pneg %p243
        $region62: #{tpu_custom_call.1} parent=55 // pred_check_branch
          %749 = sbr.rel (%p747) target = $region64
        $region63: #{tpu_custom_call.1} parent=55 // pred_region
          %s750 = sand.u32 %s38, 1
          %s751 = scalar_lea.sflag [#allocation4], %s750
          %s752 = sand.u32 %s233, 1
          %s753 = smul.addr %s752, 2
          %s754 = scalar_lea.vmem [#allocation14], %s753
          %s756 = ssub.s32 32, 32
          %757 = vsyncadd %s751, %s756
          %s758 = smul.addr %s46, 2
          %s759 = smul.addr %s758, 16
          %s760 = scalar_lea.hbm %s8, %s759
          %s762 = sshll.u32 %s754, 4
          %s763 = int_to_ptr.vmem [resolvable:$true] %s762
          %765 = dma.hbm_to_vmem [thread:$0]  %s760, 32, %s763, %s751
        $region64: #{tpu_custom_call.1} parent=55 // pred_fallthru
          _
        // Predicated region
        $region65: #{tpu_custom_call.1} parent=55 // pred_check
          %p766 = pneg %p269
        $region66: #{tpu_custom_call.1} parent=55 // pred_check_branch
          %768 = sbr.rel (%p766) target = $region68
        $region67: #{tpu_custom_call.1} parent=55 // pred_region
          %s769 = sand.u32 %s38, 1
          %s770 = scalar_lea.sflag [#allocation4], %s769
          %s771 = sand.u32 %s259, 1
          %s772 = smul.addr %s771, 2
          %s773 = scalar_lea.vmem [#allocation15], %s772
          %s775 = ssub.s32 32, 32
          %776 = vsyncadd %s770, %s775
          %s777 = smul.addr %s46, 2
          %s778 = smul.addr %s777, 16
          %s779 = scalar_lea.hbm %s9, %s778
          %s781 = sshll.u32 %s773, 4
          %s782 = int_to_ptr.vmem [resolvable:$true] %s781
          %784 = dma.hbm_to_vmem [thread:$0]  %s779, 32, %s782, %s770
        $region68: #{tpu_custom_call.1} parent=55 // pred_fallthru
          _
        // Predicated region
        $region69: #{tpu_custom_call.1} parent=55 // pred_check
          %p785 = pneg %p295
        $region70: #{tpu_custom_call.1} parent=55 // pred_check_branch
          %787 = sbr.rel (%p785) target = $region72
        $region71: #{tpu_custom_call.1} parent=55 // pred_region
          %s788 = sand.u32 %s38, 1
          %s789 = scalar_lea.sflag [#allocation4], %s788
          %s790 = sand.u32 %s285, 1
          %s791 = smul.addr %s790, 768
          %s792 = scalar_lea.vmem [#allocation16], %s791
          %s794 = ssub.s32 12288, 12288
          %795 = vsyncadd %s789, %s794
          %s796 = smul.addr %s46, 192
          %s797 = smul.addr %s796, 64
          %s798 = scalar_lea.hbm %s10, %s797
          %s799 = sshll.u32 %s792, 4
          %s800 = int_to_ptr.vmem [resolvable:$true] %s799
          %805 = dma.hbm_to_vmem [thread:$0]  %s798, 12288, %s800, %s789, 384, 384, 24
        $region72: #{tpu_custom_call.1} parent=55 // pred_fallthru
          _
        // Predicated region
        $region73: #{tpu_custom_call.1} parent=55 // pred_check
          %p806 = pneg %p321
        $region74: #{tpu_custom_call.1} parent=55 // pred_check_branch
          %808 = sbr.rel (%p806) target = $region76
        $region75: #{tpu_custom_call.1} parent=55 // pred_region
          %s809 = sand.u32 %s38, 1
          %s810 = scalar_lea.sflag [#allocation4], %s809
          %s811 = sand.u32 %s311, 1
          %s812 = smul.addr %s811, 6
          %s813 = scalar_lea.vmem [#allocation17], %s812
          %s815 = ssub.s32 96, 96
          %816 = vsyncadd %s810, %s815
          %s817 = smul.addr %s46, 6
          %s818 = smul.addr %s817, 16
          %s819 = scalar_lea.hbm %s11, %s818
          %s821 = sshll.u32 %s813, 4
          %s822 = int_to_ptr.vmem [resolvable:$true] %s821
          %824 = dma.hbm_to_vmem [thread:$0]  %s819, 96, %s822, %s810
        $region76: #{tpu_custom_call.1} parent=55 // pred_fallthru
          _
        // Predicated region
        $region77: #{tpu_custom_call.1} parent=55 // pred_check
          %p825 = pneg %p347
        $region78: #{tpu_custom_call.1} parent=55 // pred_check_branch
          %827 = sbr.rel (%p825) target = $region80
        $region79: #{tpu_custom_call.1} parent=55 // pred_region
          %s828 = sand.u32 %s38, 1
          %s829 = scalar_lea.sflag [#allocation4], %s828
          %s830 = sand.u32 %s337, 1
          %s831 = smul.addr %s830, 256
          %s832 = scalar_lea.vmem [#allocation18], %s831
          %s834 = ssub.s32 4096, 4096
          %835 = vsyncadd %s829, %s834
          %s836 = smul.addr %s46, 64
          %s837 = smul.addr %s836, 64
          %s838 = scalar_lea.hbm %s12, %s837
          %s839 = sshll.u32 %s832, 4
          %s840 = int_to_ptr.vmem [resolvable:$true] %s839
          %845 = dma.hbm_to_vmem [thread:$0]  %s838, 4096, %s840, %s829, 128, 128, 8
        $region80: #{tpu_custom_call.1} parent=55 // pred_fallthru
          _
        // Predicated region
        $region81: #{tpu_custom_call.1} parent=55 // pred_check
          %p846 = pneg %p373
        $region82: #{tpu_custom_call.1} parent=55 // pred_check_branch
          %848 = sbr.rel (%p846) target = $region84
        $region83: #{tpu_custom_call.1} parent=55 // pred_region
          %p849 = scmp.lt.s32.totalorder %s46, 1
          %s850 = scalar_select %p849, %s46, 1
          %s851 = smul.addr %s850, 2
          %s852 = scalar_lea.vmem %s13, %s851
        $region84: #{tpu_custom_call.1} parent=55 // pred_fallthru
          _
        // Predicated region
        $region85: #{tpu_custom_call.1} parent=55 // pred_check
          %p853 = pneg %p399
        $region86: #{tpu_custom_call.1} parent=55 // pred_check_branch
          %855 = sbr.rel (%p853) target = $region88
        $region87: #{tpu_custom_call.1} parent=55 // pred_region
          %p856 = scmp.lt.s32.totalorder %s46, 1
          %s857 = scalar_select %p856, %s46, 1
          %s858 = smul.addr %s857, 2
          %s859 = scalar_lea.vmem %s14, %s858
        $region88: #{tpu_custom_call.1} parent=55 // pred_fallthru
          _
        // Predicated region
        $region89: #{tpu_custom_call.1} parent=55 // pred_check
          %p860 = pneg %p425
        $region90: #{tpu_custom_call.1} parent=55 // pred_check_branch
          %862 = sbr.rel (%p860) target = $region92
        $region91: #{tpu_custom_call.1} parent=55 // pred_region
          %p863 = scmp.lt.s32.totalorder %s46, 1
          %s864 = scalar_select %p863, %s46, 1
          %s865 = smul.addr %s864, 2
          %s866 = scalar_lea.vmem %s15, %s865
        $region92: #{tpu_custom_call.1} parent=55 // pred_fallthru
          _
        // Predicated region
        $region93: #{tpu_custom_call.1} parent=55 // pred_check
          %p867 = pneg %p451
        $region94: #{tpu_custom_call.1} parent=55 // pred_check_branch
          %869 = sbr.rel (%p867) target = $region96
        $region95: #{tpu_custom_call.1} parent=55 // pred_region
          %s870 = sand.u32 %s38, 1
          %s871 = scalar_lea.sflag [#allocation4], %s870
          %s872 = sand.u32 %s441, 1
          %s873 = smul.addr %s872, 1024
          %s874 = scalar_lea.vmem [#allocation19], %s873
          %s876 = ssub.s32 16384, 16384
          %877 = vsyncadd %s871, %s876
          %s878 = smul.addr %s46, 256
          %s879 = smul.addr %s878, 64
          %s880 = scalar_lea.hbm %s16, %s879
          %s881 = sshll.u32 %s874, 4
          %s882 = int_to_ptr.vmem [resolvable:$true] %s881
          %887 = dma.hbm_to_vmem [thread:$0]  %s880, 16384, %s882, %s871, 512, 512, 32
        $region96: #{tpu_custom_call.1} parent=55 // pred_fallthru
          _
        // Predicated region
        $region97: #{tpu_custom_call.1} parent=55 // pred_check
          %p888 = pneg %p477
        $region98: #{tpu_custom_call.1} parent=55 // pred_check_branch
          %890 = sbr.rel (%p888) target = $region100
        $region99: #{tpu_custom_call.1} parent=55 // pred_region
          %p891 = scmp.lt.s32.totalorder %s46, 1
          %s892 = scalar_select %p891, %s46, 1
          %s893 = smul.addr %s892, 8
          %s894 = scalar_lea.vmem %s17, %s893
        $region100: #{tpu_custom_call.1} parent=55 // pred_fallthru
          _
        // Predicated region
        $region101: #{tpu_custom_call.1} parent=55 // pred_check
          %p895 = pneg %p503
        $region102: #{tpu_custom_call.1} parent=55 // pred_check_branch
          %897 = sbr.rel (%p895) target = $region104
        $region103: #{tpu_custom_call.1} parent=55 // pred_region
          %s898 = sand.u32 %s38, 1
          %s899 = scalar_lea.sflag [#allocation4], %s898
          %s900 = sand.u32 %s493, 1
          %s901 = smul.addr %s900, 1024
          %s902 = scalar_lea.vmem [#allocation20], %s901
          %s904 = ssub.s32 16384, 16384
          %905 = vsyncadd %s899, %s904
          %s906 = smul.addr %s46, 256
          %s907 = smul.addr %s906, 64
          %s908 = scalar_lea.hbm %s18, %s907
          %s909 = sshll.u32 %s902, 4
          %s910 = int_to_ptr.vmem [resolvable:$true] %s909
          %915 = dma.hbm_to_vmem [thread:$0]  %s908, 16384, %s910, %s899, 128, 128, 8
        $region104: #{tpu_custom_call.1} parent=55 // pred_fallthru
          _
        // Predicated region
        $region105: #{tpu_custom_call.1} parent=55 // pred_check
          %p916 = pneg %p529
        $region106: #{tpu_custom_call.1} parent=55 // pred_check_branch
          %918 = sbr.rel (%p916) target = $region108
        $region107: #{tpu_custom_call.1} parent=55 // pred_region
          %p919 = scmp.lt.s32.totalorder %s46, 1
          %s920 = scalar_select %p919, %s46, 1
          %s921 = smul.addr %s920, 2
          %s922 = scalar_lea.vmem %s19, %s921
        $region108: #{tpu_custom_call.1} parent=55 // pred_fallthru
          _
      $region56: #{tpu_custom_call.1} parent=5 // pred_fallthru
        _
      %p923 = scmp.le.s32.totalorder 1, %s38
      %p924 = scmp.lt.s32.totalorder %s38, 5
      %p925 = pnand %p923, %p924
      %p926 = pneg %p925
      // Predicated region
      $region109: #{tpu_custom_call.1} parent=5 // pred_check
        _
      $region110: #{tpu_custom_call.1} parent=5 // pred_check_branch
        %928 = sbr.rel (%p925) target = $region112
      $region111: #{tpu_custom_call.1} parent=5 // pred_region
        %s929 = ssub.s32 %s38, 1
        %s930 = sand.u32 %s43, 1
        %s931 = scalar_lea.sflag [#allocation4], %s930
        %s932 = sand.u32 %s63, 1
        %s933 = smul.addr %s932, 128
        %s934 = scalar_lea.vmem [#allocation3], %s933
        // Predicated region
        $region113: #{tpu_custom_call.1} parent=111 // pred_check
          %p935 = pneg %p76
        $region114: #{tpu_custom_call.1} parent=111 // pred_check_branch
          %937 = sbr.rel (%p935) target = $region116
        $region115: #{tpu_custom_call.1} parent=111 // pred_region
          %938 = dma.done %s931, 2048
        $region116: #{tpu_custom_call.1} parent=111 // pred_fallthru
          _
        // Predicated region
        $region117: #{tpu_custom_call.1} parent=111 // pred_check
          %p939 = pneg %p118
        $region118: #{tpu_custom_call.1} parent=111 // pred_check_branch
          %941 = sbr.rel (%p939) target = $region120
        $region119: #{tpu_custom_call.1} parent=111 // pred_region
          %942 = dma.done [#allocation7], 3072
        $region120: #{tpu_custom_call.1} parent=111 // pred_fallthru
          _
        // Predicated region
        $region121: #{tpu_custom_call.1} parent=111 // pred_check
          %p943 = pneg %p139
        $region122: #{tpu_custom_call.1} parent=111 // pred_check_branch
          %945 = sbr.rel (%p943) target = $region124
        $region123: #{tpu_custom_call.1} parent=111 // pred_region
          %946 = dma.done [#allocation7], 32
        $region124: #{tpu_custom_call.1} parent=111 // pred_fallthru
          _
        // Predicated region
        $region125: #{tpu_custom_call.1} parent=111 // pred_check
          %p947 = pneg %p160
        $region126: #{tpu_custom_call.1} parent=111 // pred_check_branch
          %949 = sbr.rel (%p947) target = $region128
        $region127: #{tpu_custom_call.1} parent=111 // pred_region
          %950 = dma.done [#allocation10], 32
        $region128: #{tpu_custom_call.1} parent=111 // pred_fallthru
          _
        // Predicated region
        $region129: #{tpu_custom_call.1} parent=111 // pred_check
          %p951 = pneg %p202
        $region130: #{tpu_custom_call.1} parent=111 // pred_check_branch
          %953 = sbr.rel (%p951) target = $region132
        $region131: #{tpu_custom_call.1} parent=111 // pred_region
          %954 = dma.done [#allocation10], 32
        $region132: #{tpu_custom_call.1} parent=111 // pred_fallthru
          _
        // Predicated region
        $region133: #{tpu_custom_call.1} parent=111 // pred_check
          %p955 = pneg %p223
        $region134: #{tpu_custom_call.1} parent=111 // pred_check_branch
          %957 = sbr.rel (%p955) target = $region136
        $region135: #{tpu_custom_call.1} parent=111 // pred_region
          %958 = dma.done [#allocation13], 32
        $region136: #{tpu_custom_call.1} parent=111 // pred_fallthru
          _
        %s959 = sand.u32 %s43, 1
        %s960 = scalar_lea.sflag [#allocation4], %s959
        %s961 = sand.u32 %s236, 1
        %s962 = smul.addr %s961, 2
        %s963 = scalar_lea.vmem [#allocation14], %s962
        // Predicated region
        $region137: #{tpu_custom_call.1} parent=111 // pred_check
          %p964 = pneg %p249
        $region138: #{tpu_custom_call.1} parent=111 // pred_check_branch
          %966 = sbr.rel (%p964) target = $region140
        $region139: #{tpu_custom_call.1} parent=111 // pred_region
          %967 = dma.done %s960, 32
        $region140: #{tpu_custom_call.1} parent=111 // pred_fallthru
          _
        %s968 = sand.u32 %s43, 1
        %s969 = scalar_lea.sflag [#allocation4], %s968
        %s970 = sand.u32 %s262, 1
        %s971 = smul.addr %s970, 2
        %s972 = scalar_lea.vmem [#allocation15], %s971
        // Predicated region
        $region141: #{tpu_custom_call.1} parent=111 // pred_check
          %p973 = pneg %p275
        $region142: #{tpu_custom_call.1} parent=111 // pred_check_branch
          %975 = sbr.rel (%p973) target = $region144
        $region143: #{tpu_custom_call.1} parent=111 // pred_region
          %976 = dma.done %s969, 32
        $region144: #{tpu_custom_call.1} parent=111 // pred_fallthru
          _
        %s977 = sand.u32 %s43, 1
        %s978 = scalar_lea.sflag [#allocation4], %s977
        %s979 = sand.u32 %s288, 1
        %s980 = smul.addr %s979, 768
        %s981 = scalar_lea.vmem [#allocation16], %s980
        // Predicated region
        $region145: #{tpu_custom_call.1} parent=111 // pred_check
          %p982 = pneg %p301
        $region146: #{tpu_custom_call.1} parent=111 // pred_check_branch
          %984 = sbr.rel (%p982) target = $region148
        $region147: #{tpu_custom_call.1} parent=111 // pred_region
          %985 = dma.done %s978, 12288
        $region148: #{tpu_custom_call.1} parent=111 // pred_fallthru
          _
        %s986 = sand.u32 %s43, 1
        %s987 = scalar_lea.sflag [#allocation4], %s986
        %s988 = sand.u32 %s314, 1
        %s989 = smul.addr %s988, 6
        %s990 = scalar_lea.vmem [#allocation17], %s989
        // Predicated region
        $region149: #{tpu_custom_call.1} parent=111 // pred_check
          %p991 = pneg %p327
        $region150: #{tpu_custom_call.1} parent=111 // pred_check_branch
          %993 = sbr.rel (%p991) target = $region152
        $region151: #{tpu_custom_call.1} parent=111 // pred_region
          %994 = dma.done %s987, 96
        $region152: #{tpu_custom_call.1} parent=111 // pred_fallthru
          _
        %s995 = sand.u32 %s43, 1
        %s996 = scalar_lea.sflag [#allocation4], %s995
        %s997 = sand.u32 %s340, 1
        %s998 = smul.addr %s997, 256
        %s999 = scalar_lea.vmem [#allocation18], %s998
        // Predicated region
        $region153: #{tpu_custom_call.1} parent=111 // pred_check
          %p1000 = pneg %p353
        $region154: #{tpu_custom_call.1} parent=111 // pred_check_branch
          %1002 = sbr.rel (%p1000) target = $region156
        $region155: #{tpu_custom_call.1} parent=111 // pred_region
          %1003 = dma.done %s996, 4096
        $region156: #{tpu_custom_call.1} parent=111 // pred_fallthru
          _
        %s1004 = sand.u32 %s43, 1
        %s1005 = scalar_lea.sflag [#allocation4], %s1004
        %s1006 = sand.u32 %s444, 1
        %s1007 = smul.addr %s1006, 1024
        %s1008 = scalar_lea.vmem [#allocation19], %s1007
        // Predicated region
        $region157: #{tpu_custom_call.1} parent=111 // pred_check
          %p1009 = pneg %p457
        $region158: #{tpu_custom_call.1} parent=111 // pred_check_branch
          %1011 = sbr.rel (%p1009) target = $region160
        $region159: #{tpu_custom_call.1} parent=111 // pred_region
          %1012 = dma.done %s1005, 16384
        $region160: #{tpu_custom_call.1} parent=111 // pred_fallthru
          _
        %s1013 = sand.u32 %s43, 1
        %s1014 = scalar_lea.sflag [#allocation4], %s1013
        %s1015 = sand.u32 %s496, 1
        %s1016 = smul.addr %s1015, 1024
        %s1017 = scalar_lea.vmem [#allocation20], %s1016
        // Predicated region
        $region161: #{tpu_custom_call.1} parent=111 // pred_check
          %p1018 = pneg %p509
        $region162: #{tpu_custom_call.1} parent=111 // pred_check_branch
          %1020 = sbr.rel (%p1018) target = $region164
        $region163: #{tpu_custom_call.1} parent=111 // pred_region
          %1021 = dma.done %s1014, 16384
        $region164: #{tpu_custom_call.1} parent=111 // pred_fallthru
          _
        // Predicated region
        $region165: #{tpu_custom_call.1} parent=111 // pred_check
          %p1022 = pneg %p598
        $region166: #{tpu_custom_call.1} parent=111 // pred_check_branch
          %1024 = sbr.rel (%p1022) target = $region168
        $region167: #{tpu_custom_call.1} parent=111 // pred_region
          %1025 = dma.done [#allocation7], 2048
        $region168: #{tpu_custom_call.1} parent=111 // pred_fallthru
          _
        %s1026 = sand.u32 %s43, 1
        %s1027 = scalar_lea.sflag [#allocation4], %s1026
        %s1028 = sand.u32 %s63, 1
        %s1029 = smul.addr %s1028, 128
        %s1030 = scalar_lea.vmem [#allocation3], %s1029
        %p1031 = pneg %p76
        %p1032 = pneg %p73
        %p1033 = pneg %p97
        %p1034 = pneg %p94
        %p1035 = pneg %p118
        %p1036 = pneg %p115
        %p1037 = pneg %p139
        %p1038 = pneg %p136
        %p1039 = pneg %p160
        %p1040 = pneg %p157
        %p1041 = pneg %p181
        %p1042 = pneg %p178
        %p1043 = pneg %p202
        %p1044 = pneg %p199
        %p1045 = pneg %p223
        %p1046 = pneg %p220
        %s1047 = sand.u32 %s43, 1
        %s1048 = scalar_lea.sflag [#allocation4], %s1047
        %s1049 = sand.u32 %s236, 1
        %s1050 = smul.addr %s1049, 2
        %s1051 = scalar_lea.vmem [#allocation14], %s1050
        %p1052 = pneg %p249
        %p1053 = pneg %p246
        %s1054 = sand.u32 %s43, 1
        %s1055 = scalar_lea.sflag [#allocation4], %s1054
        %s1056 = sand.u32 %s262, 1
        %s1057 = smul.addr %s1056, 2
        %s1058 = scalar_lea.vmem [#allocation15], %s1057
        %p1059 = pneg %p275
        %p1060 = pneg %p272
        %s1061 = sand.u32 %s43, 1
        %s1062 = scalar_lea.sflag [#allocation4], %s1061
        %s1063 = sand.u32 %s288, 1
        %s1064 = smul.addr %s1063, 768
        %s1065 = scalar_lea.vmem [#allocation16], %s1064
        %p1066 = pneg %p301
        %p1067 = pneg %p298
        %s1068 = sand.u32 %s43, 1
        %s1069 = scalar_lea.sflag [#allocation4], %s1068
        %s1070 = sand.u32 %s314, 1
        %s1071 = smul.addr %s1070, 6
        %s1072 = scalar_lea.vmem [#allocation17], %s1071
        %p1073 = pneg %p327
        %p1074 = pneg %p324
        %s1075 = sand.u32 %s43, 1
        %s1076 = scalar_lea.sflag [#allocation4], %s1075
        %s1077 = sand.u32 %s340, 1
        %s1078 = smul.addr %s1077, 256
        %s1079 = scalar_lea.vmem [#allocation18], %s1078
        %p1080 = pneg %p353
        %p1081 = pneg %p350
        %p1082 = scmp.lt.s32.totalorder %s48, 1
        %s1083 = scalar_select %p1082, %s48, 1
        %s1084 = smul.addr %s1083, 2
        %s1085 = scalar_lea.vmem %s13, %s1084
        %p1086 = pneg %p379
        %p1087 = pneg %p376
        %p1088 = scmp.lt.s32.totalorder %s48, 1
        %s1089 = scalar_select %p1088, %s48, 1
        %s1090 = smul.addr %s1089, 2
        %s1091 = scalar_lea.vmem %s14, %s1090
        %p1092 = pneg %p405
        %p1093 = pneg %p402
        %p1094 = scmp.lt.s32.totalorder %s48, 1
        %s1095 = scalar_select %p1094, %s48, 1
        %s1096 = smul.addr %s1095, 2
        %s1097 = scalar_lea.vmem %s15, %s1096
        %p1098 = pneg %p431
        %p1099 = pneg %p428
        %s1100 = sand.u32 %s43, 1
        %s1101 = scalar_lea.sflag [#allocation4], %s1100
        %s1102 = sand.u32 %s444, 1
        %s1103 = smul.addr %s1102, 1024
        %s1104 = scalar_lea.vmem [#allocation19], %s1103
        %p1105 = pneg %p457
        %p1106 = pneg %p454
        %p1107 = scmp.lt.s32.totalorder %s48, 1
        %s1108 = scalar_select %p1107, %s48, 1
        %s1109 = smul.addr %s1108, 8
        %s1110 = scalar_lea.vmem %s17, %s1109
        %p1111 = pneg %p483
        %p1112 = pneg %p480
        %s1113 = sand.u32 %s43, 1
        %s1114 = scalar_lea.sflag [#allocation4], %s1113
        %s1115 = sand.u32 %s496, 1
        %s1116 = smul.addr %s1115, 1024
        %s1117 = scalar_lea.vmem [#allocation20], %s1116
        %p1118 = pneg %p509
        %p1119 = pneg %p506
        %p1120 = scmp.lt.s32.totalorder %s48, 1
        %s1121 = scalar_select %p1120, %s48, 1
        %s1122 = smul.addr %s1121, 2
        %s1123 = scalar_lea.vmem %s19, %s1122
        %p1124 = pneg %p535
        %p1125 = pneg %p532
        %p1126 = pneg %p556
        %p1127 = pneg %p553
        %p1128 = pneg %p577
        %p1129 = pneg %p574
        %p1130 = pneg %p598
        %p1131 = pneg %p595
        %p1132 = pneg %p624
        %p1133 = pneg %p621
        %s1134 = sand.u32 %s611, 1
        %s1135 = scalar_lea.sflag [#allocation5], %s1134
        %s1136 = sand.u32 %s611, 1
        %s1137 = smul.addr %s1136, 8
        %s1138 = scalar_lea.vmem [#allocation22], %s1137
        %s1139 = smul.u32 8, %s47
        %p1140 = scmp.lt.s32.totalorder %s48, 1
        %s1141 = scalar_select %p1140, %s48, 1
        %s1142 = smul.addr %s1141, 2
        %s1143 = scalar_lea.vmem %s13, %s1142
        %p1144 = scmp.lt.s32.totalorder %s48, 1
        %s1145 = scalar_select %p1144, %s48, 1
        %s1146 = smul.addr %s1145, 2
        %s1147 = scalar_lea.vmem %s14, %s1146
        %p1148 = scmp.lt.s32.totalorder %s48, 1
        %s1149 = scalar_select %p1148, %s48, 1
        %s1150 = smul.addr %s1149, 2
        %s1151 = scalar_lea.vmem %s15, %s1150
        %p1152 = scmp.lt.s32.totalorder %s48, 1
        %s1153 = scalar_select %p1152, %s48, 1
        %s1154 = smul.addr %s1153, 8
        %s1155 = scalar_lea.vmem %s17, %s1154
        %p1156 = scmp.lt.s32.totalorder %s48, 1
        %s1157 = scalar_select %p1156, %s48, 1
        %s1158 = smul.addr %s1157, 2
        %s1159 = scalar_lea.vmem %s19, %s1158
        %s1160 = smul.u32 8, %s47
        %p1162 = scmp.eq.s32.totalorder %s48, 0
        // Predicated region
        $region169: #{tpu_custom_call.1} parent=111 // pred_check
          %p1163 = pneg %p1162
        $region170: #{tpu_custom_call.1} parent=111 // pred_check_branch
          %1165 = sbr.rel (%p1163) target = $region172
        $region171: #{tpu_custom_call.1} parent=111 // pred_region
          %v1166 = vld [vmem:[%s934] sm:$0xff]
          %v1167 = vld [vmem:[%s934 + $0x8] sm:$0xff]
          %v1168 = vld [vmem:[%s934 + $0x10] sm:$0xff]
          %v1169 = vld [vmem:[%s934 + $0x18] sm:$0xff]
          %v1170 = vld [vmem:[%s934 + $0x20] sm:$0xff]
          %v1171 = vld [vmem:[%s934 + $0x28] sm:$0xff]
          %v1172 = vld [vmem:[%s934 + $0x30] sm:$0xff]
          %v1173 = vld [vmem:[%s934 + $0x38] sm:$0xff]
          %v1174 = vld [vmem:[%s934 + $0x40] sm:$0xff]
          %v1175 = vld [vmem:[%s934 + $0x48] sm:$0xff]
          %v1176 = vld [vmem:[%s934 + $0x50] sm:$0xff]
          %v1177 = vld [vmem:[%s934 + $0x58] sm:$0xff]
          %v1178 = vld [vmem:[%s934 + $0x60] sm:$0xff]
          %v1179 = vld [vmem:[%s934 + $0x68] sm:$0xff]
          %v1180 = vld [vmem:[%s934 + $0x70] sm:$0xff]
          %v1181 = vld [vmem:[%s934 + $0x78] sm:$0xff]
          %v1182 = vpack.c.bf16 %v1168, %v1166
          %v1183 = vpack.c.bf16 %v1169, %v1167
          %v1184 = vpack.c.bf16 %v1172, %v1170
          %v1185 = vpack.c.bf16 %v1173, %v1171
          %v1186 = vpack.c.bf16 %v1176, %v1174
          %v1187 = vpack.c.bf16 %v1177, %v1175
          %v1188 = vpack.c.bf16 %v1180, %v1178
          %v1189 = vpack.c.bf16 %v1181, %v1179
          %v1190 = vld [vmem:[#allocation6] sm:$0xff]
          %v1191 = vld [vmem:[#allocation6 + $0x8] sm:$0xff]
          %v1192 = vld [vmem:[#allocation6 + $0x10] sm:$0xff]
          %v1193 = vld [vmem:[#allocation6 + $0x18] sm:$0xff]
          %v1194 = vld [vmem:[#allocation6 + $0x20] sm:$0xff]
          %v1195 = vld [vmem:[#allocation6 + $0x28] sm:$0xff]
          %v1196 = vld [vmem:[#allocation6 + $0x30] sm:$0xff]
          %v1197 = vld [vmem:[#allocation6 + $0x38] sm:$0xff]
          %v1198 = vld [vmem:[#allocation6 + $0x40] sm:$0xff]
          %v1199 = vld [vmem:[#allocation6 + $0x48] sm:$0xff]
          %v1200 = vld [vmem:[#allocation6 + $0x50] sm:$0xff]
          %v1201 = vld [vmem:[#allocation6 + $0x58] sm:$0xff]
          %v1202 = vld [vmem:[#allocation6 + $0x60] sm:$0xff]
          %v1203 = vld [vmem:[#allocation6 + $0x68] sm:$0xff]
          %v1204 = vld [vmem:[#allocation6 + $0x70] sm:$0xff]
          %v1205 = vld [vmem:[#allocation6 + $0x78] sm:$0xff]
          %v1206 = vld [vmem:[#allocation6 + $0x80] sm:$0xff]
          %v1207 = vld [vmem:[#allocation6 + $0x88] sm:$0xff]
          %v1208 = vld [vmem:[#allocation6 + $0x90] sm:$0xff]
          %v1209 = vld [vmem:[#allocation6 + $0x98] sm:$0xff]
          %v1210 = vld [vmem:[#allocation6 + $0xa0] sm:$0xff]
          %v1211 = vld [vmem:[#allocation6 + $0xa8] sm:$0xff]
          %v1212 = vld [vmem:[#allocation6 + $0xb0] sm:$0xff]
          %v1213 = vld [vmem:[#allocation6 + $0xb8] sm:$0xff]
          %v1238 = vunpack.c.l.b16 %v1190
          %v1239 = vunpack.c.h.b16 %v1190
          %v1240 = vunpack.c.l.b16 %v1191
          %v1241 = vunpack.c.h.b16 %v1191
          %v1242 = vunpack.c.l.b16 %v1192
          %v1243 = vunpack.c.h.b16 %v1192
          %v1244 = vunpack.c.l.b16 %v1193
          %v1245 = vunpack.c.h.b16 %v1193
          %v1246 = vunpack.c.l.b16 %v1194
          %v1247 = vunpack.c.h.b16 %v1194
          %v1248 = vunpack.c.l.b16 %v1195
          %v1249 = vunpack.c.h.b16 %v1195
          %v1250 = vunpack.c.l.b16 %v1196
          %v1251 = vunpack.c.h.b16 %v1196
          %v1252 = vunpack.c.l.b16 %v1197
          %v1253 = vunpack.c.h.b16 %v1197
          %v1254 = vunpack.c.l.b16 %v1198
          %v1255 = vunpack.c.h.b16 %v1198
          %v1256 = vunpack.c.l.b16 %v1199
          %v1257 = vunpack.c.h.b16 %v1199
          %v1258 = vunpack.c.l.b16 %v1200
          %v1259 = vunpack.c.h.b16 %v1200
          %v1260 = vunpack.c.l.b16 %v1201
          %v1261 = vunpack.c.h.b16 %v1201
          %v1262 = vunpack.c.l.b16 %v1202
          %v1263 = vunpack.c.h.b16 %v1202
          %v1264 = vunpack.c.l.b16 %v1203
          %v1265 = vunpack.c.h.b16 %v1203
          %v1266 = vunpack.c.l.b16 %v1204
          %v1267 = vunpack.c.h.b16 %v1204
          %v1268 = vunpack.c.l.b16 %v1205
          %v1269 = vunpack.c.h.b16 %v1205
          %v1270 = vunpack.c.l.b16 %v1206
          %v1271 = vunpack.c.h.b16 %v1206
          %v1272 = vunpack.c.l.b16 %v1207
          %v1273 = vunpack.c.h.b16 %v1207
          %v1274 = vunpack.c.l.b16 %v1208
          %v1275 = vunpack.c.h.b16 %v1208
          %v1276 = vunpack.c.l.b16 %v1209
          %v1277 = vunpack.c.h.b16 %v1209
          %v1278 = vunpack.c.l.b16 %v1210
          %v1279 = vunpack.c.h.b16 %v1210
          %v1280 = vunpack.c.l.b16 %v1211
          %v1281 = vunpack.c.h.b16 %v1211
          %v1282 = vunpack.c.l.b16 %v1212
          %v1283 = vunpack.c.h.b16 %v1212
          %v1284 = vunpack.c.l.b16 %v1213
          %v1285 = vunpack.c.h.b16 %v1213
          %v1286 = vpack.c.b16 %v1240, %v1238
          %v1287 = vpack.c.b16 %v1241, %v1239
          %v1288 = vpack.c.b16 %v1244, %v1242
          %v1289 = vpack.c.b16 %v1245, %v1243
          %v1290 = vpack.c.b16 %v1248, %v1246
          %v1291 = vpack.c.b16 %v1249, %v1247
          %v1292 = vpack.c.b16 %v1252, %v1250
          %v1293 = vpack.c.b16 %v1253, %v1251
          %v1294 = vpack.c.b16 %v1256, %v1254
          %v1295 = vpack.c.b16 %v1257, %v1255
          %v1296 = vpack.c.b16 %v1260, %v1258
          %v1297 = vpack.c.b16 %v1261, %v1259
          %v1298 = vpack.c.b16 %v1264, %v1262
          %v1299 = vpack.c.b16 %v1265, %v1263
          %v1300 = vpack.c.b16 %v1268, %v1266
          %v1301 = vpack.c.b16 %v1269, %v1267
          %v1302 = vpack.c.b16 %v1272, %v1270
          %v1303 = vpack.c.b16 %v1273, %v1271
          %v1304 = vpack.c.b16 %v1276, %v1274
          %v1305 = vpack.c.b16 %v1277, %v1275
          %v1306 = vpack.c.b16 %v1280, %v1278
          %v1307 = vpack.c.b16 %v1281, %v1279
          %v1308 = vpack.c.b16 %v1284, %v1282
          %v1309 = vpack.c.b16 %v1285, %v1283
          %vm1334 = vcmask 523264
          %v1336 = vsel %vm1334, %v1183, 0
          %v1339 = vsel %vm1334, %v1185, 0
          %v1342 = vsel %vm1334, %v1187, 0
          %v1345 = vsel %vm1334, %v1189, 0
          %1347 = vmatprep.subr.bf16.mxu0 %v1287
          %1348 = vmatpush1.bf16.msra.mxu0 %v1286
          %1349 = vmatprep.subr.bf16.mxu0 %v1289
          %1350 = vmatpush1.bf16.msra.mxu0 %v1288
          %1351 = vmatprep.subr.bf16.mxu0 %v1291
          %1352 = vmatpush1.bf16.msra.mxu0 %v1290
          %1353 = vmatprep.subr.bf16.mxu0 %v1293
          %1354 = vmatpush1.bf16.msra.mxu0 %v1292
          %1355 = vmatprep.subr.bf16.mxu0 %v1295
          %1356 = vmatpush1.bf16.msra.mxu0 %v1294
          %1357 = vmatprep.subr.bf16.mxu0 %v1297
          %1358 = vmatpush1.bf16.msra.mxu0 %v1296
          %1359 = vmatprep.subr.bf16.mxu0 %v1299
          %1360 = vmatpush1.bf16.msra.mxu0 %v1298
          %1361 = vmatprep.subr.bf16.mxu0 %v1301
          %1362 = vmatpush1.bf16.msra.mxu0 %v1300
          %1363 = vmatprep.subr.bf16.mxu0 %v1303
          %1364 = vmatpush1.bf16.msra.mxu0 %v1302
          %1365 = vmatprep.subr.bf16.mxu0 %v1305
          %1366 = vmatpush1.bf16.msra.mxu0 %v1304
          %1367 = vmatprep.subr.bf16.mxu0 %v1307
          %1368 = vmatpush1.bf16.msra.mxu0 %v1306
          %1369 = vmatprep.subr.bf16.mxu0 %v1309
          %1370 = vmatpush1.bf16.msra.mxu0 %v1308
          %1371 = vmatprep.subr.bf16.mxu0 0
          %1372 = vmatpush1.bf16.msra.mxu0 0
          %1373 = vmatprep.subr.bf16.mxu0 0
          %1374 = vmatpush1.bf16.msra.mxu0 0
          %1375 = vmatprep.subr.bf16.mxu0 0
          %1376 = vmatpush1.bf16.msra.mxu0 0
          %1377 = vmatprep.subr.bf16.mxu0 0
          %1378 = vmatpush1.bf16.msra.mxu0 0
          %1379 = vmatprep.mubr.bf16.mxu0 %v1336
          %1380 = vmatmul.mubr.bf16.gmra.mrb[0].mxu0 %v1182
          %v1381 = vpop.f32.mrb[0].mxu0
          %v1382 = vadd.f32 0.0, %v1381
          %v1383 = vpop.f32.mrb[0].mxu0
          %v1384 = vadd.f32 0.0, %v1383
          %v1385 = vpop.f32.mrb[0].mxu0
          %v1386 = vadd.f32 0.0, %v1385
          %v1387 = vpop.f32.mrb[0].mxu0
          %v1388 = vadd.f32 0.0, %v1387
          %1389 = vmatprep.mubr.bf16.mxu0 %v1339
          %1390 = vmatmul.mubr.bf16.gmra.mrb[0].mxu0 %v1184
          %v1391 = vpop.f32.mrb[0].mxu0
          %v1392 = vadd.f32 0.0, %v1391
          %v1393 = vpop.f32.mrb[0].mxu0
          %v1394 = vadd.f32 0.0, %v1393
          %v1395 = vpop.f32.mrb[0].mxu0
          %v1396 = vadd.f32 0.0, %v1395
          %v1397 = vpop.f32.mrb[0].mxu0
          %v1398 = vadd.f32 0.0, %v1397
          %1399 = vmatprep.mubr.bf16.mxu0 %v1342
          %1400 = vmatmul.mubr.bf16.gmra.mrb[0].mxu0 %v1186
          %v1401 = vpop.f32.mrb[0].mxu0
          %v1402 = vadd.f32 0.0, %v1401
          %v1403 = vpop.f32.mrb[0].mxu0
          %v1404 = vadd.f32 0.0, %v1403
          %v1405 = vpop.f32.mrb[0].mxu0
          %v1406 = vadd.f32 0.0, %v1405
          %v1407 = vpop.f32.mrb[0].mxu0
          %v1408 = vadd.f32 0.0, %v1407
          %1409 = vmatprep.mubr.bf16.mxu0 %v1345
          %1410 = vmatmul.mubr.bf16.gmra.mrb[0].mxu0 %v1188
          %v1411 = vpop.f32.mrb[0].mxu0
          %v1412 = vadd.f32 0.0, %v1411
          %v1413 = vpop.f32.mrb[0].mxu0
          %v1414 = vadd.f32 0.0, %v1413
          %v1415 = vpop.f32.mrb[0].mxu0
          %v1416 = vadd.f32 0.0, %v1415
          %v1417 = vpop.f32.mrb[0].mxu0
          %v1418 = vadd.f32 0.0, %v1417
          %1419 = vdwg.mxu0
          %v1420 = vlaneseq
          %v1421 = vshrl.u32 %v1420, 7
          %vm1422 = vcmp.ge.s32.totalorder %v1421, 1
          %vm1423 = vcmp.le.s32.totalorder %v1421, 4
          %vm1424 = vmand %vm1422, %vm1423
          %v1425 = vsel %vm1424, 1, 0
          %v1426 = vcvt.s32.f32 %v1425
          %vm1427 = vcmp.eq.s32.totalorder %v1421, 0
          %v1428 = vsel %vm1427, 1, 0
          %v1429 = vcvt.s32.f32 %v1428
          %v1430 = vld [vmem:[#allocation8] sm:$0x3]
          %v1432 = vlaneseq
          %v1433 = vshrl.u32 %v1432, 7
          %v1434 = vsub.s32 0, %v1433
          %v1435 = vrot.slane %v1430, %v1434
          %v1436 = vlaneseq
          %v1437 = vshrl.u32 %v1436, 7
          %v1438 = vsub.s32 1, %v1437
          %v1439 = vrot.slane %v1430, %v1438
          %v1442 = vmul.f32 %v1426, %v1435
          %v1443 = vmul.f32 %v1426, %v1439
          %v1444 = vadd.f32 %v1382, %v1442
          %v1445 = vadd.f32 %v1384, %v1443
          %v1446 = vadd.f32 %v1386, %v1442
          %v1447 = vadd.f32 %v1388, %v1443
          %v1448 = vadd.f32 %v1392, %v1442
          %v1449 = vadd.f32 %v1394, %v1443
          %v1450 = vadd.f32 %v1396, %v1442
          %v1451 = vadd.f32 %v1398, %v1443
          %v1452 = vadd.f32 %v1402, %v1442
          %v1453 = vadd.f32 %v1404, %v1443
          %v1454 = vadd.f32 %v1406, %v1442
          %v1455 = vadd.f32 %v1408, %v1443
          %v1456 = vadd.f32 %v1412, %v1442
          %v1457 = vadd.f32 %v1414, %v1443
          %v1458 = vadd.f32 %v1416, %v1442
          %v1459 = vadd.f32 %v1418, %v1443
          %v1460 = vld [vmem:[#allocation9] sm:$0x3]
          %v1462 = vlaneseq
          %v1463 = vshrl.u32 %v1462, 7
          %v1464 = vsub.s32 0, %v1463
          %v1465 = vrot.slane %v1460, %v1464
          %v1466 = vlaneseq
          %v1467 = vshrl.u32 %v1466, 7
          %v1468 = vsub.s32 1, %v1467
          %v1469 = vrot.slane %v1460, %v1468
          %v1472 = vmul.f32 %v1429, %v1465
          %v1473 = vmul.f32 %v1429, %v1469
          %v1474 = vadd.f32 %v1444, %v1472
          %v1475 = vadd.f32 %v1445, %v1473
          %v1476 = vadd.f32 %v1446, %v1472
          %v1477 = vadd.f32 %v1447, %v1473
          %v1478 = vadd.f32 %v1448, %v1472
          %v1479 = vadd.f32 %v1449, %v1473
          %v1480 = vadd.f32 %v1450, %v1472
          %v1481 = vadd.f32 %v1451, %v1473
          %v1482 = vadd.f32 %v1452, %v1472
          %v1483 = vadd.f32 %v1453, %v1473
          %v1484 = vadd.f32 %v1454, %v1472
          %v1485 = vadd.f32 %v1455, %v1473
          %v1486 = vadd.f32 %v1456, %v1472
          %v1487 = vadd.f32 %v1457, %v1473
          %v1488 = vadd.f32 %v1458, %v1472
          %v1489 = vadd.f32 %v1459, %v1473
          %v1490 = vld [vmem:[%s5] sm:$0xff]
          %v1491 = vld [vmem:[%s5 + $0x8] sm:$0xff]
          %v1492 = vadd.f32 %v1474, %v1490
          %v1493 = vadd.f32 %v1475, %v1491
          %v1494 = vadd.f32 %v1476, %v1490
          %v1495 = vadd.f32 %v1477, %v1491
          %v1496 = vadd.f32 %v1478, %v1490
          %v1497 = vadd.f32 %v1479, %v1491
          %v1498 = vadd.f32 %v1480, %v1490
          %v1499 = vadd.f32 %v1481, %v1491
          %v1500 = vadd.f32 %v1482, %v1490
          %v1501 = vadd.f32 %v1483, %v1491
          %v1502 = vadd.f32 %v1484, %v1490
          %v1503 = vadd.f32 %v1485, %v1491
          %v1504 = vadd.f32 %v1486, %v1490
          %v1505 = vadd.f32 %v1487, %v1491
          %v1506 = vadd.f32 %v1488, %v1490
          %v1507 = vadd.f32 %v1489, %v1491
          %v1508 = vld [vmem:[#allocation11] sm:$0x3]
          %v1509 = vld [vmem:[#allocation12] sm:$0x3]
          %v1510 = vadd.f32 %v1492, %v1493
          %1511 = vadd.xlane.f32.xlu0 %v1510
          %v1512 = vpop.xlane.xlu0 %1511
          %v1513 = vadd.f32 %v1494, %v1495
          %1514 = vadd.xlane.f32.xlu0 %v1513
          %v1515 = vpop.xlane.xlu0 %1514
          %v1516 = vadd.f32 %v1496, %v1497
          %1517 = vadd.xlane.f32.xlu0 %v1516
          %v1518 = vpop.xlane.xlu0 %1517
          %v1519 = vadd.f32 %v1498, %v1499
          %1520 = vadd.xlane.f32.xlu0 %v1519
          %v1521 = vpop.xlane.xlu0 %1520
          %v1522 = vadd.f32 %v1500, %v1501
          %1523 = vadd.xlane.f32.xlu0 %v1522
          %v1524 = vpop.xlane.xlu0 %1523
          %v1525 = vadd.f32 %v1502, %v1503
          %1526 = vadd.xlane.f32.xlu0 %v1525
          %v1527 = vpop.xlane.xlu0 %1526
          %v1528 = vadd.f32 %v1504, %v1505
          %1529 = vadd.xlane.f32.xlu0 %v1528
          %v1530 = vpop.xlane.xlu0 %1529
          %v1531 = vadd.f32 %v1506, %v1507
          %1532 = vadd.xlane.f32.xlu0 %v1531
          %v1533 = vpop.xlane.xlu0 %1532
          %v1534 = vrcp.pop 256.0
          %v1535 = vmul.f32 %v1512, %v1534
          %v1536 = vmul.f32 %v1515, %v1534
          %v1537 = vmul.f32 %v1518, %v1534
          %v1538 = vmul.f32 %v1521, %v1534
          %v1539 = vmul.f32 %v1524, %v1534
          %v1540 = vmul.f32 %v1527, %v1534
          %v1541 = vmul.f32 %v1530, %v1534
          %v1542 = vmul.f32 %v1533, %v1534
          %v1543 = vsub.f32 %v1492, %v1535
          %v1544 = vsub.f32 %v1493, %v1535
          %v1545 = vsub.f32 %v1494, %v1536
          %v1546 = vsub.f32 %v1495, %v1536
          %v1547 = vsub.f32 %v1496, %v1537
          %v1548 = vsub.f32 %v1497, %v1537
          %v1549 = vsub.f32 %v1498, %v1538
          %v1550 = vsub.f32 %v1499, %v1538
          %v1551 = vsub.f32 %v1500, %v1539
          %v1552 = vsub.f32 %v1501, %v1539
          %v1553 = vsub.f32 %v1502, %v1540
          %v1554 = vsub.f32 %v1503, %v1540
          %v1555 = vsub.f32 %v1504, %v1541
          %v1556 = vsub.f32 %v1505, %v1541
          %v1557 = vsub.f32 %v1506, %v1542
          %v1558 = vsub.f32 %v1507, %v1542
          %v1559 = vmul.f32 %v1543, %v1543
          %v1560 = vmul.f32 %v1544, %v1544
          %v1561 = vmul.f32 %v1545, %v1545
          %v1562 = vmul.f32 %v1546, %v1546
          %v1563 = vmul.f32 %v1547, %v1547
          %v1564 = vmul.f32 %v1548, %v1548
          %v1565 = vmul.f32 %v1549, %v1549
          %v1566 = vmul.f32 %v1550, %v1550
          %v1567 = vmul.f32 %v1551, %v1551
          %v1568 = vmul.f32 %v1552, %v1552
          %v1569 = vmul.f32 %v1553, %v1553
          %v1570 = vmul.f32 %v1554, %v1554
          %v1571 = vmul.f32 %v1555, %v1555
          %v1572 = vmul.f32 %v1556, %v1556
          %v1573 = vmul.f32 %v1557, %v1557
          %v1574 = vmul.f32 %v1558, %v1558
          %v1575 = vadd.f32 %v1559, %v1560
          %1576 = vadd.xlane.f32.xlu0 %v1575
          %v1577 = vpop.xlane.xlu0 %1576
          %v1578 = vadd.f32 %v1561, %v1562
          %1579 = vadd.xlane.f32.xlu0 %v1578
          %v1580 = vpop.xlane.xlu0 %1579
          %v1581 = vadd.f32 %v1563, %v1564
          %1582 = vadd.xlane.f32.xlu0 %v1581
          %v1583 = vpop.xlane.xlu0 %1582
          %v1584 = vadd.f32 %v1565, %v1566
          %1585 = vadd.xlane.f32.xlu0 %v1584
          %v1586 = vpop.xlane.xlu0 %1585
          %v1587 = vadd.f32 %v1567, %v1568
          %1588 = vadd.xlane.f32.xlu0 %v1587
          %v1589 = vpop.xlane.xlu0 %1588
          %v1590 = vadd.f32 %v1569, %v1570
          %1591 = vadd.xlane.f32.xlu0 %v1590
          %v1592 = vpop.xlane.xlu0 %1591
          %v1593 = vadd.f32 %v1571, %v1572
          %1594 = vadd.xlane.f32.xlu0 %v1593
          %v1595 = vpop.xlane.xlu0 %1594
          %v1596 = vadd.f32 %v1573, %v1574
          %1597 = vadd.xlane.f32.xlu0 %v1596
          %v1598 = vpop.xlane.xlu0 %1597
          %v1599 = vmul.f32 %v1577, %v1534
          %v1600 = vmul.f32 %v1580, %v1534
          %v1601 = vmul.f32 %v1583, %v1534
          %v1602 = vmul.f32 %v1586, %v1534
          %v1603 = vmul.f32 %v1589, %v1534
          %v1604 = vmul.f32 %v1592, %v1534
          %v1605 = vmul.f32 %v1595, %v1534
          %v1606 = vmul.f32 %v1598, %v1534
          %v1607 = vadd.f32 %v1599, 1e-05
          %v1608 = vadd.f32 %v1600, 1e-05
          %v1609 = vadd.f32 %v1601, 1e-05
          %v1610 = vadd.f32 %v1602, 1e-05
          %v1611 = vadd.f32 %v1603, 1e-05
          %v1612 = vadd.f32 %v1604, 1e-05
          %v1613 = vadd.f32 %v1605, 1e-05
          %v1614 = vadd.f32 %v1606, 1e-05
          %v1615 = vrsqrt.pop %v1607
          %v1616 = vrsqrt.pop %v1608
          %v1617 = vrsqrt.pop %v1609
          %v1618 = vrsqrt.pop %v1610
          %v1619 = vrsqrt.pop %v1611
          %v1620 = vrsqrt.pop %v1612
          %v1621 = vrsqrt.pop %v1613
          %v1622 = vrsqrt.pop %v1614
          %v1623 = vmul.f32 %v1543, %v1615
          %v1624 = vmul.f32 %v1544, %v1615
          %v1625 = vmul.f32 %v1545, %v1616
          %v1626 = vmul.f32 %v1546, %v1616
          %v1627 = vmul.f32 %v1547, %v1617
          %v1628 = vmul.f32 %v1548, %v1617
          %v1629 = vmul.f32 %v1549, %v1618
          %v1630 = vmul.f32 %v1550, %v1618
          %v1631 = vmul.f32 %v1551, %v1619
          %v1632 = vmul.f32 %v1552, %v1619
          %v1633 = vmul.f32 %v1553, %v1620
          %v1634 = vmul.f32 %v1554, %v1620
          %v1635 = vmul.f32 %v1555, %v1621
          %v1636 = vmul.f32 %v1556, %v1621
          %v1637 = vmul.f32 %v1557, %v1622
          %v1638 = vmul.f32 %v1558, %v1622
          %v1640 = vlaneseq
          %v1641 = vshrl.u32 %v1640, 7
          %v1642 = vsub.s32 0, %v1641
          %v1643 = vrot.slane %v1508, %v1642
          %v1644 = vlaneseq
          %v1645 = vshrl.u32 %v1644, 7
          %v1646 = vsub.s32 1, %v1645
          %v1647 = vrot.slane %v1508, %v1646
          %v1650 = vmul.f32 %v1623, %v1643
          %v1651 = vmul.f32 %v1624, %v1647
          %v1652 = vmul.f32 %v1625, %v1643
          %v1653 = vmul.f32 %v1626, %v1647
          %v1654 = vmul.f32 %v1627, %v1643
          %v1655 = vmul.f32 %v1628, %v1647
          %v1656 = vmul.f32 %v1629, %v1643
          %v1657 = vmul.f32 %v1630, %v1647
          %v1658 = vmul.f32 %v1631, %v1643
          %v1659 = vmul.f32 %v1632, %v1647
          %v1660 = vmul.f32 %v1633, %v1643
          %v1661 = vmul.f32 %v1634, %v1647
          %v1662 = vmul.f32 %v1635, %v1643
          %v1663 = vmul.f32 %v1636, %v1647
          %v1664 = vmul.f32 %v1637, %v1643
          %v1665 = vmul.f32 %v1638, %v1647
          %v1667 = vlaneseq
          %v1668 = vshrl.u32 %v1667, 7
          %v1669 = vsub.s32 0, %v1668
          %v1670 = vrot.slane %v1509, %v1669
          %v1671 = vlaneseq
          %v1672 = vshrl.u32 %v1671, 7
          %v1673 = vsub.s32 1, %v1672
          %v1674 = vrot.slane %v1509, %v1673
          %v1677 = vadd.f32 %v1650, %v1670
          %v1678 = vadd.f32 %v1651, %v1674
          %v1679 = vadd.f32 %v1652, %v1670
          %v1680 = vadd.f32 %v1653, %v1674
          %v1681 = vadd.f32 %v1654, %v1670
          %v1682 = vadd.f32 %v1655, %v1674
          %v1683 = vadd.f32 %v1656, %v1670
          %v1684 = vadd.f32 %v1657, %v1674
          %v1685 = vadd.f32 %v1658, %v1670
          %v1686 = vadd.f32 %v1659, %v1674
          %v1687 = vadd.f32 %v1660, %v1670
          %v1688 = vadd.f32 %v1661, %v1674
          %v1689 = vadd.f32 %v1662, %v1670
          %v1690 = vadd.f32 %v1663, %v1674
          %v1691 = vadd.f32 %v1664, %v1670
          %v1692 = vadd.f32 %v1665, %v1674
          %1693 = vst [vmem:[#allocation2] sm:$0xff] %v1677
          %1694 = vst [vmem:[#allocation2 + $0x8] sm:$0xff] %v1678
          %1695 = vst [vmem:[#allocation2 + $0x10] sm:$0xff] %v1679
          %1696 = vst [vmem:[#allocation2 + $0x18] sm:$0xff] %v1680
          %1697 = vst [vmem:[#allocation2 + $0x20] sm:$0xff] %v1681
          %1698 = vst [vmem:[#allocation2 + $0x28] sm:$0xff] %v1682
          %1699 = vst [vmem:[#allocation2 + $0x30] sm:$0xff] %v1683
          %1700 = vst [vmem:[#allocation2 + $0x38] sm:$0xff] %v1684
          %1701 = vst [vmem:[#allocation2 + $0x40] sm:$0xff] %v1685
          %1702 = vst [vmem:[#allocation2 + $0x48] sm:$0xff] %v1686
          %1703 = vst [vmem:[#allocation2 + $0x50] sm:$0xff] %v1687
          %1704 = vst [vmem:[#allocation2 + $0x58] sm:$0xff] %v1688
          %1705 = vst [vmem:[#allocation2 + $0x60] sm:$0xff] %v1689
          %1706 = vst [vmem:[#allocation2 + $0x68] sm:$0xff] %v1690
          %1707 = vst [vmem:[#allocation2 + $0x70] sm:$0xff] %v1691
          %1708 = vst [vmem:[#allocation2 + $0x78] sm:$0xff] %v1692
        $region172: #{tpu_custom_call.1} parent=111 // pred_fallthru
          _
        %v1709 = vld [vmem:[#allocation2] sm:$0xff]
        %v1710 = vld [vmem:[#allocation2 + $0x8] sm:$0xff]
        %v1711 = vld [vmem:[#allocation2 + $0x10] sm:$0xff]
        %v1712 = vld [vmem:[#allocation2 + $0x18] sm:$0xff]
        %v1713 = vld [vmem:[#allocation2 + $0x20] sm:$0xff]
        %v1714 = vld [vmem:[#allocation2 + $0x28] sm:$0xff]
        %v1715 = vld [vmem:[#allocation2 + $0x30] sm:$0xff]
        %v1716 = vld [vmem:[#allocation2 + $0x38] sm:$0xff]
        %v1717 = vld [vmem:[#allocation2 + $0x40] sm:$0xff]
        %v1718 = vld [vmem:[#allocation2 + $0x48] sm:$0xff]
        %v1719 = vld [vmem:[#allocation2 + $0x50] sm:$0xff]
        %v1720 = vld [vmem:[#allocation2 + $0x58] sm:$0xff]
        %v1721 = vld [vmem:[#allocation2 + $0x60] sm:$0xff]
        %v1722 = vld [vmem:[#allocation2 + $0x68] sm:$0xff]
        %v1723 = vld [vmem:[#allocation2 + $0x70] sm:$0xff]
        %v1724 = vld [vmem:[#allocation2 + $0x78] sm:$0xff]
        %v1725 = vld [vmem:[%s963] sm:$0x3]
        %v1726 = vld [vmem:[%s972] sm:$0x3]
        %v1727 = vadd.f32 %v1709, %v1710
        %1728 = vadd.xlane.f32.xlu0 %v1727
        %v1729 = vpop.xlane.xlu0 %1728
        %v1730 = vadd.f32 %v1711, %v1712
        %1731 = vadd.xlane.f32.xlu0 %v1730
        %v1732 = vpop.xlane.xlu0 %1731
        %v1733 = vadd.f32 %v1713, %v1714
        %1734 = vadd.xlane.f32.xlu0 %v1733
        %v1735 = vpop.xlane.xlu0 %1734
        %v1736 = vadd.f32 %v1715, %v1716
        %1737 = vadd.xlane.f32.xlu0 %v1736
        %v1738 = vpop.xlane.xlu0 %1737
        %v1739 = vadd.f32 %v1717, %v1718
        %1740 = vadd.xlane.f32.xlu0 %v1739
        %v1741 = vpop.xlane.xlu0 %1740
        %v1742 = vadd.f32 %v1719, %v1720
        %1743 = vadd.xlane.f32.xlu0 %v1742
        %v1744 = vpop.xlane.xlu0 %1743
        %v1745 = vadd.f32 %v1721, %v1722
        %1746 = vadd.xlane.f32.xlu0 %v1745
        %v1747 = vpop.xlane.xlu0 %1746
        %v1748 = vadd.f32 %v1723, %v1724
        %1749 = vadd.xlane.f32.xlu0 %v1748
        %v1750 = vpop.xlane.xlu0 %1749
        %v1751 = vrcp.pop 256.0
        %v1752 = vmul.f32 %v1729, %v1751
        %v1753 = vmul.f32 %v1732, %v1751
        %v1754 = vmul.f32 %v1735, %v1751
        %v1755 = vmul.f32 %v1738, %v1751
        %v1756 = vmul.f32 %v1741, %v1751
        %v1757 = vmul.f32 %v1744, %v1751
        %v1758 = vmul.f32 %v1747, %v1751
        %v1759 = vmul.f32 %v1750, %v1751
        %v1760 = vsub.f32 %v1709, %v1752
        %v1761 = vsub.f32 %v1710, %v1752
        %v1762 = vsub.f32 %v1711, %v1753
        %v1763 = vsub.f32 %v1712, %v1753
        %v1764 = vsub.f32 %v1713, %v1754
        %v1765 = vsub.f32 %v1714, %v1754
        %v1766 = vsub.f32 %v1715, %v1755
        %v1767 = vsub.f32 %v1716, %v1755
        %v1768 = vsub.f32 %v1717, %v1756
        %v1769 = vsub.f32 %v1718, %v1756
        %v1770 = vsub.f32 %v1719, %v1757
        %v1771 = vsub.f32 %v1720, %v1757
        %v1772 = vsub.f32 %v1721, %v1758
        %v1773 = vsub.f32 %v1722, %v1758
        %v1774 = vsub.f32 %v1723, %v1759
        %v1775 = vsub.f32 %v1724, %v1759
        %v1776 = vmul.f32 %v1760, %v1760
        %v1777 = vmul.f32 %v1761, %v1761
        %v1778 = vmul.f32 %v1762, %v1762
        %v1779 = vmul.f32 %v1763, %v1763
        %v1780 = vmul.f32 %v1764, %v1764
        %v1781 = vmul.f32 %v1765, %v1765
        %v1782 = vmul.f32 %v1766, %v1766
        %v1783 = vmul.f32 %v1767, %v1767
        %v1784 = vmul.f32 %v1768, %v1768
        %v1785 = vmul.f32 %v1769, %v1769
        %v1786 = vmul.f32 %v1770, %v1770
        %v1787 = vmul.f32 %v1771, %v1771
        %v1788 = vmul.f32 %v1772, %v1772
        %v1789 = vmul.f32 %v1773, %v1773
        %v1790 = vmul.f32 %v1774, %v1774
        %v1791 = vmul.f32 %v1775, %v1775
        %v1792 = vadd.f32 %v1776, %v1777
        %1793 = vadd.xlane.f32.xlu0 %v1792
        %v1794 = vpop.xlane.xlu0 %1793
        %v1795 = vadd.f32 %v1778, %v1779
        %1796 = vadd.xlane.f32.xlu0 %v1795
        %v1797 = vpop.xlane.xlu0 %1796
        %v1798 = vadd.f32 %v1780, %v1781
        %1799 = vadd.xlane.f32.xlu0 %v1798
        %v1800 = vpop.xlane.xlu0 %1799
        %v1801 = vadd.f32 %v1782, %v1783
        %1802 = vadd.xlane.f32.xlu0 %v1801
        %v1803 = vpop.xlane.xlu0 %1802
        %v1804 = vadd.f32 %v1784, %v1785
        %1805 = vadd.xlane.f32.xlu0 %v1804
        %v1806 = vpop.xlane.xlu0 %1805
        %v1807 = vadd.f32 %v1786, %v1787
        %1808 = vadd.xlane.f32.xlu0 %v1807
        %v1809 = vpop.xlane.xlu0 %1808
        %v1810 = vadd.f32 %v1788, %v1789
        %1811 = vadd.xlane.f32.xlu0 %v1810
        %v1812 = vpop.xlane.xlu0 %1811
        %v1813 = vadd.f32 %v1790, %v1791
        %1814 = vadd.xlane.f32.xlu0 %v1813
        %v1815 = vpop.xlane.xlu0 %1814
        %v1816 = vmul.f32 %v1794, %v1751
        %v1817 = vmul.f32 %v1797, %v1751
        %v1818 = vmul.f32 %v1800, %v1751
        %v1819 = vmul.f32 %v1803, %v1751
        %v1820 = vmul.f32 %v1806, %v1751
        %v1821 = vmul.f32 %v1809, %v1751
        %v1822 = vmul.f32 %v1812, %v1751
        %v1823 = vmul.f32 %v1815, %v1751
        %v1824 = vadd.f32 %v1816, 1e-05
        %v1825 = vadd.f32 %v1817, 1e-05
        %v1826 = vadd.f32 %v1818, 1e-05
        %v1827 = vadd.f32 %v1819, 1e-05
        %v1828 = vadd.f32 %v1820, 1e-05
        %v1829 = vadd.f32 %v1821, 1e-05
        %v1830 = vadd.f32 %v1822, 1e-05
        %v1831 = vadd.f32 %v1823, 1e-05
        %v1832 = vrsqrt.pop %v1824
        %v1833 = vrsqrt.pop %v1825
        %v1834 = vrsqrt.pop %v1826
        %v1835 = vrsqrt.pop %v1827
        %v1836 = vrsqrt.pop %v1828
        %v1837 = vrsqrt.pop %v1829
        %v1838 = vrsqrt.pop %v1830
        %v1839 = vrsqrt.pop %v1831
        %v1840 = vmul.f32 %v1760, %v1832
        %v1841 = vmul.f32 %v1761, %v1832
        %v1842 = vmul.f32 %v1762, %v1833
        %v1843 = vmul.f32 %v1763, %v1833
        %v1844 = vmul.f32 %v1764, %v1834
        %v1845 = vmul.f32 %v1765, %v1834
        %v1846 = vmul.f32 %v1766, %v1835
        %v1847 = vmul.f32 %v1767, %v1835
        %v1848 = vmul.f32 %v1768, %v1836
        %v1849 = vmul.f32 %v1769, %v1836
        %v1850 = vmul.f32 %v1770, %v1837
        %v1851 = vmul.f32 %v1771, %v1837
        %v1852 = vmul.f32 %v1772, %v1838
        %v1853 = vmul.f32 %v1773, %v1838
        %v1854 = vmul.f32 %v1774, %v1839
        %v1855 = vmul.f32 %v1775, %v1839
        %v1857 = vlaneseq
        %v1858 = vshrl.u32 %v1857, 7
        %v1859 = vsub.s32 0, %v1858
        %v1860 = vrot.slane %v1725, %v1859
        %v1861 = vlaneseq
        %v1862 = vshrl.u32 %v1861, 7
        %v1863 = vsub.s32 1, %v1862
        %v1864 = vrot.slane %v1725, %v1863
        %v1867 = vmul.f32 %v1840, %v1860
        %v1868 = vmul.f32 %v1841, %v1864
        %v1869 = vmul.f32 %v1842, %v1860
        %v1870 = vmul.f32 %v1843, %v1864
        %v1871 = vmul.f32 %v1844, %v1860
        %v1872 = vmul.f32 %v1845, %v1864
        %v1873 = vmul.f32 %v1846, %v1860
        %v1874 = vmul.f32 %v1847, %v1864
        %v1875 = vmul.f32 %v1848, %v1860
        %v1876 = vmul.f32 %v1849, %v1864
        %v1877 = vmul.f32 %v1850, %v1860
        %v1878 = vmul.f32 %v1851, %v1864
        %v1879 = vmul.f32 %v1852, %v1860
        %v1880 = vmul.f32 %v1853, %v1864
        %v1881 = vmul.f32 %v1854, %v1860
        %v1882 = vmul.f32 %v1855, %v1864
        %v1884 = vlaneseq
        %v1885 = vshrl.u32 %v1884, 7
        %v1886 = vsub.s32 0, %v1885
        %v1887 = vrot.slane %v1726, %v1886
        %v1888 = vlaneseq
        %v1889 = vshrl.u32 %v1888, 7
        %v1890 = vsub.s32 1, %v1889
        %v1891 = vrot.slane %v1726, %v1890
        %v1894 = vadd.f32 %v1867, %v1887
        %v1895 = vadd.f32 %v1868, %v1891
        %v1896 = vadd.f32 %v1869, %v1887
        %v1897 = vadd.f32 %v1870, %v1891
        %v1898 = vadd.f32 %v1871, %v1887
        %v1899 = vadd.f32 %v1872, %v1891
        %v1900 = vadd.f32 %v1873, %v1887
        %v1901 = vadd.f32 %v1874, %v1891
        %v1902 = vadd.f32 %v1875, %v1887
        %v1903 = vadd.f32 %v1876, %v1891
        %v1904 = vadd.f32 %v1877, %v1887
        %v1905 = vadd.f32 %v1878, %v1891
        %v1906 = vadd.f32 %v1879, %v1887
        %v1907 = vadd.f32 %v1880, %v1891
        %v1908 = vadd.f32 %v1881, %v1887
        %v1909 = vadd.f32 %v1882, %v1891
        %v1910 = vpack.c.bf16 %v1896, %v1894
        %v1911 = vpack.c.bf16 %v1897, %v1895
        %v1912 = vpack.c.bf16 %v1900, %v1898
        %v1913 = vpack.c.bf16 %v1901, %v1899
        %v1914 = vpack.c.bf16 %v1904, %v1902
        %v1915 = vpack.c.bf16 %v1905, %v1903
        %v1916 = vpack.c.bf16 %v1908, %v1906
        %v1917 = vpack.c.bf16 %v1909, %v1907
        %v1918 = vld [vmem:[%s981] sm:$0xff]
        %v1919 = vld [vmem:[%s981 + $0x8] sm:$0xff]
        %v1920 = vld [vmem:[%s981 + $0x10] sm:$0xff]
        %v1921 = vld [vmem:[%s981 + $0x18] sm:$0xff]
        %v1922 = vld [vmem:[%s981 + $0x20] sm:$0xff]
        %v1923 = vld [vmem:[%s981 + $0x28] sm:$0xff]
        %v1924 = vld [vmem:[%s981 + $0x30] sm:$0xff]
        %v1925 = vld [vmem:[%s981 + $0x38] sm:$0xff]
        %v1926 = vld [vmem:[%s981 + $0x40] sm:$0xff]
        %v1927 = vld [vmem:[%s981 + $0x48] sm:$0xff]
        %v1928 = vld [vmem:[%s981 + $0x50] sm:$0xff]
        %v1929 = vld [vmem:[%s981 + $0x58] sm:$0xff]
        %v1930 = vld [vmem:[%s981 + $0x60] sm:$0xff]
        %v1931 = vld [vmem:[%s981 + $0x68] sm:$0xff]
        %v1932 = vld [vmem:[%s981 + $0x70] sm:$0xff]
        %v1933 = vld [vmem:[%s981 + $0x78] sm:$0xff]
        %v1934 = vld [vmem:[%s981 + $0x80] sm:$0xff]
        %v1935 = vld [vmem:[%s981 + $0x88] sm:$0xff]
        %v1936 = vld [vmem:[%s981 + $0x90] sm:$0xff]
        %v1937 = vld [vmem:[%s981 + $0x98] sm:$0xff]
        %v1938 = vld [vmem:[%s981 + $0xa0] sm:$0xff]
        %v1939 = vld [vmem:[%s981 + $0xa8] sm:$0xff]
        %v1940 = vld [vmem:[%s981 + $0xb0] sm:$0xff]
        %v1941 = vld [vmem:[%s981 + $0xb8] sm:$0xff]
        %v1942 = vld [vmem:[%s981 + $0xc0] sm:$0xff]
        %v1943 = vld [vmem:[%s981 + $0xc8] sm:$0xff]
        %v1944 = vld [vmem:[%s981 + $0xd0] sm:$0xff]
        %v1945 = vld [vmem:[%s981 + $0xd8] sm:$0xff]
        %v1946 = vld [vmem:[%s981 + $0xe0] sm:$0xff]
        %v1947 = vld [vmem:[%s981 + $0xe8] sm:$0xff]
        %v1948 = vld [vmem:[%s981 + $0xf0] sm:$0xff]
        %v1949 = vld [vmem:[%s981 + $0xf8] sm:$0xff]
        %v1950 = vld [vmem:[%s981 + $0x100] sm:$0xff]
        %v1951 = vld [vmem:[%s981 + $0x108] sm:$0xff]
        %v1952 = vld [vmem:[%s981 + $0x110] sm:$0xff]
        %v1953 = vld [vmem:[%s981 + $0x118] sm:$0xff]
        %v1954 = vld [vmem:[%s981 + $0x120] sm:$0xff]
        %v1955 = vld [vmem:[%s981 + $0x128] sm:$0xff]
        %v1956 = vld [vmem:[%s981 + $0x130] sm:$0xff]
        %v1957 = vld [vmem:[%s981 + $0x138] sm:$0xff]
        %v1958 = vld [vmem:[%s981 + $0x140] sm:$0xff]
        %v1959 = vld [vmem:[%s981 + $0x148] sm:$0xff]
        %v1960 = vld [vmem:[%s981 + $0x150] sm:$0xff]
        %v1961 = vld [vmem:[%s981 + $0x158] sm:$0xff]
        %v1962 = vld [vmem:[%s981 + $0x160] sm:$0xff]
        %v1963 = vld [vmem:[%s981 + $0x168] sm:$0xff]
        %v1964 = vld [vmem:[%s981 + $0x170] sm:$0xff]
        %v1965 = vld [vmem:[%s981 + $0x178] sm:$0xff]
        %v1966 = vld [vmem:[%s981 + $0x180] sm:$0xff]
        %v1967 = vld [vmem:[%s981 + $0x188] sm:$0xff]
        %v1968 = vld [vmem:[%s981 + $0x190] sm:$0xff]
        %v1969 = vld [vmem:[%s981 + $0x198] sm:$0xff]
        %v1970 = vld [vmem:[%s981 + $0x1a0] sm:$0xff]
        %v1971 = vld [vmem:[%s981 + $0x1a8] sm:$0xff]
        %v1972 = vld [vmem:[%s981 + $0x1b0] sm:$0xff]
        %v1973 = vld [vmem:[%s981 + $0x1b8] sm:$0xff]
        %v1974 = vld [vmem:[%s981 + $0x1c0] sm:$0xff]
        %v1975 = vld [vmem:[%s981 + $0x1c8] sm:$0xff]
        %v1976 = vld [vmem:[%s981 + $0x1d0] sm:$0xff]
        %v1977 = vld [vmem:[%s981 + $0x1d8] sm:$0xff]
        %v1978 = vld [vmem:[%s981 + $0x1e0] sm:$0xff]
        %v1979 = vld [vmem:[%s981 + $0x1e8] sm:$0xff]
        %v1980 = vld [vmem:[%s981 + $0x1f0] sm:$0xff]
        %v1981 = vld [vmem:[%s981 + $0x1f8] sm:$0xff]
        %v1982 = vld [vmem:[%s981 + $0x200] sm:$0xff]
        %v1983 = vld [vmem:[%s981 + $0x208] sm:$0xff]
        %v1984 = vld [vmem:[%s981 + $0x210] sm:$0xff]
        %v1985 = vld [vmem:[%s981 + $0x218] sm:$0xff]
        %v1986 = vld [vmem:[%s981 + $0x220] sm:$0xff]
        %v1987 = vld [vmem:[%s981 + $0x228] sm:$0xff]
        %v1988 = vld [vmem:[%s981 + $0x230] sm:$0xff]
        %v1989 = vld [vmem:[%s981 + $0x238] sm:$0xff]
        %v1990 = vld [vmem:[%s981 + $0x240] sm:$0xff]
        %v1991 = vld [vmem:[%s981 + $0x248] sm:$0xff]
        %v1992 = vld [vmem:[%s981 + $0x250] sm:$0xff]
        %v1993 = vld [vmem:[%s981 + $0x258] sm:$0xff]
        %v1994 = vld [vmem:[%s981 + $0x260] sm:$0xff]
        %v1995 = vld [vmem:[%s981 + $0x268] sm:$0xff]
        %v1996 = vld [vmem:[%s981 + $0x270] sm:$0xff]
        %v1997 = vld [vmem:[%s981 + $0x278] sm:$0xff]
        %v1998 = vld [vmem:[%s981 + $0x280] sm:$0xff]
        %v1999 = vld [vmem:[%s981 + $0x288] sm:$0xff]
        %v2000 = vld [vmem:[%s981 + $0x290] sm:$0xff]
        %v2001 = vld [vmem:[%s981 + $0x298] sm:$0xff]
        %v2002 = vld [vmem:[%s981 + $0x2a0] sm:$0xff]
        %v2003 = vld [vmem:[%s981 + $0x2a8] sm:$0xff]
        %v2004 = vld [vmem:[%s981 + $0x2b0] sm:$0xff]
        %v2005 = vld [vmem:[%s981 + $0x2b8] sm:$0xff]
        %v2006 = vld [vmem:[%s981 + $0x2c0] sm:$0xff]
        %v2007 = vld [vmem:[%s981 + $0x2c8] sm:$0xff]
        %v2008 = vld [vmem:[%s981 + $0x2d0] sm:$0xff]
        %v2009 = vld [vmem:[%s981 + $0x2d8] sm:$0xff]
        %v2010 = vld [vmem:[%s981 + $0x2e0] sm:$0xff]
        %v2011 = vld [vmem:[%s981 + $0x2e8] sm:$0xff]
        %v2012 = vld [vmem:[%s981 + $0x2f0] sm:$0xff]
        %v2013 = vld [vmem:[%s981 + $0x2f8] sm:$0xff]
        %v2014 = vld [vmem:[%s990] sm:$0x3f]
        %v2016 = vlaneseq
        %v2017 = vshrl.u32 %v2016, 7
        %v2018 = vsub.s32 0, %v2017
        %v2019 = vrot.slane %v2014, %v2018
        %v2020 = vlaneseq
        %v2021 = vshrl.u32 %v2020, 7
        %v2022 = vsub.s32 1, %v2021
        %v2023 = vrot.slane %v2014, %v2022
        %v2024 = vlaneseq
        %v2025 = vshrl.u32 %v2024, 7
        %v2026 = vsub.s32 2, %v2025
        %v2027 = vrot.slane %v2014, %v2026
        %v2028 = vlaneseq
        %v2029 = vshrl.u32 %v2028, 7
        %v2030 = vsub.s32 3, %v2029
        %v2031 = vrot.slane %v2014, %v2030
        %v2032 = vlaneseq
        %v2033 = vshrl.u32 %v2032, 7
        %v2034 = vsub.s32 4, %v2033
        %v2035 = vrot.slane %v2014, %v2034
        %v2036 = vlaneseq
        %v2037 = vshrl.u32 %v2036, 7
        %v2038 = vsub.s32 5, %v2037
        %v2039 = vrot.slane %v2014, %v2038
        %v2142 = vunpack.c.l.b16 %v1918
        %v2143 = vunpack.c.h.b16 %v1918
        %v2144 = vunpack.c.l.b16 %v1919
        %v2145 = vunpack.c.h.b16 %v1919
        %v2146 = vunpack.c.l.b16 %v1920
        %v2147 = vunpack.c.h.b16 %v1920
        %v2148 = vunpack.c.l.b16 %v1921
        %v2149 = vunpack.c.h.b16 %v1921
        %v2150 = vunpack.c.l.b16 %v1922
        %v2151 = vunpack.c.h.b16 %v1922
        %v2152 = vunpack.c.l.b16 %v1923
        %v2153 = vunpack.c.h.b16 %v1923
        %v2154 = vunpack.c.l.b16 %v1924
        %v2155 = vunpack.c.h.b16 %v1924
        %v2156 = vunpack.c.l.b16 %v1925
        %v2157 = vunpack.c.h.b16 %v1925
        %v2158 = vunpack.c.l.b16 %v1926
        %v2159 = vunpack.c.h.b16 %v1926
        %v2160 = vunpack.c.l.b16 %v1927
        %v2161 = vunpack.c.h.b16 %v1927
        %v2162 = vunpack.c.l.b16 %v1928
        %v2163 = vunpack.c.h.b16 %v1928
        %v2164 = vunpack.c.l.b16 %v1929
        %v2165 = vunpack.c.h.b16 %v1929
        %v2166 = vunpack.c.l.b16 %v1930
        %v2167 = vunpack.c.h.b16 %v1930
        %v2168 = vunpack.c.l.b16 %v1931
        %v2169 = vunpack.c.h.b16 %v1931
        %v2170 = vunpack.c.l.b16 %v1932
        %v2171 = vunpack.c.h.b16 %v1932
        %v2172 = vunpack.c.l.b16 %v1933
        %v2173 = vunpack.c.h.b16 %v1933
        %v2174 = vunpack.c.l.b16 %v1934
        %v2175 = vunpack.c.h.b16 %v1934
        %v2176 = vunpack.c.l.b16 %v1935
        %v2177 = vunpack.c.h.b16 %v1935
        %v2178 = vunpack.c.l.b16 %v1936
        %v2179 = vunpack.c.h.b16 %v1936
        %v2180 = vunpack.c.l.b16 %v1937
        %v2181 = vunpack.c.h.b16 %v1937
        %v2182 = vunpack.c.l.b16 %v1938
        %v2183 = vunpack.c.h.b16 %v1938
        %v2184 = vunpack.c.l.b16 %v1939
        %v2185 = vunpack.c.h.b16 %v1939
        %v2186 = vunpack.c.l.b16 %v1940
        %v2187 = vunpack.c.h.b16 %v1940
        %v2188 = vunpack.c.l.b16 %v1941
        %v2189 = vunpack.c.h.b16 %v1941
        %v2190 = vunpack.c.l.b16 %v1942
        %v2191 = vunpack.c.h.b16 %v1942
        %v2192 = vunpack.c.l.b16 %v1943
        %v2193 = vunpack.c.h.b16 %v1943
        %v2194 = vunpack.c.l.b16 %v1944
        %v2195 = vunpack.c.h.b16 %v1944
        %v2196 = vunpack.c.l.b16 %v1945
        %v2197 = vunpack.c.h.b16 %v1945
        %v2198 = vunpack.c.l.b16 %v1946
        %v2199 = vunpack.c.h.b16 %v1946
        %v2200 = vunpack.c.l.b16 %v1947
        %v2201 = vunpack.c.h.b16 %v1947
        %v2202 = vunpack.c.l.b16 %v1948
        %v2203 = vunpack.c.h.b16 %v1948
        %v2204 = vunpack.c.l.b16 %v1949
        %v2205 = vunpack.c.h.b16 %v1949
        %v2206 = vunpack.c.l.b16 %v1950
        %v2207 = vunpack.c.h.b16 %v1950
        %v2208 = vunpack.c.l.b16 %v1951
        %v2209 = vunpack.c.h.b16 %v1951
        %v2210 = vunpack.c.l.b16 %v1952
        %v2211 = vunpack.c.h.b16 %v1952
        %v2212 = vunpack.c.l.b16 %v1953
        %v2213 = vunpack.c.h.b16 %v1953
        %v2214 = vunpack.c.l.b16 %v1954
        %v2215 = vunpack.c.h.b16 %v1954
        %v2216 = vunpack.c.l.b16 %v1955
        %v2217 = vunpack.c.h.b16 %v1955
        %v2218 = vunpack.c.l.b16 %v1956
        %v2219 = vunpack.c.h.b16 %v1956
        %v2220 = vunpack.c.l.b16 %v1957
        %v2221 = vunpack.c.h.b16 %v1957
        %v2222 = vunpack.c.l.b16 %v1958
        %v2223 = vunpack.c.h.b16 %v1958
        %v2224 = vunpack.c.l.b16 %v1959
        %v2225 = vunpack.c.h.b16 %v1959
        %v2226 = vunpack.c.l.b16 %v1960
        %v2227 = vunpack.c.h.b16 %v1960
        %v2228 = vunpack.c.l.b16 %v1961
        %v2229 = vunpack.c.h.b16 %v1961
        %v2230 = vunpack.c.l.b16 %v1962
        %v2231 = vunpack.c.h.b16 %v1962
        %v2232 = vunpack.c.l.b16 %v1963
        %v2233 = vunpack.c.h.b16 %v1963
        %v2234 = vunpack.c.l.b16 %v1964
        %v2235 = vunpack.c.h.b16 %v1964
        %v2236 = vunpack.c.l.b16 %v1965
        %v2237 = vunpack.c.h.b16 %v1965
        %v2238 = vunpack.c.l.b16 %v1966
        %v2239 = vunpack.c.h.b16 %v1966
        %v2240 = vunpack.c.l.b16 %v1967
        %v2241 = vunpack.c.h.b16 %v1967
        %v2242 = vunpack.c.l.b16 %v1968
        %v2243 = vunpack.c.h.b16 %v1968
        %v2244 = vunpack.c.l.b16 %v1969
        %v2245 = vunpack.c.h.b16 %v1969
        %v2246 = vunpack.c.l.b16 %v1970
        %v2247 = vunpack.c.h.b16 %v1970
        %v2248 = vunpack.c.l.b16 %v1971
        %v2249 = vunpack.c.h.b16 %v1971
        %v2250 = vunpack.c.l.b16 %v1972
        %v2251 = vunpack.c.h.b16 %v1972
        %v2252 = vunpack.c.l.b16 %v1973
        %v2253 = vunpack.c.h.b16 %v1973
        %v2254 = vunpack.c.l.b16 %v1974
        %v2255 = vunpack.c.h.b16 %v1974
        %v2256 = vunpack.c.l.b16 %v1975
        %v2257 = vunpack.c.h.b16 %v1975
        %v2258 = vunpack.c.l.b16 %v1976
        %v2259 = vunpack.c.h.b16 %v1976
        %v2260 = vunpack.c.l.b16 %v1977
        %v2261 = vunpack.c.h.b16 %v1977
        %v2262 = vunpack.c.l.b16 %v1978
        %v2263 = vunpack.c.h.b16 %v1978
        %v2264 = vunpack.c.l.b16 %v1979
        %v2265 = vunpack.c.h.b16 %v1979
        %v2266 = vunpack.c.l.b16 %v1980
        %v2267 = vunpack.c.h.b16 %v1980
        %v2268 = vunpack.c.l.b16 %v1981
        %v2269 = vunpack.c.h.b16 %v1981
        %v2270 = vunpack.c.l.b16 %v1982
        %v2271 = vunpack.c.h.b16 %v1982
        %v2272 = vunpack.c.l.b16 %v1983
        %v2273 = vunpack.c.h.b16 %v1983
        %v2274 = vunpack.c.l.b16 %v1984
        %v2275 = vunpack.c.h.b16 %v1984
        %v2276 = vunpack.c.l.b16 %v1985
        %v2277 = vunpack.c.h.b16 %v1985
        %v2278 = vunpack.c.l.b16 %v1986
        %v2279 = vunpack.c.h.b16 %v1986
        %v2280 = vunpack.c.l.b16 %v1987
        %v2281 = vunpack.c.h.b16 %v1987
        %v2282 = vunpack.c.l.b16 %v1988
        %v2283 = vunpack.c.h.b16 %v1988
        %v2284 = vunpack.c.l.b16 %v1989
        %v2285 = vunpack.c.h.b16 %v1989
        %v2286 = vunpack.c.l.b16 %v1990
        %v2287 = vunpack.c.h.b16 %v1990
        %v2288 = vunpack.c.l.b16 %v1991
        %v2289 = vunpack.c.h.b16 %v1991
        %v2290 = vunpack.c.l.b16 %v1992
        %v2291 = vunpack.c.h.b16 %v1992
        %v2292 = vunpack.c.l.b16 %v1993
        %v2293 = vunpack.c.h.b16 %v1993
        %v2294 = vunpack.c.l.b16 %v1994
        %v2295 = vunpack.c.h.b16 %v1994
        %v2296 = vunpack.c.l.b16 %v1995
        %v2297 = vunpack.c.h.b16 %v1995
        %v2298 = vunpack.c.l.b16 %v1996
        %v2299 = vunpack.c.h.b16 %v1996
        %v2300 = vunpack.c.l.b16 %v1997
        %v2301 = vunpack.c.h.b16 %v1997
        %v2302 = vunpack.c.l.b16 %v1998
        %v2303 = vunpack.c.h.b16 %v1998
        %v2304 = vunpack.c.l.b16 %v1999
        %v2305 = vunpack.c.h.b16 %v1999
        %v2306 = vunpack.c.l.b16 %v2000
        %v2307 = vunpack.c.h.b16 %v2000
        %v2308 = vunpack.c.l.b16 %v2001
        %v2309 = vunpack.c.h.b16 %v2001
        %v2310 = vunpack.c.l.b16 %v2002
        %v2311 = vunpack.c.h.b16 %v2002
        %v2312 = vunpack.c.l.b16 %v2003
        %v2313 = vunpack.c.h.b16 %v2003
        %v2314 = vunpack.c.l.b16 %v2004
        %v2315 = vunpack.c.h.b16 %v2004
        %v2316 = vunpack.c.l.b16 %v2005
        %v2317 = vunpack.c.h.b16 %v2005
        %v2318 = vunpack.c.l.b16 %v2006
        %v2319 = vunpack.c.h.b16 %v2006
        %v2320 = vunpack.c.l.b16 %v2007
        %v2321 = vunpack.c.h.b16 %v2007
        %v2322 = vunpack.c.l.b16 %v2008
        %v2323 = vunpack.c.h.b16 %v2008
        %v2324 = vunpack.c.l.b16 %v2009
        %v2325 = vunpack.c.h.b16 %v2009
        %v2326 = vunpack.c.l.b16 %v2010
        %v2327 = vunpack.c.h.b16 %v2010
        %v2328 = vunpack.c.l.b16 %v2011
        %v2329 = vunpack.c.h.b16 %v2011
        %v2330 = vunpack.c.l.b16 %v2012
        %v2331 = vunpack.c.h.b16 %v2012
        %v2332 = vunpack.c.l.b16 %v2013
        %v2333 = vunpack.c.h.b16 %v2013
        %v2334 = vpack.c.b16 %v2148, %v2142
        %v2335 = vpack.c.b16 %v2149, %v2143
        %v2336 = vpack.c.b16 %v2150, %v2144
        %v2337 = vpack.c.b16 %v2151, %v2145
        %v2338 = vpack.c.b16 %v2152, %v2146
        %v2339 = vpack.c.b16 %v2153, %v2147
        %v2340 = vpack.c.b16 %v2160, %v2154
        %v2341 = vpack.c.b16 %v2161, %v2155
        %v2342 = vpack.c.b16 %v2162, %v2156
        %v2343 = vpack.c.b16 %v2163, %v2157
        %v2344 = vpack.c.b16 %v2164, %v2158
        %v2345 = vpack.c.b16 %v2165, %v2159
        %v2346 = vpack.c.b16 %v2172, %v2166
        %v2347 = vpack.c.b16 %v2173, %v2167
        %v2348 = vpack.c.b16 %v2174, %v2168
        %v2349 = vpack.c.b16 %v2175, %v2169
        %v2350 = vpack.c.b16 %v2176, %v2170
        %v2351 = vpack.c.b16 %v2177, %v2171
        %v2352 = vpack.c.b16 %v2184, %v2178
        %v2353 = vpack.c.b16 %v2185, %v2179
        %v2354 = vpack.c.b16 %v2186, %v2180
        %v2355 = vpack.c.b16 %v2187, %v2181
        %v2356 = vpack.c.b16 %v2188, %v2182
        %v2357 = vpack.c.b16 %v2189, %v2183
        %v2358 = vpack.c.b16 %v2196, %v2190
        %v2359 = vpack.c.b16 %v2197, %v2191
        %v2360 = vpack.c.b16 %v2198, %v2192
        %v2361 = vpack.c.b16 %v2199, %v2193
        %v2362 = vpack.c.b16 %v2200, %v2194
        %v2363 = vpack.c.b16 %v2201, %v2195
        %v2364 = vpack.c.b16 %v2208, %v2202
        %v2365 = vpack.c.b16 %v2209, %v2203
        %v2366 = vpack.c.b16 %v2210, %v2204
        %v2367 = vpack.c.b16 %v2211, %v2205
        %v2368 = vpack.c.b16 %v2212, %v2206
        %v2369 = vpack.c.b16 %v2213, %v2207
        %v2370 = vpack.c.b16 %v2220, %v2214
        %v2371 = vpack.c.b16 %v2221, %v2215
        %v2372 = vpack.c.b16 %v2222, %v2216
        %v2373 = vpack.c.b16 %v2223, %v2217
        %v2374 = vpack.c.b16 %v2224, %v2218
        %v2375 = vpack.c.b16 %v2225, %v2219
        %v2376 = vpack.c.b16 %v2232, %v2226
        %v2377 = vpack.c.b16 %v2233, %v2227
        %v2378 = vpack.c.b16 %v2234, %v2228
        %v2379 = vpack.c.b16 %v2235, %v2229
        %v2380 = vpack.c.b16 %v2236, %v2230
        %v2381 = vpack.c.b16 %v2237, %v2231
        %v2382 = vpack.c.b16 %v2244, %v2238
        %v2383 = vpack.c.b16 %v2245, %v2239
        %v2384 = vpack.c.b16 %v2246, %v2240
        %v2385 = vpack.c.b16 %v2247, %v2241
        %v2386 = vpack.c.b16 %v2248, %v2242
        %v2387 = vpack.c.b16 %v2249, %v2243
        %v2388 = vpack.c.b16 %v2256, %v2250
        %v2389 = vpack.c.b16 %v2257, %v2251
        %v2390 = vpack.c.b16 %v2258, %v2252
        %v2391 = vpack.c.b16 %v2259, %v2253
        %v2392 = vpack.c.b16 %v2260, %v2254
        %v2393 = vpack.c.b16 %v2261, %v2255
        %v2394 = vpack.c.b16 %v2268, %v2262
        %v2395 = vpack.c.b16 %v2269, %v2263
        %v2396 = vpack.c.b16 %v2270, %v2264
        %v2397 = vpack.c.b16 %v2271, %v2265
        %v2398 = vpack.c.b16 %v2272, %v2266
        %v2399 = vpack.c.b16 %v2273, %v2267
        %v2400 = vpack.c.b16 %v2280, %v2274
        %v2401 = vpack.c.b16 %v2281, %v2275
        %v2402 = vpack.c.b16 %v2282, %v2276
        %v2403 = vpack.c.b16 %v2283, %v2277
        %v2404 = vpack.c.b16 %v2284, %v2278
        %v2405 = vpack.c.b16 %v2285, %v2279
        %v2406 = vpack.c.b16 %v2292, %v2286
        %v2407 = vpack.c.b16 %v2293, %v2287
        %v2408 = vpack.c.b16 %v2294, %v2288
        %v2409 = vpack.c.b16 %v2295, %v2289
        %v2410 = vpack.c.b16 %v2296, %v2290
        %v2411 = vpack.c.b16 %v2297, %v2291
        %v2412 = vpack.c.b16 %v2304, %v2298
        %v2413 = vpack.c.b16 %v2305, %v2299
        %v2414 = vpack.c.b16 %v2306, %v2300
        %v2415 = vpack.c.b16 %v2307, %v2301
        %v2416 = vpack.c.b16 %v2308, %v2302
        %v2417 = vpack.c.b16 %v2309, %v2303
        %v2418 = vpack.c.b16 %v2316, %v2310
        %v2419 = vpack.c.b16 %v2317, %v2311
        %v2420 = vpack.c.b16 %v2318, %v2312
        %v2421 = vpack.c.b16 %v2319, %v2313
        %v2422 = vpack.c.b16 %v2320, %v2314
        %v2423 = vpack.c.b16 %v2321, %v2315
        %v2424 = vpack.c.b16 %v2328, %v2322
        %v2425 = vpack.c.b16 %v2329, %v2323
        %v2426 = vpack.c.b16 %v2330, %v2324
        %v2427 = vpack.c.b16 %v2331, %v2325
        %v2428 = vpack.c.b16 %v2332, %v2326
        %v2429 = vpack.c.b16 %v2333, %v2327
        %2526 = vmatprep.subr.bf16.mxu0 %v2335
        %2527 = vmatpush1.bf16.msra.mxu0 %v2334
        %2528 = vmatprep.subr.bf16.mxu0 %v2341
        %2529 = vmatpush1.bf16.msra.mxu0 %v2340
        %2530 = vmatprep.subr.bf16.mxu0 %v2347
        %2531 = vmatpush1.bf16.msra.mxu0 %v2346
        %2532 = vmatprep.subr.bf16.mxu0 %v2353
        %2533 = vmatpush1.bf16.msra.mxu0 %v2352
        %2534 = vmatprep.subr.bf16.mxu0 %v2359
        %2535 = vmatpush1.bf16.msra.mxu0 %v2358
        %2536 = vmatprep.subr.bf16.mxu0 %v2365
        %2537 = vmatpush1.bf16.msra.mxu0 %v2364
        %2538 = vmatprep.subr.bf16.mxu0 %v2371
        %2539 = vmatpush1.bf16.msra.mxu0 %v2370
        %2540 = vmatprep.subr.bf16.mxu0 %v2377
        %2541 = vmatpush1.bf16.msra.mxu0 %v2376
        %2542 = vmatprep.subr.bf16.mxu0 %v2383
        %2543 = vmatpush1.bf16.msra.mxu0 %v2382
        %2544 = vmatprep.subr.bf16.mxu0 %v2389
        %2545 = vmatpush1.bf16.msra.mxu0 %v2388
        %2546 = vmatprep.subr.bf16.mxu0 %v2395
        %2547 = vmatpush1.bf16.msra.mxu0 %v2394
        %2548 = vmatprep.subr.bf16.mxu0 %v2401
        %2549 = vmatpush1.bf16.msra.mxu0 %v2400
        %2550 = vmatprep.subr.bf16.mxu0 %v2407
        %2551 = vmatpush1.bf16.msra.mxu0 %v2406
        %2552 = vmatprep.subr.bf16.mxu0 %v2413
        %2553 = vmatpush1.bf16.msra.mxu0 %v2412
        %2554 = vmatprep.subr.bf16.mxu0 %v2419
        %2555 = vmatpush1.bf16.msra.mxu0 %v2418
        %2556 = vmatprep.subr.bf16.mxu0 %v2425
        %2557 = vmatpush1.bf16.msra.mxu0 %v2424
        %2558 = vmatprep.mubr.bf16.mxu0 %v1911
        %2559 = vmatmul.mubr.bf16.gmra.mrb[0].mxu0 %v1910
        %v2560 = vpop.f32.mrb[0].mxu0
        %v2561 = vadd.f32 %v2019, %v2560
        %v2562 = vpop.f32.mrb[0].mxu0
        %v2563 = vadd.f32 %v2023, %v2562
        %v2564 = vpop.f32.mrb[0].mxu0
        %v2565 = vadd.f32 %v2019, %v2564
        %v2566 = vpop.f32.mrb[0].mxu0
        %v2567 = vadd.f32 %v2023, %v2566
        %2568 = vmatprep.mubr.bf16.mxu0 %v1913
        %2569 = vmatmul.mubr.bf16.gmra.mrb[0].mxu0 %v1912
        %v2570 = vpop.f32.mrb[0].mxu0
        %v2571 = vadd.f32 %v2019, %v2570
        %v2572 = vpop.f32.mrb[0].mxu0
        %v2573 = vadd.f32 %v2023, %v2572
        %v2574 = vpop.f32.mrb[0].mxu0
        %v2575 = vadd.f32 %v2019, %v2574
        %v2576 = vpop.f32.mrb[0].mxu0
        %v2577 = vadd.f32 %v2023, %v2576
        %2578 = vmatprep.mubr.bf16.mxu0 %v1915
        %2579 = vmatmul.mubr.bf16.gmra.mrb[0].mxu0 %v1914
        %v2580 = vpop.f32.mrb[0].mxu0
        %v2581 = vadd.f32 %v2019, %v2580
        %v2582 = vpop.f32.mrb[0].mxu0
        %v2583 = vadd.f32 %v2023, %v2582
        %v2584 = vpop.f32.mrb[0].mxu0
        %v2585 = vadd.f32 %v2019, %v2584
        %v2586 = vpop.f32.mrb[0].mxu0
        %v2587 = vadd.f32 %v2023, %v2586
        %2588 = vmatprep.mubr.bf16.mxu0 %v1917
        %2589 = vmatmul.mubr.bf16.gmra.mrb[0].mxu0 %v1916
        %v2590 = vpop.f32.mrb[0].mxu0
        %v2591 = vadd.f32 %v2019, %v2590
        %v2592 = vpop.f32.mrb[0].mxu0
        %v2593 = vadd.f32 %v2023, %v2592
        %v2594 = vpop.f32.mrb[0].mxu0
        %v2595 = vadd.f32 %v2019, %v2594
        %v2596 = vpop.f32.mrb[0].mxu0
        %v2597 = vadd.f32 %v2023, %v2596
        %2598 = vdwg.mxu0
        %2599 = vmatprep.subr.bf16.mxu0 %v2337
        %2600 = vmatpush1.bf16.msra.mxu0 %v2336
        %2601 = vmatprep.subr.bf16.mxu0 %v2343
        %2602 = vmatpush1.bf16.msra.mxu0 %v2342
        %2603 = vmatprep.subr.bf16.mxu0 %v2349
        %2604 = vmatpush1.bf16.msra.mxu0 %v2348
        %2605 = vmatprep.subr.bf16.mxu0 %v2355
        %2606 = vmatpush1.bf16.msra.mxu0 %v2354
        %2607 = vmatprep.subr.bf16.mxu0 %v2361
        %2608 = vmatpush1.bf16.msra.mxu0 %v2360
        %2609 = vmatprep.subr.bf16.mxu0 %v2367
        %2610 = vmatpush1.bf16.msra.mxu0 %v2366
        %2611 = vmatprep.subr.bf16.mxu0 %v2373
        %2612 = vmatpush1.bf16.msra.mxu0 %v2372
        %2613 = vmatprep.subr.bf16.mxu0 %v2379
        %2614 = vmatpush1.bf16.msra.mxu0 %v2378
        %2615 = vmatprep.subr.bf16.mxu0 %v2385
        %2616 = vmatpush1.bf16.msra.mxu0 %v2384
        %2617 = vmatprep.subr.bf16.mxu0 %v2391
        %2618 = vmatpush1.bf16.msra.mxu0 %v2390
        %2619 = vmatprep.subr.bf16.mxu0 %v2397
        %2620 = vmatpush1.bf16.msra.mxu0 %v2396
        %2621 = vmatprep.subr.bf16.mxu0 %v2403
        %2622 = vmatpush1.bf16.msra.mxu0 %v2402
        %2623 = vmatprep.subr.bf16.mxu0 %v2409
        %2624 = vmatpush1.bf16.msra.mxu0 %v2408
        %2625 = vmatprep.subr.bf16.mxu0 %v2415
        %2626 = vmatpush1.bf16.msra.mxu0 %v2414
        %2627 = vmatprep.subr.bf16.mxu0 %v2421
        %2628 = vmatpush1.bf16.msra.mxu0 %v2420
        %2629 = vmatprep.subr.bf16.mxu0 %v2427
        %2630 = vmatpush1.bf16.msra.mxu0 %v2426
        %2631 = vmatprep.mubr.bf16.mxu0 %v1911
        %2632 = vmatmul.mubr.bf16.gmra.mrb[0].mxu0 %v1910
        %v2633 = vpop.f32.mrb[0].mxu0
        %v2634 = vadd.f32 %v2027, %v2633
        %v2635 = vpop.f32.mrb[0].mxu0
        %v2636 = vadd.f32 %v2031, %v2635
        %v2637 = vpop.f32.mrb[0].mxu0
        %v2638 = vadd.f32 %v2027, %v2637
        %v2639 = vpop.f32.mrb[0].mxu0
        %v2640 = vadd.f32 %v2031, %v2639
        %2641 = vmatprep.mubr.bf16.mxu0 %v1913
        %2642 = vmatmul.mubr.bf16.gmra.mrb[0].mxu0 %v1912
        %v2643 = vpop.f32.mrb[0].mxu0
        %v2644 = vadd.f32 %v2027, %v2643
        %v2645 = vpop.f32.mrb[0].mxu0
        %v2646 = vadd.f32 %v2031, %v2645
        %v2647 = vpop.f32.mrb[0].mxu0
        %v2648 = vadd.f32 %v2027, %v2647
        %v2649 = vpop.f32.mrb[0].mxu0
        %v2650 = vadd.f32 %v2031, %v2649
        %2651 = vmatprep.mubr.bf16.mxu0 %v1915
        %2652 = vmatmul.mubr.bf16.gmra.mrb[0].mxu0 %v1914
        %v2653 = vpop.f32.mrb[0].mxu0
        %v2654 = vadd.f32 %v2027, %v2653
        %v2655 = vpop.f32.mrb[0].mxu0
        %v2656 = vadd.f32 %v2031, %v2655
        %v2657 = vpop.f32.mrb[0].mxu0
        %v2658 = vadd.f32 %v2027, %v2657
        %v2659 = vpop.f32.mrb[0].mxu0
        %v2660 = vadd.f32 %v2031, %v2659
        %2661 = vmatprep.mubr.bf16.mxu0 %v1917
        %2662 = vmatmul.mubr.bf16.gmra.mrb[0].mxu0 %v1916
        %v2663 = vpop.f32.mrb[0].mxu0
        %v2664 = vadd.f32 %v2027, %v2663
        %v2665 = vpop.f32.mrb[0].mxu0
        %v2666 = vadd.f32 %v2031, %v2665
        %v2667 = vpop.f32.mrb[0].mxu0
        %v2668 = vadd.f32 %v2027, %v2667
        %v2669 = vpop.f32.mrb[0].mxu0
        %v2670 = vadd.f32 %v2031, %v2669
        %2671 = vdwg.mxu0
        %2672 = vmatprep.subr.bf16.mxu0 %v2339
        %2673 = vmatpush1.bf16.msra.mxu0 %v2338
        %2674 = vmatprep.subr.bf16.mxu0 %v2345
        %2675 = vmatpush1.bf16.msra.mxu0 %v2344
        %2676 = vmatprep.subr.bf16.mxu0 %v2351
        %2677 = vmatpush1.bf16.msra.mxu0 %v2350
        %2678 = vmatprep.subr.bf16.mxu0 %v2357
        %2679 = vmatpush1.bf16.msra.mxu0 %v2356
        %2680 = vmatprep.subr.bf16.mxu0 %v2363
        %2681 = vmatpush1.bf16.msra.mxu0 %v2362
        %2682 = vmatprep.subr.bf16.mxu0 %v2369
        %2683 = vmatpush1.bf16.msra.mxu0 %v2368
        %2684 = vmatprep.subr.bf16.mxu0 %v2375
        %2685 = vmatpush1.bf16.msra.mxu0 %v2374
        %2686 = vmatprep.subr.bf16.mxu0 %v2381
        %2687 = vmatpush1.bf16.msra.mxu0 %v2380
        %2688 = vmatprep.subr.bf16.mxu0 %v2387
        %2689 = vmatpush1.bf16.msra.mxu0 %v2386
        %2690 = vmatprep.subr.bf16.mxu0 %v2393
        %2691 = vmatpush1.bf16.msra.mxu0 %v2392
        %2692 = vmatprep.subr.bf16.mxu0 %v2399
        %2693 = vmatpush1.bf16.msra.mxu0 %v2398
        %2694 = vmatprep.subr.bf16.mxu0 %v2405
        %2695 = vmatpush1.bf16.msra.mxu0 %v2404
        %2696 = vmatprep.subr.bf16.mxu0 %v2411
        %2697 = vmatpush1.bf16.msra.mxu0 %v2410
        %2698 = vmatprep.subr.bf16.mxu0 %v2417
        %2699 = vmatpush1.bf16.msra.mxu0 %v2416
        %2700 = vmatprep.subr.bf16.mxu0 %v2423
        %2701 = vmatpush1.bf16.msra.mxu0 %v2422
        %2702 = vmatprep.subr.bf16.mxu0 %v2429
        %2703 = vmatpush1.bf16.msra.mxu0 %v2428
        %2704 = vmatprep.mubr.bf16.mxu0 %v1911
        %2705 = vmatmul.mubr.bf16.gmra.mrb[0].mxu0 %v1910
        %v2706 = vpop.f32.mrb[0].mxu0
        %v2707 = vadd.f32 %v2035, %v2706
        %v2708 = vpop.f32.mrb[0].mxu0
        %v2709 = vadd.f32 %v2039, %v2708
        %v2710 = vpop.f32.mrb[0].mxu0
        %v2711 = vadd.f32 %v2035, %v2710
        %v2712 = vpop.f32.mrb[0].mxu0
        %v2713 = vadd.f32 %v2039, %v2712
        %2714 = vmatprep.mubr.bf16.mxu0 %v1913
        %2715 = vmatmul.mubr.bf16.gmra.mrb[0].mxu0 %v1912
        %v2716 = vpop.f32.mrb[0].mxu0
        %v2717 = vadd.f32 %v2035, %v2716
        %v2718 = vpop.f32.mrb[0].mxu0
        %v2719 = vadd.f32 %v2039, %v2718
        %v2720 = vpop.f32.mrb[0].mxu0
        %v2721 = vadd.f32 %v2035, %v2720
        %v2722 = vpop.f32.mrb[0].mxu0
        %v2723 = vadd.f32 %v2039, %v2722
        %2724 = vmatprep.mubr.bf16.mxu0 %v1915
        %2725 = vmatmul.mubr.bf16.gmra.mrb[0].mxu0 %v1914
        %v2726 = vpop.f32.mrb[0].mxu0
        %v2727 = vadd.f32 %v2035, %v2726
        %v2728 = vpop.f32.mrb[0].mxu0
        %v2729 = vadd.f32 %v2039, %v2728
        %v2730 = vpop.f32.mrb[0].mxu0
        %v2731 = vadd.f32 %v2035, %v2730
        %v2732 = vpop.f32.mrb[0].mxu0
        %v2733 = vadd.f32 %v2039, %v2732
        %2734 = vmatprep.mubr.bf16.mxu0 %v1917
        %2735 = vmatmul.mubr.bf16.gmra.mrb[0].mxu0 %v1916
        %v2736 = vpop.f32.mrb[0].mxu0
        %v2737 = vadd.f32 %v2035, %v2736
        %v2738 = vpop.f32.mrb[0].mxu0
        %v2739 = vadd.f32 %v2039, %v2738
        %v2740 = vpop.f32.mrb[0].mxu0
        %v2741 = vadd.f32 %v2035, %v2740
        %v2742 = vpop.f32.mrb[0].mxu0
        %v2743 = vadd.f32 %v2039, %v2742
        %2744 = vdwg.mxu0
        %v2745 = vld [vmem:[%s1] sm:$0x1]
        %v2746 = vld [vmem:[%s999] sm:$0xff]
        %v2747 = vld [vmem:[%s999 + $0x8] sm:$0xff]
        %v2748 = vld [vmem:[%s999 + $0x10] sm:$0xff]
        %v2749 = vld [vmem:[%s999 + $0x18] sm:$0xff]
        %v2750 = vld [vmem:[%s999 + $0x20] sm:$0xff]
        %v2751 = vld [vmem:[%s999 + $0x28] sm:$0xff]
        %v2752 = vld [vmem:[%s999 + $0x30] sm:$0xff]
        %v2753 = vld [vmem:[%s999 + $0x38] sm:$0xff]
        %v2754 = vld [vmem:[%s999 + $0x40] sm:$0xff]
        %v2755 = vld [vmem:[%s999 + $0x48] sm:$0xff]
        %v2756 = vld [vmem:[%s999 + $0x50] sm:$0xff]
        %v2757 = vld [vmem:[%s999 + $0x58] sm:$0xff]
        %v2758 = vld [vmem:[%s999 + $0x60] sm:$0xff]
        %v2759 = vld [vmem:[%s999 + $0x68] sm:$0xff]
        %v2760 = vld [vmem:[%s999 + $0x70] sm:$0xff]
        %v2761 = vld [vmem:[%s999 + $0x78] sm:$0xff]
        %v2762 = vld [vmem:[%s999 + $0x80] sm:$0xff]
        %v2763 = vld [vmem:[%s999 + $0x88] sm:$0xff]
        %v2764 = vld [vmem:[%s999 + $0x90] sm:$0xff]
        %v2765 = vld [vmem:[%s999 + $0x98] sm:$0xff]
        %v2766 = vld [vmem:[%s999 + $0xa0] sm:$0xff]
        %v2767 = vld [vmem:[%s999 + $0xa8] sm:$0xff]
        %v2768 = vld [vmem:[%s999 + $0xb0] sm:$0xff]
        %v2769 = vld [vmem:[%s999 + $0xb8] sm:$0xff]
        %v2770 = vld [vmem:[%s999 + $0xc0] sm:$0xff]
        %v2771 = vld [vmem:[%s999 + $0xc8] sm:$0xff]
        %v2772 = vld [vmem:[%s999 + $0xd0] sm:$0xff]
        %v2773 = vld [vmem:[%s999 + $0xd8] sm:$0xff]
        %v2774 = vld [vmem:[%s999 + $0xe0] sm:$0xff]
        %v2775 = vld [vmem:[%s999 + $0xe8] sm:$0xff]
        %v2776 = vld [vmem:[%s999 + $0xf0] sm:$0xff]
        %v2777 = vld [vmem:[%s999 + $0xf8] sm:$0xff]
        %v2778 = vpack.c.bf16 %v2561, %v2561
        %v2779 = vpack.c.bf16 %v2565, %v2565
        %v2780 = vpack.c.bf16 %v2571, %v2571
        %v2781 = vpack.c.bf16 %v2575, %v2575
        %v2782 = vpack.c.bf16 %v2581, %v2581
        %v2783 = vpack.c.bf16 %v2585, %v2585
        %v2784 = vpack.c.bf16 %v2591, %v2591
        %v2785 = vpack.c.bf16 %v2595, %v2595
        %v2786 = vpack.c.bf16 %v2634, %v2634
        %v2787 = vpack.c.bf16 %v2638, %v2638
        %v2788 = vpack.c.bf16 %v2644, %v2644
        %v2789 = vpack.c.bf16 %v2648, %v2648
        %v2790 = vpack.c.bf16 %v2654, %v2654
        %v2791 = vpack.c.bf16 %v2658, %v2658
        %v2792 = vpack.c.bf16 %v2664, %v2664
        %v2793 = vpack.c.bf16 %v2668, %v2668
        %v2794 = vpack.c.bf16 %v2707, %v2707
        %v2795 = vpack.c.bf16 %v2711, %v2711
        %v2796 = vpack.c.bf16 %v2717, %v2717
        %v2797 = vpack.c.bf16 %v2721, %v2721
        %v2798 = vpack.c.bf16 %v2727, %v2727
        %v2799 = vpack.c.bf16 %v2731, %v2731
        %v2800 = vpack.c.bf16 %v2737, %v2737
        %v2801 = vpack.c.bf16 %v2741, %v2741
        %2802 = vmatprep.subr.bf16.mxu0 0
        %2803 = vmatpush1.bf16.xpose.msra.mxu0 %v2786
        %2804 = vmatprep.subr.bf16.mxu0 0
        %2805 = vmatpush1.bf16.xpose.msra.mxu0 0
        %2806 = vmatprep.subr.bf16.mxu0 0
        %2807 = vmatpush1.bf16.xpose.msra.mxu0 0
        %2808 = vmatprep.subr.bf16.mxu0 0
        %2809 = vmatpush1.bf16.xpose.msra.mxu0 0
        %2810 = vmatprep.subr.bf16.mxu0 0
        %2811 = vmatpush1.bf16.xpose.msra.mxu0 0
        %2812 = vmatprep.subr.bf16.mxu0 0
        %2813 = vmatpush1.bf16.xpose.msra.mxu0 0
        %2814 = vmatprep.subr.bf16.mxu0 0
        %2815 = vmatpush1.bf16.xpose.msra.mxu0 0
        %2816 = vmatprep.subr.bf16.mxu0 0
        %2817 = vmatpush1.bf16.xpose.msra.mxu0 0
        %2818 = vmatprep.subr.bf16.mxu0 0
        %2819 = vmatpush1.bf16.xpose.msra.mxu0 0
        %2820 = vmatprep.subr.bf16.mxu0 0
        %2821 = vmatpush1.bf16.xpose.msra.mxu0 0
        %2822 = vmatprep.subr.bf16.mxu0 0
        %2823 = vmatpush1.bf16.xpose.msra.mxu0 0
        %2824 = vmatprep.subr.bf16.mxu0 0
        %2825 = vmatpush1.bf16.xpose.msra.mxu0 0
        %2826 = vmatprep.subr.bf16.mxu0 0
        %2827 = vmatpush1.bf16.xpose.msra.mxu0 0
        %2828 = vmatprep.subr.bf16.mxu0 0
        %2829 = vmatpush1.bf16.xpose.msra.mxu0 0
        %2830 = vmatprep.subr.bf16.mxu0 0
        %2831 = vmatpush1.bf16.xpose.msra.mxu0 0
        %2832 = vmatprep.subr.bf16.mxu0 0
        %2833 = vmatpush1.bf16.xpose.msra.mxu0 0
        %2834 = vmatprep.mubr.bf16.mxu0 0
        %2835 = vmatmul.mubr.bf16.gmra.mrb[0].mxu0 %v2778
        %v2836 = vpop.f32.mrb[0].mxu0
        %v2837 = vadd.f32 0.0, %v2836
        %v2838 = vpop.f32.mrb[0].mxu0
        %v2839 = vpop.f32.mrb[0].mxu0
        %v2840 = vpop.f32.mrb[0].mxu0
        %2841 = vdwg.mxu0
        %2842 = vmatprep.subr.bf16.mxu0 0
        %2843 = vmatpush1.bf16.xpose.msra.mxu0 %v2787
        %2844 = vmatprep.subr.bf16.mxu0 0
        %2845 = vmatpush1.bf16.xpose.msra.mxu0 0
        %2846 = vmatprep.subr.bf16.mxu0 0
        %2847 = vmatpush1.bf16.xpose.msra.mxu0 0
        %2848 = vmatprep.subr.bf16.mxu0 0
        %2849 = vmatpush1.bf16.xpose.msra.mxu0 0
        %2850 = vmatprep.subr.bf16.mxu0 0
        %2851 = vmatpush1.bf16.xpose.msra.mxu0 0
        %2852 = vmatprep.subr.bf16.mxu0 0
        %2853 = vmatpush1.bf16.xpose.msra.mxu0 0
        %2854 = vmatprep.subr.bf16.mxu0 0
        %2855 = vmatpush1.bf16.xpose.msra.mxu0 0
        %2856 = vmatprep.subr.bf16.mxu0 0
        %2857 = vmatpush1.bf16.xpose.msra.mxu0 0
        %2858 = vmatprep.subr.bf16.mxu0 0
        %2859 = vmatpush1.bf16.xpose.msra.mxu0 0
        %2860 = vmatprep.subr.bf16.mxu0 0
        %2861 = vmatpush1.bf16.xpose.msra.mxu0 0
        %2862 = vmatprep.subr.bf16.mxu0 0
        %2863 = vmatpush1.bf16.xpose.msra.mxu0 0
        %2864 = vmatprep.subr.bf16.mxu0 0
        %2865 = vmatpush1.bf16.xpose.msra.mxu0 0
        %2866 = vmatprep.subr.bf16.mxu0 0
        %2867 = vmatpush1.bf16.xpose.msra.mxu0 0
        %2868 = vmatprep.subr.bf16.mxu0 0
        %2869 = vmatpush1.bf16.xpose.msra.mxu0 0
        %2870 = vmatprep.subr.bf16.mxu0 0
        %2871 = vmatpush1.bf16.xpose.msra.mxu0 0
        %2872 = vmatprep.subr.bf16.mxu0 0
        %2873 = vmatpush1.bf16.xpose.msra.mxu0 0
        %2874 = vmatprep.mubr.bf16.mxu0 0
        %2875 = vmatmul.mubr.bf16.gmra.mrb[0].mxu0 %v2779
        %v2876 = vpop.f32.mrb[0].mxu0
        %v2877 = vadd.f32 0.0, %v2876
        %v2878 = vpop.f32.mrb[0].mxu0
        %v2879 = vpop.f32.mrb[0].mxu0
        %v2880 = vpop.f32.mrb[0].mxu0
        %2881 = vdwg.mxu0
        %2882 = vmatprep.subr.bf16.mxu0 0
        %2883 = vmatpush1.bf16.xpose.msra.mxu0 %v2788
        %2884 = vmatprep.subr.bf16.mxu0 0
        %2885 = vmatpush1.bf16.xpose.msra.mxu0 0
        %2886 = vmatprep.subr.bf16.mxu0 0
        %2887 = vmatpush1.bf16.xpose.msra.mxu0 0
        %2888 = vmatprep.subr.bf16.mxu0 0
        %2889 = vmatpush1.bf16.xpose.msra.mxu0 0
        %2890 = vmatprep.subr.bf16.mxu0 0
        %2891 = vmatpush1.bf16.xpose.msra.mxu0 0
        %2892 = vmatprep.subr.bf16.mxu0 0
        %2893 = vmatpush1.bf16.xpose.msra.mxu0 0
        %2894 = vmatprep.subr.bf16.mxu0 0
        %2895 = vmatpush1.bf16.xpose.msra.mxu0 0
        %2896 = vmatprep.subr.bf16.mxu0 0
        %2897 = vmatpush1.bf16.xpose.msra.mxu0 0
        %2898 = vmatprep.subr.bf16.mxu0 0
        %2899 = vmatpush1.bf16.xpose.msra.mxu0 0
        %2900 = vmatprep.subr.bf16.mxu0 0
        %2901 = vmatpush1.bf16.xpose.msra.mxu0 0
        %2902 = vmatprep.subr.bf16.mxu0 0
        %2903 = vmatpush1.bf16.xpose.msra.mxu0 0
        %2904 = vmatprep.subr.bf16.mxu0 0
        %2905 = vmatpush1.bf16.xpose.msra.mxu0 0
        %2906 = vmatprep.subr.bf16.mxu0 0
        %2907 = vmatpush1.bf16.xpose.msra.mxu0 0
        %2908 = vmatprep.subr.bf16.mxu0 0
        %2909 = vmatpush1.bf16.xpose.msra.mxu0 0
        %2910 = vmatprep.subr.bf16.mxu0 0
        %2911 = vmatpush1.bf16.xpose.msra.mxu0 0
        %2912 = vmatprep.subr.bf16.mxu0 0
        %2913 = vmatpush1.bf16.xpose.msra.mxu0 0
        %2914 = vmatprep.mubr.bf16.mxu0 0
        %2915 = vmatmul.mubr.bf16.gmra.mrb[0].mxu0 %v2780
        %v2916 = vpop.f32.mrb[0].mxu0
        %v2917 = vadd.f32 0.0, %v2916
        %v2918 = vpop.f32.mrb[0].mxu0
        %v2919 = vpop.f32.mrb[0].mxu0
        %v2920 = vpop.f32.mrb[0].mxu0
        %2921 = vdwg.mxu0
        %2922 = vmatprep.subr.bf16.mxu0 0
        %2923 = vmatpush1.bf16.xpose.msra.mxu0 %v2789
        %2924 = vmatprep.subr.bf16.mxu0 0
        %2925 = vmatpush1.bf16.xpose.msra.mxu0 0
        %2926 = vmatprep.subr.bf16.mxu0 0
        %2927 = vmatpush1.bf16.xpose.msra.mxu0 0
        %2928 = vmatprep.subr.bf16.mxu0 0
        %2929 = vmatpush1.bf16.xpose.msra.mxu0 0
        %2930 = vmatprep.subr.bf16.mxu0 0
        %2931 = vmatpush1.bf16.xpose.msra.mxu0 0
        %2932 = vmatprep.subr.bf16.mxu0 0
        %2933 = vmatpush1.bf16.xpose.msra.mxu0 0
        %2934 = vmatprep.subr.bf16.mxu0 0
        %2935 = vmatpush1.bf16.xpose.msra.mxu0 0
        %2936 = vmatprep.subr.bf16.mxu0 0
        %2937 = vmatpush1.bf16.xpose.msra.mxu0 0
        %2938 = vmatprep.subr.bf16.mxu0 0
        %2939 = vmatpush1.bf16.xpose.msra.mxu0 0
        %2940 = vmatprep.subr.bf16.mxu0 0
        %2941 = vmatpush1.bf16.xpose.msra.mxu0 0
        %2942 = vmatprep.subr.bf16.mxu0 0
        %2943 = vmatpush1.bf16.xpose.msra.mxu0 0
        %2944 = vmatprep.subr.bf16.mxu0 0
        %2945 = vmatpush1.bf16.xpose.msra.mxu0 0
        %2946 = vmatprep.subr.bf16.mxu0 0
        %2947 = vmatpush1.bf16.xpose.msra.mxu0 0
        %2948 = vmatprep.subr.bf16.mxu0 0
        %2949 = vmatpush1.bf16.xpose.msra.mxu0 0
        %2950 = vmatprep.subr.bf16.mxu0 0
        %2951 = vmatpush1.bf16.xpose.msra.mxu0 0
        %2952 = vmatprep.subr.bf16.mxu0 0
        %2953 = vmatpush1.bf16.xpose.msra.mxu0 0
        %2954 = vmatprep.mubr.bf16.mxu0 0
        %2955 = vmatmul.mubr.bf16.gmra.mrb[0].mxu0 %v2781
        %v2956 = vpop.f32.mrb[0].mxu0
        %v2957 = vadd.f32 0.0, %v2956
        %v2958 = vpop.f32.mrb[0].mxu0
        %v2959 = vpop.f32.mrb[0].mxu0
        %v2960 = vpop.f32.mrb[0].mxu0
        %2961 = vdwg.mxu0
        %2962 = vmatprep.subr.bf16.mxu0 0
        %2963 = vmatpush1.bf16.xpose.msra.mxu0 %v2790
        %2964 = vmatprep.subr.bf16.mxu0 0
        %2965 = vmatpush1.bf16.xpose.msra.mxu0 0
        %2966 = vmatprep.subr.bf16.mxu0 0
        %2967 = vmatpush1.bf16.xpose.msra.mxu0 0
        %2968 = vmatprep.subr.bf16.mxu0 0
        %2969 = vmatpush1.bf16.xpose.msra.mxu0 0
        %2970 = vmatprep.subr.bf16.mxu0 0
        %2971 = vmatpush1.bf16.xpose.msra.mxu0 0
        %2972 = vmatprep.subr.bf16.mxu0 0
        %2973 = vmatpush1.bf16.xpose.msra.mxu0 0
        %2974 = vmatprep.subr.bf16.mxu0 0
        %2975 = vmatpush1.bf16.xpose.msra.mxu0 0
        %2976 = vmatprep.subr.bf16.mxu0 0
        %2977 = vmatpush1.bf16.xpose.msra.mxu0 0
        %2978 = vmatprep.subr.bf16.mxu0 0
        %2979 = vmatpush1.bf16.xpose.msra.mxu0 0
        %2980 = vmatprep.subr.bf16.mxu0 0
        %2981 = vmatpush1.bf16.xpose.msra.mxu0 0
        %2982 = vmatprep.subr.bf16.mxu0 0
        %2983 = vmatpush1.bf16.xpose.msra.mxu0 0
        %2984 = vmatprep.subr.bf16.mxu0 0
        %2985 = vmatpush1.bf16.xpose.msra.mxu0 0
        %2986 = vmatprep.subr.bf16.mxu0 0
        %2987 = vmatpush1.bf16.xpose.msra.mxu0 0
        %2988 = vmatprep.subr.bf16.mxu0 0
        %2989 = vmatpush1.bf16.xpose.msra.mxu0 0
        %2990 = vmatprep.subr.bf16.mxu0 0
        %2991 = vmatpush1.bf16.xpose.msra.mxu0 0
        %2992 = vmatprep.subr.bf16.mxu0 0
        %2993 = vmatpush1.bf16.xpose.msra.mxu0 0
        %2994 = vmatprep.mubr.bf16.mxu0 0
        %2995 = vmatmul.mubr.bf16.gmra.mrb[0].mxu0 %v2782
        %v2996 = vpop.f32.mrb[0].mxu0
        %v2997 = vadd.f32 0.0, %v2996
        %v2998 = vpop.f32.mrb[0].mxu0
        %v2999 = vpop.f32.mrb[0].mxu0
        %v3000 = vpop.f32.mrb[0].mxu0
        %3001 = vdwg.mxu0
        %3002 = vmatprep.subr.bf16.mxu0 0
        %3003 = vmatpush1.bf16.xpose.msra.mxu0 %v2791
        %3004 = vmatprep.subr.bf16.mxu0 0
        %3005 = vmatpush1.bf16.xpose.msra.mxu0 0
        %3006 = vmatprep.subr.bf16.mxu0 0
        %3007 = vmatpush1.bf16.xpose.msra.mxu0 0
        %3008 = vmatprep.subr.bf16.mxu0 0
        %3009 = vmatpush1.bf16.xpose.msra.mxu0 0
        %3010 = vmatprep.subr.bf16.mxu0 0
        %3011 = vmatpush1.bf16.xpose.msra.mxu0 0
        %3012 = vmatprep.subr.bf16.mxu0 0
        %3013 = vmatpush1.bf16.xpose.msra.mxu0 0
        %3014 = vmatprep.subr.bf16.mxu0 0
        %3015 = vmatpush1.bf16.xpose.msra.mxu0 0
        %3016 = vmatprep.subr.bf16.mxu0 0
        %3017 = vmatpush1.bf16.xpose.msra.mxu0 0
        %3018 = vmatprep.subr.bf16.mxu0 0
        %3019 = vmatpush1.bf16.xpose.msra.mxu0 0
        %3020 = vmatprep.subr.bf16.mxu0 0
        %3021 = vmatpush1.bf16.xpose.msra.mxu0 0
        %3022 = vmatprep.subr.bf16.mxu0 0
        %3023 = vmatpush1.bf16.xpose.msra.mxu0 0
        %3024 = vmatprep.subr.bf16.mxu0 0
        %3025 = vmatpush1.bf16.xpose.msra.mxu0 0
        %3026 = vmatprep.subr.bf16.mxu0 0
        %3027 = vmatpush1.bf16.xpose.msra.mxu0 0
        %3028 = vmatprep.subr.bf16.mxu0 0
        %3029 = vmatpush1.bf16.xpose.msra.mxu0 0
        %3030 = vmatprep.subr.bf16.mxu0 0
        %3031 = vmatpush1.bf16.xpose.msra.mxu0 0
        %3032 = vmatprep.subr.bf16.mxu0 0
        %3033 = vmatpush1.bf16.xpose.msra.mxu0 0
        %3034 = vmatprep.mubr.bf16.mxu0 0
        %3035 = vmatmul.mubr.bf16.gmra.mrb[0].mxu0 %v2783
        %v3036 = vpop.f32.mrb[0].mxu0
        %v3037 = vadd.f32 0.0, %v3036
        %v3038 = vpop.f32.mrb[0].mxu0
        %v3039 = vpop.f32.mrb[0].mxu0
        %v3040 = vpop.f32.mrb[0].mxu0
        %3041 = vdwg.mxu0
        %3042 = vmatprep.subr.bf16.mxu0 0
        %3043 = vmatpush1.bf16.xpose.msra.mxu0 %v2792
        %3044 = vmatprep.subr.bf16.mxu0 0
        %3045 = vmatpush1.bf16.xpose.msra.mxu0 0
        %3046 = vmatprep.subr.bf16.mxu0 0
        %3047 = vmatpush1.bf16.xpose.msra.mxu0 0
        %3048 = vmatprep.subr.bf16.mxu0 0
        %3049 = vmatpush1.bf16.xpose.msra.mxu0 0
        %3050 = vmatprep.subr.bf16.mxu0 0
        %3051 = vmatpush1.bf16.xpose.msra.mxu0 0
        %3052 = vmatprep.subr.bf16.mxu0 0
        %3053 = vmatpush1.bf16.xpose.msra.mxu0 0
        %3054 = vmatprep.subr.bf16.mxu0 0
        %3055 = vmatpush1.bf16.xpose.msra.mxu0 0
        %3056 = vmatprep.subr.bf16.mxu0 0
        %3057 = vmatpush1.bf16.xpose.msra.mxu0 0
        %3058 = vmatprep.subr.bf16.mxu0 0
        %3059 = vmatpush1.bf16.xpose.msra.mxu0 0
        %3060 = vmatprep.subr.bf16.mxu0 0
        %3061 = vmatpush1.bf16.xpose.msra.mxu0 0
        %3062 = vmatprep.subr.bf16.mxu0 0
        %3063 = vmatpush1.bf16.xpose.msra.mxu0 0
        %3064 = vmatprep.subr.bf16.mxu0 0
        %3065 = vmatpush1.bf16.xpose.msra.mxu0 0
        %3066 = vmatprep.subr.bf16.mxu0 0
        %3067 = vmatpush1.bf16.xpose.msra.mxu0 0
        %3068 = vmatprep.subr.bf16.mxu0 0
        %3069 = vmatpush1.bf16.xpose.msra.mxu0 0
        %3070 = vmatprep.subr.bf16.mxu0 0
        %3071 = vmatpush1.bf16.xpose.msra.mxu0 0
        %3072 = vmatprep.subr.bf16.mxu0 0
        %3073 = vmatpush1.bf16.xpose.msra.mxu0 0
        %3074 = vmatprep.mubr.bf16.mxu0 0
        %3075 = vmatmul.mubr.bf16.gmra.mrb[0].mxu0 %v2784
        %v3076 = vpop.f32.mrb[0].mxu0
        %v3077 = vadd.f32 0.0, %v3076
        %v3078 = vpop.f32.mrb[0].mxu0
        %v3079 = vpop.f32.mrb[0].mxu0
        %v3080 = vpop.f32.mrb[0].mxu0
        %3081 = vdwg.mxu0
        %3082 = vmatprep.subr.bf16.mxu0 0
        %3083 = vmatpush1.bf16.xpose.msra.mxu0 %v2793
        %3084 = vmatprep.subr.bf16.mxu0 0
        %3085 = vmatpush1.bf16.xpose.msra.mxu0 0
        %3086 = vmatprep.subr.bf16.mxu0 0
        %3087 = vmatpush1.bf16.xpose.msra.mxu0 0
        %3088 = vmatprep.subr.bf16.mxu0 0
        %3089 = vmatpush1.bf16.xpose.msra.mxu0 0
        %3090 = vmatprep.subr.bf16.mxu0 0
        %3091 = vmatpush1.bf16.xpose.msra.mxu0 0
        %3092 = vmatprep.subr.bf16.mxu0 0
        %3093 = vmatpush1.bf16.xpose.msra.mxu0 0
        %3094 = vmatprep.subr.bf16.mxu0 0
        %3095 = vmatpush1.bf16.xpose.msra.mxu0 0
        %3096 = vmatprep.subr.bf16.mxu0 0
        %3097 = vmatpush1.bf16.xpose.msra.mxu0 0
        %3098 = vmatprep.subr.bf16.mxu0 0
        %3099 = vmatpush1.bf16.xpose.msra.mxu0 0
        %3100 = vmatprep.subr.bf16.mxu0 0
        %3101 = vmatpush1.bf16.xpose.msra.mxu0 0
        %3102 = vmatprep.subr.bf16.mxu0 0
        %3103 = vmatpush1.bf16.xpose.msra.mxu0 0
        %3104 = vmatprep.subr.bf16.mxu0 0
        %3105 = vmatpush1.bf16.xpose.msra.mxu0 0
        %3106 = vmatprep.subr.bf16.mxu0 0
        %3107 = vmatpush1.bf16.xpose.msra.mxu0 0
        %3108 = vmatprep.subr.bf16.mxu0 0
        %3109 = vmatpush1.bf16.xpose.msra.mxu0 0
        %3110 = vmatprep.subr.bf16.mxu0 0
        %3111 = vmatpush1.bf16.xpose.msra.mxu0 0
        %3112 = vmatprep.subr.bf16.mxu0 0
        %3113 = vmatpush1.bf16.xpose.msra.mxu0 0
        %3114 = vmatprep.mubr.bf16.mxu0 0
        %3115 = vmatmul.mubr.bf16.gmra.mrb[0].mxu0 %v2785
        %v3116 = vpop.f32.mrb[0].mxu0
        %v3117 = vadd.f32 0.0, %v3116
        %v3118 = vpop.f32.mrb[0].mxu0
        %v3119 = vpop.f32.mrb[0].mxu0
        %v3120 = vpop.f32.mrb[0].mxu0
        %3121 = vdwg.mxu0
        %v3122 = vmul.f32 %v2837, 0.088388346
        %v3123 = vmul.f32 %v2877, 0.088388346
        %v3124 = vmul.f32 %v2917, 0.088388346
        %v3125 = vmul.f32 %v2957, 0.088388346
        %v3126 = vmul.f32 %v2997, 0.088388346
        %v3127 = vmul.f32 %v3037, 0.088388346
        %v3128 = vmul.f32 %v3077, 0.088388346
        %v3129 = vmul.f32 %v3117, 0.088388346
        %v3131 = vlaneseq
        %v3132 = vshrl.u32 %v3131, 7
        %v3133 = vsub.s32 0, %v3132
        %v3134 = vrot.slane %v2745, %v3133
        %v3136 = vadd.f32 %v3122, %v3134
        %v3137 = vadd.f32 %v3123, %v3134
        %v3138 = vadd.f32 %v3124, %v3134
        %v3139 = vadd.f32 %v3125, %v3134
        %v3140 = vadd.f32 %v3126, %v3134
        %v3141 = vadd.f32 %v3127, %v3134
        %v3142 = vadd.f32 %v3128, %v3134
        %v3143 = vadd.f32 %v3129, %v3134
        %vm3144 = vcmask 64512
        %v3145 = vsel %vm3144, %v3136, -inf
        %3146 = vmax.xlane.f32.xlu0 %v3145
        %v3147 = vpop.xlane.xlu0 %3146
        %v3148 = vsel %vm3144, %v3137, -inf
        %3149 = vmax.xlane.f32.xlu0 %v3148
        %v3150 = vpop.xlane.xlu0 %3149
        %v3151 = vsel %vm3144, %v3138, -inf
        %3152 = vmax.xlane.f32.xlu0 %v3151
        %v3153 = vpop.xlane.xlu0 %3152
        %v3154 = vsel %vm3144, %v3139, -inf
        %3155 = vmax.xlane.f32.xlu0 %v3154
        %v3156 = vpop.xlane.xlu0 %3155
        %v3157 = vsel %vm3144, %v3140, -inf
        %3158 = vmax.xlane.f32.xlu0 %v3157
        %v3159 = vpop.xlane.xlu0 %3158
        %v3160 = vsel %vm3144, %v3141, -inf
        %3161 = vmax.xlane.f32.xlu0 %v3160
        %v3162 = vpop.xlane.xlu0 %3161
        %v3163 = vsel %vm3144, %v3142, -inf
        %3164 = vmax.xlane.f32.xlu0 %v3163
        %v3165 = vpop.xlane.xlu0 %3164
        %v3166 = vsel %vm3144, %v3143, -inf
        %3167 = vmax.xlane.f32.xlu0 %v3166
        %v3168 = vpop.xlane.xlu0 %3167
        %v3169 = vsub.f32 %v3136, %v3147
        %v3170 = vsub.f32 %v3137, %v3150
        %v3171 = vsub.f32 %v3138, %v3153
        %v3172 = vsub.f32 %v3139, %v3156
        %v3173 = vsub.f32 %v3140, %v3159
        %v3174 = vsub.f32 %v3141, %v3162
        %v3175 = vsub.f32 %v3142, %v3165
        %v3176 = vsub.f32 %v3143, %v3168
        %v3177 = vmul.f32 %v3169, 1.442695
        %v3178 = vpow.pop %v3177
        %v3179 = vmul.f32 %v3170, 1.442695
        %v3180 = vpow.pop %v3179
        %v3181 = vmul.f32 %v3171, 1.442695
        %v3182 = vpow.pop %v3181
        %v3183 = vmul.f32 %v3172, 1.442695
        %v3184 = vpow.pop %v3183
        %v3185 = vmul.f32 %v3173, 1.442695
        %v3186 = vpow.pop %v3185
        %v3187 = vmul.f32 %v3174, 1.442695
        %v3188 = vpow.pop %v3187
        %v3189 = vmul.f32 %v3175, 1.442695
        %v3190 = vpow.pop %v3189
        %v3191 = vmul.f32 %v3176, 1.442695
        %v3192 = vpow.pop %v3191
        %v3193 = vsel %vm3144, %v3178, 0.0
        %3194 = vadd.xlane.f32.xlu0 %v3193
        %v3195 = vpop.xlane.xlu0 %3194
        %v3196 = vsel %vm3144, %v3180, 0.0
        %3197 = vadd.xlane.f32.xlu0 %v3196
        %v3198 = vpop.xlane.xlu0 %3197
        %v3199 = vsel %vm3144, %v3182, 0.0
        %3200 = vadd.xlane.f32.xlu0 %v3199
        %v3201 = vpop.xlane.xlu0 %3200
        %v3202 = vsel %vm3144, %v3184, 0.0
        %3203 = vadd.xlane.f32.xlu0 %v3202
        %v3204 = vpop.xlane.xlu0 %3203
        %v3205 = vsel %vm3144, %v3186, 0.0
        %3206 = vadd.xlane.f32.xlu0 %v3205
        %v3207 = vpop.xlane.xlu0 %3206
        %v3208 = vsel %vm3144, %v3188, 0.0
        %3209 = vadd.xlane.f32.xlu0 %v3208
        %v3210 = vpop.xlane.xlu0 %3209
        %v3211 = vsel %vm3144, %v3190, 0.0
        %3212 = vadd.xlane.f32.xlu0 %v3211
        %v3213 = vpop.xlane.xlu0 %3212
        %v3214 = vsel %vm3144, %v3192, 0.0
        %3215 = vadd.xlane.f32.xlu0 %v3214
        %v3216 = vpop.xlane.xlu0 %3215
        %v3217 = vrcp.pop %v3195
        %v3218 = vrcp.pop %v3198
        %v3219 = vrcp.pop %v3201
        %v3220 = vrcp.pop %v3204
        %v3221 = vrcp.pop %v3207
        %v3222 = vrcp.pop %v3210
        %v3223 = vrcp.pop %v3213
        %v3224 = vrcp.pop %v3216
        %v3225 = vmul.f32 %v3178, %v3217
        %v3226 = vmul.f32 %v3180, %v3218
        %v3227 = vmul.f32 %v3182, %v3219
        %v3228 = vmul.f32 %v3184, %v3220
        %v3229 = vmul.f32 %v3186, %v3221
        %v3230 = vmul.f32 %v3188, %v3222
        %v3231 = vmul.f32 %v3190, %v3223
        %v3232 = vmul.f32 %v3192, %v3224
        %v3233 = vpack.c.bf16 %v3225, %v3225
        %v3234 = vpack.c.bf16 %v3226, %v3226
        %v3235 = vpack.c.bf16 %v3227, %v3227
        %v3236 = vpack.c.bf16 %v3228, %v3228
        %v3237 = vpack.c.bf16 %v3229, %v3229
        %v3238 = vpack.c.bf16 %v3230, %v3230
        %v3239 = vpack.c.bf16 %v3231, %v3231
        %v3240 = vpack.c.bf16 %v3232, %v3232
        %v3242 = vsel %vm3144, %v3233, 0
        %vm3244 = vcmask 1043456
        %v3246 = vsel %vm3244, %v2794, 0
        %3248 = vmatprep.subr.bf16.mxu0 0
        %3249 = vmatpush1.bf16.msra.mxu0 %v3246
        %3250 = vmatprep.subr.bf16.mxu0 0
        %3251 = vmatpush1.bf16.msra.mxu0 0
        %3252 = vmatprep.subr.bf16.mxu0 0
        %3253 = vmatpush1.bf16.msra.mxu0 0
        %3254 = vmatprep.subr.bf16.mxu0 0
        %3255 = vmatpush1.bf16.msra.mxu0 0
        %3256 = vmatprep.subr.bf16.mxu0 0
        %3257 = vmatpush1.bf16.msra.mxu0 0
        %3258 = vmatprep.subr.bf16.mxu0 0
        %3259 = vmatpush1.bf16.msra.mxu0 0
        %3260 = vmatprep.subr.bf16.mxu0 0
        %3261 = vmatpush1.bf16.msra.mxu0 0
        %3262 = vmatprep.subr.bf16.mxu0 0
        %3263 = vmatpush1.bf16.msra.mxu0 0
        %3264 = vmatprep.subr.bf16.mxu0 0
        %3265 = vmatpush1.bf16.msra.mxu0 0
        %3266 = vmatprep.subr.bf16.mxu0 0
        %3267 = vmatpush1.bf16.msra.mxu0 0
        %3268 = vmatprep.subr.bf16.mxu0 0
        %3269 = vmatpush1.bf16.msra.mxu0 0
        %3270 = vmatprep.subr.bf16.mxu0 0
        %3271 = vmatpush1.bf16.msra.mxu0 0
        %3272 = vmatprep.subr.bf16.mxu0 0
        %3273 = vmatpush1.bf16.msra.mxu0 0
        %3274 = vmatprep.subr.bf16.mxu0 0
        %3275 = vmatpush1.bf16.msra.mxu0 0
        %3276 = vmatprep.subr.bf16.mxu0 0
        %3277 = vmatpush1.bf16.msra.mxu0 0
        %3278 = vmatprep.subr.bf16.mxu0 0
        %3279 = vmatpush1.bf16.msra.mxu0 0
        %3280 = vmatprep.mubr.bf16.mxu0 0
        %3281 = vmatmul.mubr.bf16.gmra.mrb[0].mxu0 %v3242
        %v3282 = vpop.f32.mrb[0].mxu0
        %v3283 = vadd.f32 0.0, %v3282
        %v3284 = vpop.f32.mrb[0].mxu0
        %v3285 = vpop.f32.mrb[0].mxu0
        %v3286 = vpop.f32.mrb[0].mxu0
        %3287 = vdwg.mxu0
        %v3289 = vsel %vm3144, %v3234, 0
        %v3292 = vsel %vm3244, %v2795, 0
        %3294 = vmatprep.subr.bf16.mxu0 0
        %3295 = vmatpush1.bf16.msra.mxu0 %v3292
        %3296 = vmatprep.subr.bf16.mxu0 0
        %3297 = vmatpush1.bf16.msra.mxu0 0
        %3298 = vmatprep.subr.bf16.mxu0 0
        %3299 = vmatpush1.bf16.msra.mxu0 0
        %3300 = vmatprep.subr.bf16.mxu0 0
        %3301 = vmatpush1.bf16.msra.mxu0 0
        %3302 = vmatprep.subr.bf16.mxu0 0
        %3303 = vmatpush1.bf16.msra.mxu0 0
        %3304 = vmatprep.subr.bf16.mxu0 0
        %3305 = vmatpush1.bf16.msra.mxu0 0
        %3306 = vmatprep.subr.bf16.mxu0 0
        %3307 = vmatpush1.bf16.msra.mxu0 0
        %3308 = vmatprep.subr.bf16.mxu0 0
        %3309 = vmatpush1.bf16.msra.mxu0 0
        %3310 = vmatprep.subr.bf16.mxu0 0
        %3311 = vmatpush1.bf16.msra.mxu0 0
        %3312 = vmatprep.subr.bf16.mxu0 0
        %3313 = vmatpush1.bf16.msra.mxu0 0
        %3314 = vmatprep.subr.bf16.mxu0 0
        %3315 = vmatpush1.bf16.msra.mxu0 0
        %3316 = vmatprep.subr.bf16.mxu0 0
        %3317 = vmatpush1.bf16.msra.mxu0 0
        %3318 = vmatprep.subr.bf16.mxu0 0
        %3319 = vmatpush1.bf16.msra.mxu0 0
        %3320 = vmatprep.subr.bf16.mxu0 0
        %3321 = vmatpush1.bf16.msra.mxu0 0
        %3322 = vmatprep.subr.bf16.mxu0 0
        %3323 = vmatpush1.bf16.msra.mxu0 0
        %3324 = vmatprep.subr.bf16.mxu0 0
        %3325 = vmatpush1.bf16.msra.mxu0 0
        %3326 = vmatprep.mubr.bf16.mxu0 0
        %3327 = vmatmul.mubr.bf16.gmra.mrb[0].mxu0 %v3289
        %v3328 = vpop.f32.mrb[0].mxu0
        %v3329 = vadd.f32 0.0, %v3328
        %v3330 = vpop.f32.mrb[0].mxu0
        %v3331 = vpop.f32.mrb[0].mxu0
        %v3332 = vpop.f32.mrb[0].mxu0
        %3333 = vdwg.mxu0
        %v3335 = vsel %vm3144, %v3235, 0
        %v3338 = vsel %vm3244, %v2796, 0
        %3340 = vmatprep.subr.bf16.mxu0 0
        %3341 = vmatpush1.bf16.msra.mxu0 %v3338
        %3342 = vmatprep.subr.bf16.mxu0 0
        %3343 = vmatpush1.bf16.msra.mxu0 0
        %3344 = vmatprep.subr.bf16.mxu0 0
        %3345 = vmatpush1.bf16.msra.mxu0 0
        %3346 = vmatprep.subr.bf16.mxu0 0
        %3347 = vmatpush1.bf16.msra.mxu0 0
        %3348 = vmatprep.subr.bf16.mxu0 0
        %3349 = vmatpush1.bf16.msra.mxu0 0
        %3350 = vmatprep.subr.bf16.mxu0 0
        %3351 = vmatpush1.bf16.msra.mxu0 0
        %3352 = vmatprep.subr.bf16.mxu0 0
        %3353 = vmatpush1.bf16.msra.mxu0 0
        %3354 = vmatprep.subr.bf16.mxu0 0
        %3355 = vmatpush1.bf16.msra.mxu0 0
        %3356 = vmatprep.subr.bf16.mxu0 0
        %3357 = vmatpush1.bf16.msra.mxu0 0
        %3358 = vmatprep.subr.bf16.mxu0 0
        %3359 = vmatpush1.bf16.msra.mxu0 0
        %3360 = vmatprep.subr.bf16.mxu0 0
        %3361 = vmatpush1.bf16.msra.mxu0 0
        %3362 = vmatprep.subr.bf16.mxu0 0
        %3363 = vmatpush1.bf16.msra.mxu0 0
        %3364 = vmatprep.subr.bf16.mxu0 0
        %3365 = vmatpush1.bf16.msra.mxu0 0
        %3366 = vmatprep.subr.bf16.mxu0 0
        %3367 = vmatpush1.bf16.msra.mxu0 0
        %3368 = vmatprep.subr.bf16.mxu0 0
        %3369 = vmatpush1.bf16.msra.mxu0 0
        %3370 = vmatprep.subr.bf16.mxu0 0
        %3371 = vmatpush1.bf16.msra.mxu0 0
        %3372 = vmatprep.mubr.bf16.mxu0 0
        %3373 = vmatmul.mubr.bf16.gmra.mrb[0].mxu0 %v3335
        %v3374 = vpop.f32.mrb[0].mxu0
        %v3375 = vadd.f32 0.0, %v3374
        %v3376 = vpop.f32.mrb[0].mxu0
        %v3377 = vpop.f32.mrb[0].mxu0
        %v3378 = vpop.f32.mrb[0].mxu0
        %3379 = vdwg.mxu0
        %v3381 = vsel %vm3144, %v3236, 0
        %v3384 = vsel %vm3244, %v2797, 0
        %3386 = vmatprep.subr.bf16.mxu0 0
        %3387 = vmatpush1.bf16.msra.mxu0 %v3384
        %3388 = vmatprep.subr.bf16.mxu0 0
        %3389 = vmatpush1.bf16.msra.mxu0 0
        %3390 = vmatprep.subr.bf16.mxu0 0
        %3391 = vmatpush1.bf16.msra.mxu0 0
        %3392 = vmatprep.subr.bf16.mxu0 0
        %3393 = vmatpush1.bf16.msra.mxu0 0
        %3394 = vmatprep.subr.bf16.mxu0 0
        %3395 = vmatpush1.bf16.msra.mxu0 0
        %3396 = vmatprep.subr.bf16.mxu0 0
        %3397 = vmatpush1.bf16.msra.mxu0 0
        %3398 = vmatprep.subr.bf16.mxu0 0
        %3399 = vmatpush1.bf16.msra.mxu0 0
        %3400 = vmatprep.subr.bf16.mxu0 0
        %3401 = vmatpush1.bf16.msra.mxu0 0
        %3402 = vmatprep.subr.bf16.mxu0 0
        %3403 = vmatpush1.bf16.msra.mxu0 0
        %3404 = vmatprep.subr.bf16.mxu0 0
        %3405 = vmatpush1.bf16.msra.mxu0 0
        %3406 = vmatprep.subr.bf16.mxu0 0
        %3407 = vmatpush1.bf16.msra.mxu0 0
        %3408 = vmatprep.subr.bf16.mxu0 0
        %3409 = vmatpush1.bf16.msra.mxu0 0
        %3410 = vmatprep.subr.bf16.mxu0 0
        %3411 = vmatpush1.bf16.msra.mxu0 0
        %3412 = vmatprep.subr.bf16.mxu0 0
        %3413 = vmatpush1.bf16.msra.mxu0 0
        %3414 = vmatprep.subr.bf16.mxu0 0
        %3415 = vmatpush1.bf16.msra.mxu0 0
        %3416 = vmatprep.subr.bf16.mxu0 0
        %3417 = vmatpush1.bf16.msra.mxu0 0
        %3418 = vmatprep.mubr.bf16.mxu0 0
        %3419 = vmatmul.mubr.bf16.gmra.mrb[0].mxu0 %v3381
        %v3420 = vpop.f32.mrb[0].mxu0
        %v3421 = vadd.f32 0.0, %v3420
        %v3422 = vpop.f32.mrb[0].mxu0
        %v3423 = vpop.f32.mrb[0].mxu0
        %v3424 = vpop.f32.mrb[0].mxu0
        %3425 = vdwg.mxu0
        %v3427 = vsel %vm3144, %v3237, 0
        %v3430 = vsel %vm3244, %v2798, 0
        %3432 = vmatprep.subr.bf16.mxu0 0
        %3433 = vmatpush1.bf16.msra.mxu0 %v3430
        %3434 = vmatprep.subr.bf16.mxu0 0
        %3435 = vmatpush1.bf16.msra.mxu0 0
        %3436 = vmatprep.subr.bf16.mxu0 0
        %3437 = vmatpush1.bf16.msra.mxu0 0
        %3438 = vmatprep.subr.bf16.mxu0 0
        %3439 = vmatpush1.bf16.msra.mxu0 0
        %3440 = vmatprep.subr.bf16.mxu0 0
        %3441 = vmatpush1.bf16.msra.mxu0 0
        %3442 = vmatprep.subr.bf16.mxu0 0
        %3443 = vmatpush1.bf16.msra.mxu0 0
        %3444 = vmatprep.subr.bf16.mxu0 0
        %3445 = vmatpush1.bf16.msra.mxu0 0
        %3446 = vmatprep.subr.bf16.mxu0 0
        %3447 = vmatpush1.bf16.msra.mxu0 0
        %3448 = vmatprep.subr.bf16.mxu0 0
        %3449 = vmatpush1.bf16.msra.mxu0 0
        %3450 = vmatprep.subr.bf16.mxu0 0
        %3451 = vmatpush1.bf16.msra.mxu0 0
        %3452 = vmatprep.subr.bf16.mxu0 0
        %3453 = vmatpush1.bf16.msra.mxu0 0
        %3454 = vmatprep.subr.bf16.mxu0 0
        %3455 = vmatpush1.bf16.msra.mxu0 0
        %3456 = vmatprep.subr.bf16.mxu0 0
        %3457 = vmatpush1.bf16.msra.mxu0 0
        %3458 = vmatprep.subr.bf16.mxu0 0
        %3459 = vmatpush1.bf16.msra.mxu0 0
        %3460 = vmatprep.subr.bf16.mxu0 0
        %3461 = vmatpush1.bf16.msra.mxu0 0
        %3462 = vmatprep.subr.bf16.mxu0 0
        %3463 = vmatpush1.bf16.msra.mxu0 0
        %3464 = vmatprep.mubr.bf16.mxu0 0
        %3465 = vmatmul.mubr.bf16.gmra.mrb[0].mxu0 %v3427
        %v3466 = vpop.f32.mrb[0].mxu0
        %v3467 = vadd.f32 0.0, %v3466
        %v3468 = vpop.f32.mrb[0].mxu0
        %v3469 = vpop.f32.mrb[0].mxu0
        %v3470 = vpop.f32.mrb[0].mxu0
        %3471 = vdwg.mxu0
        %v3473 = vsel %vm3144, %v3238, 0
        %v3476 = vsel %vm3244, %v2799, 0
        %3478 = vmatprep.subr.bf16.mxu0 0
        %3479 = vmatpush1.bf16.msra.mxu0 %v3476
        %3480 = vmatprep.subr.bf16.mxu0 0
        %3481 = vmatpush1.bf16.msra.mxu0 0
        %3482 = vmatprep.subr.bf16.mxu0 0
        %3483 = vmatpush1.bf16.msra.mxu0 0
        %3484 = vmatprep.subr.bf16.mxu0 0
        %3485 = vmatpush1.bf16.msra.mxu0 0
        %3486 = vmatprep.subr.bf16.mxu0 0
        %3487 = vmatpush1.bf16.msra.mxu0 0
        %3488 = vmatprep.subr.bf16.mxu0 0
        %3489 = vmatpush1.bf16.msra.mxu0 0
        %3490 = vmatprep.subr.bf16.mxu0 0
        %3491 = vmatpush1.bf16.msra.mxu0 0
        %3492 = vmatprep.subr.bf16.mxu0 0
        %3493 = vmatpush1.bf16.msra.mxu0 0
        %3494 = vmatprep.subr.bf16.mxu0 0
        %3495 = vmatpush1.bf16.msra.mxu0 0
        %3496 = vmatprep.subr.bf16.mxu0 0
        %3497 = vmatpush1.bf16.msra.mxu0 0
        %3498 = vmatprep.subr.bf16.mxu0 0
        %3499 = vmatpush1.bf16.msra.mxu0 0
        %3500 = vmatprep.subr.bf16.mxu0 0
        %3501 = vmatpush1.bf16.msra.mxu0 0
        %3502 = vmatprep.subr.bf16.mxu0 0
        %3503 = vmatpush1.bf16.msra.mxu0 0
        %3504 = vmatprep.subr.bf16.mxu0 0
        %3505 = vmatpush1.bf16.msra.mxu0 0
        %3506 = vmatprep.subr.bf16.mxu0 0
        %3507 = vmatpush1.bf16.msra.mxu0 0
        %3508 = vmatprep.subr.bf16.mxu0 0
        %3509 = vmatpush1.bf16.msra.mxu0 0
        %3510 = vmatprep.mubr.bf16.mxu0 0
        %3511 = vmatmul.mubr.bf16.gmra.mrb[0].mxu0 %v3473
        %v3512 = vpop.f32.mrb[0].mxu0
        %v3513 = vadd.f32 0.0, %v3512
        %v3514 = vpop.f32.mrb[0].mxu0
        %v3515 = vpop.f32.mrb[0].mxu0
        %v3516 = vpop.f32.mrb[0].mxu0
        %3517 = vdwg.mxu0
        %v3519 = vsel %vm3144, %v3239, 0
        %v3522 = vsel %vm3244, %v2800, 0
        %3524 = vmatprep.subr.bf16.mxu0 0
        %3525 = vmatpush1.bf16.msra.mxu0 %v3522
        %3526 = vmatprep.subr.bf16.mxu0 0
        %3527 = vmatpush1.bf16.msra.mxu0 0
        %3528 = vmatprep.subr.bf16.mxu0 0
        %3529 = vmatpush1.bf16.msra.mxu0 0
        %3530 = vmatprep.subr.bf16.mxu0 0
        %3531 = vmatpush1.bf16.msra.mxu0 0
        %3532 = vmatprep.subr.bf16.mxu0 0
        %3533 = vmatpush1.bf16.msra.mxu0 0
        %3534 = vmatprep.subr.bf16.mxu0 0
        %3535 = vmatpush1.bf16.msra.mxu0 0
        %3536 = vmatprep.subr.bf16.mxu0 0
        %3537 = vmatpush1.bf16.msra.mxu0 0
        %3538 = vmatprep.subr.bf16.mxu0 0
        %3539 = vmatpush1.bf16.msra.mxu0 0
        %3540 = vmatprep.subr.bf16.mxu0 0
        %3541 = vmatpush1.bf16.msra.mxu0 0
        %3542 = vmatprep.subr.bf16.mxu0 0
        %3543 = vmatpush1.bf16.msra.mxu0 0
        %3544 = vmatprep.subr.bf16.mxu0 0
        %3545 = vmatpush1.bf16.msra.mxu0 0
        %3546 = vmatprep.subr.bf16.mxu0 0
        %3547 = vmatpush1.bf16.msra.mxu0 0
        %3548 = vmatprep.subr.bf16.mxu0 0
        %3549 = vmatpush1.bf16.msra.mxu0 0
        %3550 = vmatprep.subr.bf16.mxu0 0
        %3551 = vmatpush1.bf16.msra.mxu0 0
        %3552 = vmatprep.subr.bf16.mxu0 0
        %3553 = vmatpush1.bf16.msra.mxu0 0
        %3554 = vmatprep.subr.bf16.mxu0 0
        %3555 = vmatpush1.bf16.msra.mxu0 0
        %3556 = vmatprep.mubr.bf16.mxu0 0
        %3557 = vmatmul.mubr.bf16.gmra.mrb[0].mxu0 %v3519
        %v3558 = vpop.f32.mrb[0].mxu0
        %v3559 = vadd.f32 0.0, %v3558
        %v3560 = vpop.f32.mrb[0].mxu0
        %v3561 = vpop.f32.mrb[0].mxu0
        %v3562 = vpop.f32.mrb[0].mxu0
        %3563 = vdwg.mxu0
        %v3565 = vsel %vm3144, %v3240, 0
        %v3568 = vsel %vm3244, %v2801, 0
        %3570 = vmatprep.subr.bf16.mxu0 0
        %3571 = vmatpush1.bf16.msra.mxu0 %v3568
        %3572 = vmatprep.subr.bf16.mxu0 0
        %3573 = vmatpush1.bf16.msra.mxu0 0
        %3574 = vmatprep.subr.bf16.mxu0 0
        %3575 = vmatpush1.bf16.msra.mxu0 0
        %3576 = vmatprep.subr.bf16.mxu0 0
        %3577 = vmatpush1.bf16.msra.mxu0 0
        %3578 = vmatprep.subr.bf16.mxu0 0
        %3579 = vmatpush1.bf16.msra.mxu0 0
        %3580 = vmatprep.subr.bf16.mxu0 0
        %3581 = vmatpush1.bf16.msra.mxu0 0
        %3582 = vmatprep.subr.bf16.mxu0 0
        %3583 = vmatpush1.bf16.msra.mxu0 0
        %3584 = vmatprep.subr.bf16.mxu0 0
        %3585 = vmatpush1.bf16.msra.mxu0 0
        %3586 = vmatprep.subr.bf16.mxu0 0
        %3587 = vmatpush1.bf16.msra.mxu0 0
        %3588 = vmatprep.subr.bf16.mxu0 0
        %3589 = vmatpush1.bf16.msra.mxu0 0
        %3590 = vmatprep.subr.bf16.mxu0 0
        %3591 = vmatpush1.bf16.msra.mxu0 0
        %3592 = vmatprep.subr.bf16.mxu0 0
        %3593 = vmatpush1.bf16.msra.mxu0 0
        %3594 = vmatprep.subr.bf16.mxu0 0
        %3595 = vmatpush1.bf16.msra.mxu0 0
        %3596 = vmatprep.subr.bf16.mxu0 0
        %3597 = vmatpush1.bf16.msra.mxu0 0
        %3598 = vmatprep.subr.bf16.mxu0 0
        %3599 = vmatpush1.bf16.msra.mxu0 0
        %3600 = vmatprep.subr.bf16.mxu0 0
        %3601 = vmatpush1.bf16.msra.mxu0 0
        %3602 = vmatprep.mubr.bf16.mxu0 0
        %3603 = vmatmul.mubr.bf16.gmra.mrb[0].mxu0 %v3565
        %v3604 = vpop.f32.mrb[0].mxu0
        %v3605 = vadd.f32 0.0, %v3604
        %v3606 = vpop.f32.mrb[0].mxu0
        %v3607 = vpop.f32.mrb[0].mxu0
        %v3608 = vpop.f32.mrb[0].mxu0
        %3609 = vdwg.mxu0
        %v3610 = vpack.c.bf16 %v3329, %v3283
        %v3611 = vpack.c.bf16 %v3421, %v3375
        %v3612 = vpack.c.bf16 %v3513, %v3467
        %v3613 = vpack.c.bf16 %v3605, %v3559
        %v3614 = vpack.c.bf16 %v2563, %v2563
        %v3615 = vpack.c.bf16 %v2567, %v2567
        %v3616 = vpack.c.bf16 %v2573, %v2573
        %v3617 = vpack.c.bf16 %v2577, %v2577
        %v3618 = vpack.c.bf16 %v2583, %v2583
        %v3619 = vpack.c.bf16 %v2587, %v2587
        %v3620 = vpack.c.bf16 %v2593, %v2593
        %v3621 = vpack.c.bf16 %v2597, %v2597
        %v3622 = vpack.c.bf16 %v2636, %v2636
        %v3623 = vpack.c.bf16 %v2640, %v2640
        %v3624 = vpack.c.bf16 %v2646, %v2646
        %v3625 = vpack.c.bf16 %v2650, %v2650
        %v3626 = vpack.c.bf16 %v2656, %v2656
        %v3627 = vpack.c.bf16 %v2660, %v2660
        %v3628 = vpack.c.bf16 %v2666, %v2666
        %v3629 = vpack.c.bf16 %v2670, %v2670
        %v3630 = vpack.c.bf16 %v2709, %v2709
        %v3631 = vpack.c.bf16 %v2713, %v2713
        %v3632 = vpack.c.bf16 %v2719, %v2719
        %v3633 = vpack.c.bf16 %v2723, %v2723
        %v3634 = vpack.c.bf16 %v2729, %v2729
        %v3635 = vpack.c.bf16 %v2733, %v2733
        %v3636 = vpack.c.bf16 %v2739, %v2739
        %v3637 = vpack.c.bf16 %v2743, %v2743
        %3638 = vmatprep.subr.bf16.mxu0 0
        %3639 = vmatpush1.bf16.xpose.msra.mxu0 %v3622
        %3640 = vmatprep.subr.bf16.mxu0 0
        %3641 = vmatpush1.bf16.xpose.msra.mxu0 0
        %3642 = vmatprep.subr.bf16.mxu0 0
        %3643 = vmatpush1.bf16.xpose.msra.mxu0 0
        %3644 = vmatprep.subr.bf16.mxu0 0
        %3645 = vmatpush1.bf16.xpose.msra.mxu0 0
        %3646 = vmatprep.subr.bf16.mxu0 0
        %3647 = vmatpush1.bf16.xpose.msra.mxu0 0
        %3648 = vmatprep.subr.bf16.mxu0 0
        %3649 = vmatpush1.bf16.xpose.msra.mxu0 0
        %3650 = vmatprep.subr.bf16.mxu0 0
        %3651 = vmatpush1.bf16.xpose.msra.mxu0 0
        %3652 = vmatprep.subr.bf16.mxu0 0
        %3653 = vmatpush1.bf16.xpose.msra.mxu0 0
        %3654 = vmatprep.subr.bf16.mxu0 0
        %3655 = vmatpush1.bf16.xpose.msra.mxu0 0
        %3656 = vmatprep.subr.bf16.mxu0 0
        %3657 = vmatpush1.bf16.xpose.msra.mxu0 0
        %3658 = vmatprep.subr.bf16.mxu0 0
        %3659 = vmatpush1.bf16.xpose.msra.mxu0 0
        %3660 = vmatprep.subr.bf16.mxu0 0
        %3661 = vmatpush1.bf16.xpose.msra.mxu0 0
        %3662 = vmatprep.subr.bf16.mxu0 0
        %3663 = vmatpush1.bf16.xpose.msra.mxu0 0
        %3664 = vmatprep.subr.bf16.mxu0 0
        %3665 = vmatpush1.bf16.xpose.msra.mxu0 0
        %3666 = vmatprep.subr.bf16.mxu0 0
        %3667 = vmatpush1.bf16.xpose.msra.mxu0 0
        %3668 = vmatprep.subr.bf16.mxu0 0
        %3669 = vmatpush1.bf16.xpose.msra.mxu0 0
        %3670 = vmatprep.mubr.bf16.mxu0 0
        %3671 = vmatmul.mubr.bf16.gmra.mrb[0].mxu0 %v3614
        %v3672 = vpop.f32.mrb[0].mxu0
        %v3673 = vadd.f32 0.0, %v3672
        %v3674 = vpop.f32.mrb[0].mxu0
        %v3675 = vpop.f32.mrb[0].mxu0
        %v3676 = vpop.f32.mrb[0].mxu0
        %3677 = vdwg.mxu0
        %3678 = vmatprep.subr.bf16.mxu0 0
        %3679 = vmatpush1.bf16.xpose.msra.mxu0 %v3623
        %3680 = vmatprep.subr.bf16.mxu0 0
        %3681 = vmatpush1.bf16.xpose.msra.mxu0 0
        %3682 = vmatprep.subr.bf16.mxu0 0
        %3683 = vmatpush1.bf16.xpose.msra.mxu0 0
        %3684 = vmatprep.subr.bf16.mxu0 0
        %3685 = vmatpush1.bf16.xpose.msra.mxu0 0
        %3686 = vmatprep.subr.bf16.mxu0 0
        %3687 = vmatpush1.bf16.xpose.msra.mxu0 0
        %3688 = vmatprep.subr.bf16.mxu0 0
        %3689 = vmatpush1.bf16.xpose.msra.mxu0 0
        %3690 = vmatprep.subr.bf16.mxu0 0
        %3691 = vmatpush1.bf16.xpose.msra.mxu0 0
        %3692 = vmatprep.subr.bf16.mxu0 0
        %3693 = vmatpush1.bf16.xpose.msra.mxu0 0
        %3694 = vmatprep.subr.bf16.mxu0 0
        %3695 = vmatpush1.bf16.xpose.msra.mxu0 0
        %3696 = vmatprep.subr.bf16.mxu0 0
        %3697 = vmatpush1.bf16.xpose.msra.mxu0 0
        %3698 = vmatprep.subr.bf16.mxu0 0
        %3699 = vmatpush1.bf16.xpose.msra.mxu0 0
        %3700 = vmatprep.subr.bf16.mxu0 0
        %3701 = vmatpush1.bf16.xpose.msra.mxu0 0
        %3702 = vmatprep.subr.bf16.mxu0 0
        %3703 = vmatpush1.bf16.xpose.msra.mxu0 0
        %3704 = vmatprep.subr.bf16.mxu0 0
        %3705 = vmatpush1.bf16.xpose.msra.mxu0 0
        %3706 = vmatprep.subr.bf16.mxu0 0
        %3707 = vmatpush1.bf16.xpose.msra.mxu0 0
        %3708 = vmatprep.subr.bf16.mxu0 0
        %3709 = vmatpush1.bf16.xpose.msra.mxu0 0
        %3710 = vmatprep.mubr.bf16.mxu0 0
        %3711 = vmatmul.mubr.bf16.gmra.mrb[0].mxu0 %v3615
        %v3712 = vpop.f32.mrb[0].mxu0
        %v3713 = vadd.f32 0.0, %v3712
        %v3714 = vpop.f32.mrb[0].mxu0
        %v3715 = vpop.f32.mrb[0].mxu0
        %v3716 = vpop.f32.mrb[0].mxu0
        %3717 = vdwg.mxu0
        %3718 = vmatprep.subr.bf16.mxu0 0
        %3719 = vmatpush1.bf16.xpose.msra.mxu0 %v3624
        %3720 = vmatprep.subr.bf16.mxu0 0
        %3721 = vmatpush1.bf16.xpose.msra.mxu0 0
        %3722 = vmatprep.subr.bf16.mxu0 0
        %3723 = vmatpush1.bf16.xpose.msra.mxu0 0
        %3724 = vmatprep.subr.bf16.mxu0 0
        %3725 = vmatpush1.bf16.xpose.msra.mxu0 0
        %3726 = vmatprep.subr.bf16.mxu0 0
        %3727 = vmatpush1.bf16.xpose.msra.mxu0 0
        %3728 = vmatprep.subr.bf16.mxu0 0
        %3729 = vmatpush1.bf16.xpose.msra.mxu0 0
        %3730 = vmatprep.subr.bf16.mxu0 0
        %3731 = vmatpush1.bf16.xpose.msra.mxu0 0
        %3732 = vmatprep.subr.bf16.mxu0 0
        %3733 = vmatpush1.bf16.xpose.msra.mxu0 0
        %3734 = vmatprep.subr.bf16.mxu0 0
        %3735 = vmatpush1.bf16.xpose.msra.mxu0 0
        %3736 = vmatprep.subr.bf16.mxu0 0
        %3737 = vmatpush1.bf16.xpose.msra.mxu0 0
        %3738 = vmatprep.subr.bf16.mxu0 0
        %3739 = vmatpush1.bf16.xpose.msra.mxu0 0
        %3740 = vmatprep.subr.bf16.mxu0 0
        %3741 = vmatpush1.bf16.xpose.msra.mxu0 0
        %3742 = vmatprep.subr.bf16.mxu0 0
        %3743 = vmatpush1.bf16.xpose.msra.mxu0 0
        %3744 = vmatprep.subr.bf16.mxu0 0
        %3745 = vmatpush1.bf16.xpose.msra.mxu0 0
        %3746 = vmatprep.subr.bf16.mxu0 0
        %3747 = vmatpush1.bf16.xpose.msra.mxu0 0
        %3748 = vmatprep.subr.bf16.mxu0 0
        %3749 = vmatpush1.bf16.xpose.msra.mxu0 0
        %3750 = vmatprep.mubr.bf16.mxu0 0
        %3751 = vmatmul.mubr.bf16.gmra.mrb[0].mxu0 %v3616
        %v3752 = vpop.f32.mrb[0].mxu0
        %v3753 = vadd.f32 0.0, %v3752
        %v3754 = vpop.f32.mrb[0].mxu0
        %v3755 = vpop.f32.mrb[0].mxu0
        %v3756 = vpop.f32.mrb[0].mxu0
        %3757 = vdwg.mxu0
        %3758 = vmatprep.subr.bf16.mxu0 0
        %3759 = vmatpush1.bf16.xpose.msra.mxu0 %v3625
        %3760 = vmatprep.subr.bf16.mxu0 0
        %3761 = vmatpush1.bf16.xpose.msra.mxu0 0
        %3762 = vmatprep.subr.bf16.mxu0 0
        %3763 = vmatpush1.bf16.xpose.msra.mxu0 0
        %3764 = vmatprep.subr.bf16.mxu0 0
        %3765 = vmatpush1.bf16.xpose.msra.mxu0 0
        %3766 = vmatprep.subr.bf16.mxu0 0
        %3767 = vmatpush1.bf16.xpose.msra.mxu0 0
        %3768 = vmatprep.subr.bf16.mxu0 0
        %3769 = vmatpush1.bf16.xpose.msra.mxu0 0
        %3770 = vmatprep.subr.bf16.mxu0 0
        %3771 = vmatpush1.bf16.xpose.msra.mxu0 0
        %3772 = vmatprep.subr.bf16.mxu0 0
        %3773 = vmatpush1.bf16.xpose.msra.mxu0 0
        %3774 = vmatprep.subr.bf16.mxu0 0
        %3775 = vmatpush1.bf16.xpose.msra.mxu0 0
        %3776 = vmatprep.subr.bf16.mxu0 0
        %3777 = vmatpush1.bf16.xpose.msra.mxu0 0
        %3778 = vmatprep.subr.bf16.mxu0 0
        %3779 = vmatpush1.bf16.xpose.msra.mxu0 0
        %3780 = vmatprep.subr.bf16.mxu0 0
        %3781 = vmatpush1.bf16.xpose.msra.mxu0 0
        %3782 = vmatprep.subr.bf16.mxu0 0
        %3783 = vmatpush1.bf16.xpose.msra.mxu0 0
        %3784 = vmatprep.subr.bf16.mxu0 0
        %3785 = vmatpush1.bf16.xpose.msra.mxu0 0
        %3786 = vmatprep.subr.bf16.mxu0 0
        %3787 = vmatpush1.bf16.xpose.msra.mxu0 0
        %3788 = vmatprep.subr.bf16.mxu0 0
        %3789 = vmatpush1.bf16.xpose.msra.mxu0 0
        %3790 = vmatprep.mubr.bf16.mxu0 0
        %3791 = vmatmul.mubr.bf16.gmra.mrb[0].mxu0 %v3617
        %v3792 = vpop.f32.mrb[0].mxu0
        %v3793 = vadd.f32 0.0, %v3792
        %v3794 = vpop.f32.mrb[0].mxu0
        %v3795 = vpop.f32.mrb[0].mxu0
        %v3796 = vpop.f32.mrb[0].mxu0
        %3797 = vdwg.mxu0
        %3798 = vmatprep.subr.bf16.mxu0 0
        %3799 = vmatpush1.bf16.xpose.msra.mxu0 %v3626
        %3800 = vmatprep.subr.bf16.mxu0 0
        %3801 = vmatpush1.bf16.xpose.msra.mxu0 0
        %3802 = vmatprep.subr.bf16.mxu0 0
        %3803 = vmatpush1.bf16.xpose.msra.mxu0 0
        %3804 = vmatprep.subr.bf16.mxu0 0
        %3805 = vmatpush1.bf16.xpose.msra.mxu0 0
        %3806 = vmatprep.subr.bf16.mxu0 0
        %3807 = vmatpush1.bf16.xpose.msra.mxu0 0
        %3808 = vmatprep.subr.bf16.mxu0 0
        %3809 = vmatpush1.bf16.xpose.msra.mxu0 0
        %3810 = vmatprep.subr.bf16.mxu0 0
        %3811 = vmatpush1.bf16.xpose.msra.mxu0 0
        %3812 = vmatprep.subr.bf16.mxu0 0
        %3813 = vmatpush1.bf16.xpose.msra.mxu0 0
        %3814 = vmatprep.subr.bf16.mxu0 0
        %3815 = vmatpush1.bf16.xpose.msra.mxu0 0
        %3816 = vmatprep.subr.bf16.mxu0 0
        %3817 = vmatpush1.bf16.xpose.msra.mxu0 0
        %3818 = vmatprep.subr.bf16.mxu0 0
        %3819 = vmatpush1.bf16.xpose.msra.mxu0 0
        %3820 = vmatprep.subr.bf16.mxu0 0
        %3821 = vmatpush1.bf16.xpose.msra.mxu0 0
        %3822 = vmatprep.subr.bf16.mxu0 0
        %3823 = vmatpush1.bf16.xpose.msra.mxu0 0
        %3824 = vmatprep.subr.bf16.mxu0 0
        %3825 = vmatpush1.bf16.xpose.msra.mxu0 0
        %3826 = vmatprep.subr.bf16.mxu0 0
        %3827 = vmatpush1.bf16.xpose.msra.mxu0 0
        %3828 = vmatprep.subr.bf16.mxu0 0
        %3829 = vmatpush1.bf16.xpose.msra.mxu0 0
        %3830 = vmatprep.mubr.bf16.mxu0 0
        %3831 = vmatmul.mubr.bf16.gmra.mrb[0].mxu0 %v3618
        %v3832 = vpop.f32.mrb[0].mxu0
        %v3833 = vadd.f32 0.0, %v3832
        %v3834 = vpop.f32.mrb[0].mxu0
        %v3835 = vpop.f32.mrb[0].mxu0
        %v3836 = vpop.f32.mrb[0].mxu0
        %3837 = vdwg.mxu0
        %3838 = vmatprep.subr.bf16.mxu0 0
        %3839 = vmatpush1.bf16.xpose.msra.mxu0 %v3627
        %3840 = vmatprep.subr.bf16.mxu0 0
        %3841 = vmatpush1.bf16.xpose.msra.mxu0 0
        %3842 = vmatprep.subr.bf16.mxu0 0
        %3843 = vmatpush1.bf16.xpose.msra.mxu0 0
        %3844 = vmatprep.subr.bf16.mxu0 0
        %3845 = vmatpush1.bf16.xpose.msra.mxu0 0
        %3846 = vmatprep.subr.bf16.mxu0 0
        %3847 = vmatpush1.bf16.xpose.msra.mxu0 0
        %3848 = vmatprep.subr.bf16.mxu0 0
        %3849 = vmatpush1.bf16.xpose.msra.mxu0 0
        %3850 = vmatprep.subr.bf16.mxu0 0
        %3851 = vmatpush1.bf16.xpose.msra.mxu0 0
        %3852 = vmatprep.subr.bf16.mxu0 0
        %3853 = vmatpush1.bf16.xpose.msra.mxu0 0
        %3854 = vmatprep.subr.bf16.mxu0 0
        %3855 = vmatpush1.bf16.xpose.msra.mxu0 0
        %3856 = vmatprep.subr.bf16.mxu0 0
        %3857 = vmatpush1.bf16.xpose.msra.mxu0 0
        %3858 = vmatprep.subr.bf16.mxu0 0
        %3859 = vmatpush1.bf16.xpose.msra.mxu0 0
        %3860 = vmatprep.subr.bf16.mxu0 0
        %3861 = vmatpush1.bf16.xpose.msra.mxu0 0
        %3862 = vmatprep.subr.bf16.mxu0 0
        %3863 = vmatpush1.bf16.xpose.msra.mxu0 0
        %3864 = vmatprep.subr.bf16.mxu0 0
        %3865 = vmatpush1.bf16.xpose.msra.mxu0 0
        %3866 = vmatprep.subr.bf16.mxu0 0
        %3867 = vmatpush1.bf16.xpose.msra.mxu0 0
        %3868 = vmatprep.subr.bf16.mxu0 0
        %3869 = vmatpush1.bf16.xpose.msra.mxu0 0
        %3870 = vmatprep.mubr.bf16.mxu0 0
        %3871 = vmatmul.mubr.bf16.gmra.mrb[0].mxu0 %v3619
        %v3872 = vpop.f32.mrb[0].mxu0
        %v3873 = vadd.f32 0.0, %v3872
        %v3874 = vpop.f32.mrb[0].mxu0
        %v3875 = vpop.f32.mrb[0].mxu0
        %v3876 = vpop.f32.mrb[0].mxu0
        %3877 = vdwg.mxu0
        %3878 = vmatprep.subr.bf16.mxu0 0
        %3879 = vmatpush1.bf16.xpose.msra.mxu0 %v3628
        %3880 = vmatprep.subr.bf16.mxu0 0
        %3881 = vmatpush1.bf16.xpose.msra.mxu0 0
        %3882 = vmatprep.subr.bf16.mxu0 0
        %3883 = vmatpush1.bf16.xpose.msra.mxu0 0
        %3884 = vmatprep.subr.bf16.mxu0 0
        %3885 = vmatpush1.bf16.xpose.msra.mxu0 0
        %3886 = vmatprep.subr.bf16.mxu0 0
        %3887 = vmatpush1.bf16.xpose.msra.mxu0 0
        %3888 = vmatprep.subr.bf16.mxu0 0
        %3889 = vmatpush1.bf16.xpose.msra.mxu0 0
        %3890 = vmatprep.subr.bf16.mxu0 0
        %3891 = vmatpush1.bf16.xpose.msra.mxu0 0
        %3892 = vmatprep.subr.bf16.mxu0 0
        %3893 = vmatpush1.bf16.xpose.msra.mxu0 0
        %3894 = vmatprep.subr.bf16.mxu0 0
        %3895 = vmatpush1.bf16.xpose.msra.mxu0 0
        %3896 = vmatprep.subr.bf16.mxu0 0
        %3897 = vmatpush1.bf16.xpose.msra.mxu0 0
        %3898 = vmatprep.subr.bf16.mxu0 0
        %3899 = vmatpush1.bf16.xpose.msra.mxu0 0
        %3900 = vmatprep.subr.bf16.mxu0 0
        %3901 = vmatpush1.bf16.xpose.msra.mxu0 0
        %3902 = vmatprep.subr.bf16.mxu0 0
        %3903 = vmatpush1.bf16.xpose.msra.mxu0 0
        %3904 = vmatprep.subr.bf16.mxu0 0
        %3905 = vmatpush1.bf16.xpose.msra.mxu0 0
        %3906 = vmatprep.subr.bf16.mxu0 0
        %3907 = vmatpush1.bf16.xpose.msra.mxu0 0
        %3908 = vmatprep.subr.bf16.mxu0 0
        %3909 = vmatpush1.bf16.xpose.msra.mxu0 0
        %3910 = vmatprep.mubr.bf16.mxu0 0
        %3911 = vmatmul.mubr.bf16.gmra.mrb[0].mxu0 %v3620
        %v3912 = vpop.f32.mrb[0].mxu0
        %v3913 = vadd.f32 0.0, %v3912
        %v3914 = vpop.f32.mrb[0].mxu0
        %v3915 = vpop.f32.mrb[0].mxu0
        %v3916 = vpop.f32.mrb[0].mxu0
        %3917 = vdwg.mxu0
        %3918 = vmatprep.subr.bf16.mxu0 0
        %3919 = vmatpush1.bf16.xpose.msra.mxu0 %v3629
        %3920 = vmatprep.subr.bf16.mxu0 0
        %3921 = vmatpush1.bf16.xpose.msra.mxu0 0
        %3922 = vmatprep.subr.bf16.mxu0 0
        %3923 = vmatpush1.bf16.xpose.msra.mxu0 0
        %3924 = vmatprep.subr.bf16.mxu0 0
        %3925 = vmatpush1.bf16.xpose.msra.mxu0 0
        %3926 = vmatprep.subr.bf16.mxu0 0
        %3927 = vmatpush1.bf16.xpose.msra.mxu0 0
        %3928 = vmatprep.subr.bf16.mxu0 0
        %3929 = vmatpush1.bf16.xpose.msra.mxu0 0
        %3930 = vmatprep.subr.bf16.mxu0 0
        %3931 = vmatpush1.bf16.xpose.msra.mxu0 0
        %3932 = vmatprep.subr.bf16.mxu0 0
        %3933 = vmatpush1.bf16.xpose.msra.mxu0 0
        %3934 = vmatprep.subr.bf16.mxu0 0
        %3935 = vmatpush1.bf16.xpose.msra.mxu0 0
        %3936 = vmatprep.subr.bf16.mxu0 0
        %3937 = vmatpush1.bf16.xpose.msra.mxu0 0
        %3938 = vmatprep.subr.bf16.mxu0 0
        %3939 = vmatpush1.bf16.xpose.msra.mxu0 0
        %3940 = vmatprep.subr.bf16.mxu0 0
        %3941 = vmatpush1.bf16.xpose.msra.mxu0 0
        %3942 = vmatprep.subr.bf16.mxu0 0
        %3943 = vmatpush1.bf16.xpose.msra.mxu0 0
        %3944 = vmatprep.subr.bf16.mxu0 0
        %3945 = vmatpush1.bf16.xpose.msra.mxu0 0
        %3946 = vmatprep.subr.bf16.mxu0 0
        %3947 = vmatpush1.bf16.xpose.msra.mxu0 0
        %3948 = vmatprep.subr.bf16.mxu0 0
        %3949 = vmatpush1.bf16.xpose.msra.mxu0 0
        %3950 = vmatprep.mubr.bf16.mxu0 0
        %3951 = vmatmul.mubr.bf16.gmra.mrb[0].mxu0 %v3621
        %v3952 = vpop.f32.mrb[0].mxu0
        %v3953 = vadd.f32 0.0, %v3952
        %v3954 = vpop.f32.mrb[0].mxu0
        %v3955 = vpop.f32.mrb[0].mxu0
        %v3956 = vpop.f32.mrb[0].mxu0
        %3957 = vdwg.mxu0
        %v3958 = vmul.f32 %v3673, 0.088388346
        %v3959 = vmul.f32 %v3713, 0.088388346
        %v3960 = vmul.f32 %v3753, 0.088388346
        %v3961 = vmul.f32 %v3793, 0.088388346
        %v3962 = vmul.f32 %v3833, 0.088388346
        %v3963 = vmul.f32 %v3873, 0.088388346
        %v3964 = vmul.f32 %v3913, 0.088388346
        %v3965 = vmul.f32 %v3953, 0.088388346
        %v3966 = vadd.f32 %v3958, %v3134
        %v3967 = vadd.f32 %v3959, %v3134
        %v3968 = vadd.f32 %v3960, %v3134
        %v3969 = vadd.f32 %v3961, %v3134
        %v3970 = vadd.f32 %v3962, %v3134
        %v3971 = vadd.f32 %v3963, %v3134
        %v3972 = vadd.f32 %v3964, %v3134
        %v3973 = vadd.f32 %v3965, %v3134
        %v3974 = vsel %vm3144, %v3966, -inf
        %3975 = vmax.xlane.f32.xlu0 %v3974
        %v3976 = vpop.xlane.xlu0 %3975
        %v3977 = vsel %vm3144, %v3967, -inf
        %3978 = vmax.xlane.f32.xlu0 %v3977
        %v3979 = vpop.xlane.xlu0 %3978
        %v3980 = vsel %vm3144, %v3968, -inf
        %3981 = vmax.xlane.f32.xlu0 %v3980
        %v3982 = vpop.xlane.xlu0 %3981
        %v3983 = vsel %vm3144, %v3969, -inf
        %3984 = vmax.xlane.f32.xlu0 %v3983
        %v3985 = vpop.xlane.xlu0 %3984
        %v3986 = vsel %vm3144, %v3970, -inf
        %3987 = vmax.xlane.f32.xlu0 %v3986
        %v3988 = vpop.xlane.xlu0 %3987
        %v3989 = vsel %vm3144, %v3971, -inf
        %3990 = vmax.xlane.f32.xlu0 %v3989
        %v3991 = vpop.xlane.xlu0 %3990
        %v3992 = vsel %vm3144, %v3972, -inf
        %3993 = vmax.xlane.f32.xlu0 %v3992
        %v3994 = vpop.xlane.xlu0 %3993
        %v3995 = vsel %vm3144, %v3973, -inf
        %3996 = vmax.xlane.f32.xlu0 %v3995
        %v3997 = vpop.xlane.xlu0 %3996
        %v3998 = vsub.f32 %v3966, %v3976
        %v3999 = vsub.f32 %v3967, %v3979
        %v4000 = vsub.f32 %v3968, %v3982
        %v4001 = vsub.f32 %v3969, %v3985
        %v4002 = vsub.f32 %v3970, %v3988
        %v4003 = vsub.f32 %v3971, %v3991
        %v4004 = vsub.f32 %v3972, %v3994
        %v4005 = vsub.f32 %v3973, %v3997
        %v4006 = vmul.f32 %v3998, 1.442695
        %v4007 = vpow.pop %v4006
        %v4008 = vmul.f32 %v3999, 1.442695
        %v4009 = vpow.pop %v4008
        %v4010 = vmul.f32 %v4000, 1.442695
        %v4011 = vpow.pop %v4010
        %v4012 = vmul.f32 %v4001, 1.442695
        %v4013 = vpow.pop %v4012
        %v4014 = vmul.f32 %v4002, 1.442695
        %v4015 = vpow.pop %v4014
        %v4016 = vmul.f32 %v4003, 1.442695
        %v4017 = vpow.pop %v4016
        %v4018 = vmul.f32 %v4004, 1.442695
        %v4019 = vpow.pop %v4018
        %v4020 = vmul.f32 %v4005, 1.442695
        %v4021 = vpow.pop %v4020
        %v4022 = vsel %vm3144, %v4007, 0.0
        %4023 = vadd.xlane.f32.xlu0 %v4022
        %v4024 = vpop.xlane.xlu0 %4023
        %v4025 = vsel %vm3144, %v4009, 0.0
        %4026 = vadd.xlane.f32.xlu0 %v4025
        %v4027 = vpop.xlane.xlu0 %4026
        %v4028 = vsel %vm3144, %v4011, 0.0
        %4029 = vadd.xlane.f32.xlu0 %v4028
        %v4030 = vpop.xlane.xlu0 %4029
        %v4031 = vsel %vm3144, %v4013, 0.0
        %4032 = vadd.xlane.f32.xlu0 %v4031
        %v4033 = vpop.xlane.xlu0 %4032
        %v4034 = vsel %vm3144, %v4015, 0.0
        %4035 = vadd.xlane.f32.xlu0 %v4034
        %v4036 = vpop.xlane.xlu0 %4035
        %v4037 = vsel %vm3144, %v4017, 0.0
        %4038 = vadd.xlane.f32.xlu0 %v4037
        %v4039 = vpop.xlane.xlu0 %4038
        %v4040 = vsel %vm3144, %v4019, 0.0
        %4041 = vadd.xlane.f32.xlu0 %v4040
        %v4042 = vpop.xlane.xlu0 %4041
        %v4043 = vsel %vm3144, %v4021, 0.0
        %4044 = vadd.xlane.f32.xlu0 %v4043
        %v4045 = vpop.xlane.xlu0 %4044
        %v4046 = vrcp.pop %v4024
        %v4047 = vrcp.pop %v4027
        %v4048 = vrcp.pop %v4030
        %v4049 = vrcp.pop %v4033
        %v4050 = vrcp.pop %v4036
        %v4051 = vrcp.pop %v4039
        %v4052 = vrcp.pop %v4042
        %v4053 = vrcp.pop %v4045
        %v4054 = vmul.f32 %v4007, %v4046
        %v4055 = vmul.f32 %v4009, %v4047
        %v4056 = vmul.f32 %v4011, %v4048
        %v4057 = vmul.f32 %v4013, %v4049
        %v4058 = vmul.f32 %v4015, %v4050
        %v4059 = vmul.f32 %v4017, %v4051
        %v4060 = vmul.f32 %v4019, %v4052
        %v4061 = vmul.f32 %v4021, %v4053
        %v4062 = vpack.c.bf16 %v4054, %v4054
        %v4063 = vpack.c.bf16 %v4055, %v4055
        %v4064 = vpack.c.bf16 %v4056, %v4056
        %v4065 = vpack.c.bf16 %v4057, %v4057
        %v4066 = vpack.c.bf16 %v4058, %v4058
        %v4067 = vpack.c.bf16 %v4059, %v4059
        %v4068 = vpack.c.bf16 %v4060, %v4060
        %v4069 = vpack.c.bf16 %v4061, %v4061
        %v4071 = vsel %vm3144, %v4062, 0
        %v4074 = vsel %vm3244, %v3630, 0
        %4076 = vmatprep.subr.bf16.mxu0 0
        %4077 = vmatpush1.bf16.msra.mxu0 %v4074
        %4078 = vmatprep.subr.bf16.mxu0 0
        %4079 = vmatpush1.bf16.msra.mxu0 0
        %4080 = vmatprep.subr.bf16.mxu0 0
        %4081 = vmatpush1.bf16.msra.mxu0 0
        %4082 = vmatprep.subr.bf16.mxu0 0
        %4083 = vmatpush1.bf16.msra.mxu0 0
        %4084 = vmatprep.subr.bf16.mxu0 0
        %4085 = vmatpush1.bf16.msra.mxu0 0
        %4086 = vmatprep.subr.bf16.mxu0 0
        %4087 = vmatpush1.bf16.msra.mxu0 0
        %4088 = vmatprep.subr.bf16.mxu0 0
        %4089 = vmatpush1.bf16.msra.mxu0 0
        %4090 = vmatprep.subr.bf16.mxu0 0
        %4091 = vmatpush1.bf16.msra.mxu0 0
        %4092 = vmatprep.subr.bf16.mxu0 0
        %4093 = vmatpush1.bf16.msra.mxu0 0
        %4094 = vmatprep.subr.bf16.mxu0 0
        %4095 = vmatpush1.bf16.msra.mxu0 0
        %4096 = vmatprep.subr.bf16.mxu0 0
        %4097 = vmatpush1.bf16.msra.mxu0 0
        %4098 = vmatprep.subr.bf16.mxu0 0
        %4099 = vmatpush1.bf16.msra.mxu0 0
        %4100 = vmatprep.subr.bf16.mxu0 0
        %4101 = vmatpush1.bf16.msra.mxu0 0
        %4102 = vmatprep.subr.bf16.mxu0 0
        %4103 = vmatpush1.bf16.msra.mxu0 0
        %4104 = vmatprep.subr.bf16.mxu0 0
        %4105 = vmatpush1.bf16.msra.mxu0 0
        %4106 = vmatprep.subr.bf16.mxu0 0
        %4107 = vmatpush1.bf16.msra.mxu0 0
        %4108 = vmatprep.mubr.bf16.mxu0 0
        %4109 = vmatmul.mubr.bf16.gmra.mrb[0].mxu0 %v4071
        %v4110 = vpop.f32.mrb[0].mxu0
        %v4111 = vadd.f32 0.0, %v4110
        %v4112 = vpop.f32.mrb[0].mxu0
        %v4113 = vpop.f32.mrb[0].mxu0
        %v4114 = vpop.f32.mrb[0].mxu0
        %4115 = vdwg.mxu0
        %v4117 = vsel %vm3144, %v4063, 0
        %v4120 = vsel %vm3244, %v3631, 0
        %4122 = vmatprep.subr.bf16.mxu0 0
        %4123 = vmatpush1.bf16.msra.mxu0 %v4120
        %4124 = vmatprep.subr.bf16.mxu0 0
        %4125 = vmatpush1.bf16.msra.mxu0 0
        %4126 = vmatprep.subr.bf16.mxu0 0
        %4127 = vmatpush1.bf16.msra.mxu0 0
        %4128 = vmatprep.subr.bf16.mxu0 0
        %4129 = vmatpush1.bf16.msra.mxu0 0
        %4130 = vmatprep.subr.bf16.mxu0 0
        %4131 = vmatpush1.bf16.msra.mxu0 0
        %4132 = vmatprep.subr.bf16.mxu0 0
        %4133 = vmatpush1.bf16.msra.mxu0 0
        %4134 = vmatprep.subr.bf16.mxu0 0
        %4135 = vmatpush1.bf16.msra.mxu0 0
        %4136 = vmatprep.subr.bf16.mxu0 0
        %4137 = vmatpush1.bf16.msra.mxu0 0
        %4138 = vmatprep.subr.bf16.mxu0 0
        %4139 = vmatpush1.bf16.msra.mxu0 0
        %4140 = vmatprep.subr.bf16.mxu0 0
        %4141 = vmatpush1.bf16.msra.mxu0 0
        %4142 = vmatprep.subr.bf16.mxu0 0
        %4143 = vmatpush1.bf16.msra.mxu0 0
        %4144 = vmatprep.subr.bf16.mxu0 0
        %4145 = vmatpush1.bf16.msra.mxu0 0
        %4146 = vmatprep.subr.bf16.mxu0 0
        %4147 = vmatpush1.bf16.msra.mxu0 0
        %4148 = vmatprep.subr.bf16.mxu0 0
        %4149 = vmatpush1.bf16.msra.mxu0 0
        %4150 = vmatprep.subr.bf16.mxu0 0
        %4151 = vmatpush1.bf16.msra.mxu0 0
        %4152 = vmatprep.subr.bf16.mxu0 0
        %4153 = vmatpush1.bf16.msra.mxu0 0
        %4154 = vmatprep.mubr.bf16.mxu0 0
        %4155 = vmatmul.mubr.bf16.gmra.mrb[0].mxu0 %v4117
        %v4156 = vpop.f32.mrb[0].mxu0
        %v4157 = vadd.f32 0.0, %v4156
        %v4158 = vpop.f32.mrb[0].mxu0
        %v4159 = vpop.f32.mrb[0].mxu0
        %v4160 = vpop.f32.mrb[0].mxu0
        %4161 = vdwg.mxu0
        %v4163 = vsel %vm3144, %v4064, 0
        %v4166 = vsel %vm3244, %v3632, 0
        %4168 = vmatprep.subr.bf16.mxu0 0
        %4169 = vmatpush1.bf16.msra.mxu0 %v4166
        %4170 = vmatprep.subr.bf16.mxu0 0
        %4171 = vmatpush1.bf16.msra.mxu0 0
        %4172 = vmatprep.subr.bf16.mxu0 0
        %4173 = vmatpush1.bf16.msra.mxu0 0
        %4174 = vmatprep.subr.bf16.mxu0 0
        %4175 = vmatpush1.bf16.msra.mxu0 0
        %4176 = vmatprep.subr.bf16.mxu0 0
        %4177 = vmatpush1.bf16.msra.mxu0 0
        %4178 = vmatprep.subr.bf16.mxu0 0
        %4179 = vmatpush1.bf16.msra.mxu0 0
        %4180 = vmatprep.subr.bf16.mxu0 0
        %4181 = vmatpush1.bf16.msra.mxu0 0
        %4182 = vmatprep.subr.bf16.mxu0 0
        %4183 = vmatpush1.bf16.msra.mxu0 0
        %4184 = vmatprep.subr.bf16.mxu0 0
        %4185 = vmatpush1.bf16.msra.mxu0 0
        %4186 = vmatprep.subr.bf16.mxu0 0
        %4187 = vmatpush1.bf16.msra.mxu0 0
        %4188 = vmatprep.subr.bf16.mxu0 0
        %4189 = vmatpush1.bf16.msra.mxu0 0
        %4190 = vmatprep.subr.bf16.mxu0 0
        %4191 = vmatpush1.bf16.msra.mxu0 0
        %4192 = vmatprep.subr.bf16.mxu0 0
        %4193 = vmatpush1.bf16.msra.mxu0 0
        %4194 = vmatprep.subr.bf16.mxu0 0
        %4195 = vmatpush1.bf16.msra.mxu0 0
        %4196 = vmatprep.subr.bf16.mxu0 0
        %4197 = vmatpush1.bf16.msra.mxu0 0
        %4198 = vmatprep.subr.bf16.mxu0 0
        %4199 = vmatpush1.bf16.msra.mxu0 0
        %4200 = vmatprep.mubr.bf16.mxu0 0
        %4201 = vmatmul.mubr.bf16.gmra.mrb[0].mxu0 %v4163
        %v4202 = vpop.f32.mrb[0].mxu0
        %v4203 = vadd.f32 0.0, %v4202
        %v4204 = vpop.f32.mrb[0].mxu0
        %v4205 = vpop.f32.mrb[0].mxu0
        %v4206 = vpop.f32.mrb[0].mxu0
        %4207 = vdwg.mxu0
        %v4209 = vsel %vm3144, %v4065, 0
        %v4212 = vsel %vm3244, %v3633, 0
        %4214 = vmatprep.subr.bf16.mxu0 0
        %4215 = vmatpush1.bf16.msra.mxu0 %v4212
        %4216 = vmatprep.subr.bf16.mxu0 0
        %4217 = vmatpush1.bf16.msra.mxu0 0
        %4218 = vmatprep.subr.bf16.mxu0 0
        %4219 = vmatpush1.bf16.msra.mxu0 0
        %4220 = vmatprep.subr.bf16.mxu0 0
        %4221 = vmatpush1.bf16.msra.mxu0 0
        %4222 = vmatprep.subr.bf16.mxu0 0
        %4223 = vmatpush1.bf16.msra.mxu0 0
        %4224 = vmatprep.subr.bf16.mxu0 0
        %4225 = vmatpush1.bf16.msra.mxu0 0
        %4226 = vmatprep.subr.bf16.mxu0 0
        %4227 = vmatpush1.bf16.msra.mxu0 0
        %4228 = vmatprep.subr.bf16.mxu0 0
        %4229 = vmatpush1.bf16.msra.mxu0 0
        %4230 = vmatprep.subr.bf16.mxu0 0
        %4231 = vmatpush1.bf16.msra.mxu0 0
        %4232 = vmatprep.subr.bf16.mxu0 0
        %4233 = vmatpush1.bf16.msra.mxu0 0
        %4234 = vmatprep.subr.bf16.mxu0 0
        %4235 = vmatpush1.bf16.msra.mxu0 0
        %4236 = vmatprep.subr.bf16.mxu0 0
        %4237 = vmatpush1.bf16.msra.mxu0 0
        %4238 = vmatprep.subr.bf16.mxu0 0
        %4239 = vmatpush1.bf16.msra.mxu0 0
        %4240 = vmatprep.subr.bf16.mxu0 0
        %4241 = vmatpush1.bf16.msra.mxu0 0
        %4242 = vmatprep.subr.bf16.mxu0 0
        %4243 = vmatpush1.bf16.msra.mxu0 0
        %4244 = vmatprep.subr.bf16.mxu0 0
        %4245 = vmatpush1.bf16.msra.mxu0 0
        %4246 = vmatprep.mubr.bf16.mxu0 0
        %4247 = vmatmul.mubr.bf16.gmra.mrb[0].mxu0 %v4209
        %v4248 = vpop.f32.mrb[0].mxu0
        %v4249 = vadd.f32 0.0, %v4248
        %v4250 = vpop.f32.mrb[0].mxu0
        %v4251 = vpop.f32.mrb[0].mxu0
        %v4252 = vpop.f32.mrb[0].mxu0
        %4253 = vdwg.mxu0
        %v4255 = vsel %vm3144, %v4066, 0
        %v4258 = vsel %vm3244, %v3634, 0
        %4260 = vmatprep.subr.bf16.mxu0 0
        %4261 = vmatpush1.bf16.msra.mxu0 %v4258
        %4262 = vmatprep.subr.bf16.mxu0 0
        %4263 = vmatpush1.bf16.msra.mxu0 0
        %4264 = vmatprep.subr.bf16.mxu0 0
        %4265 = vmatpush1.bf16.msra.mxu0 0
        %4266 = vmatprep.subr.bf16.mxu0 0
        %4267 = vmatpush1.bf16.msra.mxu0 0
        %4268 = vmatprep.subr.bf16.mxu0 0
        %4269 = vmatpush1.bf16.msra.mxu0 0
        %4270 = vmatprep.subr.bf16.mxu0 0
        %4271 = vmatpush1.bf16.msra.mxu0 0
        %4272 = vmatprep.subr.bf16.mxu0 0
        %4273 = vmatpush1.bf16.msra.mxu0 0
        %4274 = vmatprep.subr.bf16.mxu0 0
        %4275 = vmatpush1.bf16.msra.mxu0 0
        %4276 = vmatprep.subr.bf16.mxu0 0
        %4277 = vmatpush1.bf16.msra.mxu0 0
        %4278 = vmatprep.subr.bf16.mxu0 0
        %4279 = vmatpush1.bf16.msra.mxu0 0
        %4280 = vmatprep.subr.bf16.mxu0 0
        %4281 = vmatpush1.bf16.msra.mxu0 0
        %4282 = vmatprep.subr.bf16.mxu0 0
        %4283 = vmatpush1.bf16.msra.mxu0 0
        %4284 = vmatprep.subr.bf16.mxu0 0
        %4285 = vmatpush1.bf16.msra.mxu0 0
        %4286 = vmatprep.subr.bf16.mxu0 0
        %4287 = vmatpush1.bf16.msra.mxu0 0
        %4288 = vmatprep.subr.bf16.mxu0 0
        %4289 = vmatpush1.bf16.msra.mxu0 0
        %4290 = vmatprep.subr.bf16.mxu0 0
        %4291 = vmatpush1.bf16.msra.mxu0 0
        %4292 = vmatprep.mubr.bf16.mxu0 0
        %4293 = vmatmul.mubr.bf16.gmra.mrb[0].mxu0 %v4255
        %v4294 = vpop.f32.mrb[0].mxu0
        %v4295 = vadd.f32 0.0, %v4294
        %v4296 = vpop.f32.mrb[0].mxu0
        %v4297 = vpop.f32.mrb[0].mxu0
        %v4298 = vpop.f32.mrb[0].mxu0
        %4299 = vdwg.mxu0
        %v4301 = vsel %vm3144, %v4067, 0
        %v4304 = vsel %vm3244, %v3635, 0
        %4306 = vmatprep.subr.bf16.mxu0 0
        %4307 = vmatpush1.bf16.msra.mxu0 %v4304
        %4308 = vmatprep.subr.bf16.mxu0 0
        %4309 = vmatpush1.bf16.msra.mxu0 0
        %4310 = vmatprep.subr.bf16.mxu0 0
        %4311 = vmatpush1.bf16.msra.mxu0 0
        %4312 = vmatprep.subr.bf16.mxu0 0
        %4313 = vmatpush1.bf16.msra.mxu0 0
        %4314 = vmatprep.subr.bf16.mxu0 0
        %4315 = vmatpush1.bf16.msra.mxu0 0
        %4316 = vmatprep.subr.bf16.mxu0 0
        %4317 = vmatpush1.bf16.msra.mxu0 0
        %4318 = vmatprep.subr.bf16.mxu0 0
        %4319 = vmatpush1.bf16.msra.mxu0 0
        %4320 = vmatprep.subr.bf16.mxu0 0
        %4321 = vmatpush1.bf16.msra.mxu0 0
        %4322 = vmatprep.subr.bf16.mxu0 0
        %4323 = vmatpush1.bf16.msra.mxu0 0
        %4324 = vmatprep.subr.bf16.mxu0 0
        %4325 = vmatpush1.bf16.msra.mxu0 0
        %4326 = vmatprep.subr.bf16.mxu0 0
        %4327 = vmatpush1.bf16.msra.mxu0 0
        %4328 = vmatprep.subr.bf16.mxu0 0
        %4329 = vmatpush1.bf16.msra.mxu0 0
        %4330 = vmatprep.subr.bf16.mxu0 0
        %4331 = vmatpush1.bf16.msra.mxu0 0
        %4332 = vmatprep.subr.bf16.mxu0 0
        %4333 = vmatpush1.bf16.msra.mxu0 0
        %4334 = vmatprep.subr.bf16.mxu0 0
        %4335 = vmatpush1.bf16.msra.mxu0 0
        %4336 = vmatprep.subr.bf16.mxu0 0
        %4337 = vmatpush1.bf16.msra.mxu0 0
        %4338 = vmatprep.mubr.bf16.mxu0 0
        %4339 = vmatmul.mubr.bf16.gmra.mrb[0].mxu0 %v4301
        %v4340 = vpop.f32.mrb[0].mxu0
        %v4341 = vadd.f32 0.0, %v4340
        %v4342 = vpop.f32.mrb[0].mxu0
        %v4343 = vpop.f32.mrb[0].mxu0
        %v4344 = vpop.f32.mrb[0].mxu0
        %4345 = vdwg.mxu0
        %v4347 = vsel %vm3144, %v4068, 0
        %v4350 = vsel %vm3244, %v3636, 0
        %4352 = vmatprep.subr.bf16.mxu0 0
        %4353 = vmatpush1.bf16.msra.mxu0 %v4350
        %4354 = vmatprep.subr.bf16.mxu0 0
        %4355 = vmatpush1.bf16.msra.mxu0 0
        %4356 = vmatprep.subr.bf16.mxu0 0
        %4357 = vmatpush1.bf16.msra.mxu0 0
        %4358 = vmatprep.subr.bf16.mxu0 0
        %4359 = vmatpush1.bf16.msra.mxu0 0
        %4360 = vmatprep.subr.bf16.mxu0 0
        %4361 = vmatpush1.bf16.msra.mxu0 0
        %4362 = vmatprep.subr.bf16.mxu0 0
        %4363 = vmatpush1.bf16.msra.mxu0 0
        %4364 = vmatprep.subr.bf16.mxu0 0
        %4365 = vmatpush1.bf16.msra.mxu0 0
        %4366 = vmatprep.subr.bf16.mxu0 0
        %4367 = vmatpush1.bf16.msra.mxu0 0
        %4368 = vmatprep.subr.bf16.mxu0 0
        %4369 = vmatpush1.bf16.msra.mxu0 0
        %4370 = vmatprep.subr.bf16.mxu0 0
        %4371 = vmatpush1.bf16.msra.mxu0 0
        %4372 = vmatprep.subr.bf16.mxu0 0
        %4373 = vmatpush1.bf16.msra.mxu0 0
        %4374 = vmatprep.subr.bf16.mxu0 0
        %4375 = vmatpush1.bf16.msra.mxu0 0
        %4376 = vmatprep.subr.bf16.mxu0 0
        %4377 = vmatpush1.bf16.msra.mxu0 0
        %4378 = vmatprep.subr.bf16.mxu0 0
        %4379 = vmatpush1.bf16.msra.mxu0 0
        %4380 = vmatprep.subr.bf16.mxu0 0
        %4381 = vmatpush1.bf16.msra.mxu0 0
        %4382 = vmatprep.subr.bf16.mxu0 0
        %4383 = vmatpush1.bf16.msra.mxu0 0
        %4384 = vmatprep.mubr.bf16.mxu0 0
        %4385 = vmatmul.mubr.bf16.gmra.mrb[0].mxu0 %v4347
        %v4386 = vpop.f32.mrb[0].mxu0
        %v4387 = vadd.f32 0.0, %v4386
        %v4388 = vpop.f32.mrb[0].mxu0
        %v4389 = vpop.f32.mrb[0].mxu0
        %v4390 = vpop.f32.mrb[0].mxu0
        %4391 = vdwg.mxu0
        %v4393 = vsel %vm3144, %v4069, 0
        %v4396 = vsel %vm3244, %v3637, 0
        %4398 = vmatprep.subr.bf16.mxu0 0
        %4399 = vmatpush1.bf16.msra.mxu0 %v4396
        %4400 = vmatprep.subr.bf16.mxu0 0
        %4401 = vmatpush1.bf16.msra.mxu0 0
        %4402 = vmatprep.subr.bf16.mxu0 0
        %4403 = vmatpush1.bf16.msra.mxu0 0
        %4404 = vmatprep.subr.bf16.mxu0 0
        %4405 = vmatpush1.bf16.msra.mxu0 0
        %4406 = vmatprep.subr.bf16.mxu0 0
        %4407 = vmatpush1.bf16.msra.mxu0 0
        %4408 = vmatprep.subr.bf16.mxu0 0
        %4409 = vmatpush1.bf16.msra.mxu0 0
        %4410 = vmatprep.subr.bf16.mxu0 0
        %4411 = vmatpush1.bf16.msra.mxu0 0
        %4412 = vmatprep.subr.bf16.mxu0 0
        %4413 = vmatpush1.bf16.msra.mxu0 0
        %4414 = vmatprep.subr.bf16.mxu0 0
        %4415 = vmatpush1.bf16.msra.mxu0 0
        %4416 = vmatprep.subr.bf16.mxu0 0
        %4417 = vmatpush1.bf16.msra.mxu0 0
        %4418 = vmatprep.subr.bf16.mxu0 0
        %4419 = vmatpush1.bf16.msra.mxu0 0
        %4420 = vmatprep.subr.bf16.mxu0 0
        %4421 = vmatpush1.bf16.msra.mxu0 0
        %4422 = vmatprep.subr.bf16.mxu0 0
        %4423 = vmatpush1.bf16.msra.mxu0 0
        %4424 = vmatprep.subr.bf16.mxu0 0
        %4425 = vmatpush1.bf16.msra.mxu0 0
        %4426 = vmatprep.subr.bf16.mxu0 0
        %4427 = vmatpush1.bf16.msra.mxu0 0
        %4428 = vmatprep.subr.bf16.mxu0 0
        %4429 = vmatpush1.bf16.msra.mxu0 0
        %4430 = vmatprep.mubr.bf16.mxu0 0
        %4431 = vmatmul.mubr.bf16.gmra.mrb[0].mxu0 %v4393
        %v4432 = vpop.f32.mrb[0].mxu0
        %v4433 = vadd.f32 0.0, %v4432
        %v4434 = vpop.f32.mrb[0].mxu0
        %v4435 = vpop.f32.mrb[0].mxu0
        %v4436 = vpop.f32.mrb[0].mxu0
        %4437 = vdwg.mxu0
        %v4438 = vpack.c.bf16 %v4157, %v4111
        %v4439 = vpack.c.bf16 %v4249, %v4203
        %v4440 = vpack.c.bf16 %v4341, %v4295
        %v4441 = vpack.c.bf16 %v4433, %v4387
        %v4458 = vunpack.c.l.b16 %v2762
        %v4459 = vunpack.c.h.b16 %v2762
        %v4460 = vunpack.c.l.b16 %v2763
        %v4461 = vunpack.c.h.b16 %v2763
        %v4462 = vunpack.c.l.b16 %v2764
        %v4463 = vunpack.c.h.b16 %v2764
        %v4464 = vunpack.c.l.b16 %v2765
        %v4465 = vunpack.c.h.b16 %v2765
        %v4466 = vunpack.c.l.b16 %v2766
        %v4467 = vunpack.c.h.b16 %v2766
        %v4468 = vunpack.c.l.b16 %v2767
        %v4469 = vunpack.c.h.b16 %v2767
        %v4470 = vunpack.c.l.b16 %v2768
        %v4471 = vunpack.c.h.b16 %v2768
        %v4472 = vunpack.c.l.b16 %v2769
        %v4473 = vunpack.c.h.b16 %v2769
        %v4474 = vunpack.c.l.b16 %v2770
        %v4475 = vunpack.c.h.b16 %v2770
        %v4476 = vunpack.c.l.b16 %v2771
        %v4477 = vunpack.c.h.b16 %v2771
        %v4478 = vunpack.c.l.b16 %v2772
        %v4479 = vunpack.c.h.b16 %v2772
        %v4480 = vunpack.c.l.b16 %v2773
        %v4481 = vunpack.c.h.b16 %v2773
        %v4482 = vunpack.c.l.b16 %v2774
        %v4483 = vunpack.c.h.b16 %v2774
        %v4484 = vunpack.c.l.b16 %v2775
        %v4485 = vunpack.c.h.b16 %v2775
        %v4486 = vunpack.c.l.b16 %v2776
        %v4487 = vunpack.c.h.b16 %v2776
        %v4488 = vunpack.c.l.b16 %v2777
        %v4489 = vunpack.c.h.b16 %v2777
        %v4490 = vpack.c.b16 %v4460, %v4458
        %v4491 = vpack.c.b16 %v4461, %v4459
        %v4492 = vpack.c.b16 %v4464, %v4462
        %v4493 = vpack.c.b16 %v4465, %v4463
        %v4494 = vpack.c.b16 %v4468, %v4466
        %v4495 = vpack.c.b16 %v4469, %v4467
        %v4496 = vpack.c.b16 %v4472, %v4470
        %v4497 = vpack.c.b16 %v4473, %v4471
        %v4498 = vpack.c.b16 %v4476, %v4474
        %v4499 = vpack.c.b16 %v4477, %v4475
        %v4500 = vpack.c.b16 %v4480, %v4478
        %v4501 = vpack.c.b16 %v4481, %v4479
        %v4502 = vpack.c.b16 %v4484, %v4482
        %v4503 = vpack.c.b16 %v4485, %v4483
        %v4504 = vpack.c.b16 %v4488, %v4486
        %v4505 = vpack.c.b16 %v4489, %v4487
        %4522 = vmatprep.subr.bf16.mxu0 %v4491
        %4523 = vmatpush1.bf16.msra.mxu0 %v4490
        %4524 = vmatprep.subr.bf16.mxu0 %v4493
        %4525 = vmatpush1.bf16.msra.mxu0 %v4492
        %4526 = vmatprep.subr.bf16.mxu0 %v4495
        %4527 = vmatpush1.bf16.msra.mxu0 %v4494
        %4528 = vmatprep.subr.bf16.mxu0 %v4497
        %4529 = vmatpush1.bf16.msra.mxu0 %v4496
        %4530 = vmatprep.subr.bf16.mxu0 %v4499
        %4531 = vmatpush1.bf16.msra.mxu0 %v4498
        %4532 = vmatprep.subr.bf16.mxu0 %v4501
        %4533 = vmatpush1.bf16.msra.mxu0 %v4500
        %4534 = vmatprep.subr.bf16.mxu0 %v4503
        %4535 = vmatpush1.bf16.msra.mxu0 %v4502
        %4536 = vmatprep.subr.bf16.mxu0 %v4505
        %4537 = vmatpush1.bf16.msra.mxu0 %v4504
        %4538 = vmatprep.subr.bf16.mxu0 0
        %4539 = vmatpush1.bf16.msra.mxu0 0
        %4540 = vmatprep.subr.bf16.mxu0 0
        %4541 = vmatpush1.bf16.msra.mxu0 0
        %4542 = vmatprep.subr.bf16.mxu0 0
        %4543 = vmatpush1.bf16.msra.mxu0 0
        %4544 = vmatprep.subr.bf16.mxu0 0
        %4545 = vmatpush1.bf16.msra.mxu0 0
        %4546 = vmatprep.subr.bf16.mxu0 0
        %4547 = vmatpush1.bf16.msra.mxu0 0
        %4548 = vmatprep.subr.bf16.mxu0 0
        %4549 = vmatpush1.bf16.msra.mxu0 0
        %4550 = vmatprep.subr.bf16.mxu0 0
        %4551 = vmatpush1.bf16.msra.mxu0 0
        %4552 = vmatprep.subr.bf16.mxu0 0
        %4553 = vmatpush1.bf16.msra.mxu0 0
        %4554 = vmatprep.mubr.bf16.mxu0 0
        %4555 = vmatmul.mubr.bf16.gmra.mrb[0].mxu0 %v4438
        %v4556 = vpop.f32.mrb[0].mxu0
        %v4557 = vadd.f32 0.0, %v4556
        %v4558 = vpop.f32.mrb[0].mxu0
        %v4559 = vadd.f32 0.0, %v4558
        %v4560 = vpop.f32.mrb[0].mxu0
        %v4561 = vadd.f32 0.0, %v4560
        %v4562 = vpop.f32.mrb[0].mxu0
        %v4563 = vadd.f32 0.0, %v4562
        %4564 = vmatprep.mubr.bf16.mxu0 0
        %4565 = vmatmul.mubr.bf16.gmra.mrb[0].mxu0 %v4439
        %v4566 = vpop.f32.mrb[0].mxu0
        %v4567 = vadd.f32 0.0, %v4566
        %v4568 = vpop.f32.mrb[0].mxu0
        %v4569 = vadd.f32 0.0, %v4568
        %v4570 = vpop.f32.mrb[0].mxu0
        %v4571 = vadd.f32 0.0, %v4570
        %v4572 = vpop.f32.mrb[0].mxu0
        %v4573 = vadd.f32 0.0, %v4572
        %4574 = vmatprep.mubr.bf16.mxu0 0
        %4575 = vmatmul.mubr.bf16.gmra.mrb[0].mxu0 %v4440
        %v4576 = vpop.f32.mrb[0].mxu0
        %v4577 = vadd.f32 0.0, %v4576
        %v4578 = vpop.f32.mrb[0].mxu0
        %v4579 = vadd.f32 0.0, %v4578
        %v4580 = vpop.f32.mrb[0].mxu0
        %v4581 = vadd.f32 0.0, %v4580
        %v4582 = vpop.f32.mrb[0].mxu0
        %v4583 = vadd.f32 0.0, %v4582
        %4584 = vmatprep.mubr.bf16.mxu0 0
        %4585 = vmatmul.mubr.bf16.gmra.mrb[0].mxu0 %v4441
        %v4586 = vpop.f32.mrb[0].mxu0
        %v4587 = vadd.f32 0.0, %v4586
        %v4588 = vpop.f32.mrb[0].mxu0
        %v4589 = vadd.f32 0.0, %v4588
        %v4590 = vpop.f32.mrb[0].mxu0
        %v4591 = vadd.f32 0.0, %v4590
        %v4592 = vpop.f32.mrb[0].mxu0
        %v4593 = vadd.f32 0.0, %v4592
        %4594 = vdwg.mxu0
        %v4611 = vunpack.c.l.b16 %v2746
        %v4612 = vunpack.c.h.b16 %v2746
        %v4613 = vunpack.c.l.b16 %v2747
        %v4614 = vunpack.c.h.b16 %v2747
        %v4615 = vunpack.c.l.b16 %v2748
        %v4616 = vunpack.c.h.b16 %v2748
        %v4617 = vunpack.c.l.b16 %v2749
        %v4618 = vunpack.c.h.b16 %v2749
        %v4619 = vunpack.c.l.b16 %v2750
        %v4620 = vunpack.c.h.b16 %v2750
        %v4621 = vunpack.c.l.b16 %v2751
        %v4622 = vunpack.c.h.b16 %v2751
        %v4623 = vunpack.c.l.b16 %v2752
        %v4624 = vunpack.c.h.b16 %v2752
        %v4625 = vunpack.c.l.b16 %v2753
        %v4626 = vunpack.c.h.b16 %v2753
        %v4627 = vunpack.c.l.b16 %v2754
        %v4628 = vunpack.c.h.b16 %v2754
        %v4629 = vunpack.c.l.b16 %v2755
        %v4630 = vunpack.c.h.b16 %v2755
        %v4631 = vunpack.c.l.b16 %v2756
        %v4632 = vunpack.c.h.b16 %v2756
        %v4633 = vunpack.c.l.b16 %v2757
        %v4634 = vunpack.c.h.b16 %v2757
        %v4635 = vunpack.c.l.b16 %v2758
        %v4636 = vunpack.c.h.b16 %v2758
        %v4637 = vunpack.c.l.b16 %v2759
        %v4638 = vunpack.c.h.b16 %v2759
        %v4639 = vunpack.c.l.b16 %v2760
        %v4640 = vunpack.c.h.b16 %v2760
        %v4641 = vunpack.c.l.b16 %v2761
        %v4642 = vunpack.c.h.b16 %v2761
        %v4643 = vpack.c.b16 %v4613, %v4611
        %v4644 = vpack.c.b16 %v4614, %v4612
        %v4645 = vpack.c.b16 %v4617, %v4615
        %v4646 = vpack.c.b16 %v4618, %v4616
        %v4647 = vpack.c.b16 %v4621, %v4619
        %v4648 = vpack.c.b16 %v4622, %v4620
        %v4649 = vpack.c.b16 %v4625, %v4623
        %v4650 = vpack.c.b16 %v4626, %v4624
        %v4651 = vpack.c.b16 %v4629, %v4627
        %v4652 = vpack.c.b16 %v4630, %v4628
        %v4653 = vpack.c.b16 %v4633, %v4631
        %v4654 = vpack.c.b16 %v4634, %v4632
        %v4655 = vpack.c.b16 %v4637, %v4635
        %v4656 = vpack.c.b16 %v4638, %v4636
        %v4657 = vpack.c.b16 %v4641, %v4639
        %v4658 = vpack.c.b16 %v4642, %v4640
        %4675 = vmatprep.subr.bf16.mxu0 %v4644
        %4676 = vmatpush1.bf16.msra.mxu0 %v4643
        %4677 = vmatprep.subr.bf16.mxu0 %v4646
        %4678 = vmatpush1.bf16.msra.mxu0 %v4645
        %4679 = vmatprep.subr.bf16.mxu0 %v4648
        %4680 = vmatpush1.bf16.msra.mxu0 %v4647
        %4681 = vmatprep.subr.bf16.mxu0 %v4650
        %4682 = vmatpush1.bf16.msra.mxu0 %v4649
        %4683 = vmatprep.subr.bf16.mxu0 %v4652
        %4684 = vmatpush1.bf16.msra.mxu0 %v4651
        %4685 = vmatprep.subr.bf16.mxu0 %v4654
        %4686 = vmatpush1.bf16.msra.mxu0 %v4653
        %4687 = vmatprep.subr.bf16.mxu0 %v4656
        %4688 = vmatpush1.bf16.msra.mxu0 %v4655
        %4689 = vmatprep.subr.bf16.mxu0 %v4658
        %4690 = vmatpush1.bf16.msra.mxu0 %v4657
        %4691 = vmatprep.subr.bf16.mxu0 0
        %4692 = vmatpush1.bf16.msra.mxu0 0
        %4693 = vmatprep.subr.bf16.mxu0 0
        %4694 = vmatpush1.bf16.msra.mxu0 0
        %4695 = vmatprep.subr.bf16.mxu0 0
        %4696 = vmatpush1.bf16.msra.mxu0 0
        %4697 = vmatprep.subr.bf16.mxu0 0
        %4698 = vmatpush1.bf16.msra.mxu0 0
        %4699 = vmatprep.subr.bf16.mxu0 0
        %4700 = vmatpush1.bf16.msra.mxu0 0
        %4701 = vmatprep.subr.bf16.mxu0 0
        %4702 = vmatpush1.bf16.msra.mxu0 0
        %4703 = vmatprep.subr.bf16.mxu0 0
        %4704 = vmatpush1.bf16.msra.mxu0 0
        %4705 = vmatprep.subr.bf16.mxu0 0
        %4706 = vmatpush1.bf16.msra.mxu0 0
        %4707 = vmatprep.mubr.bf16.mxu0 0
        %4708 = vmatmul.mubr.bf16.gmra.mrb[0].mxu0 %v3610
        %v4709 = vpop.f32.mrb[0].mxu0
        %v4710 = vadd.f32 %v4557, %v4709
        %v4711 = vpop.f32.mrb[0].mxu0
        %v4712 = vadd.f32 %v4559, %v4711
        %v4713 = vpop.f32.mrb[0].mxu0
        %v4714 = vadd.f32 %v4561, %v4713
        %v4715 = vpop.f32.mrb[0].mxu0
        %v4716 = vadd.f32 %v4563, %v4715
        %4717 = vmatprep.mubr.bf16.mxu0 0
        %4718 = vmatmul.mubr.bf16.gmra.mrb[0].mxu0 %v3611
        %v4719 = vpop.f32.mrb[0].mxu0
        %v4720 = vadd.f32 %v4567, %v4719
        %v4721 = vpop.f32.mrb[0].mxu0
        %v4722 = vadd.f32 %v4569, %v4721
        %v4723 = vpop.f32.mrb[0].mxu0
        %v4724 = vadd.f32 %v4571, %v4723
        %v4725 = vpop.f32.mrb[0].mxu0
        %v4726 = vadd.f32 %v4573, %v4725
        %4727 = vmatprep.mubr.bf16.mxu0 0
        %4728 = vmatmul.mubr.bf16.gmra.mrb[0].mxu0 %v3612
        %v4729 = vpop.f32.mrb[0].mxu0
        %v4730 = vadd.f32 %v4577, %v4729
        %v4731 = vpop.f32.mrb[0].mxu0
        %v4732 = vadd.f32 %v4579, %v4731
        %v4733 = vpop.f32.mrb[0].mxu0
        %v4734 = vadd.f32 %v4581, %v4733
        %v4735 = vpop.f32.mrb[0].mxu0
        %v4736 = vadd.f32 %v4583, %v4735
        %4737 = vmatprep.mubr.bf16.mxu0 0
        %4738 = vmatmul.mubr.bf16.gmra.mrb[0].mxu0 %v3613
        %v4739 = vpop.f32.mrb[0].mxu0
        %v4740 = vadd.f32 %v4587, %v4739
        %v4741 = vpop.f32.mrb[0].mxu0
        %v4742 = vadd.f32 %v4589, %v4741
        %v4743 = vpop.f32.mrb[0].mxu0
        %v4744 = vadd.f32 %v4591, %v4743
        %v4745 = vpop.f32.mrb[0].mxu0
        %v4746 = vadd.f32 %v4593, %v4745
        %4747 = vdwg.mxu0
        %v4748 = vld [vmem:[%s1143] sm:$0x3]
        %v4750 = vlaneseq
        %v4751 = vshrl.u32 %v4750, 7
        %v4752 = vsub.s32 0, %v4751
        %v4753 = vrot.slane %v4748, %v4752
        %v4754 = vlaneseq
        %v4755 = vshrl.u32 %v4754, 7
        %v4756 = vsub.s32 1, %v4755
        %v4757 = vrot.slane %v4748, %v4756
        %v4760 = vadd.f32 %v4710, %v4753
        %v4761 = vadd.f32 %v4712, %v4757
        %v4762 = vadd.f32 %v4714, %v4753
        %v4763 = vadd.f32 %v4716, %v4757
        %v4764 = vadd.f32 %v4720, %v4753
        %v4765 = vadd.f32 %v4722, %v4757
        %v4766 = vadd.f32 %v4724, %v4753
        %v4767 = vadd.f32 %v4726, %v4757
        %v4768 = vadd.f32 %v4730, %v4753
        %v4769 = vadd.f32 %v4732, %v4757
        %v4770 = vadd.f32 %v4734, %v4753
        %v4771 = vadd.f32 %v4736, %v4757
        %v4772 = vadd.f32 %v4740, %v4753
        %v4773 = vadd.f32 %v4742, %v4757
        %v4774 = vadd.f32 %v4744, %v4753
        %v4775 = vadd.f32 %v4746, %v4757
        %v4776 = vadd.f32 %v1709, %v4760
        %v4777 = vadd.f32 %v1710, %v4761
        %v4778 = vadd.f32 %v1711, %v4762
        %v4779 = vadd.f32 %v1712, %v4763
        %v4780 = vadd.f32 %v1713, %v4764
        %v4781 = vadd.f32 %v1714, %v4765
        %v4782 = vadd.f32 %v1715, %v4766
        %v4783 = vadd.f32 %v1716, %v4767
        %v4784 = vadd.f32 %v1717, %v4768
        %v4785 = vadd.f32 %v1718, %v4769
        %v4786 = vadd.f32 %v1719, %v4770
        %v4787 = vadd.f32 %v1720, %v4771
        %v4788 = vadd.f32 %v1721, %v4772
        %v4789 = vadd.f32 %v1722, %v4773
        %v4790 = vadd.f32 %v1723, %v4774
        %v4791 = vadd.f32 %v1724, %v4775
        %v4792 = vld [vmem:[%s1147] sm:$0x3]
        %v4793 = vld [vmem:[%s1151] sm:$0x3]
        %v4794 = vadd.f32 %v4776, %v4777
        %4795 = vadd.xlane.f32.xlu0 %v4794
        %v4796 = vpop.xlane.xlu0 %4795
        %v4797 = vadd.f32 %v4778, %v4779
        %4798 = vadd.xlane.f32.xlu0 %v4797
        %v4799 = vpop.xlane.xlu0 %4798
        %v4800 = vadd.f32 %v4780, %v4781
        %4801 = vadd.xlane.f32.xlu0 %v4800
        %v4802 = vpop.xlane.xlu0 %4801
        %v4803 = vadd.f32 %v4782, %v4783
        %4804 = vadd.xlane.f32.xlu0 %v4803
        %v4805 = vpop.xlane.xlu0 %4804
        %v4806 = vadd.f32 %v4784, %v4785
        %4807 = vadd.xlane.f32.xlu0 %v4806
        %v4808 = vpop.xlane.xlu0 %4807
        %v4809 = vadd.f32 %v4786, %v4787
        %4810 = vadd.xlane.f32.xlu0 %v4809
        %v4811 = vpop.xlane.xlu0 %4810
        %v4812 = vadd.f32 %v4788, %v4789
        %4813 = vadd.xlane.f32.xlu0 %v4812
        %v4814 = vpop.xlane.xlu0 %4813
        %v4815 = vadd.f32 %v4790, %v4791
        %4816 = vadd.xlane.f32.xlu0 %v4815
        %v4817 = vpop.xlane.xlu0 %4816
        %v4818 = vmul.f32 %v4796, %v1751
        %v4819 = vmul.f32 %v4799, %v1751
        %v4820 = vmul.f32 %v4802, %v1751
        %v4821 = vmul.f32 %v4805, %v1751
        %v4822 = vmul.f32 %v4808, %v1751
        %v4823 = vmul.f32 %v4811, %v1751
        %v4824 = vmul.f32 %v4814, %v1751
        %v4825 = vmul.f32 %v4817, %v1751
        %v4826 = vsub.f32 %v4776, %v4818
        %v4827 = vsub.f32 %v4777, %v4818
        %v4828 = vsub.f32 %v4778, %v4819
        %v4829 = vsub.f32 %v4779, %v4819
        %v4830 = vsub.f32 %v4780, %v4820
        %v4831 = vsub.f32 %v4781, %v4820
        %v4832 = vsub.f32 %v4782, %v4821
        %v4833 = vsub.f32 %v4783, %v4821
        %v4834 = vsub.f32 %v4784, %v4822
        %v4835 = vsub.f32 %v4785, %v4822
        %v4836 = vsub.f32 %v4786, %v4823
        %v4837 = vsub.f32 %v4787, %v4823
        %v4838 = vsub.f32 %v4788, %v4824
        %v4839 = vsub.f32 %v4789, %v4824
        %v4840 = vsub.f32 %v4790, %v4825
        %v4841 = vsub.f32 %v4791, %v4825
        %v4842 = vmul.f32 %v4826, %v4826
        %v4843 = vmul.f32 %v4827, %v4827
        %v4844 = vmul.f32 %v4828, %v4828
        %v4845 = vmul.f32 %v4829, %v4829
        %v4846 = vmul.f32 %v4830, %v4830
        %v4847 = vmul.f32 %v4831, %v4831
        %v4848 = vmul.f32 %v4832, %v4832
        %v4849 = vmul.f32 %v4833, %v4833
        %v4850 = vmul.f32 %v4834, %v4834
        %v4851 = vmul.f32 %v4835, %v4835
        %v4852 = vmul.f32 %v4836, %v4836
        %v4853 = vmul.f32 %v4837, %v4837
        %v4854 = vmul.f32 %v4838, %v4838
        %v4855 = vmul.f32 %v4839, %v4839
        %v4856 = vmul.f32 %v4840, %v4840
        %v4857 = vmul.f32 %v4841, %v4841
        %v4858 = vadd.f32 %v4842, %v4843
        %4859 = vadd.xlane.f32.xlu0 %v4858
        %v4860 = vpop.xlane.xlu0 %4859
        %v4861 = vadd.f32 %v4844, %v4845
        %4862 = vadd.xlane.f32.xlu0 %v4861
        %v4863 = vpop.xlane.xlu0 %4862
        %v4864 = vadd.f32 %v4846, %v4847
        %4865 = vadd.xlane.f32.xlu0 %v4864
        %v4866 = vpop.xlane.xlu0 %4865
        %v4867 = vadd.f32 %v4848, %v4849
        %4868 = vadd.xlane.f32.xlu0 %v4867
        %v4869 = vpop.xlane.xlu0 %4868
        %v4870 = vadd.f32 %v4850, %v4851
        %4871 = vadd.xlane.f32.xlu0 %v4870
        %v4872 = vpop.xlane.xlu0 %4871
        %v4873 = vadd.f32 %v4852, %v4853
        %4874 = vadd.xlane.f32.xlu0 %v4873
        %v4875 = vpop.xlane.xlu0 %4874
        %v4876 = vadd.f32 %v4854, %v4855
        %4877 = vadd.xlane.f32.xlu0 %v4876
        %v4878 = vpop.xlane.xlu0 %4877
        %v4879 = vadd.f32 %v4856, %v4857
        %4880 = vadd.xlane.f32.xlu0 %v4879
        %v4881 = vpop.xlane.xlu0 %4880
        %v4882 = vmul.f32 %v4860, %v1751
        %v4883 = vmul.f32 %v4863, %v1751
        %v4884 = vmul.f32 %v4866, %v1751
        %v4885 = vmul.f32 %v4869, %v1751
        %v4886 = vmul.f32 %v4872, %v1751
        %v4887 = vmul.f32 %v4875, %v1751
        %v4888 = vmul.f32 %v4878, %v1751
        %v4889 = vmul.f32 %v4881, %v1751
        %v4890 = vadd.f32 %v4882, 1e-05
        %v4891 = vadd.f32 %v4883, 1e-05
        %v4892 = vadd.f32 %v4884, 1e-05
        %v4893 = vadd.f32 %v4885, 1e-05
        %v4894 = vadd.f32 %v4886, 1e-05
        %v4895 = vadd.f32 %v4887, 1e-05
        %v4896 = vadd.f32 %v4888, 1e-05
        %v4897 = vadd.f32 %v4889, 1e-05
        %v4898 = vrsqrt.pop %v4890
        %v4899 = vrsqrt.pop %v4891
        %v4900 = vrsqrt.pop %v4892
        %v4901 = vrsqrt.pop %v4893
        %v4902 = vrsqrt.pop %v4894
        %v4903 = vrsqrt.pop %v4895
        %v4904 = vrsqrt.pop %v4896
        %v4905 = vrsqrt.pop %v4897
        %v4906 = vmul.f32 %v4826, %v4898
        %v4907 = vmul.f32 %v4827, %v4898
        %v4908 = vmul.f32 %v4828, %v4899
        %v4909 = vmul.f32 %v4829, %v4899
        %v4910 = vmul.f32 %v4830, %v4900
        %v4911 = vmul.f32 %v4831, %v4900
        %v4912 = vmul.f32 %v4832, %v4901
        %v4913 = vmul.f32 %v4833, %v4901
        %v4914 = vmul.f32 %v4834, %v4902
        %v4915 = vmul.f32 %v4835, %v4902
        %v4916 = vmul.f32 %v4836, %v4903
        %v4917 = vmul.f32 %v4837, %v4903
        %v4918 = vmul.f32 %v4838, %v4904
        %v4919 = vmul.f32 %v4839, %v4904
        %v4920 = vmul.f32 %v4840, %v4905
        %v4921 = vmul.f32 %v4841, %v4905
        %v4923 = vlaneseq
        %v4924 = vshrl.u32 %v4923, 7
        %v4925 = vsub.s32 0, %v4924
        %v4926 = vrot.slane %v4792, %v4925
        %v4927 = vlaneseq
        %v4928 = vshrl.u32 %v4927, 7
        %v4929 = vsub.s32 1, %v4928
        %v4930 = vrot.slane %v4792, %v4929
        %v4933 = vmul.f32 %v4906, %v4926
        %v4934 = vmul.f32 %v4907, %v4930
        %v4935 = vmul.f32 %v4908, %v4926
        %v4936 = vmul.f32 %v4909, %v4930
        %v4937 = vmul.f32 %v4910, %v4926
        %v4938 = vmul.f32 %v4911, %v4930
        %v4939 = vmul.f32 %v4912, %v4926
        %v4940 = vmul.f32 %v4913, %v4930
        %v4941 = vmul.f32 %v4914, %v4926
        %v4942 = vmul.f32 %v4915, %v4930
        %v4943 = vmul.f32 %v4916, %v4926
        %v4944 = vmul.f32 %v4917, %v4930
        %v4945 = vmul.f32 %v4918, %v4926
        %v4946 = vmul.f32 %v4919, %v4930
        %v4947 = vmul.f32 %v4920, %v4926
        %v4948 = vmul.f32 %v4921, %v4930
        %v4950 = vlaneseq
        %v4951 = vshrl.u32 %v4950, 7
        %v4952 = vsub.s32 0, %v4951
        %v4953 = vrot.slane %v4793, %v4952
        %v4954 = vlaneseq
        %v4955 = vshrl.u32 %v4954, 7
        %v4956 = vsub.s32 1, %v4955
        %v4957 = vrot.slane %v4793, %v4956
        %v4960 = vadd.f32 %v4933, %v4953
        %v4961 = vadd.f32 %v4934, %v4957
        %v4962 = vadd.f32 %v4935, %v4953
        %v4963 = vadd.f32 %v4936, %v4957
        %v4964 = vadd.f32 %v4937, %v4953
        %v4965 = vadd.f32 %v4938, %v4957
        %v4966 = vadd.f32 %v4939, %v4953
        %v4967 = vadd.f32 %v4940, %v4957
        %v4968 = vadd.f32 %v4941, %v4953
        %v4969 = vadd.f32 %v4942, %v4957
        %v4970 = vadd.f32 %v4943, %v4953
        %v4971 = vadd.f32 %v4944, %v4957
        %v4972 = vadd.f32 %v4945, %v4953
        %v4973 = vadd.f32 %v4946, %v4957
        %v4974 = vadd.f32 %v4947, %v4953
        %v4975 = vadd.f32 %v4948, %v4957
        %v4976 = vpack.c.bf16 %v4962, %v4960
        %v4977 = vpack.c.bf16 %v4963, %v4961
        %v4978 = vpack.c.bf16 %v4966, %v4964
        %v4979 = vpack.c.bf16 %v4967, %v4965
        %v4980 = vpack.c.bf16 %v4970, %v4968
        %v4981 = vpack.c.bf16 %v4971, %v4969
        %v4982 = vpack.c.bf16 %v4974, %v4972
        %v4983 = vpack.c.bf16 %v4975, %v4973
        %v4984 = vld [vmem:[%s1008] sm:$0xff]
        %v4985 = vld [vmem:[%s1008 + $0x8] sm:$0xff]
        %v4986 = vld [vmem:[%s1008 + $0x10] sm:$0xff]
        %v4987 = vld [vmem:[%s1008 + $0x18] sm:$0xff]
        %v4988 = vld [vmem:[%s1008 + $0x20] sm:$0xff]
        %v4989 = vld [vmem:[%s1008 + $0x28] sm:$0xff]
        %v4990 = vld [vmem:[%s1008 + $0x30] sm:$0xff]
        %v4991 = vld [vmem:[%s1008 + $0x38] sm:$0xff]
        %v4992 = vld [vmem:[%s1008 + $0x40] sm:$0xff]
        %v4993 = vld [vmem:[%s1008 + $0x48] sm:$0xff]
        %v4994 = vld [vmem:[%s1008 + $0x50] sm:$0xff]
        %v4995 = vld [vmem:[%s1008 + $0x58] sm:$0xff]
        %v4996 = vld [vmem:[%s1008 + $0x60] sm:$0xff]
        %v4997 = vld [vmem:[%s1008 + $0x68] sm:$0xff]
        %v4998 = vld [vmem:[%s1008 + $0x70] sm:$0xff]
        %v4999 = vld [vmem:[%s1008 + $0x78] sm:$0xff]
        %v5000 = vld [vmem:[%s1008 + $0x80] sm:$0xff]
        %v5001 = vld [vmem:[%s1008 + $0x88] sm:$0xff]
        %v5002 = vld [vmem:[%s1008 + $0x90] sm:$0xff]
        %v5003 = vld [vmem:[%s1008 + $0x98] sm:$0xff]
        %v5004 = vld [vmem:[%s1008 + $0xa0] sm:$0xff]
        %v5005 = vld [vmem:[%s1008 + $0xa8] sm:$0xff]
        %v5006 = vld [vmem:[%s1008 + $0xb0] sm:$0xff]
        %v5007 = vld [vmem:[%s1008 + $0xb8] sm:$0xff]
        %v5008 = vld [vmem:[%s1008 + $0xc0] sm:$0xff]
        %v5009 = vld [vmem:[%s1008 + $0xc8] sm:$0xff]
        %v5010 = vld [vmem:[%s1008 + $0xd0] sm:$0xff]
        %v5011 = vld [vmem:[%s1008 + $0xd8] sm:$0xff]
        %v5012 = vld [vmem:[%s1008 + $0xe0] sm:$0xff]
        %v5013 = vld [vmem:[%s1008 + $0xe8] sm:$0xff]
        %v5014 = vld [vmem:[%s1008 + $0xf0] sm:$0xff]
        %v5015 = vld [vmem:[%s1008 + $0xf8] sm:$0xff]
        %v5016 = vld [vmem:[%s1008 + $0x100] sm:$0xff]
        %v5017 = vld [vmem:[%s1008 + $0x108] sm:$0xff]
        %v5018 = vld [vmem:[%s1008 + $0x110] sm:$0xff]
        %v5019 = vld [vmem:[%s1008 + $0x118] sm:$0xff]
        %v5020 = vld [vmem:[%s1008 + $0x120] sm:$0xff]
        %v5021 = vld [vmem:[%s1008 + $0x128] sm:$0xff]
        %v5022 = vld [vmem:[%s1008 + $0x130] sm:$0xff]
        %v5023 = vld [vmem:[%s1008 + $0x138] sm:$0xff]
        %v5024 = vld [vmem:[%s1008 + $0x140] sm:$0xff]
        %v5025 = vld [vmem:[%s1008 + $0x148] sm:$0xff]
        %v5026 = vld [vmem:[%s1008 + $0x150] sm:$0xff]
        %v5027 = vld [vmem:[%s1008 + $0x158] sm:$0xff]
        %v5028 = vld [vmem:[%s1008 + $0x160] sm:$0xff]
        %v5029 = vld [vmem:[%s1008 + $0x168] sm:$0xff]
        %v5030 = vld [vmem:[%s1008 + $0x170] sm:$0xff]
        %v5031 = vld [vmem:[%s1008 + $0x178] sm:$0xff]
        %v5032 = vld [vmem:[%s1008 + $0x180] sm:$0xff]
        %v5033 = vld [vmem:[%s1008 + $0x188] sm:$0xff]
        %v5034 = vld [vmem:[%s1008 + $0x190] sm:$0xff]
        %v5035 = vld [vmem:[%s1008 + $0x198] sm:$0xff]
        %v5036 = vld [vmem:[%s1008 + $0x1a0] sm:$0xff]
        %v5037 = vld [vmem:[%s1008 + $0x1a8] sm:$0xff]
        %v5038 = vld [vmem:[%s1008 + $0x1b0] sm:$0xff]
        %v5039 = vld [vmem:[%s1008 + $0x1b8] sm:$0xff]
        %v5040 = vld [vmem:[%s1008 + $0x1c0] sm:$0xff]
        %v5041 = vld [vmem:[%s1008 + $0x1c8] sm:$0xff]
        %v5042 = vld [vmem:[%s1008 + $0x1d0] sm:$0xff]
        %v5043 = vld [vmem:[%s1008 + $0x1d8] sm:$0xff]
        %v5044 = vld [vmem:[%s1008 + $0x1e0] sm:$0xff]
        %v5045 = vld [vmem:[%s1008 + $0x1e8] sm:$0xff]
        %v5046 = vld [vmem:[%s1008 + $0x1f0] sm:$0xff]
        %v5047 = vld [vmem:[%s1008 + $0x1f8] sm:$0xff]
        %v5048 = vld [vmem:[%s1008 + $0x200] sm:$0xff]
        %v5049 = vld [vmem:[%s1008 + $0x208] sm:$0xff]
        %v5050 = vld [vmem:[%s1008 + $0x210] sm:$0xff]
        %v5051 = vld [vmem:[%s1008 + $0x218] sm:$0xff]
        %v5052 = vld [vmem:[%s1008 + $0x220] sm:$0xff]
        %v5053 = vld [vmem:[%s1008 + $0x228] sm:$0xff]
        %v5054 = vld [vmem:[%s1008 + $0x230] sm:$0xff]
        %v5055 = vld [vmem:[%s1008 + $0x238] sm:$0xff]
        %v5056 = vld [vmem:[%s1008 + $0x240] sm:$0xff]
        %v5057 = vld [vmem:[%s1008 + $0x248] sm:$0xff]
        %v5058 = vld [vmem:[%s1008 + $0x250] sm:$0xff]
        %v5059 = vld [vmem:[%s1008 + $0x258] sm:$0xff]
        %v5060 = vld [vmem:[%s1008 + $0x260] sm:$0xff]
        %v5061 = vld [vmem:[%s1008 + $0x268] sm:$0xff]
        %v5062 = vld [vmem:[%s1008 + $0x270] sm:$0xff]
        %v5063 = vld [vmem:[%s1008 + $0x278] sm:$0xff]
        %v5064 = vld [vmem:[%s1008 + $0x280] sm:$0xff]
        %v5065 = vld [vmem:[%s1008 + $0x288] sm:$0xff]
        %v5066 = vld [vmem:[%s1008 + $0x290] sm:$0xff]
        %v5067 = vld [vmem:[%s1008 + $0x298] sm:$0xff]
        %v5068 = vld [vmem:[%s1008 + $0x2a0] sm:$0xff]
        %v5069 = vld [vmem:[%s1008 + $0x2a8] sm:$0xff]
        %v5070 = vld [vmem:[%s1008 + $0x2b0] sm:$0xff]
        %v5071 = vld [vmem:[%s1008 + $0x2b8] sm:$0xff]
        %v5072 = vld [vmem:[%s1008 + $0x2c0] sm:$0xff]
        %v5073 = vld [vmem:[%s1008 + $0x2c8] sm:$0xff]
        %v5074 = vld [vmem:[%s1008 + $0x2d0] sm:$0xff]
        %v5075 = vld [vmem:[%s1008 + $0x2d8] sm:$0xff]
        %v5076 = vld [vmem:[%s1008 + $0x2e0] sm:$0xff]
        %v5077 = vld [vmem:[%s1008 + $0x2e8] sm:$0xff]
        %v5078 = vld [vmem:[%s1008 + $0x2f0] sm:$0xff]
        %v5079 = vld [vmem:[%s1008 + $0x2f8] sm:$0xff]
        %v5080 = vld [vmem:[%s1008 + $0x300] sm:$0xff]
        %v5081 = vld [vmem:[%s1008 + $0x308] sm:$0xff]
        %v5082 = vld [vmem:[%s1008 + $0x310] sm:$0xff]
        %v5083 = vld [vmem:[%s1008 + $0x318] sm:$0xff]
        %v5084 = vld [vmem:[%s1008 + $0x320] sm:$0xff]
        %v5085 = vld [vmem:[%s1008 + $0x328] sm:$0xff]
        %v5086 = vld [vmem:[%s1008 + $0x330] sm:$0xff]
        %v5087 = vld [vmem:[%s1008 + $0x338] sm:$0xff]
        %v5088 = vld [vmem:[%s1008 + $0x340] sm:$0xff]
        %v5089 = vld [vmem:[%s1008 + $0x348] sm:$0xff]
        %v5090 = vld [vmem:[%s1008 + $0x350] sm:$0xff]
        %v5091 = vld [vmem:[%s1008 + $0x358] sm:$0xff]
        %v5092 = vld [vmem:[%s1008 + $0x360] sm:$0xff]
        %v5093 = vld [vmem:[%s1008 + $0x368] sm:$0xff]
        %v5094 = vld [vmem:[%s1008 + $0x370] sm:$0xff]
        %v5095 = vld [vmem:[%s1008 + $0x378] sm:$0xff]
        %v5096 = vld [vmem:[%s1008 + $0x380] sm:$0xff]
        %v5097 = vld [vmem:[%s1008 + $0x388] sm:$0xff]
        %v5098 = vld [vmem:[%s1008 + $0x390] sm:$0xff]
        %v5099 = vld [vmem:[%s1008 + $0x398] sm:$0xff]
        %v5100 = vld [vmem:[%s1008 + $0x3a0] sm:$0xff]
        %v5101 = vld [vmem:[%s1008 + $0x3a8] sm:$0xff]
        %v5102 = vld [vmem:[%s1008 + $0x3b0] sm:$0xff]
        %v5103 = vld [vmem:[%s1008 + $0x3b8] sm:$0xff]
        %v5104 = vld [vmem:[%s1008 + $0x3c0] sm:$0xff]
        %v5105 = vld [vmem:[%s1008 + $0x3c8] sm:$0xff]
        %v5106 = vld [vmem:[%s1008 + $0x3d0] sm:$0xff]
        %v5107 = vld [vmem:[%s1008 + $0x3d8] sm:$0xff]
        %v5108 = vld [vmem:[%s1008 + $0x3e0] sm:$0xff]
        %v5109 = vld [vmem:[%s1008 + $0x3e8] sm:$0xff]
        %v5110 = vld [vmem:[%s1008 + $0x3f0] sm:$0xff]
        %v5111 = vld [vmem:[%s1008 + $0x3f8] sm:$0xff]
        %v5112 = vld [vmem:[%s1155] sm:$0xff]
        %v5114 = vlaneseq
        %v5115 = vshrl.u32 %v5114, 7
        %v5116 = vsub.s32 0, %v5115
        %v5117 = vrot.slane %v5112, %v5116
        %v5118 = vlaneseq
        %v5119 = vshrl.u32 %v5118, 7
        %v5120 = vsub.s32 1, %v5119
        %v5121 = vrot.slane %v5112, %v5120
        %v5122 = vlaneseq
        %v5123 = vshrl.u32 %v5122, 7
        %v5124 = vsub.s32 2, %v5123
        %v5125 = vrot.slane %v5112, %v5124
        %v5126 = vlaneseq
        %v5127 = vshrl.u32 %v5126, 7
        %v5128 = vsub.s32 3, %v5127
        %v5129 = vrot.slane %v5112, %v5128
        %v5130 = vlaneseq
        %v5131 = vshrl.u32 %v5130, 7
        %v5132 = vsub.s32 4, %v5131
        %v5133 = vrot.slane %v5112, %v5132
        %v5134 = vlaneseq
        %v5135 = vshrl.u32 %v5134, 7
        %v5136 = vsub.s32 5, %v5135
        %v5137 = vrot.slane %v5112, %v5136
        %v5138 = vlaneseq
        %v5139 = vshrl.u32 %v5138, 7
        %v5140 = vsub.s32 6, %v5139
        %v5141 = vrot.slane %v5112, %v5140
        %v5142 = vlaneseq
        %v5143 = vshrl.u32 %v5142, 7
        %v5144 = vsub.s32 7, %v5143
        %v5145 = vrot.slane %v5112, %v5144
        %v5282 = vunpack.c.l.b16 %v4984
        %v5283 = vunpack.c.h.b16 %v4984
        %v5284 = vunpack.c.l.b16 %v4985
        %v5285 = vunpack.c.h.b16 %v4985
        %v5286 = vunpack.c.l.b16 %v4986
        %v5287 = vunpack.c.h.b16 %v4986
        %v5288 = vunpack.c.l.b16 %v4987
        %v5289 = vunpack.c.h.b16 %v4987
        %v5290 = vunpack.c.l.b16 %v4988
        %v5291 = vunpack.c.h.b16 %v4988
        %v5292 = vunpack.c.l.b16 %v4989
        %v5293 = vunpack.c.h.b16 %v4989
        %v5294 = vunpack.c.l.b16 %v4990
        %v5295 = vunpack.c.h.b16 %v4990
        %v5296 = vunpack.c.l.b16 %v4991
        %v5297 = vunpack.c.h.b16 %v4991
        %v5298 = vunpack.c.l.b16 %v4992
        %v5299 = vunpack.c.h.b16 %v4992
        %v5300 = vunpack.c.l.b16 %v4993
        %v5301 = vunpack.c.h.b16 %v4993
        %v5302 = vunpack.c.l.b16 %v4994
        %v5303 = vunpack.c.h.b16 %v4994
        %v5304 = vunpack.c.l.b16 %v4995
        %v5305 = vunpack.c.h.b16 %v4995
        %v5306 = vunpack.c.l.b16 %v4996
        %v5307 = vunpack.c.h.b16 %v4996
        %v5308 = vunpack.c.l.b16 %v4997
        %v5309 = vunpack.c.h.b16 %v4997
        %v5310 = vunpack.c.l.b16 %v4998
        %v5311 = vunpack.c.h.b16 %v4998
        %v5312 = vunpack.c.l.b16 %v4999
        %v5313 = vunpack.c.h.b16 %v4999
        %v5314 = vunpack.c.l.b16 %v5000
        %v5315 = vunpack.c.h.b16 %v5000
        %v5316 = vunpack.c.l.b16 %v5001
        %v5317 = vunpack.c.h.b16 %v5001
        %v5318 = vunpack.c.l.b16 %v5002
        %v5319 = vunpack.c.h.b16 %v5002
        %v5320 = vunpack.c.l.b16 %v5003
        %v5321 = vunpack.c.h.b16 %v5003
        %v5322 = vunpack.c.l.b16 %v5004
        %v5323 = vunpack.c.h.b16 %v5004
        %v5324 = vunpack.c.l.b16 %v5005
        %v5325 = vunpack.c.h.b16 %v5005
        %v5326 = vunpack.c.l.b16 %v5006
        %v5327 = vunpack.c.h.b16 %v5006
        %v5328 = vunpack.c.l.b16 %v5007
        %v5329 = vunpack.c.h.b16 %v5007
        %v5330 = vunpack.c.l.b16 %v5008
        %v5331 = vunpack.c.h.b16 %v5008
        %v5332 = vunpack.c.l.b16 %v5009
        %v5333 = vunpack.c.h.b16 %v5009
        %v5334 = vunpack.c.l.b16 %v5010
        %v5335 = vunpack.c.h.b16 %v5010
        %v5336 = vunpack.c.l.b16 %v5011
        %v5337 = vunpack.c.h.b16 %v5011
        %v5338 = vunpack.c.l.b16 %v5012
        %v5339 = vunpack.c.h.b16 %v5012
        %v5340 = vunpack.c.l.b16 %v5013
        %v5341 = vunpack.c.h.b16 %v5013
        %v5342 = vunpack.c.l.b16 %v5014
        %v5343 = vunpack.c.h.b16 %v5014
        %v5344 = vunpack.c.l.b16 %v5015
        %v5345 = vunpack.c.h.b16 %v5015
        %v5346 = vunpack.c.l.b16 %v5016
        %v5347 = vunpack.c.h.b16 %v5016
        %v5348 = vunpack.c.l.b16 %v5017
        %v5349 = vunpack.c.h.b16 %v5017
        %v5350 = vunpack.c.l.b16 %v5018
        %v5351 = vunpack.c.h.b16 %v5018
        %v5352 = vunpack.c.l.b16 %v5019
        %v5353 = vunpack.c.h.b16 %v5019
        %v5354 = vunpack.c.l.b16 %v5020
        %v5355 = vunpack.c.h.b16 %v5020
        %v5356 = vunpack.c.l.b16 %v5021
        %v5357 = vunpack.c.h.b16 %v5021
        %v5358 = vunpack.c.l.b16 %v5022
        %v5359 = vunpack.c.h.b16 %v5022
        %v5360 = vunpack.c.l.b16 %v5023
        %v5361 = vunpack.c.h.b16 %v5023
        %v5362 = vunpack.c.l.b16 %v5024
        %v5363 = vunpack.c.h.b16 %v5024
        %v5364 = vunpack.c.l.b16 %v5025
        %v5365 = vunpack.c.h.b16 %v5025
        %v5366 = vunpack.c.l.b16 %v5026
        %v5367 = vunpack.c.h.b16 %v5026
        %v5368 = vunpack.c.l.b16 %v5027
        %v5369 = vunpack.c.h.b16 %v5027
        %v5370 = vunpack.c.l.b16 %v5028
        %v5371 = vunpack.c.h.b16 %v5028
        %v5372 = vunpack.c.l.b16 %v5029
        %v5373 = vunpack.c.h.b16 %v5029
        %v5374 = vunpack.c.l.b16 %v5030
        %v5375 = vunpack.c.h.b16 %v5030
        %v5376 = vunpack.c.l.b16 %v5031
        %v5377 = vunpack.c.h.b16 %v5031
        %v5378 = vunpack.c.l.b16 %v5032
        %v5379 = vunpack.c.h.b16 %v5032
        %v5380 = vunpack.c.l.b16 %v5033
        %v5381 = vunpack.c.h.b16 %v5033
        %v5382 = vunpack.c.l.b16 %v5034
        %v5383 = vunpack.c.h.b16 %v5034
        %v5384 = vunpack.c.l.b16 %v5035
        %v5385 = vunpack.c.h.b16 %v5035
        %v5386 = vunpack.c.l.b16 %v5036
        %v5387 = vunpack.c.h.b16 %v5036
        %v5388 = vunpack.c.l.b16 %v5037
        %v5389 = vunpack.c.h.b16 %v5037
        %v5390 = vunpack.c.l.b16 %v5038
        %v5391 = vunpack.c.h.b16 %v5038
        %v5392 = vunpack.c.l.b16 %v5039
        %v5393 = vunpack.c.h.b16 %v5039
        %v5394 = vunpack.c.l.b16 %v5040
        %v5395 = vunpack.c.h.b16 %v5040
        %v5396 = vunpack.c.l.b16 %v5041
        %v5397 = vunpack.c.h.b16 %v5041
        %v5398 = vunpack.c.l.b16 %v5042
        %v5399 = vunpack.c.h.b16 %v5042
        %v5400 = vunpack.c.l.b16 %v5043
        %v5401 = vunpack.c.h.b16 %v5043
        %v5402 = vunpack.c.l.b16 %v5044
        %v5403 = vunpack.c.h.b16 %v5044
        %v5404 = vunpack.c.l.b16 %v5045
        %v5405 = vunpack.c.h.b16 %v5045
        %v5406 = vunpack.c.l.b16 %v5046
        %v5407 = vunpack.c.h.b16 %v5046
        %v5408 = vunpack.c.l.b16 %v5047
        %v5409 = vunpack.c.h.b16 %v5047
        %v5410 = vunpack.c.l.b16 %v5048
        %v5411 = vunpack.c.h.b16 %v5048
        %v5412 = vunpack.c.l.b16 %v5049
        %v5413 = vunpack.c.h.b16 %v5049
        %v5414 = vunpack.c.l.b16 %v5050
        %v5415 = vunpack.c.h.b16 %v5050
        %v5416 = vunpack.c.l.b16 %v5051
        %v5417 = vunpack.c.h.b16 %v5051
        %v5418 = vunpack.c.l.b16 %v5052
        %v5419 = vunpack.c.h.b16 %v5052
        %v5420 = vunpack.c.l.b16 %v5053
        %v5421 = vunpack.c.h.b16 %v5053
        %v5422 = vunpack.c.l.b16 %v5054
        %v5423 = vunpack.c.h.b16 %v5054
        %v5424 = vunpack.c.l.b16 %v5055
        %v5425 = vunpack.c.h.b16 %v5055
        %v5426 = vunpack.c.l.b16 %v5056
        %v5427 = vunpack.c.h.b16 %v5056
        %v5428 = vunpack.c.l.b16 %v5057
        %v5429 = vunpack.c.h.b16 %v5057
        %v5430 = vunpack.c.l.b16 %v5058
        %v5431 = vunpack.c.h.b16 %v5058
        %v5432 = vunpack.c.l.b16 %v5059
        %v5433 = vunpack.c.h.b16 %v5059
        %v5434 = vunpack.c.l.b16 %v5060
        %v5435 = vunpack.c.h.b16 %v5060
        %v5436 = vunpack.c.l.b16 %v5061
        %v5437 = vunpack.c.h.b16 %v5061
        %v5438 = vunpack.c.l.b16 %v5062
        %v5439 = vunpack.c.h.b16 %v5062
        %v5440 = vunpack.c.l.b16 %v5063
        %v5441 = vunpack.c.h.b16 %v5063
        %v5442 = vunpack.c.l.b16 %v5064
        %v5443 = vunpack.c.h.b16 %v5064
        %v5444 = vunpack.c.l.b16 %v5065
        %v5445 = vunpack.c.h.b16 %v5065
        %v5446 = vunpack.c.l.b16 %v5066
        %v5447 = vunpack.c.h.b16 %v5066
        %v5448 = vunpack.c.l.b16 %v5067
        %v5449 = vunpack.c.h.b16 %v5067
        %v5450 = vunpack.c.l.b16 %v5068
        %v5451 = vunpack.c.h.b16 %v5068
        %v5452 = vunpack.c.l.b16 %v5069
        %v5453 = vunpack.c.h.b16 %v5069
        %v5454 = vunpack.c.l.b16 %v5070
        %v5455 = vunpack.c.h.b16 %v5070
        %v5456 = vunpack.c.l.b16 %v5071
        %v5457 = vunpack.c.h.b16 %v5071
        %v5458 = vunpack.c.l.b16 %v5072
        %v5459 = vunpack.c.h.b16 %v5072
        %v5460 = vunpack.c.l.b16 %v5073
        %v5461 = vunpack.c.h.b16 %v5073
        %v5462 = vunpack.c.l.b16 %v5074
        %v5463 = vunpack.c.h.b16 %v5074
        %v5464 = vunpack.c.l.b16 %v5075
        %v5465 = vunpack.c.h.b16 %v5075
        %v5466 = vunpack.c.l.b16 %v5076
        %v5467 = vunpack.c.h.b16 %v5076
        %v5468 = vunpack.c.l.b16 %v5077
        %v5469 = vunpack.c.h.b16 %v5077
        %v5470 = vunpack.c.l.b16 %v5078
        %v5471 = vunpack.c.h.b16 %v5078
        %v5472 = vunpack.c.l.b16 %v5079
        %v5473 = vunpack.c.h.b16 %v5079
        %v5474 = vunpack.c.l.b16 %v5080
        %v5475 = vunpack.c.h.b16 %v5080
        %v5476 = vunpack.c.l.b16 %v5081
        %v5477 = vunpack.c.h.b16 %v5081
        %v5478 = vunpack.c.l.b16 %v5082
        %v5479 = vunpack.c.h.b16 %v5082
        %v5480 = vunpack.c.l.b16 %v5083
        %v5481 = vunpack.c.h.b16 %v5083
        %v5482 = vunpack.c.l.b16 %v5084
        %v5483 = vunpack.c.h.b16 %v5084
        %v5484 = vunpack.c.l.b16 %v5085
        %v5485 = vunpack.c.h.b16 %v5085
        %v5486 = vunpack.c.l.b16 %v5086
        %v5487 = vunpack.c.h.b16 %v5086
        %v5488 = vunpack.c.l.b16 %v5087
        %v5489 = vunpack.c.h.b16 %v5087
        %v5490 = vunpack.c.l.b16 %v5088
        %v5491 = vunpack.c.h.b16 %v5088
        %v5492 = vunpack.c.l.b16 %v5089
        %v5493 = vunpack.c.h.b16 %v5089
        %v5494 = vunpack.c.l.b16 %v5090
        %v5495 = vunpack.c.h.b16 %v5090
        %v5496 = vunpack.c.l.b16 %v5091
        %v5497 = vunpack.c.h.b16 %v5091
        %v5498 = vunpack.c.l.b16 %v5092
        %v5499 = vunpack.c.h.b16 %v5092
        %v5500 = vunpack.c.l.b16 %v5093
        %v5501 = vunpack.c.h.b16 %v5093
        %v5502 = vunpack.c.l.b16 %v5094
        %v5503 = vunpack.c.h.b16 %v5094
        %v5504 = vunpack.c.l.b16 %v5095
        %v5505 = vunpack.c.h.b16 %v5095
        %v5506 = vunpack.c.l.b16 %v5096
        %v5507 = vunpack.c.h.b16 %v5096
        %v5508 = vunpack.c.l.b16 %v5097
        %v5509 = vunpack.c.h.b16 %v5097
        %v5510 = vunpack.c.l.b16 %v5098
        %v5511 = vunpack.c.h.b16 %v5098
        %v5512 = vunpack.c.l.b16 %v5099
        %v5513 = vunpack.c.h.b16 %v5099
        %v5514 = vunpack.c.l.b16 %v5100
        %v5515 = vunpack.c.h.b16 %v5100
        %v5516 = vunpack.c.l.b16 %v5101
        %v5517 = vunpack.c.h.b16 %v5101
        %v5518 = vunpack.c.l.b16 %v5102
        %v5519 = vunpack.c.h.b16 %v5102
        %v5520 = vunpack.c.l.b16 %v5103
        %v5521 = vunpack.c.h.b16 %v5103
        %v5522 = vunpack.c.l.b16 %v5104
        %v5523 = vunpack.c.h.b16 %v5104
        %v5524 = vunpack.c.l.b16 %v5105
        %v5525 = vunpack.c.h.b16 %v5105
        %v5526 = vunpack.c.l.b16 %v5106
        %v5527 = vunpack.c.h.b16 %v5106
        %v5528 = vunpack.c.l.b16 %v5107
        %v5529 = vunpack.c.h.b16 %v5107
        %v5530 = vunpack.c.l.b16 %v5108
        %v5531 = vunpack.c.h.b16 %v5108
        %v5532 = vunpack.c.l.b16 %v5109
        %v5533 = vunpack.c.h.b16 %v5109
        %v5534 = vunpack.c.l.b16 %v5110
        %v5535 = vunpack.c.h.b16 %v5110
        %v5536 = vunpack.c.l.b16 %v5111
        %v5537 = vunpack.c.h.b16 %v5111
        %v5538 = vpack.c.b16 %v5290, %v5282
        %v5539 = vpack.c.b16 %v5291, %v5283
        %v5540 = vpack.c.b16 %v5292, %v5284
        %v5541 = vpack.c.b16 %v5293, %v5285
        %v5542 = vpack.c.b16 %v5294, %v5286
        %v5543 = vpack.c.b16 %v5295, %v5287
        %v5544 = vpack.c.b16 %v5296, %v5288
        %v5545 = vpack.c.b16 %v5297, %v5289
        %v5546 = vpack.c.b16 %v5306, %v5298
        %v5547 = vpack.c.b16 %v5307, %v5299
        %v5548 = vpack.c.b16 %v5308, %v5300
        %v5549 = vpack.c.b16 %v5309, %v5301
        %v5550 = vpack.c.b16 %v5310, %v5302
        %v5551 = vpack.c.b16 %v5311, %v5303
        %v5552 = vpack.c.b16 %v5312, %v5304
        %v5553 = vpack.c.b16 %v5313, %v5305
        %v5554 = vpack.c.b16 %v5322, %v5314
        %v5555 = vpack.c.b16 %v5323, %v5315
        %v5556 = vpack.c.b16 %v5324, %v5316
        %v5557 = vpack.c.b16 %v5325, %v5317
        %v5558 = vpack.c.b16 %v5326, %v5318
        %v5559 = vpack.c.b16 %v5327, %v5319
        %v5560 = vpack.c.b16 %v5328, %v5320
        %v5561 = vpack.c.b16 %v5329, %v5321
        %v5562 = vpack.c.b16 %v5338, %v5330
        %v5563 = vpack.c.b16 %v5339, %v5331
        %v5564 = vpack.c.b16 %v5340, %v5332
        %v5565 = vpack.c.b16 %v5341, %v5333
        %v5566 = vpack.c.b16 %v5342, %v5334
        %v5567 = vpack.c.b16 %v5343, %v5335
        %v5568 = vpack.c.b16 %v5344, %v5336
        %v5569 = vpack.c.b16 %v5345, %v5337
        %v5570 = vpack.c.b16 %v5354, %v5346
        %v5571 = vpack.c.b16 %v5355, %v5347
        %v5572 = vpack.c.b16 %v5356, %v5348
        %v5573 = vpack.c.b16 %v5357, %v5349
        %v5574 = vpack.c.b16 %v5358, %v5350
        %v5575 = vpack.c.b16 %v5359, %v5351
        %v5576 = vpack.c.b16 %v5360, %v5352
        %v5577 = vpack.c.b16 %v5361, %v5353
        %v5578 = vpack.c.b16 %v5370, %v5362
        %v5579 = vpack.c.b16 %v5371, %v5363
        %v5580 = vpack.c.b16 %v5372, %v5364
        %v5581 = vpack.c.b16 %v5373, %v5365
        %v5582 = vpack.c.b16 %v5374, %v5366
        %v5583 = vpack.c.b16 %v5375, %v5367
        %v5584 = vpack.c.b16 %v5376, %v5368
        %v5585 = vpack.c.b16 %v5377, %v5369
        %v5586 = vpack.c.b16 %v5386, %v5378
        %v5587 = vpack.c.b16 %v5387, %v5379
        %v5588 = vpack.c.b16 %v5388, %v5380
        %v5589 = vpack.c.b16 %v5389, %v5381
        %v5590 = vpack.c.b16 %v5390, %v5382
        %v5591 = vpack.c.b16 %v5391, %v5383
        %v5592 = vpack.c.b16 %v5392, %v5384
        %v5593 = vpack.c.b16 %v5393, %v5385
        %v5594 = vpack.c.b16 %v5402, %v5394
        %v5595 = vpack.c.b16 %v5403, %v5395
        %v5596 = vpack.c.b16 %v5404, %v5396
        %v5597 = vpack.c.b16 %v5405, %v5397
        %v5598 = vpack.c.b16 %v5406, %v5398
        %v5599 = vpack.c.b16 %v5407, %v5399
        %v5600 = vpack.c.b16 %v5408, %v5400
        %v5601 = vpack.c.b16 %v5409, %v5401
        %v5602 = vpack.c.b16 %v5418, %v5410
        %v5603 = vpack.c.b16 %v5419, %v5411
        %v5604 = vpack.c.b16 %v5420, %v5412
        %v5605 = vpack.c.b16 %v5421, %v5413
        %v5606 = vpack.c.b16 %v5422, %v5414
        %v5607 = vpack.c.b16 %v5423, %v5415
        %v5608 = vpack.c.b16 %v5424, %v5416
        %v5609 = vpack.c.b16 %v5425, %v5417
        %v5610 = vpack.c.b16 %v5434, %v5426
        %v5611 = vpack.c.b16 %v5435, %v5427
        %v5612 = vpack.c.b16 %v5436, %v5428
        %v5613 = vpack.c.b16 %v5437, %v5429
        %v5614 = vpack.c.b16 %v5438, %v5430
        %v5615 = vpack.c.b16 %v5439, %v5431
        %v5616 = vpack.c.b16 %v5440, %v5432
        %v5617 = vpack.c.b16 %v5441, %v5433
        %v5618 = vpack.c.b16 %v5450, %v5442
        %v5619 = vpack.c.b16 %v5451, %v5443
        %v5620 = vpack.c.b16 %v5452, %v5444
        %v5621 = vpack.c.b16 %v5453, %v5445
        %v5622 = vpack.c.b16 %v5454, %v5446
        %v5623 = vpack.c.b16 %v5455, %v5447
        %v5624 = vpack.c.b16 %v5456, %v5448
        %v5625 = vpack.c.b16 %v5457, %v5449
        %v5626 = vpack.c.b16 %v5466, %v5458
        %v5627 = vpack.c.b16 %v5467, %v5459
        %v5628 = vpack.c.b16 %v5468, %v5460
        %v5629 = vpack.c.b16 %v5469, %v5461
        %v5630 = vpack.c.b16 %v5470, %v5462
        %v5631 = vpack.c.b16 %v5471, %v5463
        %v5632 = vpack.c.b16 %v5472, %v5464
        %v5633 = vpack.c.b16 %v5473, %v5465
        %v5634 = vpack.c.b16 %v5482, %v5474
        %v5635 = vpack.c.b16 %v5483, %v5475
        %v5636 = vpack.c.b16 %v5484, %v5476
        %v5637 = vpack.c.b16 %v5485, %v5477
        %v5638 = vpack.c.b16 %v5486, %v5478
        %v5639 = vpack.c.b16 %v5487, %v5479
        %v5640 = vpack.c.b16 %v5488, %v5480
        %v5641 = vpack.c.b16 %v5489, %v5481
        %v5642 = vpack.c.b16 %v5498, %v5490
        %v5643 = vpack.c.b16 %v5499, %v5491
        %v5644 = vpack.c.b16 %v5500, %v5492
        %v5645 = vpack.c.b16 %v5501, %v5493
        %v5646 = vpack.c.b16 %v5502, %v5494
        %v5647 = vpack.c.b16 %v5503, %v5495
        %v5648 = vpack.c.b16 %v5504, %v5496
        %v5649 = vpack.c.b16 %v5505, %v5497
        %v5650 = vpack.c.b16 %v5514, %v5506
        %v5651 = vpack.c.b16 %v5515, %v5507
        %v5652 = vpack.c.b16 %v5516, %v5508
        %v5653 = vpack.c.b16 %v5517, %v5509
        %v5654 = vpack.c.b16 %v5518, %v5510
        %v5655 = vpack.c.b16 %v5519, %v5511
        %v5656 = vpack.c.b16 %v5520, %v5512
        %v5657 = vpack.c.b16 %v5521, %v5513
        %v5658 = vpack.c.b16 %v5530, %v5522
        %v5659 = vpack.c.b16 %v5531, %v5523
        %v5660 = vpack.c.b16 %v5532, %v5524
        %v5661 = vpack.c.b16 %v5533, %v5525
        %v5662 = vpack.c.b16 %v5534, %v5526
        %v5663 = vpack.c.b16 %v5535, %v5527
        %v5664 = vpack.c.b16 %v5536, %v5528
        %v5665 = vpack.c.b16 %v5537, %v5529
        %5794 = vmatprep.subr.bf16.mxu0 %v5539
        %5795 = vmatpush1.bf16.msra.mxu0 %v5538
        %5796 = vmatprep.subr.bf16.mxu0 %v5547
        %5797 = vmatpush1.bf16.msra.mxu0 %v5546
        %5798 = vmatprep.subr.bf16.mxu0 %v5555
        %5799 = vmatpush1.bf16.msra.mxu0 %v5554
        %5800 = vmatprep.subr.bf16.mxu0 %v5563
        %5801 = vmatpush1.bf16.msra.mxu0 %v5562
        %5802 = vmatprep.subr.bf16.mxu0 %v5571
        %5803 = vmatpush1.bf16.msra.mxu0 %v5570
        %5804 = vmatprep.subr.bf16.mxu0 %v5579
        %5805 = vmatpush1.bf16.msra.mxu0 %v5578
        %5806 = vmatprep.subr.bf16.mxu0 %v5587
        %5807 = vmatpush1.bf16.msra.mxu0 %v5586
        %5808 = vmatprep.subr.bf16.mxu0 %v5595
        %5809 = vmatpush1.bf16.msra.mxu0 %v5594
        %5810 = vmatprep.subr.bf16.mxu0 %v5603
        %5811 = vmatpush1.bf16.msra.mxu0 %v5602
        %5812 = vmatprep.subr.bf16.mxu0 %v5611
        %5813 = vmatpush1.bf16.msra.mxu0 %v5610
        %5814 = vmatprep.subr.bf16.mxu0 %v5619
        %5815 = vmatpush1.bf16.msra.mxu0 %v5618
        %5816 = vmatprep.subr.bf16.mxu0 %v5627
        %5817 = vmatpush1.bf16.msra.mxu0 %v5626
        %5818 = vmatprep.subr.bf16.mxu0 %v5635
        %5819 = vmatpush1.bf16.msra.mxu0 %v5634
        %5820 = vmatprep.subr.bf16.mxu0 %v5643
        %5821 = vmatpush1.bf16.msra.mxu0 %v5642
        %5822 = vmatprep.subr.bf16.mxu0 %v5651
        %5823 = vmatpush1.bf16.msra.mxu0 %v5650
        %5824 = vmatprep.subr.bf16.mxu0 %v5659
        %5825 = vmatpush1.bf16.msra.mxu0 %v5658
        %5826 = vmatprep.mubr.bf16.mxu0 %v4977
        %5827 = vmatmul.mubr.bf16.gmra.mrb[0].mxu0 %v4976
        %v5828 = vpop.f32.mrb[0].mxu0
        %v5829 = vadd.f32 %v5117, %v5828
        %v5830 = vpop.f32.mrb[0].mxu0
        %v5831 = vadd.f32 %v5121, %v5830
        %v5832 = vpop.f32.mrb[0].mxu0
        %v5833 = vadd.f32 %v5117, %v5832
        %v5834 = vpop.f32.mrb[0].mxu0
        %v5835 = vadd.f32 %v5121, %v5834
        %5836 = vmatprep.mubr.bf16.mxu0 %v4979
        %5837 = vmatmul.mubr.bf16.gmra.mrb[0].mxu0 %v4978
        %v5838 = vpop.f32.mrb[0].mxu0
        %v5839 = vadd.f32 %v5117, %v5838
        %v5840 = vpop.f32.mrb[0].mxu0
        %v5841 = vadd.f32 %v5121, %v5840
        %v5842 = vpop.f32.mrb[0].mxu0
        %v5843 = vadd.f32 %v5117, %v5842
        %v5844 = vpop.f32.mrb[0].mxu0
        %v5845 = vadd.f32 %v5121, %v5844
        %5846 = vmatprep.mubr.bf16.mxu0 %v4981
        %5847 = vmatmul.mubr.bf16.gmra.mrb[0].mxu0 %v4980
        %v5848 = vpop.f32.mrb[0].mxu0
        %v5849 = vadd.f32 %v5117, %v5848
        %v5850 = vpop.f32.mrb[0].mxu0
        %v5851 = vadd.f32 %v5121, %v5850
        %v5852 = vpop.f32.mrb[0].mxu0
        %v5853 = vadd.f32 %v5117, %v5852
        %v5854 = vpop.f32.mrb[0].mxu0
        %v5855 = vadd.f32 %v5121, %v5854
        %5856 = vmatprep.mubr.bf16.mxu0 %v4983
        %5857 = vmatmul.mubr.bf16.gmra.mrb[0].mxu0 %v4982
        %v5858 = vpop.f32.mrb[0].mxu0
        %v5859 = vadd.f32 %v5117, %v5858
        %v5860 = vpop.f32.mrb[0].mxu0
        %v5861 = vadd.f32 %v5121, %v5860
        %v5862 = vpop.f32.mrb[0].mxu0
        %v5863 = vadd.f32 %v5117, %v5862
        %v5864 = vpop.f32.mrb[0].mxu0
        %v5865 = vadd.f32 %v5121, %v5864
        %5866 = vdwg.mxu0
        %5867 = vmatprep.subr.bf16.mxu0 %v5541
        %5868 = vmatpush1.bf16.msra.mxu0 %v5540
        %5869 = vmatprep.subr.bf16.mxu0 %v5549
        %5870 = vmatpush1.bf16.msra.mxu0 %v5548
        %5871 = vmatprep.subr.bf16.mxu0 %v5557
        %5872 = vmatpush1.bf16.msra.mxu0 %v5556
        %5873 = vmatprep.subr.bf16.mxu0 %v5565
        %5874 = vmatpush1.bf16.msra.mxu0 %v5564
        %5875 = vmatprep.subr.bf16.mxu0 %v5573
        %5876 = vmatpush1.bf16.msra.mxu0 %v5572
        %5877 = vmatprep.subr.bf16.mxu0 %v5581
        %5878 = vmatpush1.bf16.msra.mxu0 %v5580
        %5879 = vmatprep.subr.bf16.mxu0 %v5589
        %5880 = vmatpush1.bf16.msra.mxu0 %v5588
        %5881 = vmatprep.subr.bf16.mxu0 %v5597
        %5882 = vmatpush1.bf16.msra.mxu0 %v5596
        %5883 = vmatprep.subr.bf16.mxu0 %v5605
        %5884 = vmatpush1.bf16.msra.mxu0 %v5604
        %5885 = vmatprep.subr.bf16.mxu0 %v5613
        %5886 = vmatpush1.bf16.msra.mxu0 %v5612
        %5887 = vmatprep.subr.bf16.mxu0 %v5621
        %5888 = vmatpush1.bf16.msra.mxu0 %v5620
        %5889 = vmatprep.subr.bf16.mxu0 %v5629
        %5890 = vmatpush1.bf16.msra.mxu0 %v5628
        %5891 = vmatprep.subr.bf16.mxu0 %v5637
        %5892 = vmatpush1.bf16.msra.mxu0 %v5636
        %5893 = vmatprep.subr.bf16.mxu0 %v5645
        %5894 = vmatpush1.bf16.msra.mxu0 %v5644
        %5895 = vmatprep.subr.bf16.mxu0 %v5653
        %5896 = vmatpush1.bf16.msra.mxu0 %v5652
        %5897 = vmatprep.subr.bf16.mxu0 %v5661
        %5898 = vmatpush1.bf16.msra.mxu0 %v5660
        %5899 = vmatprep.mubr.bf16.mxu0 %v4977
        %5900 = vmatmul.mubr.bf16.gmra.mrb[0].mxu0 %v4976
        %v5901 = vpop.f32.mrb[0].mxu0
        %v5902 = vadd.f32 %v5125, %v5901
        %v5903 = vpop.f32.mrb[0].mxu0
        %v5904 = vadd.f32 %v5129, %v5903
        %v5905 = vpop.f32.mrb[0].mxu0
        %v5906 = vadd.f32 %v5125, %v5905
        %v5907 = vpop.f32.mrb[0].mxu0
        %v5908 = vadd.f32 %v5129, %v5907
        %5909 = vmatprep.mubr.bf16.mxu0 %v4979
        %5910 = vmatmul.mubr.bf16.gmra.mrb[0].mxu0 %v4978
        %v5911 = vpop.f32.mrb[0].mxu0
        %v5912 = vadd.f32 %v5125, %v5911
        %v5913 = vpop.f32.mrb[0].mxu0
        %v5914 = vadd.f32 %v5129, %v5913
        %v5915 = vpop.f32.mrb[0].mxu0
        %v5916 = vadd.f32 %v5125, %v5915
        %v5917 = vpop.f32.mrb[0].mxu0
        %v5918 = vadd.f32 %v5129, %v5917
        %5919 = vmatprep.mubr.bf16.mxu0 %v4981
        %5920 = vmatmul.mubr.bf16.gmra.mrb[0].mxu0 %v4980
        %v5921 = vpop.f32.mrb[0].mxu0
        %v5922 = vadd.f32 %v5125, %v5921
        %v5923 = vpop.f32.mrb[0].mxu0
        %v5924 = vadd.f32 %v5129, %v5923
        %v5925 = vpop.f32.mrb[0].mxu0
        %v5926 = vadd.f32 %v5125, %v5925
        %v5927 = vpop.f32.mrb[0].mxu0
        %v5928 = vadd.f32 %v5129, %v5927
        %5929 = vmatprep.mubr.bf16.mxu0 %v4983
        %5930 = vmatmul.mubr.bf16.gmra.mrb[0].mxu0 %v4982
        %v5931 = vpop.f32.mrb[0].mxu0
        %v5932 = vadd.f32 %v5125, %v5931
        %v5933 = vpop.f32.mrb[0].mxu0
        %v5934 = vadd.f32 %v5129, %v5933
        %v5935 = vpop.f32.mrb[0].mxu0
        %v5936 = vadd.f32 %v5125, %v5935
        %v5937 = vpop.f32.mrb[0].mxu0
        %v5938 = vadd.f32 %v5129, %v5937
        %5939 = vdwg.mxu0
        %5940 = vmatprep.subr.bf16.mxu0 %v5543
        %5941 = vmatpush1.bf16.msra.mxu0 %v5542
        %5942 = vmatprep.subr.bf16.mxu0 %v5551
        %5943 = vmatpush1.bf16.msra.mxu0 %v5550
        %5944 = vmatprep.subr.bf16.mxu0 %v5559
        %5945 = vmatpush1.bf16.msra.mxu0 %v5558
        %5946 = vmatprep.subr.bf16.mxu0 %v5567
        %5947 = vmatpush1.bf16.msra.mxu0 %v5566
        %5948 = vmatprep.subr.bf16.mxu0 %v5575
        %5949 = vmatpush1.bf16.msra.mxu0 %v5574
        %5950 = vmatprep.subr.bf16.mxu0 %v5583
        %5951 = vmatpush1.bf16.msra.mxu0 %v5582
        %5952 = vmatprep.subr.bf16.mxu0 %v5591
        %5953 = vmatpush1.bf16.msra.mxu0 %v5590
        %5954 = vmatprep.subr.bf16.mxu0 %v5599
        %5955 = vmatpush1.bf16.msra.mxu0 %v5598
        %5956 = vmatprep.subr.bf16.mxu0 %v5607
        %5957 = vmatpush1.bf16.msra.mxu0 %v5606
        %5958 = vmatprep.subr.bf16.mxu0 %v5615
        %5959 = vmatpush1.bf16.msra.mxu0 %v5614
        %5960 = vmatprep.subr.bf16.mxu0 %v5623
        %5961 = vmatpush1.bf16.msra.mxu0 %v5622
        %5962 = vmatprep.subr.bf16.mxu0 %v5631
        %5963 = vmatpush1.bf16.msra.mxu0 %v5630
        %5964 = vmatprep.subr.bf16.mxu0 %v5639
        %5965 = vmatpush1.bf16.msra.mxu0 %v5638
        %5966 = vmatprep.subr.bf16.mxu0 %v5647
        %5967 = vmatpush1.bf16.msra.mxu0 %v5646
        %5968 = vmatprep.subr.bf16.mxu0 %v5655
        %5969 = vmatpush1.bf16.msra.mxu0 %v5654
        %5970 = vmatprep.subr.bf16.mxu0 %v5663
        %5971 = vmatpush1.bf16.msra.mxu0 %v5662
        %5972 = vmatprep.mubr.bf16.mxu0 %v4977
        %5973 = vmatmul.mubr.bf16.gmra.mrb[0].mxu0 %v4976
        %v5974 = vpop.f32.mrb[0].mxu0
        %v5975 = vadd.f32 %v5133, %v5974
        %v5976 = vpop.f32.mrb[0].mxu0
        %v5977 = vadd.f32 %v5137, %v5976
        %v5978 = vpop.f32.mrb[0].mxu0
        %v5979 = vadd.f32 %v5133, %v5978
        %v5980 = vpop.f32.mrb[0].mxu0
        %v5981 = vadd.f32 %v5137, %v5980
        %5982 = vmatprep.mubr.bf16.mxu0 %v4979
        %5983 = vmatmul.mubr.bf16.gmra.mrb[0].mxu0 %v4978
        %v5984 = vpop.f32.mrb[0].mxu0
        %v5985 = vadd.f32 %v5133, %v5984
        %v5986 = vpop.f32.mrb[0].mxu0
        %v5987 = vadd.f32 %v5137, %v5986
        %v5988 = vpop.f32.mrb[0].mxu0
        %v5989 = vadd.f32 %v5133, %v5988
        %v5990 = vpop.f32.mrb[0].mxu0
        %v5991 = vadd.f32 %v5137, %v5990
        %5992 = vmatprep.mubr.bf16.mxu0 %v4981
        %5993 = vmatmul.mubr.bf16.gmra.mrb[0].mxu0 %v4980
        %v5994 = vpop.f32.mrb[0].mxu0
        %v5995 = vadd.f32 %v5133, %v5994
        %v5996 = vpop.f32.mrb[0].mxu0
        %v5997 = vadd.f32 %v5137, %v5996
        %v5998 = vpop.f32.mrb[0].mxu0
        %v5999 = vadd.f32 %v5133, %v5998
        %v6000 = vpop.f32.mrb[0].mxu0
        %v6001 = vadd.f32 %v5137, %v6000
        %6002 = vmatprep.mubr.bf16.mxu0 %v4983
        %6003 = vmatmul.mubr.bf16.gmra.mrb[0].mxu0 %v4982
        %v6004 = vpop.f32.mrb[0].mxu0
        %v6005 = vadd.f32 %v5133, %v6004
        %v6006 = vpop.f32.mrb[0].mxu0
        %v6007 = vadd.f32 %v5137, %v6006
        %v6008 = vpop.f32.mrb[0].mxu0
        %v6009 = vadd.f32 %v5133, %v6008
        %v6010 = vpop.f32.mrb[0].mxu0
        %v6011 = vadd.f32 %v5137, %v6010
        %6012 = vdwg.mxu0
        %6013 = vmatprep.subr.bf16.mxu0 %v5545
        %6014 = vmatpush1.bf16.msra.mxu0 %v5544
        %6015 = vmatprep.subr.bf16.mxu0 %v5553
        %6016 = vmatpush1.bf16.msra.mxu0 %v5552
        %6017 = vmatprep.subr.bf16.mxu0 %v5561
        %6018 = vmatpush1.bf16.msra.mxu0 %v5560
        %6019 = vmatprep.subr.bf16.mxu0 %v5569
        %6020 = vmatpush1.bf16.msra.mxu0 %v5568
        %6021 = vmatprep.subr.bf16.mxu0 %v5577
        %6022 = vmatpush1.bf16.msra.mxu0 %v5576
        %6023 = vmatprep.subr.bf16.mxu0 %v5585
        %6024 = vmatpush1.bf16.msra.mxu0 %v5584
        %6025 = vmatprep.subr.bf16.mxu0 %v5593
        %6026 = vmatpush1.bf16.msra.mxu0 %v5592
        %6027 = vmatprep.subr.bf16.mxu0 %v5601
        %6028 = vmatpush1.bf16.msra.mxu0 %v5600
        %6029 = vmatprep.subr.bf16.mxu0 %v5609
        %6030 = vmatpush1.bf16.msra.mxu0 %v5608
        %6031 = vmatprep.subr.bf16.mxu0 %v5617
        %6032 = vmatpush1.bf16.msra.mxu0 %v5616
        %6033 = vmatprep.subr.bf16.mxu0 %v5625
        %6034 = vmatpush1.bf16.msra.mxu0 %v5624
        %6035 = vmatprep.subr.bf16.mxu0 %v5633
        %6036 = vmatpush1.bf16.msra.mxu0 %v5632
        %6037 = vmatprep.subr.bf16.mxu0 %v5641
        %6038 = vmatpush1.bf16.msra.mxu0 %v5640
        %6039 = vmatprep.subr.bf16.mxu0 %v5649
        %6040 = vmatpush1.bf16.msra.mxu0 %v5648
        %6041 = vmatprep.subr.bf16.mxu0 %v5657
        %6042 = vmatpush1.bf16.msra.mxu0 %v5656
        %6043 = vmatprep.subr.bf16.mxu0 %v5665
        %6044 = vmatpush1.bf16.msra.mxu0 %v5664
        %6045 = vmatprep.mubr.bf16.mxu0 %v4977
        %6046 = vmatmul.mubr.bf16.gmra.mrb[0].mxu0 %v4976
        %v6047 = vpop.f32.mrb[0].mxu0
        %v6048 = vadd.f32 %v5141, %v6047
        %v6049 = vpop.f32.mrb[0].mxu0
        %v6050 = vadd.f32 %v5145, %v6049
        %v6051 = vpop.f32.mrb[0].mxu0
        %v6052 = vadd.f32 %v5141, %v6051
        %v6053 = vpop.f32.mrb[0].mxu0
        %v6054 = vadd.f32 %v5145, %v6053
        %6055 = vmatprep.mubr.bf16.mxu0 %v4979
        %6056 = vmatmul.mubr.bf16.gmra.mrb[0].mxu0 %v4978
        %v6057 = vpop.f32.mrb[0].mxu0
        %v6058 = vadd.f32 %v5141, %v6057
        %v6059 = vpop.f32.mrb[0].mxu0
        %v6060 = vadd.f32 %v5145, %v6059
        %v6061 = vpop.f32.mrb[0].mxu0
        %v6062 = vadd.f32 %v5141, %v6061
        %v6063 = vpop.f32.mrb[0].mxu0
        %v6064 = vadd.f32 %v5145, %v6063
        %6065 = vmatprep.mubr.bf16.mxu0 %v4981
        %6066 = vmatmul.mubr.bf16.gmra.mrb[0].mxu0 %v4980
        %v6067 = vpop.f32.mrb[0].mxu0
        %v6068 = vadd.f32 %v5141, %v6067
        %v6069 = vpop.f32.mrb[0].mxu0
        %v6070 = vadd.f32 %v5145, %v6069
        %v6071 = vpop.f32.mrb[0].mxu0
        %v6072 = vadd.f32 %v5141, %v6071
        %v6073 = vpop.f32.mrb[0].mxu0
        %v6074 = vadd.f32 %v5145, %v6073
        %6075 = vmatprep.mubr.bf16.mxu0 %v4983
        %6076 = vmatmul.mubr.bf16.gmra.mrb[0].mxu0 %v4982
        %v6077 = vpop.f32.mrb[0].mxu0
        %v6078 = vadd.f32 %v5141, %v6077
        %v6079 = vpop.f32.mrb[0].mxu0
        %v6080 = vadd.f32 %v5145, %v6079
        %v6081 = vpop.f32.mrb[0].mxu0
        %v6082 = vadd.f32 %v5141, %v6081
        %v6083 = vpop.f32.mrb[0].mxu0
        %v6084 = vadd.f32 %v5145, %v6083
        %6085 = vdwg.mxu0
        %v6086 = vmul.f32 %v5829, -1.702
        %v6087 = vmul.f32 %v5831, -1.702
        %v6088 = vmul.f32 %v5902, -1.702
        %v6089 = vmul.f32 %v5904, -1.702
        %v6090 = vmul.f32 %v5975, -1.702
        %v6091 = vmul.f32 %v5977, -1.702
        %v6092 = vmul.f32 %v6048, -1.702
        %v6093 = vmul.f32 %v6050, -1.702
        %v6094 = vmul.f32 %v5833, -1.702
        %v6095 = vmul.f32 %v5835, -1.702
        %v6096 = vmul.f32 %v5906, -1.702
        %v6097 = vmul.f32 %v5908, -1.702
        %v6098 = vmul.f32 %v5979, -1.702
        %v6099 = vmul.f32 %v5981, -1.702
        %v6100 = vmul.f32 %v6052, -1.702
        %v6101 = vmul.f32 %v6054, -1.702
        %v6102 = vmul.f32 %v5839, -1.702
        %v6103 = vmul.f32 %v5841, -1.702
        %v6104 = vmul.f32 %v5912, -1.702
        %v6105 = vmul.f32 %v5914, -1.702
        %v6106 = vmul.f32 %v5985, -1.702
        %v6107 = vmul.f32 %v5987, -1.702
        %v6108 = vmul.f32 %v6058, -1.702
        %v6109 = vmul.f32 %v6060, -1.702
        %v6110 = vmul.f32 %v5843, -1.702
        %v6111 = vmul.f32 %v5845, -1.702
        %v6112 = vmul.f32 %v5916, -1.702
        %v6113 = vmul.f32 %v5918, -1.702
        %v6114 = vmul.f32 %v5989, -1.702
        %v6115 = vmul.f32 %v5991, -1.702
        %v6116 = vmul.f32 %v6062, -1.702
        %v6117 = vmul.f32 %v6064, -1.702
        %v6118 = vmul.f32 %v5849, -1.702
        %v6119 = vmul.f32 %v5851, -1.702
        %v6120 = vmul.f32 %v5922, -1.702
        %v6121 = vmul.f32 %v5924, -1.702
        %v6122 = vmul.f32 %v5995, -1.702
        %v6123 = vmul.f32 %v5997, -1.702
        %v6124 = vmul.f32 %v6068, -1.702
        %v6125 = vmul.f32 %v6070, -1.702
        %v6126 = vmul.f32 %v5853, -1.702
        %v6127 = vmul.f32 %v5855, -1.702
        %v6128 = vmul.f32 %v5926, -1.702
        %v6129 = vmul.f32 %v5928, -1.702
        %v6130 = vmul.f32 %v5999, -1.702
        %v6131 = vmul.f32 %v6001, -1.702
        %v6132 = vmul.f32 %v6072, -1.702
        %v6133 = vmul.f32 %v6074, -1.702
        %v6134 = vmul.f32 %v5859, -1.702
        %v6135 = vmul.f32 %v5861, -1.702
        %v6136 = vmul.f32 %v5932, -1.702
        %v6137 = vmul.f32 %v5934, -1.702
        %v6138 = vmul.f32 %v6005, -1.702
        %v6139 = vmul.f32 %v6007, -1.702
        %v6140 = vmul.f32 %v6078, -1.702
        %v6141 = vmul.f32 %v6080, -1.702
        %v6142 = vmul.f32 %v5863, -1.702
        %v6143 = vmul.f32 %v5865, -1.702
        %v6144 = vmul.f32 %v5936, -1.702
        %v6145 = vmul.f32 %v5938, -1.702
        %v6146 = vmul.f32 %v6009, -1.702
        %v6147 = vmul.f32 %v6011, -1.702
        %v6148 = vmul.f32 %v6082, -1.702
        %v6149 = vmul.f32 %v6084, -1.702
        %v6150 = vmul.f32 %v6086, 1.442695
        %v6151 = vpow.pop %v6150
        %v6152 = vmul.f32 %v6087, 1.442695
        %v6153 = vpow.pop %v6152
        %v6154 = vmul.f32 %v6088, 1.442695
        %v6155 = vpow.pop %v6154
        %v6156 = vmul.f32 %v6089, 1.442695
        %v6157 = vpow.pop %v6156
        %v6158 = vmul.f32 %v6090, 1.442695
        %v6159 = vpow.pop %v6158
        %v6160 = vmul.f32 %v6091, 1.442695
        %v6161 = vpow.pop %v6160
        %v6162 = vmul.f32 %v6092, 1.442695
        %v6163 = vpow.pop %v6162
        %v6164 = vmul.f32 %v6093, 1.442695
        %v6165 = vpow.pop %v6164
        %v6166 = vmul.f32 %v6094, 1.442695
        %v6167 = vpow.pop %v6166
        %v6168 = vmul.f32 %v6095, 1.442695
        %v6169 = vpow.pop %v6168
        %v6170 = vmul.f32 %v6096, 1.442695
        %v6171 = vpow.pop %v6170
        %v6172 = vmul.f32 %v6097, 1.442695
        %v6173 = vpow.pop %v6172
        %v6174 = vmul.f32 %v6098, 1.442695
        %v6175 = vpow.pop %v6174
        %v6176 = vmul.f32 %v6099, 1.442695
        %v6177 = vpow.pop %v6176
        %v6178 = vmul.f32 %v6100, 1.442695
        %v6179 = vpow.pop %v6178
        %v6180 = vmul.f32 %v6101, 1.442695
        %v6181 = vpow.pop %v6180
        %v6182 = vmul.f32 %v6102, 1.442695
        %v6183 = vpow.pop %v6182
        %v6184 = vmul.f32 %v6103, 1.442695
        %v6185 = vpow.pop %v6184
        %v6186 = vmul.f32 %v6104, 1.442695
        %v6187 = vpow.pop %v6186
        %v6188 = vmul.f32 %v6105, 1.442695
        %v6189 = vpow.pop %v6188
        %v6190 = vmul.f32 %v6106, 1.442695
        %v6191 = vpow.pop %v6190
        %v6192 = vmul.f32 %v6107, 1.442695
        %v6193 = vpow.pop %v6192
        %v6194 = vmul.f32 %v6108, 1.442695
        %v6195 = vpow.pop %v6194
        %v6196 = vmul.f32 %v6109, 1.442695
        %v6197 = vpow.pop %v6196
        %v6198 = vmul.f32 %v6110, 1.442695
        %v6199 = vpow.pop %v6198
        %v6200 = vmul.f32 %v6111, 1.442695
        %v6201 = vpow.pop %v6200
        %v6202 = vmul.f32 %v6112, 1.442695
        %v6203 = vpow.pop %v6202
        %v6204 = vmul.f32 %v6113, 1.442695
        %v6205 = vpow.pop %v6204
        %v6206 = vmul.f32 %v6114, 1.442695
        %v6207 = vpow.pop %v6206
        %v6208 = vmul.f32 %v6115, 1.442695
        %v6209 = vpow.pop %v6208
        %v6210 = vmul.f32 %v6116, 1.442695
        %v6211 = vpow.pop %v6210
        %v6212 = vmul.f32 %v6117, 1.442695
        %v6213 = vpow.pop %v6212
        %v6214 = vmul.f32 %v6118, 1.442695
        %v6215 = vpow.pop %v6214
        %v6216 = vmul.f32 %v6119, 1.442695
        %v6217 = vpow.pop %v6216
        %v6218 = vmul.f32 %v6120, 1.442695
        %v6219 = vpow.pop %v6218
        %v6220 = vmul.f32 %v6121, 1.442695
        %v6221 = vpow.pop %v6220
        %v6222 = vmul.f32 %v6122, 1.442695
        %v6223 = vpow.pop %v6222
        %v6224 = vmul.f32 %v6123, 1.442695
        %v6225 = vpow.pop %v6224
        %v6226 = vmul.f32 %v6124, 1.442695
        %v6227 = vpow.pop %v6226
        %v6228 = vmul.f32 %v6125, 1.442695
        %v6229 = vpow.pop %v6228
        %v6230 = vmul.f32 %v6126, 1.442695
        %v6231 = vpow.pop %v6230
        %v6232 = vmul.f32 %v6127, 1.442695
        %v6233 = vpow.pop %v6232
        %v6234 = vmul.f32 %v6128, 1.442695
        %v6235 = vpow.pop %v6234
        %v6236 = vmul.f32 %v6129, 1.442695
        %v6237 = vpow.pop %v6236
        %v6238 = vmul.f32 %v6130, 1.442695
        %v6239 = vpow.pop %v6238
        %v6240 = vmul.f32 %v6131, 1.442695
        %v6241 = vpow.pop %v6240
        %v6242 = vmul.f32 %v6132, 1.442695
        %v6243 = vpow.pop %v6242
        %v6244 = vmul.f32 %v6133, 1.442695
        %v6245 = vpow.pop %v6244
        %v6246 = vmul.f32 %v6134, 1.442695
        %v6247 = vpow.pop %v6246
        %v6248 = vmul.f32 %v6135, 1.442695
        %v6249 = vpow.pop %v6248
        %v6250 = vmul.f32 %v6136, 1.442695
        %v6251 = vpow.pop %v6250
        %v6252 = vmul.f32 %v6137, 1.442695
        %v6253 = vpow.pop %v6252
        %v6254 = vmul.f32 %v6138, 1.442695
        %v6255 = vpow.pop %v6254
        %v6256 = vmul.f32 %v6139, 1.442695
        %v6257 = vpow.pop %v6256
        %v6258 = vmul.f32 %v6140, 1.442695
        %v6259 = vpow.pop %v6258
        %v6260 = vmul.f32 %v6141, 1.442695
        %v6261 = vpow.pop %v6260
        %v6262 = vmul.f32 %v6142, 1.442695
        %v6263 = vpow.pop %v6262
        %v6264 = vmul.f32 %v6143, 1.442695
        %v6265 = vpow.pop %v6264
        %v6266 = vmul.f32 %v6144, 1.442695
        %v6267 = vpow.pop %v6266
        %v6268 = vmul.f32 %v6145, 1.442695
        %v6269 = vpow.pop %v6268
        %v6270 = vmul.f32 %v6146, 1.442695
        %v6271 = vpow.pop %v6270
        %v6272 = vmul.f32 %v6147, 1.442695
        %v6273 = vpow.pop %v6272
        %v6274 = vmul.f32 %v6148, 1.442695
        %v6275 = vpow.pop %v6274
        %v6276 = vmul.f32 %v6149, 1.442695
        %v6277 = vpow.pop %v6276
        %v6278 = vadd.f32 %v6151, 1.0
        %v6279 = vadd.f32 %v6153, 1.0
        %v6280 = vadd.f32 %v6155, 1.0
        %v6281 = vadd.f32 %v6157, 1.0
        %v6282 = vadd.f32 %v6159, 1.0
        %v6283 = vadd.f32 %v6161, 1.0
        %v6284 = vadd.f32 %v6163, 1.0
        %v6285 = vadd.f32 %v6165, 1.0
        %v6286 = vadd.f32 %v6167, 1.0
        %v6287 = vadd.f32 %v6169, 1.0
        %v6288 = vadd.f32 %v6171, 1.0
        %v6289 = vadd.f32 %v6173, 1.0
        %v6290 = vadd.f32 %v6175, 1.0
        %v6291 = vadd.f32 %v6177, 1.0
        %v6292 = vadd.f32 %v6179, 1.0
        %v6293 = vadd.f32 %v6181, 1.0
        %v6294 = vadd.f32 %v6183, 1.0
        %v6295 = vadd.f32 %v6185, 1.0
        %v6296 = vadd.f32 %v6187, 1.0
        %v6297 = vadd.f32 %v6189, 1.0
        %v6298 = vadd.f32 %v6191, 1.0
        %v6299 = vadd.f32 %v6193, 1.0
        %v6300 = vadd.f32 %v6195, 1.0
        %v6301 = vadd.f32 %v6197, 1.0
        %v6302 = vadd.f32 %v6199, 1.0
        %v6303 = vadd.f32 %v6201, 1.0
        %v6304 = vadd.f32 %v6203, 1.0
        %v6305 = vadd.f32 %v6205, 1.0
        %v6306 = vadd.f32 %v6207, 1.0
        %v6307 = vadd.f32 %v6209, 1.0
        %v6308 = vadd.f32 %v6211, 1.0
        %v6309 = vadd.f32 %v6213, 1.0
        %v6310 = vadd.f32 %v6215, 1.0
        %v6311 = vadd.f32 %v6217, 1.0
        %v6312 = vadd.f32 %v6219, 1.0
        %v6313 = vadd.f32 %v6221, 1.0
        %v6314 = vadd.f32 %v6223, 1.0
        %v6315 = vadd.f32 %v6225, 1.0
        %v6316 = vadd.f32 %v6227, 1.0
        %v6317 = vadd.f32 %v6229, 1.0
        %v6318 = vadd.f32 %v6231, 1.0
        %v6319 = vadd.f32 %v6233, 1.0
        %v6320 = vadd.f32 %v6235, 1.0
        %v6321 = vadd.f32 %v6237, 1.0
        %v6322 = vadd.f32 %v6239, 1.0
        %v6323 = vadd.f32 %v6241, 1.0
        %v6324 = vadd.f32 %v6243, 1.0
        %v6325 = vadd.f32 %v6245, 1.0
        %v6326 = vadd.f32 %v6247, 1.0
        %v6327 = vadd.f32 %v6249, 1.0
        %v6328 = vadd.f32 %v6251, 1.0
        %v6329 = vadd.f32 %v6253, 1.0
        %v6330 = vadd.f32 %v6255, 1.0
        %v6331 = vadd.f32 %v6257, 1.0
        %v6332 = vadd.f32 %v6259, 1.0
        %v6333 = vadd.f32 %v6261, 1.0
        %v6334 = vadd.f32 %v6263, 1.0
        %v6335 = vadd.f32 %v6265, 1.0
        %v6336 = vadd.f32 %v6267, 1.0
        %v6337 = vadd.f32 %v6269, 1.0
        %v6338 = vadd.f32 %v6271, 1.0
        %v6339 = vadd.f32 %v6273, 1.0
        %v6340 = vadd.f32 %v6275, 1.0
        %v6341 = vadd.f32 %v6277, 1.0
        %v6342 = vrcp.pop %v6278
        %v6343 = vmul.f32 1.0, %v6342
        %v6344 = vrcp.pop %v6279
        %v6345 = vmul.f32 1.0, %v6344
        %v6346 = vrcp.pop %v6280
        %v6347 = vmul.f32 1.0, %v6346
        %v6348 = vrcp.pop %v6281
        %v6349 = vmul.f32 1.0, %v6348
        %v6350 = vrcp.pop %v6282
        %v6351 = vmul.f32 1.0, %v6350
        %v6352 = vrcp.pop %v6283
        %v6353 = vmul.f32 1.0, %v6352
        %v6354 = vrcp.pop %v6284
        %v6355 = vmul.f32 1.0, %v6354
        %v6356 = vrcp.pop %v6285
        %v6357 = vmul.f32 1.0, %v6356
        %v6358 = vrcp.pop %v6286
        %v6359 = vmul.f32 1.0, %v6358
        %v6360 = vrcp.pop %v6287
        %v6361 = vmul.f32 1.0, %v6360
        %v6362 = vrcp.pop %v6288
        %v6363 = vmul.f32 1.0, %v6362
        %v6364 = vrcp.pop %v6289
        %v6365 = vmul.f32 1.0, %v6364
        %v6366 = vrcp.pop %v6290
        %v6367 = vmul.f32 1.0, %v6366
        %v6368 = vrcp.pop %v6291
        %v6369 = vmul.f32 1.0, %v6368
        %v6370 = vrcp.pop %v6292
        %v6371 = vmul.f32 1.0, %v6370
        %v6372 = vrcp.pop %v6293
        %v6373 = vmul.f32 1.0, %v6372
        %v6374 = vrcp.pop %v6294
        %v6375 = vmul.f32 1.0, %v6374
        %v6376 = vrcp.pop %v6295
        %v6377 = vmul.f32 1.0, %v6376
        %v6378 = vrcp.pop %v6296
        %v6379 = vmul.f32 1.0, %v6378
        %v6380 = vrcp.pop %v6297
        %v6381 = vmul.f32 1.0, %v6380
        %v6382 = vrcp.pop %v6298
        %v6383 = vmul.f32 1.0, %v6382
        %v6384 = vrcp.pop %v6299
        %v6385 = vmul.f32 1.0, %v6384
        %v6386 = vrcp.pop %v6300
        %v6387 = vmul.f32 1.0, %v6386
        %v6388 = vrcp.pop %v6301
        %v6389 = vmul.f32 1.0, %v6388
        %v6390 = vrcp.pop %v6302
        %v6391 = vmul.f32 1.0, %v6390
        %v6392 = vrcp.pop %v6303
        %v6393 = vmul.f32 1.0, %v6392
        %v6394 = vrcp.pop %v6304
        %v6395 = vmul.f32 1.0, %v6394
        %v6396 = vrcp.pop %v6305
        %v6397 = vmul.f32 1.0, %v6396
        %v6398 = vrcp.pop %v6306
        %v6399 = vmul.f32 1.0, %v6398
        %v6400 = vrcp.pop %v6307
        %v6401 = vmul.f32 1.0, %v6400
        %v6402 = vrcp.pop %v6308
        %v6403 = vmul.f32 1.0, %v6402
        %v6404 = vrcp.pop %v6309
        %v6405 = vmul.f32 1.0, %v6404
        %v6406 = vrcp.pop %v6310
        %v6407 = vmul.f32 1.0, %v6406
        %v6408 = vrcp.pop %v6311
        %v6409 = vmul.f32 1.0, %v6408
        %v6410 = vrcp.pop %v6312
        %v6411 = vmul.f32 1.0, %v6410
        %v6412 = vrcp.pop %v6313
        %v6413 = vmul.f32 1.0, %v6412
        %v6414 = vrcp.pop %v6314
        %v6415 = vmul.f32 1.0, %v6414
        %v6416 = vrcp.pop %v6315
        %v6417 = vmul.f32 1.0, %v6416
        %v6418 = vrcp.pop %v6316
        %v6419 = vmul.f32 1.0, %v6418
        %v6420 = vrcp.pop %v6317
        %v6421 = vmul.f32 1.0, %v6420
        %v6422 = vrcp.pop %v6318
        %v6423 = vmul.f32 1.0, %v6422
        %v6424 = vrcp.pop %v6319
        %v6425 = vmul.f32 1.0, %v6424
        %v6426 = vrcp.pop %v6320
        %v6427 = vmul.f32 1.0, %v6426
        %v6428 = vrcp.pop %v6321
        %v6429 = vmul.f32 1.0, %v6428
        %v6430 = vrcp.pop %v6322
        %v6431 = vmul.f32 1.0, %v6430
        %v6432 = vrcp.pop %v6323
        %v6433 = vmul.f32 1.0, %v6432
        %v6434 = vrcp.pop %v6324
        %v6435 = vmul.f32 1.0, %v6434
        %v6436 = vrcp.pop %v6325
        %v6437 = vmul.f32 1.0, %v6436
        %v6438 = vrcp.pop %v6326
        %v6439 = vmul.f32 1.0, %v6438
        %v6440 = vrcp.pop %v6327
        %v6441 = vmul.f32 1.0, %v6440
        %v6442 = vrcp.pop %v6328
        %v6443 = vmul.f32 1.0, %v6442
        %v6444 = vrcp.pop %v6329
        %v6445 = vmul.f32 1.0, %v6444
        %v6446 = vrcp.pop %v6330
        %v6447 = vmul.f32 1.0, %v6446
        %v6448 = vrcp.pop %v6331
        %v6449 = vmul.f32 1.0, %v6448
        %v6450 = vrcp.pop %v6332
        %v6451 = vmul.f32 1.0, %v6450
        %v6452 = vrcp.pop %v6333
        %v6453 = vmul.f32 1.0, %v6452
        %v6454 = vrcp.pop %v6334
        %v6455 = vmul.f32 1.0, %v6454
        %v6456 = vrcp.pop %v6335
        %v6457 = vmul.f32 1.0, %v6456
        %v6458 = vrcp.pop %v6336
        %v6459 = vmul.f32 1.0, %v6458
        %v6460 = vrcp.pop %v6337
        %v6461 = vmul.f32 1.0, %v6460
        %v6462 = vrcp.pop %v6338
        %v6463 = vmul.f32 1.0, %v6462
        %v6464 = vrcp.pop %v6339
        %v6465 = vmul.f32 1.0, %v6464
        %v6466 = vrcp.pop %v6340
        %v6467 = vmul.f32 1.0, %v6466
        %v6468 = vrcp.pop %v6341
        %v6469 = vmul.f32 1.0, %v6468
        %v6470 = vmul.f32 %v5829, %v6343
        %v6471 = vmul.f32 %v5831, %v6345
        %v6472 = vmul.f32 %v5902, %v6347
        %v6473 = vmul.f32 %v5904, %v6349
        %v6474 = vmul.f32 %v5975, %v6351
        %v6475 = vmul.f32 %v5977, %v6353
        %v6476 = vmul.f32 %v6048, %v6355
        %v6477 = vmul.f32 %v6050, %v6357
        %v6478 = vmul.f32 %v5833, %v6359
        %v6479 = vmul.f32 %v5835, %v6361
        %v6480 = vmul.f32 %v5906, %v6363
        %v6481 = vmul.f32 %v5908, %v6365
        %v6482 = vmul.f32 %v5979, %v6367
        %v6483 = vmul.f32 %v5981, %v6369
        %v6484 = vmul.f32 %v6052, %v6371
        %v6485 = vmul.f32 %v6054, %v6373
        %v6486 = vmul.f32 %v5839, %v6375
        %v6487 = vmul.f32 %v5841, %v6377
        %v6488 = vmul.f32 %v5912, %v6379
        %v6489 = vmul.f32 %v5914, %v6381
        %v6490 = vmul.f32 %v5985, %v6383
        %v6491 = vmul.f32 %v5987, %v6385
        %v6492 = vmul.f32 %v6058, %v6387
        %v6493 = vmul.f32 %v6060, %v6389
        %v6494 = vmul.f32 %v5843, %v6391
        %v6495 = vmul.f32 %v5845, %v6393
        %v6496 = vmul.f32 %v5916, %v6395
        %v6497 = vmul.f32 %v5918, %v6397
        %v6498 = vmul.f32 %v5989, %v6399
        %v6499 = vmul.f32 %v5991, %v6401
        %v6500 = vmul.f32 %v6062, %v6403
        %v6501 = vmul.f32 %v6064, %v6405
        %v6502 = vmul.f32 %v5849, %v6407
        %v6503 = vmul.f32 %v5851, %v6409
        %v6504 = vmul.f32 %v5922, %v6411
        %v6505 = vmul.f32 %v5924, %v6413
        %v6506 = vmul.f32 %v5995, %v6415
        %v6507 = vmul.f32 %v5997, %v6417
        %v6508 = vmul.f32 %v6068, %v6419
        %v6509 = vmul.f32 %v6070, %v6421
        %v6510 = vmul.f32 %v5853, %v6423
        %v6511 = vmul.f32 %v5855, %v6425
        %v6512 = vmul.f32 %v5926, %v6427
        %v6513 = vmul.f32 %v5928, %v6429
        %v6514 = vmul.f32 %v5999, %v6431
        %v6515 = vmul.f32 %v6001, %v6433
        %v6516 = vmul.f32 %v6072, %v6435
        %v6517 = vmul.f32 %v6074, %v6437
        %v6518 = vmul.f32 %v5859, %v6439
        %v6519 = vmul.f32 %v5861, %v6441
        %v6520 = vmul.f32 %v5932, %v6443
        %v6521 = vmul.f32 %v5934, %v6445
        %v6522 = vmul.f32 %v6005, %v6447
        %v6523 = vmul.f32 %v6007, %v6449
        %v6524 = vmul.f32 %v6078, %v6451
        %v6525 = vmul.f32 %v6080, %v6453
        %v6526 = vmul.f32 %v5863, %v6455
        %v6527 = vmul.f32 %v5865, %v6457
        %v6528 = vmul.f32 %v5936, %v6459
        %v6529 = vmul.f32 %v5938, %v6461
        %v6530 = vmul.f32 %v6009, %v6463
        %v6531 = vmul.f32 %v6011, %v6465
        %v6532 = vmul.f32 %v6082, %v6467
        %v6533 = vmul.f32 %v6084, %v6469
        %v6534 = vpack.c.bf16 %v6478, %v6470
        %v6535 = vpack.c.bf16 %v6479, %v6471
        %v6536 = vpack.c.bf16 %v6480, %v6472
        %v6537 = vpack.c.bf16 %v6481, %v6473
        %v6538 = vpack.c.bf16 %v6482, %v6474
        %v6539 = vpack.c.bf16 %v6483, %v6475
        %v6540 = vpack.c.bf16 %v6484, %v6476
        %v6541 = vpack.c.bf16 %v6485, %v6477
        %v6542 = vpack.c.bf16 %v6494, %v6486
        %v6543 = vpack.c.bf16 %v6495, %v6487
        %v6544 = vpack.c.bf16 %v6496, %v6488
        %v6545 = vpack.c.bf16 %v6497, %v6489
        %v6546 = vpack.c.bf16 %v6498, %v6490
        %v6547 = vpack.c.bf16 %v6499, %v6491
        %v6548 = vpack.c.bf16 %v6500, %v6492
        %v6549 = vpack.c.bf16 %v6501, %v6493
        %v6550 = vpack.c.bf16 %v6510, %v6502
        %v6551 = vpack.c.bf16 %v6511, %v6503
        %v6552 = vpack.c.bf16 %v6512, %v6504
        %v6553 = vpack.c.bf16 %v6513, %v6505
        %v6554 = vpack.c.bf16 %v6514, %v6506
        %v6555 = vpack.c.bf16 %v6515, %v6507
        %v6556 = vpack.c.bf16 %v6516, %v6508
        %v6557 = vpack.c.bf16 %v6517, %v6509
        %v6558 = vpack.c.bf16 %v6526, %v6518
        %v6559 = vpack.c.bf16 %v6527, %v6519
        %v6560 = vpack.c.bf16 %v6528, %v6520
        %v6561 = vpack.c.bf16 %v6529, %v6521
        %v6562 = vpack.c.bf16 %v6530, %v6522
        %v6563 = vpack.c.bf16 %v6531, %v6523
        %v6564 = vpack.c.bf16 %v6532, %v6524
        %v6565 = vpack.c.bf16 %v6533, %v6525
        %v6566 = vld [vmem:[%s1017] sm:$0xff]
        %v6567 = vld [vmem:[%s1017 + $0x8] sm:$0xff]
        %v6568 = vld [vmem:[%s1017 + $0x10] sm:$0xff]
        %v6569 = vld [vmem:[%s1017 + $0x18] sm:$0xff]
        %v6570 = vld [vmem:[%s1017 + $0x20] sm:$0xff]
        %v6571 = vld [vmem:[%s1017 + $0x28] sm:$0xff]
        %v6572 = vld [vmem:[%s1017 + $0x30] sm:$0xff]
        %v6573 = vld [vmem:[%s1017 + $0x38] sm:$0xff]
        %v6574 = vld [vmem:[%s1017 + $0x40] sm:$0xff]
        %v6575 = vld [vmem:[%s1017 + $0x48] sm:$0xff]
        %v6576 = vld [vmem:[%s1017 + $0x50] sm:$0xff]
        %v6577 = vld [vmem:[%s1017 + $0x58] sm:$0xff]
        %v6578 = vld [vmem:[%s1017 + $0x60] sm:$0xff]
        %v6579 = vld [vmem:[%s1017 + $0x68] sm:$0xff]
        %v6580 = vld [vmem:[%s1017 + $0x70] sm:$0xff]
        %v6581 = vld [vmem:[%s1017 + $0x78] sm:$0xff]
        %v6582 = vld [vmem:[%s1017 + $0x80] sm:$0xff]
        %v6583 = vld [vmem:[%s1017 + $0x88] sm:$0xff]
        %v6584 = vld [vmem:[%s1017 + $0x90] sm:$0xff]
        %v6585 = vld [vmem:[%s1017 + $0x98] sm:$0xff]
        %v6586 = vld [vmem:[%s1017 + $0xa0] sm:$0xff]
        %v6587 = vld [vmem:[%s1017 + $0xa8] sm:$0xff]
        %v6588 = vld [vmem:[%s1017 + $0xb0] sm:$0xff]
        %v6589 = vld [vmem:[%s1017 + $0xb8] sm:$0xff]
        %v6590 = vld [vmem:[%s1017 + $0xc0] sm:$0xff]
        %v6591 = vld [vmem:[%s1017 + $0xc8] sm:$0xff]
        %v6592 = vld [vmem:[%s1017 + $0xd0] sm:$0xff]
        %v6593 = vld [vmem:[%s1017 + $0xd8] sm:$0xff]
        %v6594 = vld [vmem:[%s1017 + $0xe0] sm:$0xff]
        %v6595 = vld [vmem:[%s1017 + $0xe8] sm:$0xff]
        %v6596 = vld [vmem:[%s1017 + $0xf0] sm:$0xff]
        %v6597 = vld [vmem:[%s1017 + $0xf8] sm:$0xff]
        %v6598 = vld [vmem:[%s1017 + $0x100] sm:$0xff]
        %v6599 = vld [vmem:[%s1017 + $0x108] sm:$0xff]
        %v6600 = vld [vmem:[%s1017 + $0x110] sm:$0xff]
        %v6601 = vld [vmem:[%s1017 + $0x118] sm:$0xff]
        %v6602 = vld [vmem:[%s1017 + $0x120] sm:$0xff]
        %v6603 = vld [vmem:[%s1017 + $0x128] sm:$0xff]
        %v6604 = vld [vmem:[%s1017 + $0x130] sm:$0xff]
        %v6605 = vld [vmem:[%s1017 + $0x138] sm:$0xff]
        %v6606 = vld [vmem:[%s1017 + $0x140] sm:$0xff]
        %v6607 = vld [vmem:[%s1017 + $0x148] sm:$0xff]
        %v6608 = vld [vmem:[%s1017 + $0x150] sm:$0xff]
        %v6609 = vld [vmem:[%s1017 + $0x158] sm:$0xff]
        %v6610 = vld [vmem:[%s1017 + $0x160] sm:$0xff]
        %v6611 = vld [vmem:[%s1017 + $0x168] sm:$0xff]
        %v6612 = vld [vmem:[%s1017 + $0x170] sm:$0xff]
        %v6613 = vld [vmem:[%s1017 + $0x178] sm:$0xff]
        %v6614 = vld [vmem:[%s1017 + $0x180] sm:$0xff]
        %v6615 = vld [vmem:[%s1017 + $0x188] sm:$0xff]
        %v6616 = vld [vmem:[%s1017 + $0x190] sm:$0xff]
        %v6617 = vld [vmem:[%s1017 + $0x198] sm:$0xff]
        %v6618 = vld [vmem:[%s1017 + $0x1a0] sm:$0xff]
        %v6619 = vld [vmem:[%s1017 + $0x1a8] sm:$0xff]
        %v6620 = vld [vmem:[%s1017 + $0x1b0] sm:$0xff]
        %v6621 = vld [vmem:[%s1017 + $0x1b8] sm:$0xff]
        %v6622 = vld [vmem:[%s1017 + $0x1c0] sm:$0xff]
        %v6623 = vld [vmem:[%s1017 + $0x1c8] sm:$0xff]
        %v6624 = vld [vmem:[%s1017 + $0x1d0] sm:$0xff]
        %v6625 = vld [vmem:[%s1017 + $0x1d8] sm:$0xff]
        %v6626 = vld [vmem:[%s1017 + $0x1e0] sm:$0xff]
        %v6627 = vld [vmem:[%s1017 + $0x1e8] sm:$0xff]
        %v6628 = vld [vmem:[%s1017 + $0x1f0] sm:$0xff]
        %v6629 = vld [vmem:[%s1017 + $0x1f8] sm:$0xff]
        %v6630 = vld [vmem:[%s1017 + $0x200] sm:$0xff]
        %v6631 = vld [vmem:[%s1017 + $0x208] sm:$0xff]
        %v6632 = vld [vmem:[%s1017 + $0x210] sm:$0xff]
        %v6633 = vld [vmem:[%s1017 + $0x218] sm:$0xff]
        %v6634 = vld [vmem:[%s1017 + $0x220] sm:$0xff]
        %v6635 = vld [vmem:[%s1017 + $0x228] sm:$0xff]
        %v6636 = vld [vmem:[%s1017 + $0x230] sm:$0xff]
        %v6637 = vld [vmem:[%s1017 + $0x238] sm:$0xff]
        %v6638 = vld [vmem:[%s1017 + $0x240] sm:$0xff]
        %v6639 = vld [vmem:[%s1017 + $0x248] sm:$0xff]
        %v6640 = vld [vmem:[%s1017 + $0x250] sm:$0xff]
        %v6641 = vld [vmem:[%s1017 + $0x258] sm:$0xff]
        %v6642 = vld [vmem:[%s1017 + $0x260] sm:$0xff]
        %v6643 = vld [vmem:[%s1017 + $0x268] sm:$0xff]
        %v6644 = vld [vmem:[%s1017 + $0x270] sm:$0xff]
        %v6645 = vld [vmem:[%s1017 + $0x278] sm:$0xff]
        %v6646 = vld [vmem:[%s1017 + $0x280] sm:$0xff]
        %v6647 = vld [vmem:[%s1017 + $0x288] sm:$0xff]
        %v6648 = vld [vmem:[%s1017 + $0x290] sm:$0xff]
        %v6649 = vld [vmem:[%s1017 + $0x298] sm:$0xff]
        %v6650 = vld [vmem:[%s1017 + $0x2a0] sm:$0xff]
        %v6651 = vld [vmem:[%s1017 + $0x2a8] sm:$0xff]
        %v6652 = vld [vmem:[%s1017 + $0x2b0] sm:$0xff]
        %v6653 = vld [vmem:[%s1017 + $0x2b8] sm:$0xff]
        %v6654 = vld [vmem:[%s1017 + $0x2c0] sm:$0xff]
        %v6655 = vld [vmem:[%s1017 + $0x2c8] sm:$0xff]
        %v6656 = vld [vmem:[%s1017 + $0x2d0] sm:$0xff]
        %v6657 = vld [vmem:[%s1017 + $0x2d8] sm:$0xff]
        %v6658 = vld [vmem:[%s1017 + $0x2e0] sm:$0xff]
        %v6659 = vld [vmem:[%s1017 + $0x2e8] sm:$0xff]
        %v6660 = vld [vmem:[%s1017 + $0x2f0] sm:$0xff]
        %v6661 = vld [vmem:[%s1017 + $0x2f8] sm:$0xff]
        %v6662 = vld [vmem:[%s1017 + $0x300] sm:$0xff]
        %v6663 = vld [vmem:[%s1017 + $0x308] sm:$0xff]
        %v6664 = vld [vmem:[%s1017 + $0x310] sm:$0xff]
        %v6665 = vld [vmem:[%s1017 + $0x318] sm:$0xff]
        %v6666 = vld [vmem:[%s1017 + $0x320] sm:$0xff]
        %v6667 = vld [vmem:[%s1017 + $0x328] sm:$0xff]
        %v6668 = vld [vmem:[%s1017 + $0x330] sm:$0xff]
        %v6669 = vld [vmem:[%s1017 + $0x338] sm:$0xff]
        %v6670 = vld [vmem:[%s1017 + $0x340] sm:$0xff]
        %v6671 = vld [vmem:[%s1017 + $0x348] sm:$0xff]
        %v6672 = vld [vmem:[%s1017 + $0x350] sm:$0xff]
        %v6673 = vld [vmem:[%s1017 + $0x358] sm:$0xff]
        %v6674 = vld [vmem:[%s1017 + $0x360] sm:$0xff]
        %v6675 = vld [vmem:[%s1017 + $0x368] sm:$0xff]
        %v6676 = vld [vmem:[%s1017 + $0x370] sm:$0xff]
        %v6677 = vld [vmem:[%s1017 + $0x378] sm:$0xff]
        %v6678 = vld [vmem:[%s1017 + $0x380] sm:$0xff]
        %v6679 = vld [vmem:[%s1017 + $0x388] sm:$0xff]
        %v6680 = vld [vmem:[%s1017 + $0x390] sm:$0xff]
        %v6681 = vld [vmem:[%s1017 + $0x398] sm:$0xff]
        %v6682 = vld [vmem:[%s1017 + $0x3a0] sm:$0xff]
        %v6683 = vld [vmem:[%s1017 + $0x3a8] sm:$0xff]
        %v6684 = vld [vmem:[%s1017 + $0x3b0] sm:$0xff]
        %v6685 = vld [vmem:[%s1017 + $0x3b8] sm:$0xff]
        %v6686 = vld [vmem:[%s1017 + $0x3c0] sm:$0xff]
        %v6687 = vld [vmem:[%s1017 + $0x3c8] sm:$0xff]
        %v6688 = vld [vmem:[%s1017 + $0x3d0] sm:$0xff]
        %v6689 = vld [vmem:[%s1017 + $0x3d8] sm:$0xff]
        %v6690 = vld [vmem:[%s1017 + $0x3e0] sm:$0xff]
        %v6691 = vld [vmem:[%s1017 + $0x3e8] sm:$0xff]
        %v6692 = vld [vmem:[%s1017 + $0x3f0] sm:$0xff]
        %v6693 = vld [vmem:[%s1017 + $0x3f8] sm:$0xff]
        %v6694 = vld [vmem:[%s1159] sm:$0x3]
        %v6696 = vlaneseq
        %v6697 = vshrl.u32 %v6696, 7
        %v6698 = vsub.s32 0, %v6697
        %v6699 = vrot.slane %v6694, %v6698
        %v6700 = vlaneseq
        %v6701 = vshrl.u32 %v6700, 7
        %v6702 = vsub.s32 1, %v6701
        %v6703 = vrot.slane %v6694, %v6702
        %v6834 = vunpack.c.l.b16 %v6566
        %v6835 = vunpack.c.h.b16 %v6566
        %v6836 = vunpack.c.l.b16 %v6567
        %v6837 = vunpack.c.h.b16 %v6567
        %v6838 = vunpack.c.l.b16 %v6568
        %v6839 = vunpack.c.h.b16 %v6568
        %v6840 = vunpack.c.l.b16 %v6569
        %v6841 = vunpack.c.h.b16 %v6569
        %v6842 = vunpack.c.l.b16 %v6570
        %v6843 = vunpack.c.h.b16 %v6570
        %v6844 = vunpack.c.l.b16 %v6571
        %v6845 = vunpack.c.h.b16 %v6571
        %v6846 = vunpack.c.l.b16 %v6572
        %v6847 = vunpack.c.h.b16 %v6572
        %v6848 = vunpack.c.l.b16 %v6573
        %v6849 = vunpack.c.h.b16 %v6573
        %v6850 = vunpack.c.l.b16 %v6574
        %v6851 = vunpack.c.h.b16 %v6574
        %v6852 = vunpack.c.l.b16 %v6575
        %v6853 = vunpack.c.h.b16 %v6575
        %v6854 = vunpack.c.l.b16 %v6576
        %v6855 = vunpack.c.h.b16 %v6576
        %v6856 = vunpack.c.l.b16 %v6577
        %v6857 = vunpack.c.h.b16 %v6577
        %v6858 = vunpack.c.l.b16 %v6578
        %v6859 = vunpack.c.h.b16 %v6578
        %v6860 = vunpack.c.l.b16 %v6579
        %v6861 = vunpack.c.h.b16 %v6579
        %v6862 = vunpack.c.l.b16 %v6580
        %v6863 = vunpack.c.h.b16 %v6580
        %v6864 = vunpack.c.l.b16 %v6581
        %v6865 = vunpack.c.h.b16 %v6581
        %v6866 = vunpack.c.l.b16 %v6582
        %v6867 = vunpack.c.h.b16 %v6582
        %v6868 = vunpack.c.l.b16 %v6583
        %v6869 = vunpack.c.h.b16 %v6583
        %v6870 = vunpack.c.l.b16 %v6584
        %v6871 = vunpack.c.h.b16 %v6584
        %v6872 = vunpack.c.l.b16 %v6585
        %v6873 = vunpack.c.h.b16 %v6585
        %v6874 = vunpack.c.l.b16 %v6586
        %v6875 = vunpack.c.h.b16 %v6586
        %v6876 = vunpack.c.l.b16 %v6587
        %v6877 = vunpack.c.h.b16 %v6587
        %v6878 = vunpack.c.l.b16 %v6588
        %v6879 = vunpack.c.h.b16 %v6588
        %v6880 = vunpack.c.l.b16 %v6589
        %v6881 = vunpack.c.h.b16 %v6589
        %v6882 = vunpack.c.l.b16 %v6590
        %v6883 = vunpack.c.h.b16 %v6590
        %v6884 = vunpack.c.l.b16 %v6591
        %v6885 = vunpack.c.h.b16 %v6591
        %v6886 = vunpack.c.l.b16 %v6592
        %v6887 = vunpack.c.h.b16 %v6592
        %v6888 = vunpack.c.l.b16 %v6593
        %v6889 = vunpack.c.h.b16 %v6593
        %v6890 = vunpack.c.l.b16 %v6594
        %v6891 = vunpack.c.h.b16 %v6594
        %v6892 = vunpack.c.l.b16 %v6595
        %v6893 = vunpack.c.h.b16 %v6595
        %v6894 = vunpack.c.l.b16 %v6596
        %v6895 = vunpack.c.h.b16 %v6596
        %v6896 = vunpack.c.l.b16 %v6597
        %v6897 = vunpack.c.h.b16 %v6597
        %v6898 = vunpack.c.l.b16 %v6598
        %v6899 = vunpack.c.h.b16 %v6598
        %v6900 = vunpack.c.l.b16 %v6599
        %v6901 = vunpack.c.h.b16 %v6599
        %v6902 = vunpack.c.l.b16 %v6600
        %v6903 = vunpack.c.h.b16 %v6600
        %v6904 = vunpack.c.l.b16 %v6601
        %v6905 = vunpack.c.h.b16 %v6601
        %v6906 = vunpack.c.l.b16 %v6602
        %v6907 = vunpack.c.h.b16 %v6602
        %v6908 = vunpack.c.l.b16 %v6603
        %v6909 = vunpack.c.h.b16 %v6603
        %v6910 = vunpack.c.l.b16 %v6604
        %v6911 = vunpack.c.h.b16 %v6604
        %v6912 = vunpack.c.l.b16 %v6605
        %v6913 = vunpack.c.h.b16 %v6605
        %v6914 = vunpack.c.l.b16 %v6606
        %v6915 = vunpack.c.h.b16 %v6606
        %v6916 = vunpack.c.l.b16 %v6607
        %v6917 = vunpack.c.h.b16 %v6607
        %v6918 = vunpack.c.l.b16 %v6608
        %v6919 = vunpack.c.h.b16 %v6608
        %v6920 = vunpack.c.l.b16 %v6609
        %v6921 = vunpack.c.h.b16 %v6609
        %v6922 = vunpack.c.l.b16 %v6610
        %v6923 = vunpack.c.h.b16 %v6610
        %v6924 = vunpack.c.l.b16 %v6611
        %v6925 = vunpack.c.h.b16 %v6611
        %v6926 = vunpack.c.l.b16 %v6612
        %v6927 = vunpack.c.h.b16 %v6612
        %v6928 = vunpack.c.l.b16 %v6613
        %v6929 = vunpack.c.h.b16 %v6613
        %v6930 = vunpack.c.l.b16 %v6614
        %v6931 = vunpack.c.h.b16 %v6614
        %v6932 = vunpack.c.l.b16 %v6615
        %v6933 = vunpack.c.h.b16 %v6615
        %v6934 = vunpack.c.l.b16 %v6616
        %v6935 = vunpack.c.h.b16 %v6616
        %v6936 = vunpack.c.l.b16 %v6617
        %v6937 = vunpack.c.h.b16 %v6617
        %v6938 = vunpack.c.l.b16 %v6618
        %v6939 = vunpack.c.h.b16 %v6618
        %v6940 = vunpack.c.l.b16 %v6619
        %v6941 = vunpack.c.h.b16 %v6619
        %v6942 = vunpack.c.l.b16 %v6620
        %v6943 = vunpack.c.h.b16 %v6620
        %v6944 = vunpack.c.l.b16 %v6621
        %v6945 = vunpack.c.h.b16 %v6621
        %v6946 = vunpack.c.l.b16 %v6622
        %v6947 = vunpack.c.h.b16 %v6622
        %v6948 = vunpack.c.l.b16 %v6623
        %v6949 = vunpack.c.h.b16 %v6623
        %v6950 = vunpack.c.l.b16 %v6624
        %v6951 = vunpack.c.h.b16 %v6624
        %v6952 = vunpack.c.l.b16 %v6625
        %v6953 = vunpack.c.h.b16 %v6625
        %v6954 = vunpack.c.l.b16 %v6626
        %v6955 = vunpack.c.h.b16 %v6626
        %v6956 = vunpack.c.l.b16 %v6627
        %v6957 = vunpack.c.h.b16 %v6627
        %v6958 = vunpack.c.l.b16 %v6628
        %v6959 = vunpack.c.h.b16 %v6628
        %v6960 = vunpack.c.l.b16 %v6629
        %v6961 = vunpack.c.h.b16 %v6629
        %v6962 = vunpack.c.l.b16 %v6630
        %v6963 = vunpack.c.h.b16 %v6630
        %v6964 = vunpack.c.l.b16 %v6631
        %v6965 = vunpack.c.h.b16 %v6631
        %v6966 = vunpack.c.l.b16 %v6632
        %v6967 = vunpack.c.h.b16 %v6632
        %v6968 = vunpack.c.l.b16 %v6633
        %v6969 = vunpack.c.h.b16 %v6633
        %v6970 = vunpack.c.l.b16 %v6634
        %v6971 = vunpack.c.h.b16 %v6634
        %v6972 = vunpack.c.l.b16 %v6635
        %v6973 = vunpack.c.h.b16 %v6635
        %v6974 = vunpack.c.l.b16 %v6636
        %v6975 = vunpack.c.h.b16 %v6636
        %v6976 = vunpack.c.l.b16 %v6637
        %v6977 = vunpack.c.h.b16 %v6637
        %v6978 = vunpack.c.l.b16 %v6638
        %v6979 = vunpack.c.h.b16 %v6638
        %v6980 = vunpack.c.l.b16 %v6639
        %v6981 = vunpack.c.h.b16 %v6639
        %v6982 = vunpack.c.l.b16 %v6640
        %v6983 = vunpack.c.h.b16 %v6640
        %v6984 = vunpack.c.l.b16 %v6641
        %v6985 = vunpack.c.h.b16 %v6641
        %v6986 = vunpack.c.l.b16 %v6642
        %v6987 = vunpack.c.h.b16 %v6642
        %v6988 = vunpack.c.l.b16 %v6643
        %v6989 = vunpack.c.h.b16 %v6643
        %v6990 = vunpack.c.l.b16 %v6644
        %v6991 = vunpack.c.h.b16 %v6644
        %v6992 = vunpack.c.l.b16 %v6645
        %v6993 = vunpack.c.h.b16 %v6645
        %v6994 = vunpack.c.l.b16 %v6646
        %v6995 = vunpack.c.h.b16 %v6646
        %v6996 = vunpack.c.l.b16 %v6647
        %v6997 = vunpack.c.h.b16 %v6647
        %v6998 = vunpack.c.l.b16 %v6648
        %v6999 = vunpack.c.h.b16 %v6648
        %v7000 = vunpack.c.l.b16 %v6649
        %v7001 = vunpack.c.h.b16 %v6649
        %v7002 = vunpack.c.l.b16 %v6650
        %v7003 = vunpack.c.h.b16 %v6650
        %v7004 = vunpack.c.l.b16 %v6651
        %v7005 = vunpack.c.h.b16 %v6651
        %v7006 = vunpack.c.l.b16 %v6652
        %v7007 = vunpack.c.h.b16 %v6652
        %v7008 = vunpack.c.l.b16 %v6653
        %v7009 = vunpack.c.h.b16 %v6653
        %v7010 = vunpack.c.l.b16 %v6654
        %v7011 = vunpack.c.h.b16 %v6654
        %v7012 = vunpack.c.l.b16 %v6655
        %v7013 = vunpack.c.h.b16 %v6655
        %v7014 = vunpack.c.l.b16 %v6656
        %v7015 = vunpack.c.h.b16 %v6656
        %v7016 = vunpack.c.l.b16 %v6657
        %v7017 = vunpack.c.h.b16 %v6657
        %v7018 = vunpack.c.l.b16 %v6658
        %v7019 = vunpack.c.h.b16 %v6658
        %v7020 = vunpack.c.l.b16 %v6659
        %v7021 = vunpack.c.h.b16 %v6659
        %v7022 = vunpack.c.l.b16 %v6660
        %v7023 = vunpack.c.h.b16 %v6660
        %v7024 = vunpack.c.l.b16 %v6661
        %v7025 = vunpack.c.h.b16 %v6661
        %v7026 = vunpack.c.l.b16 %v6662
        %v7027 = vunpack.c.h.b16 %v6662
        %v7028 = vunpack.c.l.b16 %v6663
        %v7029 = vunpack.c.h.b16 %v6663
        %v7030 = vunpack.c.l.b16 %v6664
        %v7031 = vunpack.c.h.b16 %v6664
        %v7032 = vunpack.c.l.b16 %v6665
        %v7033 = vunpack.c.h.b16 %v6665
        %v7034 = vunpack.c.l.b16 %v6666
        %v7035 = vunpack.c.h.b16 %v6666
        %v7036 = vunpack.c.l.b16 %v6667
        %v7037 = vunpack.c.h.b16 %v6667
        %v7038 = vunpack.c.l.b16 %v6668
        %v7039 = vunpack.c.h.b16 %v6668
        %v7040 = vunpack.c.l.b16 %v6669
        %v7041 = vunpack.c.h.b16 %v6669
        %v7042 = vunpack.c.l.b16 %v6670
        %v7043 = vunpack.c.h.b16 %v6670
        %v7044 = vunpack.c.l.b16 %v6671
        %v7045 = vunpack.c.h.b16 %v6671
        %v7046 = vunpack.c.l.b16 %v6672
        %v7047 = vunpack.c.h.b16 %v6672
        %v7048 = vunpack.c.l.b16 %v6673
        %v7049 = vunpack.c.h.b16 %v6673
        %v7050 = vunpack.c.l.b16 %v6674
        %v7051 = vunpack.c.h.b16 %v6674
        %v7052 = vunpack.c.l.b16 %v6675
        %v7053 = vunpack.c.h.b16 %v6675
        %v7054 = vunpack.c.l.b16 %v6676
        %v7055 = vunpack.c.h.b16 %v6676
        %v7056 = vunpack.c.l.b16 %v6677
        %v7057 = vunpack.c.h.b16 %v6677
        %v7058 = vunpack.c.l.b16 %v6678
        %v7059 = vunpack.c.h.b16 %v6678
        %v7060 = vunpack.c.l.b16 %v6679
        %v7061 = vunpack.c.h.b16 %v6679
        %v7062 = vunpack.c.l.b16 %v6680
        %v7063 = vunpack.c.h.b16 %v6680
        %v7064 = vunpack.c.l.b16 %v6681
        %v7065 = vunpack.c.h.b16 %v6681
        %v7066 = vunpack.c.l.b16 %v6682
        %v7067 = vunpack.c.h.b16 %v6682
        %v7068 = vunpack.c.l.b16 %v6683
        %v7069 = vunpack.c.h.b16 %v6683
        %v7070 = vunpack.c.l.b16 %v6684
        %v7071 = vunpack.c.h.b16 %v6684
        %v7072 = vunpack.c.l.b16 %v6685
        %v7073 = vunpack.c.h.b16 %v6685
        %v7074 = vunpack.c.l.b16 %v6686
        %v7075 = vunpack.c.h.b16 %v6686
        %v7076 = vunpack.c.l.b16 %v6687
        %v7077 = vunpack.c.h.b16 %v6687
        %v7078 = vunpack.c.l.b16 %v6688
        %v7079 = vunpack.c.h.b16 %v6688
        %v7080 = vunpack.c.l.b16 %v6689
        %v7081 = vunpack.c.h.b16 %v6689
        %v7082 = vunpack.c.l.b16 %v6690
        %v7083 = vunpack.c.h.b16 %v6690
        %v7084 = vunpack.c.l.b16 %v6691
        %v7085 = vunpack.c.h.b16 %v6691
        %v7086 = vunpack.c.l.b16 %v6692
        %v7087 = vunpack.c.h.b16 %v6692
        %v7088 = vunpack.c.l.b16 %v6693
        %v7089 = vunpack.c.h.b16 %v6693
        %v7090 = vpack.c.b16 %v6836, %v6834
        %v7091 = vpack.c.b16 %v6837, %v6835
        %v7092 = vpack.c.b16 %v6840, %v6838
        %v7093 = vpack.c.b16 %v6841, %v6839
        %v7094 = vpack.c.b16 %v6844, %v6842
        %v7095 = vpack.c.b16 %v6845, %v6843
        %v7096 = vpack.c.b16 %v6848, %v6846
        %v7097 = vpack.c.b16 %v6849, %v6847
        %v7098 = vpack.c.b16 %v6852, %v6850
        %v7099 = vpack.c.b16 %v6853, %v6851
        %v7100 = vpack.c.b16 %v6856, %v6854
        %v7101 = vpack.c.b16 %v6857, %v6855
        %v7102 = vpack.c.b16 %v6860, %v6858
        %v7103 = vpack.c.b16 %v6861, %v6859
        %v7104 = vpack.c.b16 %v6864, %v6862
        %v7105 = vpack.c.b16 %v6865, %v6863
        %v7106 = vpack.c.b16 %v6868, %v6866
        %v7107 = vpack.c.b16 %v6869, %v6867
        %v7108 = vpack.c.b16 %v6872, %v6870
        %v7109 = vpack.c.b16 %v6873, %v6871
        %v7110 = vpack.c.b16 %v6876, %v6874
        %v7111 = vpack.c.b16 %v6877, %v6875
        %v7112 = vpack.c.b16 %v6880, %v6878
        %v7113 = vpack.c.b16 %v6881, %v6879
        %v7114 = vpack.c.b16 %v6884, %v6882
        %v7115 = vpack.c.b16 %v6885, %v6883
        %v7116 = vpack.c.b16 %v6888, %v6886
        %v7117 = vpack.c.b16 %v6889, %v6887
        %v7118 = vpack.c.b16 %v6892, %v6890
        %v7119 = vpack.c.b16 %v6893, %v6891
        %v7120 = vpack.c.b16 %v6896, %v6894
        %v7121 = vpack.c.b16 %v6897, %v6895
        %v7122 = vpack.c.b16 %v6900, %v6898
        %v7123 = vpack.c.b16 %v6901, %v6899
        %v7124 = vpack.c.b16 %v6904, %v6902
        %v7125 = vpack.c.b16 %v6905, %v6903
        %v7126 = vpack.c.b16 %v6908, %v6906
        %v7127 = vpack.c.b16 %v6909, %v6907
        %v7128 = vpack.c.b16 %v6912, %v6910
        %v7129 = vpack.c.b16 %v6913, %v6911
        %v7130 = vpack.c.b16 %v6916, %v6914
        %v7131 = vpack.c.b16 %v6917, %v6915
        %v7132 = vpack.c.b16 %v6920, %v6918
        %v7133 = vpack.c.b16 %v6921, %v6919
        %v7134 = vpack.c.b16 %v6924, %v6922
        %v7135 = vpack.c.b16 %v6925, %v6923
        %v7136 = vpack.c.b16 %v6928, %v6926
        %v7137 = vpack.c.b16 %v6929, %v6927
        %v7138 = vpack.c.b16 %v6932, %v6930
        %v7139 = vpack.c.b16 %v6933, %v6931
        %v7140 = vpack.c.b16 %v6936, %v6934
        %v7141 = vpack.c.b16 %v6937, %v6935
        %v7142 = vpack.c.b16 %v6940, %v6938
        %v7143 = vpack.c.b16 %v6941, %v6939
        %v7144 = vpack.c.b16 %v6944, %v6942
        %v7145 = vpack.c.b16 %v6945, %v6943
        %v7146 = vpack.c.b16 %v6948, %v6946
        %v7147 = vpack.c.b16 %v6949, %v6947
        %v7148 = vpack.c.b16 %v6952, %v6950
        %v7149 = vpack.c.b16 %v6953, %v6951
        %v7150 = vpack.c.b16 %v6956, %v6954
        %v7151 = vpack.c.b16 %v6957, %v6955
        %v7152 = vpack.c.b16 %v6960, %v6958
        %v7153 = vpack.c.b16 %v6961, %v6959
        %v7154 = vpack.c.b16 %v6964, %v6962
        %v7155 = vpack.c.b16 %v6965, %v6963
        %v7156 = vpack.c.b16 %v6968, %v6966
        %v7157 = vpack.c.b16 %v6969, %v6967
        %v7158 = vpack.c.b16 %v6972, %v6970
        %v7159 = vpack.c.b16 %v6973, %v6971
        %v7160 = vpack.c.b16 %v6976, %v6974
        %v7161 = vpack.c.b16 %v6977, %v6975
        %v7162 = vpack.c.b16 %v6980, %v6978
        %v7163 = vpack.c.b16 %v6981, %v6979
        %v7164 = vpack.c.b16 %v6984, %v6982
        %v7165 = vpack.c.b16 %v6985, %v6983
        %v7166 = vpack.c.b16 %v6988, %v6986
        %v7167 = vpack.c.b16 %v6989, %v6987
        %v7168 = vpack.c.b16 %v6992, %v6990
        %v7169 = vpack.c.b16 %v6993, %v6991
        %v7170 = vpack.c.b16 %v6996, %v6994
        %v7171 = vpack.c.b16 %v6997, %v6995
        %v7172 = vpack.c.b16 %v7000, %v6998
        %v7173 = vpack.c.b16 %v7001, %v6999
        %v7174 = vpack.c.b16 %v7004, %v7002
        %v7175 = vpack.c.b16 %v7005, %v7003
        %v7176 = vpack.c.b16 %v7008, %v7006
        %v7177 = vpack.c.b16 %v7009, %v7007
        %v7178 = vpack.c.b16 %v7012, %v7010
        %v7179 = vpack.c.b16 %v7013, %v7011
        %v7180 = vpack.c.b16 %v7016, %v7014
        %v7181 = vpack.c.b16 %v7017, %v7015
        %v7182 = vpack.c.b16 %v7020, %v7018
        %v7183 = vpack.c.b16 %v7021, %v7019
        %v7184 = vpack.c.b16 %v7024, %v7022
        %v7185 = vpack.c.b16 %v7025, %v7023
        %v7186 = vpack.c.b16 %v7028, %v7026
        %v7187 = vpack.c.b16 %v7029, %v7027
        %v7188 = vpack.c.b16 %v7032, %v7030
        %v7189 = vpack.c.b16 %v7033, %v7031
        %v7190 = vpack.c.b16 %v7036, %v7034
        %v7191 = vpack.c.b16 %v7037, %v7035
        %v7192 = vpack.c.b16 %v7040, %v7038
        %v7193 = vpack.c.b16 %v7041, %v7039
        %v7194 = vpack.c.b16 %v7044, %v7042
        %v7195 = vpack.c.b16 %v7045, %v7043
        %v7196 = vpack.c.b16 %v7048, %v7046
        %v7197 = vpack.c.b16 %v7049, %v7047
        %v7198 = vpack.c.b16 %v7052, %v7050
        %v7199 = vpack.c.b16 %v7053, %v7051
        %v7200 = vpack.c.b16 %v7056, %v7054
        %v7201 = vpack.c.b16 %v7057, %v7055
        %v7202 = vpack.c.b16 %v7060, %v7058
        %v7203 = vpack.c.b16 %v7061, %v7059
        %v7204 = vpack.c.b16 %v7064, %v7062
        %v7205 = vpack.c.b16 %v7065, %v7063
        %v7206 = vpack.c.b16 %v7068, %v7066
        %v7207 = vpack.c.b16 %v7069, %v7067
        %v7208 = vpack.c.b16 %v7072, %v7070
        %v7209 = vpack.c.b16 %v7073, %v7071
        %v7210 = vpack.c.b16 %v7076, %v7074
        %v7211 = vpack.c.b16 %v7077, %v7075
        %v7212 = vpack.c.b16 %v7080, %v7078
        %v7213 = vpack.c.b16 %v7081, %v7079
        %v7214 = vpack.c.b16 %v7084, %v7082
        %v7215 = vpack.c.b16 %v7085, %v7083
        %v7216 = vpack.c.b16 %v7088, %v7086
        %v7217 = vpack.c.b16 %v7089, %v7087
        %7346 = vmatprep.subr.bf16.mxu0 %v7091
        %7347 = vmatpush1.bf16.msra.mxu0 %v7090
        %7348 = vmatprep.subr.bf16.mxu0 %v7093
        %7349 = vmatpush1.bf16.msra.mxu0 %v7092
        %7350 = vmatprep.subr.bf16.mxu0 %v7095
        %7351 = vmatpush1.bf16.msra.mxu0 %v7094
        %7352 = vmatprep.subr.bf16.mxu0 %v7097
        %7353 = vmatpush1.bf16.msra.mxu0 %v7096
        %7354 = vmatprep.subr.bf16.mxu0 %v7099
        %7355 = vmatpush1.bf16.msra.mxu0 %v7098
        %7356 = vmatprep.subr.bf16.mxu0 %v7101
        %7357 = vmatpush1.bf16.msra.mxu0 %v7100
        %7358 = vmatprep.subr.bf16.mxu0 %v7103
        %7359 = vmatpush1.bf16.msra.mxu0 %v7102
        %7360 = vmatprep.subr.bf16.mxu0 %v7105
        %7361 = vmatpush1.bf16.msra.mxu0 %v7104
        %7362 = vmatprep.subr.bf16.mxu0 %v7107
        %7363 = vmatpush1.bf16.msra.mxu0 %v7106
        %7364 = vmatprep.subr.bf16.mxu0 %v7109
        %7365 = vmatpush1.bf16.msra.mxu0 %v7108
        %7366 = vmatprep.subr.bf16.mxu0 %v7111
        %7367 = vmatpush1.bf16.msra.mxu0 %v7110
        %7368 = vmatprep.subr.bf16.mxu0 %v7113
        %7369 = vmatpush1.bf16.msra.mxu0 %v7112
        %7370 = vmatprep.subr.bf16.mxu0 %v7115
        %7371 = vmatpush1.bf16.msra.mxu0 %v7114
        %7372 = vmatprep.subr.bf16.mxu0 %v7117
        %7373 = vmatpush1.bf16.msra.mxu0 %v7116
        %7374 = vmatprep.subr.bf16.mxu0 %v7119
        %7375 = vmatpush1.bf16.msra.mxu0 %v7118
        %7376 = vmatprep.subr.bf16.mxu0 %v7121
        %7377 = vmatpush1.bf16.msra.mxu0 %v7120
        %7378 = vmatprep.mubr.bf16.mxu0 %v6535
        %7379 = vmatmul.mubr.bf16.gmra.mrb[0].mxu0 %v6534
        %v7380 = vpop.f32.mrb[0].mxu0
        %v7381 = vadd.f32 %v6699, %v7380
        %v7382 = vpop.f32.mrb[0].mxu0
        %v7383 = vadd.f32 %v6703, %v7382
        %v7384 = vpop.f32.mrb[0].mxu0
        %v7385 = vadd.f32 %v6699, %v7384
        %v7386 = vpop.f32.mrb[0].mxu0
        %v7387 = vadd.f32 %v6703, %v7386
        %7388 = vmatprep.mubr.bf16.mxu0 %v6543
        %7389 = vmatmul.mubr.bf16.gmra.mrb[0].mxu0 %v6542
        %v7390 = vpop.f32.mrb[0].mxu0
        %v7391 = vadd.f32 %v6699, %v7390
        %v7392 = vpop.f32.mrb[0].mxu0
        %v7393 = vadd.f32 %v6703, %v7392
        %v7394 = vpop.f32.mrb[0].mxu0
        %v7395 = vadd.f32 %v6699, %v7394
        %v7396 = vpop.f32.mrb[0].mxu0
        %v7397 = vadd.f32 %v6703, %v7396
        %7398 = vmatprep.mubr.bf16.mxu0 %v6551
        %7399 = vmatmul.mubr.bf16.gmra.mrb[0].mxu0 %v6550
        %v7400 = vpop.f32.mrb[0].mxu0
        %v7401 = vadd.f32 %v6699, %v7400
        %v7402 = vpop.f32.mrb[0].mxu0
        %v7403 = vadd.f32 %v6703, %v7402
        %v7404 = vpop.f32.mrb[0].mxu0
        %v7405 = vadd.f32 %v6699, %v7404
        %v7406 = vpop.f32.mrb[0].mxu0
        %v7407 = vadd.f32 %v6703, %v7406
        %7408 = vmatprep.mubr.bf16.mxu0 %v6559
        %7409 = vmatmul.mubr.bf16.gmra.mrb[0].mxu0 %v6558
        %v7410 = vpop.f32.mrb[0].mxu0
        %v7411 = vadd.f32 %v6699, %v7410
        %v7412 = vpop.f32.mrb[0].mxu0
        %v7413 = vadd.f32 %v6703, %v7412
        %v7414 = vpop.f32.mrb[0].mxu0
        %v7415 = vadd.f32 %v6699, %v7414
        %v7416 = vpop.f32.mrb[0].mxu0
        %v7417 = vadd.f32 %v6703, %v7416
        %7418 = vdwg.mxu0
        %7419 = vmatprep.subr.bf16.mxu0 %v7123
        %7420 = vmatpush1.bf16.msra.mxu0 %v7122
        %7421 = vmatprep.subr.bf16.mxu0 %v7125
        %7422 = vmatpush1.bf16.msra.mxu0 %v7124
        %7423 = vmatprep.subr.bf16.mxu0 %v7127
        %7424 = vmatpush1.bf16.msra.mxu0 %v7126
        %7425 = vmatprep.subr.bf16.mxu0 %v7129
        %7426 = vmatpush1.bf16.msra.mxu0 %v7128
        %7427 = vmatprep.subr.bf16.mxu0 %v7131
        %7428 = vmatpush1.bf16.msra.mxu0 %v7130
        %7429 = vmatprep.subr.bf16.mxu0 %v7133
        %7430 = vmatpush1.bf16.msra.mxu0 %v7132
        %7431 = vmatprep.subr.bf16.mxu0 %v7135
        %7432 = vmatpush1.bf16.msra.mxu0 %v7134
        %7433 = vmatprep.subr.bf16.mxu0 %v7137
        %7434 = vmatpush1.bf16.msra.mxu0 %v7136
        %7435 = vmatprep.subr.bf16.mxu0 %v7139
        %7436 = vmatpush1.bf16.msra.mxu0 %v7138
        %7437 = vmatprep.subr.bf16.mxu0 %v7141
        %7438 = vmatpush1.bf16.msra.mxu0 %v7140
        %7439 = vmatprep.subr.bf16.mxu0 %v7143
        %7440 = vmatpush1.bf16.msra.mxu0 %v7142
        %7441 = vmatprep.subr.bf16.mxu0 %v7145
        %7442 = vmatpush1.bf16.msra.mxu0 %v7144
        %7443 = vmatprep.subr.bf16.mxu0 %v7147
        %7444 = vmatpush1.bf16.msra.mxu0 %v7146
        %7445 = vmatprep.subr.bf16.mxu0 %v7149
        %7446 = vmatpush1.bf16.msra.mxu0 %v7148
        %7447 = vmatprep.subr.bf16.mxu0 %v7151
        %7448 = vmatpush1.bf16.msra.mxu0 %v7150
        %7449 = vmatprep.subr.bf16.mxu0 %v7153
        %7450 = vmatpush1.bf16.msra.mxu0 %v7152
        %7451 = vmatprep.mubr.bf16.mxu0 %v6537
        %7452 = vmatmul.mubr.bf16.gmra.mrb[0].mxu0 %v6536
        %v7453 = vpop.f32.mrb[0].mxu0
        %v7454 = vadd.f32 %v7381, %v7453
        %v7455 = vpop.f32.mrb[0].mxu0
        %v7456 = vadd.f32 %v7383, %v7455
        %v7457 = vpop.f32.mrb[0].mxu0
        %v7458 = vadd.f32 %v7385, %v7457
        %v7459 = vpop.f32.mrb[0].mxu0
        %v7460 = vadd.f32 %v7387, %v7459
        %7461 = vmatprep.mubr.bf16.mxu0 %v6545
        %7462 = vmatmul.mubr.bf16.gmra.mrb[0].mxu0 %v6544
        %v7463 = vpop.f32.mrb[0].mxu0
        %v7464 = vadd.f32 %v7391, %v7463
        %v7465 = vpop.f32.mrb[0].mxu0
        %v7466 = vadd.f32 %v7393, %v7465
        %v7467 = vpop.f32.mrb[0].mxu0
        %v7468 = vadd.f32 %v7395, %v7467
        %v7469 = vpop.f32.mrb[0].mxu0
        %v7470 = vadd.f32 %v7397, %v7469
        %7471 = vmatprep.mubr.bf16.mxu0 %v6553
        %7472 = vmatmul.mubr.bf16.gmra.mrb[0].mxu0 %v6552
        %v7473 = vpop.f32.mrb[0].mxu0
        %v7474 = vadd.f32 %v7401, %v7473
        %v7475 = vpop.f32.mrb[0].mxu0
        %v7476 = vadd.f32 %v7403, %v7475
        %v7477 = vpop.f32.mrb[0].mxu0
        %v7478 = vadd.f32 %v7405, %v7477
        %v7479 = vpop.f32.mrb[0].mxu0
        %v7480 = vadd.f32 %v7407, %v7479
        %7481 = vmatprep.mubr.bf16.mxu0 %v6561
        %7482 = vmatmul.mubr.bf16.gmra.mrb[0].mxu0 %v6560
        %v7483 = vpop.f32.mrb[0].mxu0
        %v7484 = vadd.f32 %v7411, %v7483
        %v7485 = vpop.f32.mrb[0].mxu0
        %v7486 = vadd.f32 %v7413, %v7485
        %v7487 = vpop.f32.mrb[0].mxu0
        %v7488 = vadd.f32 %v7415, %v7487
        %v7489 = vpop.f32.mrb[0].mxu0
        %v7490 = vadd.f32 %v7417, %v7489
        %7491 = vdwg.mxu0
        %7492 = vmatprep.subr.bf16.mxu0 %v7155
        %7493 = vmatpush1.bf16.msra.mxu0 %v7154
        %7494 = vmatprep.subr.bf16.mxu0 %v7157
        %7495 = vmatpush1.bf16.msra.mxu0 %v7156
        %7496 = vmatprep.subr.bf16.mxu0 %v7159
        %7497 = vmatpush1.bf16.msra.mxu0 %v7158
        %7498 = vmatprep.subr.bf16.mxu0 %v7161
        %7499 = vmatpush1.bf16.msra.mxu0 %v7160
        %7500 = vmatprep.subr.bf16.mxu0 %v7163
        %7501 = vmatpush1.bf16.msra.mxu0 %v7162
        %7502 = vmatprep.subr.bf16.mxu0 %v7165
        %7503 = vmatpush1.bf16.msra.mxu0 %v7164
        %7504 = vmatprep.subr.bf16.mxu0 %v7167
        %7505 = vmatpush1.bf16.msra.mxu0 %v7166
        %7506 = vmatprep.subr.bf16.mxu0 %v7169
        %7507 = vmatpush1.bf16.msra.mxu0 %v7168
        %7508 = vmatprep.subr.bf16.mxu0 %v7171
        %7509 = vmatpush1.bf16.msra.mxu0 %v7170
        %7510 = vmatprep.subr.bf16.mxu0 %v7173
        %7511 = vmatpush1.bf16.msra.mxu0 %v7172
        %7512 = vmatprep.subr.bf16.mxu0 %v7175
        %7513 = vmatpush1.bf16.msra.mxu0 %v7174
        %7514 = vmatprep.subr.bf16.mxu0 %v7177
        %7515 = vmatpush1.bf16.msra.mxu0 %v7176
        %7516 = vmatprep.subr.bf16.mxu0 %v7179
        %7517 = vmatpush1.bf16.msra.mxu0 %v7178
        %7518 = vmatprep.subr.bf16.mxu0 %v7181
        %7519 = vmatpush1.bf16.msra.mxu0 %v7180
        %7520 = vmatprep.subr.bf16.mxu0 %v7183
        %7521 = vmatpush1.bf16.msra.mxu0 %v7182
        %7522 = vmatprep.subr.bf16.mxu0 %v7185
        %7523 = vmatpush1.bf16.msra.mxu0 %v7184
        %7524 = vmatprep.mubr.bf16.mxu0 %v6539
        %7525 = vmatmul.mubr.bf16.gmra.mrb[0].mxu0 %v6538
        %v7526 = vpop.f32.mrb[0].mxu0
        %v7527 = vadd.f32 %v7454, %v7526
        %v7528 = vpop.f32.mrb[0].mxu0
        %v7529 = vadd.f32 %v7456, %v7528
        %v7530 = vpop.f32.mrb[0].mxu0
        %v7531 = vadd.f32 %v7458, %v7530
        %v7532 = vpop.f32.mrb[0].mxu0
        %v7533 = vadd.f32 %v7460, %v7532
        %7534 = vmatprep.mubr.bf16.mxu0 %v6547
        %7535 = vmatmul.mubr.bf16.gmra.mrb[0].mxu0 %v6546
        %v7536 = vpop.f32.mrb[0].mxu0
        %v7537 = vadd.f32 %v7464, %v7536
        %v7538 = vpop.f32.mrb[0].mxu0
        %v7539 = vadd.f32 %v7466, %v7538
        %v7540 = vpop.f32.mrb[0].mxu0
        %v7541 = vadd.f32 %v7468, %v7540
        %v7542 = vpop.f32.mrb[0].mxu0
        %v7543 = vadd.f32 %v7470, %v7542
        %7544 = vmatprep.mubr.bf16.mxu0 %v6555
        %7545 = vmatmul.mubr.bf16.gmra.mrb[0].mxu0 %v6554
        %v7546 = vpop.f32.mrb[0].mxu0
        %v7547 = vadd.f32 %v7474, %v7546
        %v7548 = vpop.f32.mrb[0].mxu0
        %v7549 = vadd.f32 %v7476, %v7548
        %v7550 = vpop.f32.mrb[0].mxu0
        %v7551 = vadd.f32 %v7478, %v7550
        %v7552 = vpop.f32.mrb[0].mxu0
        %v7553 = vadd.f32 %v7480, %v7552
        %7554 = vmatprep.mubr.bf16.mxu0 %v6563
        %7555 = vmatmul.mubr.bf16.gmra.mrb[0].mxu0 %v6562
        %v7556 = vpop.f32.mrb[0].mxu0
        %v7557 = vadd.f32 %v7484, %v7556
        %v7558 = vpop.f32.mrb[0].mxu0
        %v7559 = vadd.f32 %v7486, %v7558
        %v7560 = vpop.f32.mrb[0].mxu0
        %v7561 = vadd.f32 %v7488, %v7560
        %v7562 = vpop.f32.mrb[0].mxu0
        %v7563 = vadd.f32 %v7490, %v7562
        %7564 = vdwg.mxu0
        %7565 = vmatprep.subr.bf16.mxu0 %v7187
        %7566 = vmatpush1.bf16.msra.mxu0 %v7186
        %7567 = vmatprep.subr.bf16.mxu0 %v7189
        %7568 = vmatpush1.bf16.msra.mxu0 %v7188
        %7569 = vmatprep.subr.bf16.mxu0 %v7191
        %7570 = vmatpush1.bf16.msra.mxu0 %v7190
        %7571 = vmatprep.subr.bf16.mxu0 %v7193
        %7572 = vmatpush1.bf16.msra.mxu0 %v7192
        %7573 = vmatprep.subr.bf16.mxu0 %v7195
        %7574 = vmatpush1.bf16.msra.mxu0 %v7194
        %7575 = vmatprep.subr.bf16.mxu0 %v7197
        %7576 = vmatpush1.bf16.msra.mxu0 %v7196
        %7577 = vmatprep.subr.bf16.mxu0 %v7199
        %7578 = vmatpush1.bf16.msra.mxu0 %v7198
        %7579 = vmatprep.subr.bf16.mxu0 %v7201
        %7580 = vmatpush1.bf16.msra.mxu0 %v7200
        %7581 = vmatprep.subr.bf16.mxu0 %v7203
        %7582 = vmatpush1.bf16.msra.mxu0 %v7202
        %7583 = vmatprep.subr.bf16.mxu0 %v7205
        %7584 = vmatpush1.bf16.msra.mxu0 %v7204
        %7585 = vmatprep.subr.bf16.mxu0 %v7207
        %7586 = vmatpush1.bf16.msra.mxu0 %v7206
        %7587 = vmatprep.subr.bf16.mxu0 %v7209
        %7588 = vmatpush1.bf16.msra.mxu0 %v7208
        %7589 = vmatprep.subr.bf16.mxu0 %v7211
        %7590 = vmatpush1.bf16.msra.mxu0 %v7210
        %7591 = vmatprep.subr.bf16.mxu0 %v7213
        %7592 = vmatpush1.bf16.msra.mxu0 %v7212
        %7593 = vmatprep.subr.bf16.mxu0 %v7215
        %7594 = vmatpush1.bf16.msra.mxu0 %v7214
        %7595 = vmatprep.subr.bf16.mxu0 %v7217
        %7596 = vmatpush1.bf16.msra.mxu0 %v7216
        %7597 = vmatprep.mubr.bf16.mxu0 %v6541
        %7598 = vmatmul.mubr.bf16.gmra.mrb[0].mxu0 %v6540
        %v7599 = vpop.f32.mrb[0].mxu0
        %v7600 = vadd.f32 %v7527, %v7599
        %v7601 = vpop.f32.mrb[0].mxu0
        %v7602 = vadd.f32 %v7529, %v7601
        %v7603 = vpop.f32.mrb[0].mxu0
        %v7604 = vadd.f32 %v7531, %v7603
        %v7605 = vpop.f32.mrb[0].mxu0
        %v7606 = vadd.f32 %v7533, %v7605
        %7607 = vmatprep.mubr.bf16.mxu0 %v6549
        %7608 = vmatmul.mubr.bf16.gmra.mrb[0].mxu0 %v6548
        %v7609 = vpop.f32.mrb[0].mxu0
        %v7610 = vadd.f32 %v7537, %v7609
        %v7611 = vpop.f32.mrb[0].mxu0
        %v7612 = vadd.f32 %v7539, %v7611
        %v7613 = vpop.f32.mrb[0].mxu0
        %v7614 = vadd.f32 %v7541, %v7613
        %v7615 = vpop.f32.mrb[0].mxu0
        %v7616 = vadd.f32 %v7543, %v7615
        %7617 = vmatprep.mubr.bf16.mxu0 %v6557
        %7618 = vmatmul.mubr.bf16.gmra.mrb[0].mxu0 %v6556
        %v7619 = vpop.f32.mrb[0].mxu0
        %v7620 = vadd.f32 %v7547, %v7619
        %v7621 = vpop.f32.mrb[0].mxu0
        %v7622 = vadd.f32 %v7549, %v7621
        %v7623 = vpop.f32.mrb[0].mxu0
        %v7624 = vadd.f32 %v7551, %v7623
        %v7625 = vpop.f32.mrb[0].mxu0
        %v7626 = vadd.f32 %v7553, %v7625
        %7627 = vmatprep.mubr.bf16.mxu0 %v6565
        %7628 = vmatmul.mubr.bf16.gmra.mrb[0].mxu0 %v6564
        %v7629 = vpop.f32.mrb[0].mxu0
        %v7630 = vadd.f32 %v7557, %v7629
        %v7631 = vpop.f32.mrb[0].mxu0
        %v7632 = vadd.f32 %v7559, %v7631
        %v7633 = vpop.f32.mrb[0].mxu0
        %v7634 = vadd.f32 %v7561, %v7633
        %v7635 = vpop.f32.mrb[0].mxu0
        %v7636 = vadd.f32 %v7563, %v7635
        %7637 = vdwg.mxu0
        %v7638 = vadd.f32 %v4776, %v7600
        %v7639 = vadd.f32 %v4777, %v7602
        %v7640 = vadd.f32 %v4778, %v7604
        %v7641 = vadd.f32 %v4779, %v7606
        %v7642 = vadd.f32 %v4780, %v7610
        %v7643 = vadd.f32 %v4781, %v7612
        %v7644 = vadd.f32 %v4782, %v7614
        %v7645 = vadd.f32 %v4783, %v7616
        %v7646 = vadd.f32 %v4784, %v7620
        %v7647 = vadd.f32 %v4785, %v7622
        %v7648 = vadd.f32 %v4786, %v7624
        %v7649 = vadd.f32 %v4787, %v7626
        %v7650 = vadd.f32 %v4788, %v7630
        %v7651 = vadd.f32 %v4789, %v7632
        %v7652 = vadd.f32 %v4790, %v7634
        %v7653 = vadd.f32 %v4791, %v7636
        %7654 = vst [vmem:[#allocation2] sm:$0xff] %v7638
        %7655 = vst [vmem:[#allocation2 + $0x8] sm:$0xff] %v7639
        %7656 = vst [vmem:[#allocation2 + $0x10] sm:$0xff] %v7640
        %7657 = vst [vmem:[#allocation2 + $0x18] sm:$0xff] %v7641
        %7658 = vst [vmem:[#allocation2 + $0x20] sm:$0xff] %v7642
        %7659 = vst [vmem:[#allocation2 + $0x28] sm:$0xff] %v7643
        %7660 = vst [vmem:[#allocation2 + $0x30] sm:$0xff] %v7644
        %7661 = vst [vmem:[#allocation2 + $0x38] sm:$0xff] %v7645
        %7662 = vst [vmem:[#allocation2 + $0x40] sm:$0xff] %v7646
        %7663 = vst [vmem:[#allocation2 + $0x48] sm:$0xff] %v7647
        %7664 = vst [vmem:[#allocation2 + $0x50] sm:$0xff] %v7648
        %7665 = vst [vmem:[#allocation2 + $0x58] sm:$0xff] %v7649
        %7666 = vst [vmem:[#allocation2 + $0x60] sm:$0xff] %v7650
        %7667 = vst [vmem:[#allocation2 + $0x68] sm:$0xff] %v7651
        %7668 = vst [vmem:[#allocation2 + $0x70] sm:$0xff] %v7652
        %7669 = vst [vmem:[#allocation2 + $0x78] sm:$0xff] %v7653
        %p7670 = scmp.eq.s32.totalorder %s48, 1
        // Predicated region
        $region173: #{tpu_custom_call.1} parent=111 // pred_check
          %p7671 = pneg %p7670
        $region174: #{tpu_custom_call.1} parent=111 // pred_check_branch
          %7673 = sbr.rel (%p7671) target = $region176
        $region175: #{tpu_custom_call.1} parent=111 // pred_region
          %v7674 = vld [vmem:[%s20] sm:$0x3]
          %v7675 = vld [vmem:[%s21] sm:$0x3]
          %v7692 = vrot.slane %v7640, 7
          %vm7693 = vcmask 1041409
          %v7694 = vsel %vm7693, %v7692, %v7638
          %v7695 = vrot.slane %v7642, 6
          %vm7696 = vcmask 1042434
          %v7697 = vsel %vm7696, %v7695, %v7694
          %v7698 = vrot.slane %v7644, 5
          %vm7699 = vcmask 1043459
          %v7700 = vsel %vm7699, %v7698, %v7697
          %v7701 = vrot.slane %v7646, 4
          %vm7702 = vcmask 1044484
          %v7703 = vsel %vm7702, %v7701, %v7700
          %v7704 = vrot.slane %v7648, 3
          %vm7705 = vcmask 1045509
          %v7706 = vsel %vm7705, %v7704, %v7703
          %v7707 = vrot.slane %v7650, 2
          %vm7708 = vcmask 1046534
          %v7709 = vsel %vm7708, %v7707, %v7706
          %v7710 = vrot.slane %v7652, 1
          %vm7711 = vcmask 1047559
          %v7712 = vsel %vm7711, %v7710, %v7709
          %v7713 = vrot.slane %v7641, 7
          %v7714 = vsel %vm7693, %v7713, %v7639
          %v7715 = vrot.slane %v7643, 6
          %v7716 = vsel %vm7696, %v7715, %v7714
          %v7717 = vrot.slane %v7645, 5
          %v7718 = vsel %vm7699, %v7717, %v7716
          %v7719 = vrot.slane %v7647, 4
          %v7720 = vsel %vm7702, %v7719, %v7718
          %v7721 = vrot.slane %v7649, 3
          %v7722 = vsel %vm7705, %v7721, %v7720
          %v7723 = vrot.slane %v7651, 2
          %v7724 = vsel %vm7708, %v7723, %v7722
          %v7725 = vrot.slane %v7653, 1
          %v7726 = vsel %vm7711, %v7725, %v7724
          %v7729 = vadd.f32 %v7712, %v7726
          %7730 = vadd.xlane.f32.xlu0 %v7729
          %v7731 = vpop.xlane.xlu0 %7730
          %v7732 = vmul.f32 %v7731, %v1751
          %v7734 = vrot.slane %v7732, 1
          %v7735 = vrot.slane %v7732, 2
          %v7736 = vrot.slane %v7732, 3
          %v7737 = vrot.slane %v7732, 4
          %v7738 = vrot.slane %v7732, 5
          %v7739 = vrot.slane %v7732, 6
          %v7740 = vrot.slane %v7732, 7
          %v7749 = vsub.f32 %v7638, %v7732
          %v7750 = vsub.f32 %v7639, %v7732
          %v7751 = vsub.f32 %v7640, %v7734
          %v7752 = vsub.f32 %v7641, %v7734
          %v7753 = vsub.f32 %v7642, %v7735
          %v7754 = vsub.f32 %v7643, %v7735
          %v7755 = vsub.f32 %v7644, %v7736
          %v7756 = vsub.f32 %v7645, %v7736
          %v7757 = vsub.f32 %v7646, %v7737
          %v7758 = vsub.f32 %v7647, %v7737
          %v7759 = vsub.f32 %v7648, %v7738
          %v7760 = vsub.f32 %v7649, %v7738
          %v7761 = vsub.f32 %v7650, %v7739
          %v7762 = vsub.f32 %v7651, %v7739
          %v7763 = vsub.f32 %v7652, %v7740
          %v7764 = vsub.f32 %v7653, %v7740
          %v7765 = vmul.f32 %v7749, %v7749
          %v7766 = vmul.f32 %v7750, %v7750
          %v7767 = vmul.f32 %v7751, %v7751
          %v7768 = vmul.f32 %v7752, %v7752
          %v7769 = vmul.f32 %v7753, %v7753
          %v7770 = vmul.f32 %v7754, %v7754
          %v7771 = vmul.f32 %v7755, %v7755
          %v7772 = vmul.f32 %v7756, %v7756
          %v7773 = vmul.f32 %v7757, %v7757
          %v7774 = vmul.f32 %v7758, %v7758
          %v7775 = vmul.f32 %v7759, %v7759
          %v7776 = vmul.f32 %v7760, %v7760
          %v7777 = vmul.f32 %v7761, %v7761
          %v7778 = vmul.f32 %v7762, %v7762
          %v7779 = vmul.f32 %v7763, %v7763
          %v7780 = vmul.f32 %v7764, %v7764
          %v7797 = vrot.slane %v7767, 7
          %v7798 = vsel %vm7693, %v7797, %v7765
          %v7799 = vrot.slane %v7769, 6
          %v7800 = vsel %vm7696, %v7799, %v7798
          %v7801 = vrot.slane %v7771, 5
          %v7802 = vsel %vm7699, %v7801, %v7800
          %v7803 = vrot.slane %v7773, 4
          %v7804 = vsel %vm7702, %v7803, %v7802
          %v7805 = vrot.slane %v7775, 3
          %v7806 = vsel %vm7705, %v7805, %v7804
          %v7807 = vrot.slane %v7777, 2
          %v7808 = vsel %vm7708, %v7807, %v7806
          %v7809 = vrot.slane %v7779, 1
          %v7810 = vsel %vm7711, %v7809, %v7808
          %v7811 = vrot.slane %v7768, 7
          %v7812 = vsel %vm7693, %v7811, %v7766
          %v7813 = vrot.slane %v7770, 6
          %v7814 = vsel %vm7696, %v7813, %v7812
          %v7815 = vrot.slane %v7772, 5
          %v7816 = vsel %vm7699, %v7815, %v7814
          %v7817 = vrot.slane %v7774, 4
          %v7818 = vsel %vm7702, %v7817, %v7816
          %v7819 = vrot.slane %v7776, 3
          %v7820 = vsel %vm7705, %v7819, %v7818
          %v7821 = vrot.slane %v7778, 2
          %v7822 = vsel %vm7708, %v7821, %v7820
          %v7823 = vrot.slane %v7780, 1
          %v7824 = vsel %vm7711, %v7823, %v7822
          %v7827 = vadd.f32 %v7810, %v7824
          %7828 = vadd.xlane.f32.xlu0 %v7827
          %v7829 = vpop.xlane.xlu0 %7828
          %v7830 = vmul.f32 %v7829, %v1751
          %v7831 = vadd.f32 %v7830, 1e-05
          %v7832 = vrsqrt.pop %v7831
          %v7834 = vrot.slane %v7832, 1
          %v7835 = vrot.slane %v7832, 2
          %v7836 = vrot.slane %v7832, 3
          %v7837 = vrot.slane %v7832, 4
          %v7838 = vrot.slane %v7832, 5
          %v7839 = vrot.slane %v7832, 6
          %v7840 = vrot.slane %v7832, 7
          %v7849 = vmul.f32 %v7749, %v7832
          %v7850 = vmul.f32 %v7750, %v7832
          %v7851 = vmul.f32 %v7751, %v7834
          %v7852 = vmul.f32 %v7752, %v7834
          %v7853 = vmul.f32 %v7753, %v7835
          %v7854 = vmul.f32 %v7754, %v7835
          %v7855 = vmul.f32 %v7755, %v7836
          %v7856 = vmul.f32 %v7756, %v7836
          %v7857 = vmul.f32 %v7757, %v7837
          %v7858 = vmul.f32 %v7758, %v7837
          %v7859 = vmul.f32 %v7759, %v7838
          %v7860 = vmul.f32 %v7760, %v7838
          %v7861 = vmul.f32 %v7761, %v7839
          %v7862 = vmul.f32 %v7762, %v7839
          %v7863 = vmul.f32 %v7763, %v7840
          %v7864 = vmul.f32 %v7764, %v7840
          %v7866 = vlaneseq
          %v7867 = vshrl.u32 %v7866, 7
          %v7868 = vsub.s32 0, %v7867
          %v7869 = vrot.slane %v7674, %v7868
          %v7870 = vlaneseq
          %v7871 = vshrl.u32 %v7870, 7
          %v7872 = vsub.s32 1, %v7871
          %v7873 = vrot.slane %v7674, %v7872
          %v7876 = vmul.f32 %v7849, %v7869
          %v7877 = vmul.f32 %v7850, %v7873
          %v7878 = vmul.f32 %v7851, %v7869
          %v7879 = vmul.f32 %v7852, %v7873
          %v7880 = vmul.f32 %v7853, %v7869
          %v7881 = vmul.f32 %v7854, %v7873
          %v7882 = vmul.f32 %v7855, %v7869
          %v7883 = vmul.f32 %v7856, %v7873
          %v7884 = vmul.f32 %v7857, %v7869
          %v7885 = vmul.f32 %v7858, %v7873
          %v7886 = vmul.f32 %v7859, %v7869
          %v7887 = vmul.f32 %v7860, %v7873
          %v7888 = vmul.f32 %v7861, %v7869
          %v7889 = vmul.f32 %v7862, %v7873
          %v7890 = vmul.f32 %v7863, %v7869
          %v7891 = vmul.f32 %v7864, %v7873
          %v7893 = vlaneseq
          %v7894 = vshrl.u32 %v7893, 7
          %v7895 = vsub.s32 0, %v7894
          %v7896 = vrot.slane %v7675, %v7895
          %v7897 = vlaneseq
          %v7898 = vshrl.u32 %v7897, 7
          %v7899 = vsub.s32 1, %v7898
          %v7900 = vrot.slane %v7675, %v7899
          %v7903 = vadd.f32 %v7876, %v7896
          %v7904 = vadd.f32 %v7877, %v7900
          %v7905 = vadd.f32 %v7878, %v7896
          %v7906 = vadd.f32 %v7879, %v7900
          %v7907 = vadd.f32 %v7880, %v7896
          %v7908 = vadd.f32 %v7881, %v7900
          %v7909 = vadd.f32 %v7882, %v7896
          %v7910 = vadd.f32 %v7883, %v7900
          %v7911 = vadd.f32 %v7884, %v7896
          %v7912 = vadd.f32 %v7885, %v7900
          %v7913 = vadd.f32 %v7886, %v7896
          %v7914 = vadd.f32 %v7887, %v7900
          %v7915 = vadd.f32 %v7888, %v7896
          %v7916 = vadd.f32 %v7889, %v7900
          %v7917 = vadd.f32 %v7890, %v7896
          %v7918 = vadd.f32 %v7891, %v7900
          %v7919 = vpack.c.bf16 %v7903, %v7903
          %v7920 = vpack.c.bf16 %v7904, %v7904
          %v7921 = vpack.c.bf16 %v7905, %v7905
          %v7922 = vpack.c.bf16 %v7906, %v7906
          %v7923 = vpack.c.bf16 %v7907, %v7907
          %v7924 = vpack.c.bf16 %v7908, %v7908
          %v7925 = vpack.c.bf16 %v7909, %v7909
          %v7926 = vpack.c.bf16 %v7910, %v7910
          %v7927 = vpack.c.bf16 %v7911, %v7911
          %v7928 = vpack.c.bf16 %v7912, %v7912
          %v7929 = vpack.c.bf16 %v7913, %v7913
          %v7930 = vpack.c.bf16 %v7914, %v7914
          %v7931 = vpack.c.bf16 %v7915, %v7915
          %v7932 = vpack.c.bf16 %v7916, %v7916
          %v7933 = vpack.c.bf16 %v7917, %v7917
          %v7934 = vpack.c.bf16 %v7918, %v7918
          %v7935 = vld [vmem:[#allocation21] sm:$0xf]
          %v7936 = vld [vmem:[#allocation21 + $0x4] sm:$0xf]
          %v7937 = vld [vmem:[#allocation21 + $0x8] sm:$0xf]
          %v7938 = vld [vmem:[#allocation21 + $0xc] sm:$0xf]
          %v7939 = vld [vmem:[#allocation21 + $0x10] sm:$0xf]
          %v7940 = vld [vmem:[#allocation21 + $0x14] sm:$0xf]
          %v7941 = vld [vmem:[#allocation21 + $0x18] sm:$0xf]
          %v7942 = vld [vmem:[#allocation21 + $0x1c] sm:$0xf]
          %v7943 = vld [vmem:[#allocation21 + $0x20] sm:$0xf]
          %v7944 = vld [vmem:[#allocation21 + $0x24] sm:$0xf]
          %v7945 = vld [vmem:[#allocation21 + $0x28] sm:$0xf]
          %v7946 = vld [vmem:[#allocation21 + $0x2c] sm:$0xf]
          %v7947 = vld [vmem:[#allocation21 + $0x30] sm:$0xf]
          %v7948 = vld [vmem:[#allocation21 + $0x34] sm:$0xf]
          %v7949 = vld [vmem:[#allocation21 + $0x38] sm:$0xf]
          %v7950 = vld [vmem:[#allocation21 + $0x3c] sm:$0xf]
          %v7951 = vld [vmem:[#allocation21 + $0x40] sm:$0xf]
          %v7952 = vld [vmem:[#allocation21 + $0x44] sm:$0xf]
          %v7953 = vld [vmem:[#allocation21 + $0x48] sm:$0xf]
          %v7954 = vld [vmem:[#allocation21 + $0x4c] sm:$0xf]
          %v7955 = vld [vmem:[#allocation21 + $0x50] sm:$0xf]
          %v7956 = vld [vmem:[#allocation21 + $0x54] sm:$0xf]
          %v7957 = vld [vmem:[#allocation21 + $0x58] sm:$0xf]
          %v7958 = vld [vmem:[#allocation21 + $0x5c] sm:$0xf]
          %v7959 = vld [vmem:[#allocation21 + $0x60] sm:$0xf]
          %v7960 = vld [vmem:[#allocation21 + $0x64] sm:$0xf]
          %v7961 = vld [vmem:[#allocation21 + $0x68] sm:$0xf]
          %v7962 = vld [vmem:[#allocation21 + $0x6c] sm:$0xf]
          %v7963 = vld [vmem:[#allocation21 + $0x70] sm:$0xf]
          %v7964 = vld [vmem:[#allocation21 + $0x74] sm:$0xf]
          %v7965 = vld [vmem:[#allocation21 + $0x78] sm:$0xf]
          %v7966 = vld [vmem:[#allocation21 + $0x7c] sm:$0xf]
          %v7983 = vunpack.c.l.b16 %v7919
          %v7984 = vunpack.c.l.b16 %v7920
          %v7985 = vunpack.c.l.b16 %v7921
          %v7986 = vunpack.c.l.b16 %v7922
          %v7987 = vunpack.c.l.b16 %v7923
          %v7988 = vunpack.c.l.b16 %v7924
          %v7989 = vunpack.c.l.b16 %v7925
          %v7990 = vunpack.c.l.b16 %v7926
          %v7991 = vunpack.c.l.b16 %v7927
          %v7992 = vunpack.c.l.b16 %v7928
          %v7993 = vunpack.c.l.b16 %v7929
          %v7994 = vunpack.c.l.b16 %v7930
          %v7995 = vunpack.c.l.b16 %v7931
          %v7996 = vunpack.c.l.b16 %v7932
          %v7997 = vunpack.c.l.b16 %v7933
          %v7998 = vunpack.c.l.b16 %v7934
          %v7999 = vrot.slane %v7985, 7
          %v8000 = vsel %vm7693, %v7999, %v7983
          %v8001 = vrot.slane %v7987, 6
          %v8002 = vsel %vm7696, %v8001, %v8000
          %v8003 = vrot.slane %v7989, 5
          %v8004 = vsel %vm7699, %v8003, %v8002
          %v8005 = vrot.slane %v7991, 4
          %v8006 = vsel %vm7702, %v8005, %v8004
          %v8007 = vrot.slane %v7993, 3
          %v8008 = vsel %vm7705, %v8007, %v8006
          %v8009 = vrot.slane %v7995, 2
          %v8010 = vsel %vm7708, %v8009, %v8008
          %v8011 = vrot.slane %v7997, 1
          %v8012 = vsel %vm7711, %v8011, %v8010
          %v8013 = vrot.slane %v7986, 7
          %v8014 = vsel %vm7693, %v8013, %v7984
          %v8015 = vrot.slane %v7988, 6
          %v8016 = vsel %vm7696, %v8015, %v8014
          %v8017 = vrot.slane %v7990, 5
          %v8018 = vsel %vm7699, %v8017, %v8016
          %v8019 = vrot.slane %v7992, 4
          %v8020 = vsel %vm7702, %v8019, %v8018
          %v8021 = vrot.slane %v7994, 3
          %v8022 = vsel %vm7705, %v8021, %v8020
          %v8023 = vrot.slane %v7996, 2
          %v8024 = vsel %vm7708, %v8023, %v8022
          %v8025 = vrot.slane %v7998, 1
          %v8026 = vsel %vm7711, %v8025, %v8024
          %v8027 = vpack.c.b16 %v8012, %v8012
          %v8028 = vpack.c.b16 %v8026, %v8026
          %v8063 = vunpack.c.l.b16 %v7935
          %v8064 = vunpack.c.l.b16 %v7936
          %v8065 = vunpack.c.l.b16 %v7937
          %v8066 = vunpack.c.l.b16 %v7938
          %v8067 = vunpack.c.l.b16 %v7939
          %v8068 = vunpack.c.l.b16 %v7940
          %v8069 = vunpack.c.l.b16 %v7941
          %v8070 = vunpack.c.l.b16 %v7942
          %v8071 = vunpack.c.l.b16 %v7943
          %v8072 = vunpack.c.l.b16 %v7944
          %v8073 = vunpack.c.l.b16 %v7945
          %v8074 = vunpack.c.l.b16 %v7946
          %v8075 = vunpack.c.l.b16 %v7947
          %v8076 = vunpack.c.l.b16 %v7948
          %v8077 = vunpack.c.l.b16 %v7949
          %v8078 = vunpack.c.l.b16 %v7950
          %v8079 = vunpack.c.l.b16 %v7951
          %v8080 = vunpack.c.l.b16 %v7952
          %v8081 = vunpack.c.l.b16 %v7953
          %v8082 = vunpack.c.l.b16 %v7954
          %v8083 = vunpack.c.l.b16 %v7955
          %v8084 = vunpack.c.l.b16 %v7956
          %v8085 = vunpack.c.l.b16 %v7957
          %v8086 = vunpack.c.l.b16 %v7958
          %v8087 = vunpack.c.l.b16 %v7959
          %v8088 = vunpack.c.l.b16 %v7960
          %v8089 = vunpack.c.l.b16 %v7961
          %v8090 = vunpack.c.l.b16 %v7962
          %v8091 = vunpack.c.l.b16 %v7963
          %v8092 = vunpack.c.l.b16 %v7964
          %v8093 = vunpack.c.l.b16 %v7965
          %v8094 = vunpack.c.l.b16 %v7966
          %v8095 = vpack.c.b16 %v8064, %v8063
          %v8096 = vpack.c.b16 %v8066, %v8065
          %v8097 = vpack.c.b16 %v8068, %v8067
          %v8098 = vpack.c.b16 %v8070, %v8069
          %v8099 = vpack.c.b16 %v8072, %v8071
          %v8100 = vpack.c.b16 %v8074, %v8073
          %v8101 = vpack.c.b16 %v8076, %v8075
          %v8102 = vpack.c.b16 %v8078, %v8077
          %v8103 = vpack.c.b16 %v8080, %v8079
          %v8104 = vpack.c.b16 %v8082, %v8081
          %v8105 = vpack.c.b16 %v8084, %v8083
          %v8106 = vpack.c.b16 %v8086, %v8085
          %v8107 = vpack.c.b16 %v8088, %v8087
          %v8108 = vpack.c.b16 %v8090, %v8089
          %v8109 = vpack.c.b16 %v8092, %v8091
          %v8110 = vpack.c.b16 %v8094, %v8093
          %8127 = vmatprep.subr.bf16.mxu0 0
          %8128 = vmatpush1.bf16.msra.mxu0 %v8095
          %8129 = vmatprep.subr.bf16.mxu0 0
          %8130 = vmatpush1.bf16.msra.mxu0 %v8096
          %8131 = vmatprep.subr.bf16.mxu0 0
          %8132 = vmatpush1.bf16.msra.mxu0 %v8097
          %8133 = vmatprep.subr.bf16.mxu0 0
          %8134 = vmatpush1.bf16.msra.mxu0 %v8098
          %8135 = vmatprep.subr.bf16.mxu0 0
          %8136 = vmatpush1.bf16.msra.mxu0 %v8099
          %8137 = vmatprep.subr.bf16.mxu0 0
          %8138 = vmatpush1.bf16.msra.mxu0 %v8100
          %8139 = vmatprep.subr.bf16.mxu0 0
          %8140 = vmatpush1.bf16.msra.mxu0 %v8101
          %8141 = vmatprep.subr.bf16.mxu0 0
          %8142 = vmatpush1.bf16.msra.mxu0 %v8102
          %8143 = vmatprep.subr.bf16.mxu0 0
          %8144 = vmatpush1.bf16.msra.mxu0 %v8103
          %8145 = vmatprep.subr.bf16.mxu0 0
          %8146 = vmatpush1.bf16.msra.mxu0 %v8104
          %8147 = vmatprep.subr.bf16.mxu0 0
          %8148 = vmatpush1.bf16.msra.mxu0 %v8105
          %8149 = vmatprep.subr.bf16.mxu0 0
          %8150 = vmatpush1.bf16.msra.mxu0 %v8106
          %8151 = vmatprep.subr.bf16.mxu0 0
          %8152 = vmatpush1.bf16.msra.mxu0 %v8107
          %8153 = vmatprep.subr.bf16.mxu0 0
          %8154 = vmatpush1.bf16.msra.mxu0 %v8108
          %8155 = vmatprep.subr.bf16.mxu0 0
          %8156 = vmatpush1.bf16.msra.mxu0 %v8109
          %8157 = vmatprep.subr.bf16.mxu0 0
          %8158 = vmatpush1.bf16.msra.mxu0 %v8110
          %8159 = vmatprep.mubr.bf16.mxu0 %v8028
          %8160 = vmatmul.mubr.bf16.gmra.mrb[0].mxu0 %v8027
          %v8161 = vpop.f32.mrb[0].mxu0
          %v8162 = vadd.f32 0.0, %v8161
          %v8163 = vpop.f32.mrb[0].mxu0
          %v8164 = vpop.f32.mrb[0].mxu0
          %v8165 = vpop.f32.mrb[0].mxu0
          %8166 = vdwg.mxu0
          %v8168 = vcombine.high %v8162, %v8162
          %v8170 = vunpack.c.l.s4 1966171168
          %v8171 = vunpack.c.0.s8 %v8170
          %v8172 = vlaneseq
          %v8173 = vshrl.u32 %v8172, 7
          %v8174 = vsub.s32 %v8171, %v8173
          %v8175 = vrot.slane %v8162, %v8174
          %v8177 = vunpack.c.l.s4 1966171168
          %v8178 = vunpack.c.0.s8 %v8177
          %v8179 = vlaneseq
          %v8180 = vshrl.u32 %v8179, 7
          %v8181 = vsub.s32 %v8178, %v8180
          %v8182 = vrot.slane %v8168, %v8181
          %v8183 = vcombine.high %v8175, %v8175
          %v8184 = vcombine.high %v8182, %v8182
          %v8186 = vunpack.c.l.s4 1966171168
          %v8187 = vunpack.c.0.s8 %v8186
          %v8188 = vlaneseq
          %v8189 = vshrl.u32 %v8188, 7
          %v8190 = vsub.s32 %v8187, %v8189
          %v8191 = vrot.slane %v8175, %v8190
          %v8193 = vunpack.c.l.s4 1966171168
          %v8194 = vunpack.c.0.s8 %v8193
          %v8195 = vlaneseq
          %v8196 = vshrl.u32 %v8195, 7
          %v8197 = vsub.s32 %v8194, %v8196
          %v8198 = vrot.slane %v8182, %v8197
          %v8200 = vunpack.c.l.s4 1966171168
          %v8201 = vunpack.c.0.s8 %v8200
          %v8202 = vlaneseq
          %v8203 = vshrl.u32 %v8202, 7
          %v8204 = vsub.s32 %v8201, %v8203
          %v8205 = vrot.slane %v8183, %v8204
          %v8207 = vunpack.c.l.s4 1966171168
          %v8208 = vunpack.c.0.s8 %v8207
          %v8209 = vlaneseq
          %v8210 = vshrl.u32 %v8209, 7
          %v8211 = vsub.s32 %v8208, %v8210
          %v8212 = vrot.slane %v8184, %v8211
          %v8213 = vcombine.high %v8191, %v8191
          %v8214 = vcombine.high %v8198, %v8198
          %v8215 = vcombine.high %v8205, %v8205
          %v8216 = vcombine.high %v8212, %v8212
          %8225 = vst [vmem:[%s1138] sm:$0x1] %v8191
          %8226 = vst [vmem:[%s1138 + $0x1] sm:$0x1] %v8205
          %8227 = vst [vmem:[%s1138 + $0x2] sm:$0x1] %v8213
          %8228 = vst [vmem:[%s1138 + $0x3] sm:$0x1] %v8215
          %8229 = vst [vmem:[%s1138 + $0x4] sm:$0x1] %v8198
          %8230 = vst [vmem:[%s1138 + $0x5] sm:$0x1] %v8212
          %8231 = vst [vmem:[%s1138 + $0x6] sm:$0x1] %v8214
          %8232 = vst [vmem:[%s1138 + $0x7] sm:$0x1] %v8216
        $region176: #{tpu_custom_call.1} parent=111 // pred_fallthru
          _
        %s8233 = sand.u32 %s611, 1
        %s8234 = scalar_lea.sflag [#allocation5], %s8233
        %s8235 = sand.u32 %s611, 1
        %s8236 = smul.addr %s8235, 8
        %s8237 = scalar_lea.vmem [#allocation22], %s8236
        // Predicated region
        $region177: #{tpu_custom_call.1} parent=111 // pred_check
          %p8238 = pneg %p621
        $region178: #{tpu_custom_call.1} parent=111 // pred_check_branch
          %8240 = sbr.rel (%p8238) target = $region180
        $region179: #{tpu_custom_call.1} parent=111 // pred_region
          %s8241 = smul.u32 8, %s47
          %s8243 = ssub.s32 128, 128
          %8244 = vsyncadd %s8234, %s8243
          %s8245 = smul.addr %s8241, 16
          %s8246 = scalar_lea.hbm %s23, %s8245
          %s8247 = sshll.u32 %s8237, 4
          %s8248 = int_to_ptr.vmem [resolvable:$true] %s8247
          %8253 = dma.vmem_to_hbm [thread:$0]  %s8248, 128, %s8246, %s8234, 16, 16, 1
        $region180: #{tpu_custom_call.1} parent=111 // pred_fallthru
          _
      $region112: #{tpu_custom_call.1} parent=5 // pred_fallthru
        _
      %p8254 = scmp.le.s32.totalorder 2, %s38
      // Predicated region
      $region181: #{tpu_custom_call.1} parent=5 // pred_check
        %p8255 = pneg %p8254
      $region182: #{tpu_custom_call.1} parent=5 // pred_check_branch
        %8257 = sbr.rel (%p8255) target = $region184
      $region183: #{tpu_custom_call.1} parent=5 // pred_region
        %s8258 = ssub.s32 %s38, 2
        // Predicated region
        $region185: #{tpu_custom_call.1} parent=183 // pred_check
          %p8259 = pneg %p627
        $region186: #{tpu_custom_call.1} parent=183 // pred_check_branch
          %8261 = sbr.rel (%p8259) target = $region188
        $region187: #{tpu_custom_call.1} parent=183 // pred_region
          %s8262 = sand.u32 %s612, 1
          %s8263 = scalar_lea.sflag [#allocation5], %s8262
          %s8264 = sand.u32 %s612, 1
          %s8265 = smul.addr %s8264, 8
          %s8266 = scalar_lea.vmem [#allocation22], %s8265
          %8267 = dma.done %s8263, 128
        $region188: #{tpu_custom_call.1} parent=183 // pred_fallthru
          _
      $region184: #{tpu_custom_call.1} parent=5 // pred_fallthru
        _
    $region6: #{tpu_custom_call.1} parent=1 // loop_footer
      %s42 = sadd.s32 1, %s38
    $region7: #{tpu_custom_call.1} parent=1 // loop_footer_branch
      %37 = sbr.rel target = $region3
    $region8: #{tpu_custom_call.1} parent=1 // loop_exit
      _
    %8268 = vsyncpa [#allocation4], 1
    %s8269 = scalar_lea.sflag [#allocation4], 1
    %8270 = vsyncpa %s8269, 1
    %8271 = vsyncpa [#allocation7], 1
    %8272 = vsyncpa [#allocation10], 1
    %8273 = vsyncpa [#allocation13], 1
    %8274 = vsyncpa [#allocation5], 1
    %s8275 = scalar_lea.sflag [#allocation5], 1
    %8276 = vsyncpa %s8275, 1

</llo_original>
